<compile_context>
chip_gen: v7x
topology: tpu7x:2x2x1
jax: 0.10.0
libtpu: 0.0.40
codegen_flags: <defaults>
</compile_context>

<pallas_src>
import functools

import jax
import jax.numpy as jnp
import numpy as np
from jax.experimental import pallas as pl
from jax.experimental.pallas import tpu as pltpu

BN_EPSILON = 1e-5


# ------------------------------------------------------------------ helpers
def _silu(x):
    return x * jax.nn.sigmoid(x)


def _fold_bn(gamma, beta, mean, var):
    scale = gamma / jnp.sqrt(var + BN_EPSILON)
    bias = beta - mean * scale
    return scale, bias


def _vmem_limit_bytes():
    # 128 MiB physical on v5e/v6e -> ~96 MiB scoped; 64 MiB on v7x -> ~48 MiB.
    try:
        cap = int(pltpu.get_tpu_info().vmem_capacity_bytes)
    except Exception:
        cap = 64 * 1024 * 1024
    return max(32 * 1024 * 1024, min(cap * 3 // 4, 96 * 1024 * 1024))


def _params(dims):
    return pltpu.CompilerParams(dimension_semantics=dims,
                                vmem_limit_bytes=_vmem_limit_bytes())


def _pick_tile(total, cap):
    """Largest divisor of `total` <= cap, preferring multiples of 8."""
    if total <= cap:
        return total
    for cand in range(cap, 7, -1):
        if total % cand == 0 and cand % 8 == 0:
            return cand
    for cand in range(cap, 0, -1):
        if total % cand == 0:
            return cand
    # TODO(synk): switch to pl.cdiv grids with masked tail tiles instead of
    # requiring exact divisibility.
    return total


# ------------------------------------------------------------------ kernels
def fused_expand_dw_kernel(*refs, ksize, stride, pad, wside, expand):
    # Fused: expand 1x1 conv (+BN+SiLU) -> padded VMEM scratch -> depthwise KxK
    # conv (+BN+SiLU) -> bf16 output + fused SE global-average pool.
    if expand:
        x_ref, we_ref, be_ref, wd_ref, bd_ref, o_ref, pool_ref, xpad_ref = refs
    else:
        x_ref, wd_ref, bd_ref, o_ref, pool_ref, xpad_ref = refs

    _, H, W, Cin = x_ref.shape
    _, Ho, Wo, C = o_ref.shape
    Hp, Wp, _ = xpad_ref.shape

    # Zero only the padding border (interior is fully overwritten below).
    if pad > 0:
        xpad_ref[0:pad, :, :] = jnp.zeros((pad, Wp, C), jnp.float32)
        xpad_ref[pad + H:Hp, :, :] = jnp.zeros((Hp - pad - H, Wp, C), jnp.float32)
        xpad_ref[pad:pad + H, 0:wside, :] = jnp.zeros((H, wside, C), jnp.float32)
        xpad_ref[pad:pad + H, wside + W:Wp, :] = jnp.zeros(
            (H, Wp - wside - W, C), jnp.float32)

    # Expand 1x1 conv (+ folded BN + SiLU) straight into the padded scratch:
    # the expanded activation never makes an HBM round trip.
    if expand:
        x2 = x_ref[0].reshape(H * W, Cin)                      # bf16
        y = jnp.dot(x2, we_ref[...], preferred_element_type=jnp.float32)
        y = _silu(y + be_ref[...])
        xpad_ref[pad:pad + H, wside:wside + W, :] = y.reshape(H, W, C)
    else:
        xpad_ref[pad:pad + H, wside:wside + W, :] = x_ref[0].astype(jnp.float32)

    wdw = wd_ref[...]                                          # (K*K, C), BN folded

    # TODO(synk): strip-wise vreg accumulation with pltpu.roll-based kw shifts;
    # here one unaligned sublane slice per kw is amortized over all kh taps.
    acc = None
    if stride == 1:
        for kw in range(ksize):
            c0 = wside - pad + kw
            col_slab = xpad_ref[:, c0:c0 + Wo, :]              # (Hp, Wo, C)
            for kh in range(ksize):
                term = col_slab[kh:kh + Ho] * wdw[kh * ksize + kw]
                acc = term if acc is None else acc + term
    else:
        # TODO(synk): stride>1 -> phase-decomposed / strided-store path instead
        # of in-kernel strided slices.
        xfull = xpad_ref[...]
        for kw in range(ksize):
            c0 = wside - pad + kw
            for kh in range(ksize):
                tap = jax.lax.slice(
                    xfull, (kh, c0, 0),
                    (kh + (Ho - 1) * stride + 1, c0 + (Wo - 1) * stride + 1, C),
                    (stride, stride, 1))
                term = tap * wdw[kh * ksize + kw]
                acc = term if acc is None else acc + term

    act = _silu(acc + bd_ref[...])                             # folded-BN bias + SiLU
    o_ref[...] = act[None].astype(o_ref.dtype)                 # bf16 to HBM
    pool_ref[...] = jnp.mean(act, axis=(0, 1), keepdims=True)  # fused SE pool (f32)


def project_se_kernel(dw_ref, pool_ref, w1_ref, b1_ref, w2_ref, b2_ref,
                      wpt_ref, bp_ref, *rest, residual):
    # Fused SE gate + gated projection 1x1 conv (+BN) + optional residual,
    # output written lane-dense in NCHW layout (HW on the 128-lane axis).
    if residual:
        xres_ref, o_ref = rest
    else:
        (o_ref,) = rest

    # SE FC path, recomputed per tile (negligible FLOPs; avoids a separate
    # pallas_call and an HBM round trip of the gate).
    m = pool_ref[0]                                            # (1, Cexp) f32
    h = _silu(jnp.dot(m, w1_ref[...], preferred_element_type=jnp.float32)
              + b1_ref[...])
    g = jax.nn.sigmoid(jnp.dot(h, w2_ref[...], preferred_element_type=jnp.float32)
                       + b2_ref[...])                          # (1, Cexp)

    # Fold the gate into the pre-transposed projection weight:
    # (a * g) @ W == a @ (g[:,None] * W);  wpt is (Cout, Cexp) so g broadcasts rows.
    wgt = (wpt_ref[...] * g).astype(jnp.bfloat16)              # (Cout, Cexp)

    # (Cout, TR) = wgt @ dw^T  -- NT matmul on the MXU; result is already NCHW.
    zt = jax.lax.dot_general(wgt, dw_ref[0], (((1,), (1,)), ((), ())),
                             preferred_element_type=jnp.float32)
    zt = zt + bp_ref[...]                                      # (Cout, 1) bias
    if residual:
        zt = zt + xres_ref[0]                                  # f32 NCHW residual
    o_ref[...] = zt[None]


# ------------------------------------------------------------------ parameters
def init_params(key, in_channels, out_channels, kernel_size, expand_ratio, se_ratio):
    cexp = in_channels * expand_ratio
    csq = int(in_channels * se_ratio)
    ks = jax.random.split(key, 12)

    def bn(k, c):
        k1, k2, k3, k4 = jax.random.split(k, 4)
        gamma = 1.0 + 0.1 * jax.random.normal(k1, (c,), jnp.float32)
        beta = 0.1 * jax.random.normal(k2, (c,), jnp.float32)
        mean = 0.1 * jax.random.normal(k3, (c,), jnp.float32)
        var = 1.0 + 0.1 * jax.random.uniform(k4, (c,), jnp.float32)
        return gamma, beta, mean, var

    p = {}
    if expand_ratio != 1:
        p["exp_w"] = 0.1 * jax.random.normal(ks[0], (in_channels, cexp), jnp.float32)
        p["exp_bn"] = bn(ks[1], cexp)
    p["dw_w"] = 0.1 * jax.random.normal(ks[2], (kernel_size * kernel_size, cexp),
                                        jnp.float32)
    p["dw_bn"] = bn(ks[3], cexp)
    p["se_w1"] = 0.1 * jax.random.normal(ks[4], (cexp, csq), jnp.float32)
    p["se_b1"] = 0.1 * jax.random.normal(ks[5], (1, csq), jnp.float32)
    p["se_w2"] = 0.1 * jax.random.normal(ks[6], (csq, cexp), jnp.float32)
    p["se_b2"] = 0.1 * jax.random.normal(ks[7], (1, cexp), jnp.float32)
    p["proj_w"] = 0.1 * jax.random.normal(ks[8], (cexp, out_channels), jnp.float32)
    p["proj_bn"] = bn(ks[9], out_channels)
    return p


# ------------------------------------------------------------------ forward
def mbconv_forward(x_nchw, p, *, in_channels, out_channels, kernel_size, stride,
                   expand_ratio):
    res = (stride == 1) and (in_channels == out_channels)
    expand = expand_ratio != 1
    N, Cin, H, W = x_nchw.shape
    cexp = Cin * expand_ratio
    csq = p["se_w1"].shape[1]

    x_nchw = x_nchw.astype(jnp.float32)
    # NCHW -> NHWC; cast to bf16 in the same pass (halves the expand-input DMA).
    x_nhwc = jnp.transpose(x_nchw, (0, 2, 3, 1)).astype(jnp.bfloat16)

    pad = (kernel_size - 1) // 2
    wside = ((pad + 7) // 8) * 8 if pad > 0 else 0   # sublane-aligned interior offset
    Ho = (H + 2 * pad - kernel_size) // stride + 1
    Wo = (W + 2 * pad - kernel_size) // stride + 1

    # ---- fused expand (1x1) + depthwise (KxK) + SE global pool, one image/step ---
    sc, bi = _fold_bn(*p["dw_bn"])
    wd = p["dw_w"] * sc[None, :]                      # BN scale folded
    bd = bi.reshape(1, 1, cexp)

    kern = functools.partial(fused_expand_dw_kernel, ksize=kernel_size,
                             stride=stride, pad=pad, wside=wside, expand=expand)
    inputs = [x_nhwc]
    in_specs = [pl.BlockSpec((1, H, W, Cin), lambda n: (n, 0, 0, 0))]
    if expand:
        sc, bi = _fold_bn(*p["exp_bn"])
        we = (p["exp_w"] * sc[None, :]).astype(jnp.bfloat16)   # BN scale folded
        be = bi[None, :]
        inputs += [we, be]
        in_specs += [pl.BlockSpec((Cin, cexp), lambda n: (0, 0)),
                     pl.BlockSpec((1, cexp), lambda n: (0, 0))]
    inputs += [wd, bd]
    in_specs += [pl.BlockSpec((kernel_size * kernel_size, cexp), lambda n: (0, 0)),
                 pl.BlockSpec((1, 1, cexp), lambda n: (0, 0, 0))]

    # TODO(synk): for very large H*W, tile spatially (grid=(N, Ho//TH) with a
    # (K-1)-row halo) so the per-step VMEM footprint stays bounded on v7x.
    dw, pooled = pl.pallas_call(
        kern,
        grid=(N,),
        in_specs=in_specs,
        out_specs=[pl.BlockSpec((1, Ho, Wo, cexp), lambda n: (n, 0, 0, 0)),
                   pl.BlockSpec((1, 1, cexp), lambda n: (n, 0, 0))],
        out_shape=(jax.ShapeDtypeStruct((N, Ho, Wo, cexp), jnp.bfloat16),
                   jax.ShapeDtypeStruct((N, 1, cexp), jnp.float32)),
        # TODO(synk): bf16 padded scratch on v6e/v7x would halve this footprint.
        scratch_shapes=[pltpu.VMEM((H + 2 * pad, W + 2 * wside, cexp), jnp.float32)],
        compiler_params=_params(("parallel",)),
    )(*inputs)

    # ---- fused SE gate + projection 1x1 conv + BN (+ residual), NCHW output ------
    sc, bi = _fold_bn(*p["proj_bn"])
    wpt = (p["proj_w"] * sc[None, :]).T               # (Cout, Cexp), BN scale folded
    bp = bi.reshape(out_channels, 1)

    HW = Ho * Wo
    tr = _pick_tile(HW, 1024)
    dw3 = dw.reshape(N, HW, cexp)

    inputs = [dw3, pooled, p["se_w1"], p["se_b1"], p["se_w2"], p["se_b2"], wpt, bp]
    in_specs = [pl.BlockSpec((1, tr, cexp), lambda n, i: (n, i, 0)),
                pl.BlockSpec((1, 1, cexp), lambda n, i: (n, 0, 0)),
                pl.BlockSpec((cexp, csq), lambda n, i: (0, 0)),
                pl.BlockSpec((1, csq), lambda n, i: (0, 0)),
                pl.BlockSpec((csq, cexp), lambda n, i: (0, 0)),
                pl.BlockSpec((1, cexp), lambda n, i: (0, 0)),
                pl.BlockSpec((out_channels, cexp), lambda n, i: (0, 0)),
                pl.BlockSpec((out_channels, 1), lambda n, i: (0, 0))]
    if res:
        inputs.append(x_nchw.reshape(N, Cin, HW))     # f32 residual, already NCHW
        in_specs.append(pl.BlockSpec((1, Cin, tr), lambda n, i: (n, 0, i)))

    out = pl.pallas_call(
        functools.partial(project_se_kernel, residual=res),
        grid=(N, HW // tr),
        in_specs=in_specs,
        out_specs=pl.BlockSpec((1, out_channels, tr), lambda n, i: (n, 0, i)),
        out_shape=jax.ShapeDtypeStruct((N, out_channels, HW), jnp.float32),
        compiler_params=_params(("parallel", "parallel")),
    )(*inputs)
    return out.reshape(N, out_channels, Ho, Wo)       # already NCHW, no transpose


# ------------------------------------------------------------------ pure-JAX reference
def mbconv_reference(x_nchw, p, *, in_channels, out_channels, kernel_size, stride,
                     expand_ratio):
    res = (stride == 1) and (in_channels == out_channels)
    x_nchw = x_nchw.astype(jnp.float32)
    x = jnp.transpose(x_nchw, (0, 2, 3, 1))
    cexp = in_channels * expand_ratio
    if expand_ratio != 1:
        sc, bi = _fold_bn(*p["exp_bn"])
        w = (p["exp_w"] * sc[None, :]).astype(jnp.bfloat16)
        y = jnp.einsum("nhwc,cd->nhwd", x.astype(jnp.bfloat16), w,
                       preferred_element_type=jnp.float32) + bi
        y = _silu(y)
    else:
        y = x.astype(jnp.bfloat16).astype(jnp.float32)
    pad = (kernel_size - 1) // 2
    sc, bi = _fold_bn(*p["dw_bn"])
    wk = (p["dw_w"] * sc[None, :]).reshape(kernel_size, kernel_size, 1, cexp)
    dw = jax.lax.conv_general_dilated(
        y, wk, window_strides=(stride, stride),
        padding=((pad, pad), (pad, pad)),
        dimension_numbers=("NHWC", "HWIO", "NHWC"),
        feature_group_count=cexp)
    act = _silu(dw + bi)
    m = jnp.mean(act, axis=(1, 2))
    h = _silu(m @ p["se_w1"] + p["se_b1"])
    g = jax.nn.sigmoid(h @ p["se_w2"] + p["se_b2"])
    sc, bi = _fold_bn(*p["proj_bn"])
    wp = p["proj_w"] * sc[None, :]
    wg = (g[:, :, None] * wp[None]).astype(jnp.bfloat16)
    out = jnp.einsum("nhwc,ncd->nhwd", act.astype(jnp.bfloat16), wg,
                     preferred_element_type=jnp.float32) + bi
    if res:
        out = out + x
    return jnp.transpose(out, (0, 3, 1, 2))


# ------------------------------------------------------------------ main
if __name__ == "__main__":
    in_channels, out_channels = 8, 8
    kernel_size, stride = 3, 1
    expand_ratio, se_ratio = 4, 0.25
    N, H, W = 2, 32, 32

    key = jax.random.PRNGKey(0)
    kx, kp = jax.random.split(key)
    x = jax.random.normal(kx, (N, in_channels, H, W), jnp.float32)     # NCHW input
    params = init_params(kp, in_channels, out_channels, kernel_size,
                         expand_ratio, se_ratio)

    cfg = dict(in_channels=in_channels, out_channels=out_channels,
               kernel_size=kernel_size, stride=stride, expand_ratio=expand_ratio)

    fwd = jax.jit(functools.partial(mbconv_forward, **cfg))
    out = jax.block_until_ready(fwd(x, params))

    ref = jax.block_until_ready(mbconv_reference(x, params, **cfg))
    np.testing.assert_allclose(np.asarray(out), np.asarray(ref),
                               atol=2e-2, rtol=2e-2)
    assert out.shape == (N, out_channels, H, W)

    print("KERNEL_OK")
</pallas_src>

<mosaic_0001>
module attributes {stable_mosaic.version = 11 : i64} {
  func.func @fused_expand_dw_kernel(%arg0: i32, %arg1: memref<1x32x32x8xbf16, #tpu.memory_space<vmem>>, %arg2: memref<8x32xbf16, #tpu.memory_space<vmem>>, %arg3: memref<1x32xf32, #tpu.memory_space<vmem>>, %arg4: memref<9x32xf32, #tpu.memory_space<vmem>>, %arg5: memref<1x1x32xf32, #tpu.memory_space<vmem>>, %arg6: memref<1x32x32x32xbf16, #tpu.memory_space<vmem>>, %arg7: memref<1x1x32xf32, #tpu.memory_space<vmem>>, %arg8: memref<34x48x32xf32, #tpu.memory_space<vmem>>) attributes {dimension_semantics = [#tpu.dimension_semantics<parallel>], iteration_bounds = array<i64: 2>, scalar_prefetch = 0 : i64, scratch_operands = 1 : i64, tpu.core_type = #tpu.core_type<tc>, window_params = [{transform_indices = @transform_0, window_bounds = array<i64: 1, 32, 32, 8>}, {pipeline_mode = #tpu.pipeline_mode<synchronous>, transform_indices = @transform_1, window_bounds = array<i64: 8, 32>}, {pipeline_mode = #tpu.pipeline_mode<synchronous>, transform_indices = @transform_2, window_bounds = array<i64: 1, 32>}, {pipeline_mode = #tpu.pipeline_mode<synchronous>, transform_indices = @transform_3, window_bounds = array<i64: 9, 32>}, {pipeline_mode = #tpu.pipeline_mode<synchronous>, transform_indices = @transform_4, window_bounds = array<i64: 1, 1, 32>}, {transform_indices = @transform_5, window_bounds = array<i64: 1, 32, 32, 32>}, {transform_indices = @transform_6, window_bounds = array<i64: 1, 1, 32>}]} {
    %cst = arith.constant 0.000000e+00 : f32
    %0 = vector.broadcast %cst : f32 to vector<1x48x32xf32>
    %c0 = arith.constant 0 : index
    %c0_0 = arith.constant 0 : index
    %c0_1 = arith.constant 0 : index
    %1 = vector.load %arg8[%c0, %c0_0, %c0_1] : memref<34x48x32xf32, #tpu.memory_space<vmem>>, vector<1x48x32xf32>
    tpu.vector_store %arg8[%c0, %c0_0, %c0_1], %0 {strides = array<i32>} : memref<34x48x32xf32, #tpu.memory_space<vmem>>, vector<1x48x32xf32>,
    %cst_2 = arith.constant 0.000000e+00 : f32
    %2 = vector.broadcast %cst_2 : f32 to vector<1x48x32xf32>
    %c33 = arith.constant 33 : index
    %c0_3 = arith.constant 0 : index
    %c0_4 = arith.constant 0 : index
    %3 = vector.load %arg8[%c33, %c0_3, %c0_4] : memref<34x48x32xf32, #tpu.memory_space<vmem>>, vector<1x48x32xf32>
    tpu.vector_store %arg8[%c33, %c0_3, %c0_4], %2 {strides = array<i32>} : memref<34x48x32xf32, #tpu.memory_space<vmem>>, vector<1x48x32xf32>,
    %cst_5 = arith.constant 0.000000e+00 : f32
    %4 = vector.broadcast %cst_5 : f32 to vector<32x8x32xf32>
    %c1 = arith.constant 1 : index
    %c0_6 = arith.constant 0 : index
    %c0_7 = arith.constant 0 : index
    %5 = vector.load %arg8[%c1, %c0_6, %c0_7] : memref<34x48x32xf32, #tpu.memory_space<vmem>>, vector<32x8x32xf32>
    tpu.vector_store %arg8[%c1, %c0_6, %c0_7], %4 {strides = array<i32>} : memref<34x48x32xf32, #tpu.memory_space<vmem>>, vector<32x8x32xf32>,
    %cst_8 = arith.constant 0.000000e+00 : f32
    %6 = vector.broadcast %cst_8 : f32 to vector<32x8x32xf32>
    %c1_9 = arith.constant 1 : index
    %c40 = arith.constant 40 : index
    %c0_10 = arith.constant 0 : index
    %7 = vector.load %arg8[%c1_9, %c40, %c0_10] : memref<34x48x32xf32, #tpu.memory_space<vmem>>, vector<32x8x32xf32>
    tpu.vector_store %arg8[%c1_9, %c40, %c0_10], %6 {strides = array<i32>} : memref<34x48x32xf32, #tpu.memory_space<vmem>>, vector<32x8x32xf32>,
    %c0_11 = arith.constant 0 : index
    %c0_12 = arith.constant 0 : index
    %c0_13 = arith.constant 0 : index
    %c0_14 = arith.constant 0 : index
    %8 = vector.load %arg1[%c0_11, %c0_12, %c0_13, %c0_14] : memref<1x32x32x8xbf16, #tpu.memory_space<vmem>>, vector<1x32x32x8xbf16>
    %9 = vector.shape_cast %8 : vector<1x32x32x8xbf16> to vector<32x32x8xbf16>
    %10 = vector.shape_cast %9 : vector<32x32x8xbf16> to vector<1024x8xbf16>
    %c0_15 = arith.constant 0 : index
    %c0_16 = arith.constant 0 : index
    %11 = vector.load %arg2[%c0_15, %c0_16] : memref<8x32xbf16, #tpu.memory_space<vmem>>, vector<8x32xbf16>
    %cst_17 = arith.constant dense<0.000000e+00> : vector<1024x32xf32>
    %12 = tpu.matmul %10, %11, %cst_17 {dimension_numbers = #tpu.dot_dimension_numbers<[1], [0], [0], [1], [0, 0, 1, 1], [], []>} : vector<1024x8xbf16>, vector<8x32xbf16>, vector<1024x32xf32> -> vector<1024x32xf32>
    %c0_18 = arith.constant 0 : index
    %c0_19 = arith.constant 0 : index
    %13 = vector.load %arg3[%c0_18, %c0_19] : memref<1x32xf32, #tpu.memory_space<vmem>>, vector<1x32xf32>
    %14 = vector.broadcast %13 : vector<1x32xf32> to vector<1024x32xf32>
    %15 = arith.addf %12, %14 : vector<1024x32xf32>
    %16 = arith.negf %15 : vector<1024x32xf32>
    %17 = math.exp %16 : vector<1024x32xf32>
    %cst_20 = arith.constant 1.000000e+00 : f32
    %18 = vector.broadcast %cst_20 : f32 to vector<1024x32xf32>
    %19 = arith.addf %18, %17 : vector<1024x32xf32>
    %20 = arith.divf %18, %19 : vector<1024x32xf32>
    %21 = arith.mulf %15, %20 : vector<1024x32xf32>
    %22 = vector.shape_cast %21 : vector<1024x32xf32> to vector<32x32x32xf32>
    %c1_21 = arith.constant 1 : index
    %c8 = arith.constant 8 : index
    %c0_22 = arith.constant 0 : index
    %23 = vector.load %arg8[%c1_21, %c8, %c0_22] : memref<34x48x32xf32, #tpu.memory_space<vmem>>, vector<32x32x32xf32>
    tpu.vector_store %arg8[%c1_21, %c8, %c0_22], %22 {strides = array<i32>} : memref<34x48x32xf32, #tpu.memory_space<vmem>>, vector<32x32x32xf32>,
    %c0_23 = arith.constant 0 : index
    %c0_24 = arith.constant 0 : index
    %24 = vector.load %arg4[%c0_23, %c0_24] : memref<9x32xf32, #tpu.memory_space<vmem>>, vector<9x32xf32>
    %c0_25 = arith.constant 0 : index
    %c7 = arith.constant 7 : index
    %c0_26 = arith.constant 0 : index
    %25 = vector.load %arg8[%c0_25, %c7, %c0_26] : memref<34x48x32xf32, #tpu.memory_space<vmem>>, vector<34x32x32xf32>
    %26 = vector.extract_strided_slice %25 {offsets = [0, 0, 0], sizes = [32, 32, 32], strides = [1, 1, 1]} : vector<34x32x32xf32> to vector<32x32x32xf32>
    %27 = vector.extract_strided_slice %24 {offsets = [0, 0], sizes = [1, 32], strides = [1, 1]} : vector<9x32xf32> to vector<1x32xf32>
    %28 = vector.shape_cast %27 : vector<1x32xf32> to vector<32xf32>
    %29 = vector.shape_cast %28 : vector<32xf32> to vector<1x1x32xf32>
    %30 = vector.broadcast %29 : vector<1x1x32xf32> to vector<32x32x32xf32>
    %31 = arith.mulf %26, %30 : vector<32x32x32xf32>
    %32 = vector.extract_strided_slice %25 {offsets = [1, 0, 0], sizes = [32, 32, 32], strides = [1, 1, 1]} : vector<34x32x32xf32> to vector<32x32x32xf32>
    %33 = vector.extract_strided_slice %24 {offsets = [3, 0], sizes = [1, 32], strides = [1, 1]} : vector<9x32xf32> to vector<1x32xf32>
    %34 = vector.shape_cast %33 : vector<1x32xf32> to vector<32xf32>
    %35 = vector.shape_cast %34 : vector<32xf32> to vector<1x1x32xf32>
    %36 = vector.broadcast %35 : vector<1x1x32xf32> to vector<32x32x32xf32>
    %37 = arith.mulf %32, %36 : vector<32x32x32xf32>
    %38 = arith.addf %31, %37 : vector<32x32x32xf32>
    %39 = vector.extract_strided_slice %25 {offsets = [2, 0, 0], sizes = [32, 32, 32], strides = [1, 1, 1]} : vector<34x32x32xf32> to vector<32x32x32xf32>
    %40 = vector.extract_strided_slice %24 {offsets = [6, 0], sizes = [1, 32], strides = [1, 1]} : vector<9x32xf32> to vector<1x32xf32>
    %41 = vector.shape_cast %40 : vector<1x32xf32> to vector<32xf32>
    %42 = vector.shape_cast %41 : vector<32xf32> to vector<1x1x32xf32>
    %43 = vector.broadcast %42 : vector<1x1x32xf32> to vector<32x32x32xf32>
    %44 = arith.mulf %39, %43 : vector<32x32x32xf32>
    %45 = arith.addf %38, %44 : vector<32x32x32xf32>
    %c0_27 = arith.constant 0 : index
    %c8_28 = arith.constant 8 : index
    %c0_29 = arith.constant 0 : index
    %46 = vector.load %arg8[%c0_27, %c8_28, %c0_29] : memref<34x48x32xf32, #tpu.memory_space<vmem>>, vector<34x32x32xf32>
    %47 = vector.extract_strided_slice %46 {offsets = [0, 0, 0], sizes = [32, 32, 32], strides = [1, 1, 1]} : vector<34x32x32xf32> to vector<32x32x32xf32>
    %48 = vector.extract_strided_slice %24 {offsets = [1, 0], sizes = [1, 32], strides = [1, 1]} : vector<9x32xf32> to vector<1x32xf32>
    %49 = vector.shape_cast %48 : vector<1x32xf32> to vector<32xf32>
    %50 = vector.shape_cast %49 : vector<32xf32> to vector<1x1x32xf32>
    %51 = vector.broadcast %50 : vector<1x1x32xf32> to vector<32x32x32xf32>
    %52 = arith.mulf %47, %51 : vector<32x32x32xf32>
    %53 = arith.addf %45, %52 : vector<32x32x32xf32>
    %54 = vector.extract_strided_slice %46 {offsets = [1, 0, 0], sizes = [32, 32, 32], strides = [1, 1, 1]} : vector<34x32x32xf32> to vector<32x32x32xf32>
    %55 = vector.extract_strided_slice %24 {offsets = [4, 0], sizes = [1, 32], strides = [1, 1]} : vector<9x32xf32> to vector<1x32xf32>
    %56 = vector.shape_cast %55 : vector<1x32xf32> to vector<32xf32>
    %57 = vector.shape_cast %56 : vector<32xf32> to vector<1x1x32xf32>
    %58 = vector.broadcast %57 : vector<1x1x32xf32> to vector<32x32x32xf32>
    %59 = arith.mulf %54, %58 : vector<32x32x32xf32>
    %60 = arith.addf %53, %59 : vector<32x32x32xf32>
    %61 = vector.extract_strided_slice %46 {offsets = [2, 0, 0], sizes = [32, 32, 32], strides = [1, 1, 1]} : vector<34x32x32xf32> to vector<32x32x32xf32>
    %62 = vector.extract_strided_slice %24 {offsets = [7, 0], sizes = [1, 32], strides = [1, 1]} : vector<9x32xf32> to vector<1x32xf32>
    %63 = vector.shape_cast %62 : vector<1x32xf32> to vector<32xf32>
    %64 = vector.shape_cast %63 : vector<32xf32> to vector<1x1x32xf32>
    %65 = vector.broadcast %64 : vector<1x1x32xf32> to vector<32x32x32xf32>
    %66 = arith.mulf %61, %65 : vector<32x32x32xf32>
    %67 = arith.addf %60, %66 : vector<32x32x32xf32>
    %c0_30 = arith.constant 0 : index
    %c9 = arith.constant 9 : index
    %c0_31 = arith.constant 0 : index
    %68 = vector.load %arg8[%c0_30, %c9, %c0_31] : memref<34x48x32xf32, #tpu.memory_space<vmem>>, vector<34x32x32xf32>
    %69 = vector.extract_strided_slice %68 {offsets = [0, 0, 0], sizes = [32, 32, 32], strides = [1, 1, 1]} : vector<34x32x32xf32> to vector<32x32x32xf32>
    %70 = vector.extract_strided_slice %24 {offsets = [2, 0], sizes = [1, 32], strides = [1, 1]} : vector<9x32xf32> to vector<1x32xf32>
    %71 = vector.shape_cast %70 : vector<1x32xf32> to vector<32xf32>
    %72 = vector.shape_cast %71 : vector<32xf32> to vector<1x1x32xf32>
    %73 = vector.broadcast %72 : vector<1x1x32xf32> to vector<32x32x32xf32>
    %74 = arith.mulf %69, %73 : vector<32x32x32xf32>
    %75 = arith.addf %67, %74 : vector<32x32x32xf32>
    %76 = vector.extract_strided_slice %68 {offsets = [1, 0, 0], sizes = [32, 32, 32], strides = [1, 1, 1]} : vector<34x32x32xf32> to vector<32x32x32xf32>
    %77 = vector.extract_strided_slice %24 {offsets = [5, 0], sizes = [1, 32], strides = [1, 1]} : vector<9x32xf32> to vector<1x32xf32>
    %78 = vector.shape_cast %77 : vector<1x32xf32> to vector<32xf32>
    %79 = vector.shape_cast %78 : vector<32xf32> to vector<1x1x32xf32>
    %80 = vector.broadcast %79 : vector<1x1x32xf32> to vector<32x32x32xf32>
    %81 = arith.mulf %76, %80 : vector<32x32x32xf32>
    %82 = arith.addf %75, %81 : vector<32x32x32xf32>
    %83 = vector.extract_strided_slice %68 {offsets = [2, 0, 0], sizes = [32, 32, 32], strides = [1, 1, 1]} : vector<34x32x32xf32> to vector<32x32x32xf32>
    %84 = vector.extract_strided_slice %24 {offsets = [8, 0], sizes = [1, 32], strides = [1, 1]} : vector<9x32xf32> to vector<1x32xf32>
    %85 = vector.shape_cast %84 : vector<1x32xf32> to vector<32xf32>
    %86 = vector.shape_cast %85 : vector<32xf32> to vector<1x1x32xf32>
    %87 = vector.broadcast %86 : vector<1x1x32xf32> to vector<32x32x32xf32>
    %88 = arith.mulf %83, %87 : vector<32x32x32xf32>
    %89 = arith.addf %82, %88 : vector<32x32x32xf32>
    %c0_32 = arith.constant 0 : index
    %c0_33 = arith.constant 0 : index
    %c0_34 = arith.constant 0 : index
    %90 = vector.load %arg5[%c0_32, %c0_33, %c0_34] : memref<1x1x32xf32, #tpu.memory_space<vmem>>, vector<1x1x32xf32>
    %91 = vector.broadcast %90 : vector<1x1x32xf32> to vector<32x32x32xf32>
    %92 = arith.addf %89, %91 : vector<32x32x32xf32>
    %93 = arith.negf %92 : vector<32x32x32xf32>
    %94 = math.exp %93 : vector<32x32x32xf32>
    %cst_35 = arith.constant 1.000000e+00 : f32
    %95 = vector.broadcast %cst_35 : f32 to vector<32x32x32xf32>
    %96 = arith.addf %95, %94 : vector<32x32x32xf32>
    %97 = arith.divf %95, %96 : vector<32x32x32xf32>
    %98 = arith.mulf %92, %97 : vector<32x32x32xf32>
    %99 = vector.shape_cast %98 : vector<32x32x32xf32> to vector<1x32x32x32xf32>
    %100 = arith.truncf %99 : vector<1x32x32x32xf32> to vector<1x32x32x32xbf16>
    %c0_36 = arith.constant 0 : index
    %c0_37 = arith.constant 0 : index
    %c0_38 = arith.constant 0 : index
    %c0_39 = arith.constant 0 : index
    %101 = vector.load %arg6[%c0_36, %c0_37, %c0_38, %c0_39] : memref<1x32x32x32xbf16, #tpu.memory_space<vmem>>, vector<1x32x32x32xbf16>
    tpu.vector_store %arg6[%c0_36, %c0_37, %c0_38, %c0_39], %100 {strides = array<i32>} : memref<1x32x32x32xbf16, #tpu.memory_space<vmem>>, vector<1x32x32x32xbf16>,
    %cst_40 = arith.constant dense<0.000000e+00> : vector<32xf32>
    %102 = vector.multi_reduction <add>, %98, %cst_40 [0, 1] : vector<32x32x32xf32> to vector<32xf32>
    %103 = vector.shape_cast %102 : vector<32xf32> to vector<1x1x32xf32>
    %cst_41 = arith.constant 1.024000e+03 : f32
    %104 = vector.broadcast %cst_41 : f32 to vector<1x1x32xf32>
    %105 = arith.divf %103, %104 : vector<1x1x32xf32>
    %c0_42 = arith.constant 0 : index
    %c0_43 = arith.constant 0 : index
    %c0_44 = arith.constant 0 : index
    %106 = vector.load %arg7[%c0_42, %c0_43, %c0_44] : memref<1x1x32xf32, #tpu.memory_space<vmem>>, vector<1x1x32xf32>
    tpu.vector_store %arg7[%c0_42, %c0_43, %c0_44], %105 {strides = array<i32>} : memref<1x1x32xf32, #tpu.memory_space<vmem>>, vector<1x1x32xf32>,
    return
  }
  func.func @transform_0(%arg0: i32) -> (i32, i32, i32, i32) {
    %c0_i32 = arith.constant 0 : i32
    %c0_i32_0 = arith.constant 0 : i32
    %c0_i32_1 = arith.constant 0 : i32
    %c0_i32_2 = arith.constant 0 : i32
    return %arg0, %c0_i32, %c0_i32_0, %c0_i32_1 : i32, i32, i32, i32
  }
  func.func @transform_1(%arg0: i32) -> (i32, i32) {
    %c0_i32 = arith.constant 0 : i32
    %c0_i32_0 = arith.constant 0 : i32
    %c0_i32_1 = arith.constant 0 : i32
    return %c0_i32, %c0_i32_0 : i32, i32
  }
  func.func @transform_2(%arg0: i32) -> (i32, i32) {
    %c0_i32 = arith.constant 0 : i32
    %c0_i32_0 = arith.constant 0 : i32
    %c0_i32_1 = arith.constant 0 : i32
    return %c0_i32, %c0_i32_0 : i32, i32
  }
  func.func @transform_3(%arg0: i32) -> (i32, i32) {
    %c0_i32 = arith.constant 0 : i32
    %c0_i32_0 = arith.constant 0 : i32
    %c0_i32_1 = arith.constant 0 : i32
    return %c0_i32, %c0_i32_0 : i32, i32
  }
  func.func @transform_4(%arg0: i32) -> (i32, i32, i32) {
    %c0_i32 = arith.constant 0 : i32
    %c0_i32_0 = arith.constant 0 : i32
    %c0_i32_1 = arith.constant 0 : i32
    %c0_i32_2 = arith.constant 0 : i32
    return %c0_i32, %c0_i32_0, %c0_i32_1 : i32, i32, i32
  }
  func.func @transform_5(%arg0: i32) -> (i32, i32, i32, i32) {
    %c0_i32 = arith.constant 0 : i32
    %c0_i32_0 = arith.constant 0 : i32
    %c0_i32_1 = arith.constant 0 : i32
    %c0_i32_2 = arith.constant 0 : i32
    return %arg0, %c0_i32, %c0_i32_0, %c0_i32_1 : i32, i32, i32, i32
  }
  func.func @transform_6(%arg0: i32) -> (i32, i32, i32) {
    %c0_i32 = arith.constant 0 : i32
    %c0_i32_0 = arith.constant 0 : i32
    %c0_i32_1 = arith.constant 0 : i32
    return %arg0, %c0_i32, %c0_i32_0 : i32, i32, i32
  }
}

module attributes {stable_mosaic.version = 11 : i64} {
  func.func @project_se_kernel(%arg0: i32, %arg1: i32, %arg2: memref<1x1024x32xbf16, #tpu.memory_space<vmem>>, %arg3: memref<1x1x32xf32, #tpu.memory_space<vmem>>, %arg4: memref<32x2xf32, #tpu.memory_space<vmem>>, %arg5: memref<1x2xf32, #tpu.memory_space<vmem>>, %arg6: memref<2x32xf32, #tpu.memory_space<vmem>>, %arg7: memref<1x32xf32, #tpu.memory_space<vmem>>, %arg8: memref<8x32xf32, #tpu.memory_space<vmem>>, %arg9: memref<8x1xf32, #tpu.memory_space<vmem>>, %arg10: memref<1x8x1024xf32, #tpu.memory_space<vmem>>, %arg11: memref<1x8x1024xf32, #tpu.memory_space<vmem>>) attributes {dimension_semantics = [#tpu.dimension_semantics<parallel>, #tpu.dimension_semantics<parallel>], iteration_bounds = array<i64: 2, 1>, scalar_prefetch = 0 : i64, scratch_operands = 0 : i64, tpu.core_type = #tpu.core_type<tc>, window_params = [{transform_indices = @transform_0, window_bounds = array<i64: 1, 1024, 32>}, {transform_indices = @transform_1, window_bounds = array<i64: 1, 1, 32>}, {pipeline_mode = #tpu.pipeline_mode<synchronous>, transform_indices = @transform_2, window_bounds = array<i64: 32, 2>}, {pipeline_mode = #tpu.pipeline_mode<synchronous>, transform_indices = @transform_3, window_bounds = array<i64: 1, 2>}, {pipeline_mode = #tpu.pipeline_mode<synchronous>, transform_indices = @transform_4, window_bounds = array<i64: 2, 32>}, {pipeline_mode = #tpu.pipeline_mode<synchronous>, transform_indices = @transform_5, window_bounds = array<i64: 1, 32>}, {pipeline_mode = #tpu.pipeline_mode<synchronous>, transform_indices = @transform_6, window_bounds = array<i64: 8, 32>}, {pipeline_mode = #tpu.pipeline_mode<synchronous>, transform_indices = @transform_7, window_bounds = array<i64: 8, 1>}, {transform_indices = @transform_8, window_bounds = array<i64: 1, 8, 1024>}, {transform_indices = @transform_9, window_bounds = array<i64: 1, 8, 1024>}]} {
    %c0 = arith.constant 0 : index
    %c0_0 = arith.constant 0 : index
    %c0_1 = arith.constant 0 : index
    %0 = vector.load %arg3[%c0, %c0_0, %c0_1] : memref<1x1x32xf32, #tpu.memory_space<vmem>>, vector<1x1x32xf32>
    %1 = vector.shape_cast %0 : vector<1x1x32xf32> to vector<1x32xf32>
    %c0_2 = arith.constant 0 : index
    %c0_3 = arith.constant 0 : index
    %2 = vector.load %arg4[%c0_2, %c0_3] : memref<32x2xf32, #tpu.memory_space<vmem>>, vector<32x2xf32>
    %cst = arith.constant dense<0.000000e+00> : vector<1x2xf32>
    %3 = tpu.matmul %1, %2, %cst {dimension_numbers = #tpu.dot_dimension_numbers<[1], [0], [0], [1], [0, 0, 1, 1], [], []>} : vector<1x32xf32>, vector<32x2xf32>, vector<1x2xf32> -> vector<1x2xf32>
    %c0_4 = arith.constant 0 : index
    %c0_5 = arith.constant 0 : index
    %4 = vector.load %arg5[%c0_4, %c0_5] : memref<1x2xf32, #tpu.memory_space<vmem>>, vector<1x2xf32>
    %5 = arith.addf %3, %4 : vector<1x2xf32>
    %6 = arith.negf %5 : vector<1x2xf32>
    %7 = math.exp %6 : vector<1x2xf32>
    %cst_6 = arith.constant 1.000000e+00 : f32
    %8 = vector.broadcast %cst_6 : f32 to vector<1x2xf32>
    %9 = arith.addf %8, %7 : vector<1x2xf32>
    %10 = arith.divf %8, %9 : vector<1x2xf32>
    %11 = arith.mulf %5, %10 : vector<1x2xf32>
    %c0_7 = arith.constant 0 : index
    %c0_8 = arith.constant 0 : index
    %12 = vector.load %arg6[%c0_7, %c0_8] : memref<2x32xf32, #tpu.memory_space<vmem>>, vector<2x32xf32>
    %cst_9 = arith.constant dense<0.000000e+00> : vector<1x32xf32>
    %13 = tpu.matmul %11, %12, %cst_9 {dimension_numbers = #tpu.dot_dimension_numbers<[1], [0], [0], [1], [0, 0, 1, 1], [], []>} : vector<1x2xf32>, vector<2x32xf32>, vector<1x32xf32> -> vector<1x32xf32>
    %c0_10 = arith.constant 0 : index
    %c0_11 = arith.constant 0 : index
    %14 = vector.load %arg7[%c0_10, %c0_11] : memref<1x32xf32, #tpu.memory_space<vmem>>, vector<1x32xf32>
    %15 = arith.addf %13, %14 : vector<1x32xf32>
    %16 = arith.negf %15 : vector<1x32xf32>
    %17 = math.exp %16 : vector<1x32xf32>
    %cst_12 = arith.constant 1.000000e+00 : f32
    %18 = vector.broadcast %cst_12 : f32 to vector<1x32xf32>
    %19 = arith.addf %18, %17 : vector<1x32xf32>
    %20 = arith.divf %18, %19 : vector<1x32xf32>
    %c0_13 = arith.constant 0 : index
    %c0_14 = arith.constant 0 : index
    %21 = vector.load %arg8[%c0_13, %c0_14] : memref<8x32xf32, #tpu.memory_space<vmem>>, vector<8x32xf32>
    %22 = vector.broadcast %20 : vector<1x32xf32> to vector<8x32xf32>
    %23 = arith.mulf %21, %22 : vector<8x32xf32>
    %24 = arith.truncf %23 : vector<8x32xf32> to vector<8x32xbf16>
    %c0_15 = arith.constant 0 : index
    %c0_16 = arith.constant 0 : index
    %c0_17 = arith.constant 0 : index
    %25 = vector.load %arg2[%c0_15, %c0_16, %c0_17] : memref<1x1024x32xbf16, #tpu.memory_space<vmem>>, vector<1x1024x32xbf16>
    %26 = vector.shape_cast %25 : vector<1x1024x32xbf16> to vector<1024x32xbf16>
    %cst_18 = arith.constant dense<0.000000e+00> : vector<8x1024xf32>
    %27 = tpu.matmul %24, %26, %cst_18 {dimension_numbers = #tpu.dot_dimension_numbers<[1], [1], [0], [0], [0, 0, 1, 0], [], []>} : vector<8x32xbf16>, vector<1024x32xbf16>, vector<8x1024xf32> -> vector<8x1024xf32>
    %c0_19 = arith.constant 0 : index
    %c0_20 = arith.constant 0 : index
    %28 = vector.load %arg9[%c0_19, %c0_20] : memref<8x1xf32, #tpu.memory_space<vmem>>, vector<8x1xf32>
    %29 = vector.broadcast %28 : vector<8x1xf32> to vector<8x1024xf32>
    %30 = arith.addf %27, %29 : vector<8x1024xf32>
    %c0_21 = arith.constant 0 : index
    %c0_22 = arith.constant 0 : index
    %c0_23 = arith.constant 0 : index
    %31 = vector.load %arg10[%c0_21, %c0_22, %c0_23] : memref<1x8x1024xf32, #tpu.memory_space<vmem>>, vector<1x8x1024xf32>
    %32 = vector.shape_cast %31 : vector<1x8x1024xf32> to vector<8x1024xf32>
    %33 = arith.addf %30, %32 : vector<8x1024xf32>
    %34 = vector.shape_cast %33 : vector<8x1024xf32> to vector<1x8x1024xf32>
    %c0_24 = arith.constant 0 : index
    %c0_25 = arith.constant 0 : index
    %c0_26 = arith.constant 0 : index
    %35 = vector.load %arg11[%c0_24, %c0_25, %c0_26] : memref<1x8x1024xf32, #tpu.memory_space<vmem>>, vector<1x8x1024xf32>
    tpu.vector_store %arg11[%c0_24, %c0_25, %c0_26], %34 {strides = array<i32>} : memref<1x8x1024xf32, #tpu.memory_space<vmem>>, vector<1x8x1024xf32>,
    return
  }
  func.func @transform_0(%arg0: i32, %arg1: i32) -> (i32, i32, i32) {
    %c0_i32 = arith.constant 0 : i32
    %c0_i32_0 = arith.constant 0 : i32
    return %arg0, %arg1, %c0_i32 : i32, i32, i32
  }
  func.func @transform_1(%arg0: i32, %arg1: i32) -> (i32, i32, i32) {
    %c0_i32 = arith.constant 0 : i32
    %c0_i32_0 = arith.constant 0 : i32
    %c0_i32_1 = arith.constant 0 : i32
    return %arg0, %c0_i32, %c0_i32_0 : i32, i32, i32
  }
  func.func @transform_2(%arg0: i32, %arg1: i32) -> (i32, i32) {
    %c0_i32 = arith.constant 0 : i32
    %c0_i32_0 = arith.constant 0 : i32
    %c0_i32_1 = arith.constant 0 : i32
    return %c0_i32, %c0_i32_0 : i32, i32
  }
  func.func @transform_3(%arg0: i32, %arg1: i32) -> (i32, i32) {
    %c0_i32 = arith.constant 0 : i32
    %c0_i32_0 = arith.constant 0 : i32
    %c0_i32_1 = arith.constant 0 : i32
    return %c0_i32, %c0_i32_0 : i32, i32
  }
  func.func @transform_4(%arg0: i32, %arg1: i32) -> (i32, i32) {
    %c0_i32 = arith.constant 0 : i32
    %c0_i32_0 = arith.constant 0 : i32
    %c0_i32_1 = arith.constant 0 : i32
    return %c0_i32, %c0_i32_0 : i32, i32
  }
  func.func @transform_5(%arg0: i32, %arg1: i32) -> (i32, i32) {
    %c0_i32 = arith.constant 0 : i32
    %c0_i32_0 = arith.constant 0 : i32
    %c0_i32_1 = arith.constant 0 : i32
    return %c0_i32, %c0_i32_0 : i32, i32
  }
  func.func @transform_6(%arg0: i32, %arg1: i32) -> (i32, i32) {
    %c0_i32 = arith.constant 0 : i32
    %c0_i32_0 = arith.constant 0 : i32
    %c0_i32_1 = arith.constant 0 : i32
    return %c0_i32, %c0_i32_0 : i32, i32
  }
  func.func @transform_7(%arg0: i32, %arg1: i32) -> (i32, i32) {
    %c0_i32 = arith.constant 0 : i32
    %c0_i32_0 = arith.constant 0 : i32
    %c0_i32_1 = arith.constant 0 : i32
    return %c0_i32, %c0_i32_0 : i32, i32
  }
  func.func @transform_8(%arg0: i32, %arg1: i32) -> (i32, i32, i32) {
    %c0_i32 = arith.constant 0 : i32
    %c0_i32_0 = arith.constant 0 : i32
    return %arg0, %c0_i32, %arg1 : i32, i32, i32
  }
  func.func @transform_9(%arg0: i32, %arg1: i32) -> (i32, i32, i32) {
    %c0_i32 = arith.constant 0 : i32
    %c0_i32_0 = arith.constant 0 : i32
    return %arg0, %c0_i32, %arg1 : i32, i32, i32
  }
}

</mosaic_0001>

<llo_original>
// kernel: mbconv_forward.3
$region0: #{mbconv_forward.3}
  #allocation0 [shape = 'u32[]', space=smem, size = 0x4, offset = 0x4, fixed_abs, tag = 'smem constant byte address 0x4 - core index']
  #allocation1 [shape = 'u32[144,128]{1,0:T(1,128)}', space=vmem, size = 0x12000, scoped, tag = 'internal scratch']
  %s0 = inlined_call_operand.vmem [shape: bf16[2,1024,32], index: 0, kind: input, shape index: {}]
  %s1 = inlined_call_operand.vmem [shape: f32[2,1,32], index: 1, kind: input, shape index: {}]
  %s2 = inlined_call_operand.vmem [shape: f32[32,2], index: 2, kind: input, shape index: {}]
  %s3 = inlined_call_operand.vmem [shape: f32[1,2], index: 3, kind: input, shape index: {}]
  %s4 = inlined_call_operand.vmem [shape: f32[2,32], index: 4, kind: input, shape index: {}]
  %s5 = inlined_call_operand.vmem [shape: f32[1,32], index: 5, kind: input, shape index: {}]
  %s6 = inlined_call_operand.vmem [shape: f32[8,32], index: 6, kind: input, shape index: {}]
  %s7 = inlined_call_operand.vmem [shape: f32[8,1], index: 7, kind: input, shape index: {}]
  %s8 = inlined_call_operand.vmem [shape: f32[2,8,1024], index: 8, kind: input, shape index: {}]
  %s9 = inlined_call_operand.vmem [shape: f32[2,8,1024], index: 9, kind: output, shape index: {}]
  %s10 = sld [smem:[#allocation0]]
  $region69: #{mbconv_forward.3} parent=0
    _
  %s12 = ssub.s32 1, %s10
  %s13 = scalar_select 0, %s12, %s10
  loop: start=0, step=1, limit=4
  $region2: #{mbconv_forward.3} parent=0 // loop_pre_header
    _
  $region3: #{mbconv_forward.3} parent=0 // loop_header
    %s15 = sphi 0, %s19
    %p16 = scmp.ge.s32.totalorder %s15, 4
    %s22 = sphi 0, %s34
    %s23 = sphi 0, %s30
    %s24 = sphi 0, %s22
    %s25 = sphi 0, %s23
    %s26 = sphi 0, %s24
    %s27 = sphi 0, %s25
    %s39 = sphi 0, %s41
    %s42 = sphi 0, %s39
    %s43 = sphi 0, %s42
    %s59 = sphi 0, %s43
    %s65 = sphi 0, %s67
    %s68 = sphi 0, %s65
    %s69 = sphi 0, %s68
    %s85 = sphi 0, %s69
    %s89 = sphi 0, %s89
    %s91 = sphi 0, %s89
    %s92 = sphi 0, %s91
    %s106 = sphi 0, %s92
    %s110 = sphi 0, %s110
    %s112 = sphi 0, %s110
    %s113 = sphi 0, %s112
    %s127 = sphi 0, %s113
    %s131 = sphi 0, %s131
    %s133 = sphi 0, %s131
    %s134 = sphi 0, %s133
    %s148 = sphi 0, %s134
    %s152 = sphi 0, %s152
    %s154 = sphi 0, %s152
    %s155 = sphi 0, %s154
    %s169 = sphi 0, %s155
    %s173 = sphi 0, %s173
    %s175 = sphi 0, %s173
    %s176 = sphi 0, %s175
    %s190 = sphi 0, %s176
    %s194 = sphi 0, %s194
    %s196 = sphi 0, %s194
    %s197 = sphi 0, %s196
    %s211 = sphi 0, %s197
    %s219 = sphi 0, %s221
    %s222 = sphi 0, %s219
    %s223 = sphi 0, %s222
    %s239 = sphi 0, %s223
    %s247 = sphi 0, %s249
    %s250 = sphi 0, %s247
    %s251 = sphi 0, %s250
    %s267 = sphi 0, %s251
  $region4: #{mbconv_forward.3} parent=0 // loop_header_branch
    %18 = sbr.rel (%p16) target = $region8
  $region5: #{mbconv_forward.3} parent=0 // loop_body
    %s20 = ssub.s32 %s15, 1
    %s21 = ssub.s32 %s15, 2
    %s28 = sadd.s32 1, %s23
    %p29 = scmp.ge.s32.totalorder %s28, 1
    %s30 = scalar_select %p29, 0, %s28
    %s31 = sadd.s32 1, %s22
    %s32 = scalar_select %p29, %s31, %s22
    %p33 = scmp.ge.s32.totalorder %s32, 2
    %s34 = scalar_select %p33, 0, %s32
    %s35 = ssub.s32 %s22, %s34
    %s36 = ssub.s32 %s23, %s30
    %s37 = sor.u32 %s35, %s36
    %p38 = scmp.eq.s32.totalorder %s37, 0
    %s40 = sadd.s32 %s39, 1
    %s41 = scalar_select %p38, %s39, %s40
    %p44 = pneg %p38
    %p45 = scmp.eq.s32.totalorder %s15, 1
    %p46 = por %p44, %p45
    %p47 = scmp.ne.s32.totalorder %s39, %s42
    %p48 = scmp.eq.s32.totalorder %s15, 0
    %p49 = por %p47, %p48
    %p50 = scmp.ne.s32.totalorder %s39, %s42
    %p51 = scmp.eq.s32.totalorder %s20, 1
    %p52 = por %p50, %p51
    %p53 = scmp.ne.s32.totalorder %s42, %s43
    %p54 = scmp.eq.s32.totalorder %s20, 0
    %p55 = por %p53, %p54
    %p56 = scmp.ne.s32.totalorder %s42, %s43
    %p57 = scmp.eq.s32.totalorder %s21, 1
    %p58 = por %p56, %p57
    %p60 = scmp.ne.s32.totalorder %s43, %s59
    %p61 = scmp.eq.s32.totalorder %s21, 0
    %p62 = por %p60, %p61
    %s63 = ssub.s32 %s22, %s34
    %p64 = scmp.eq.s32.totalorder %s63, 0
    %s66 = sadd.s32 %s65, 1
    %s67 = scalar_select %p64, %s65, %s66
    %p70 = pneg %p64
    %p71 = scmp.eq.s32.totalorder %s15, 1
    %p72 = por %p70, %p71
    %p73 = scmp.ne.s32.totalorder %s65, %s68
    %p74 = scmp.eq.s32.totalorder %s15, 0
    %p75 = por %p73, %p74
    %p76 = scmp.ne.s32.totalorder %s65, %s68
    %p77 = scmp.eq.s32.totalorder %s20, 1
    %p78 = por %p76, %p77
    %p79 = scmp.ne.s32.totalorder %s68, %s69
    %p80 = scmp.eq.s32.totalorder %s20, 0
    %p81 = por %p79, %p80
    %p82 = scmp.ne.s32.totalorder %s68, %s69
    %p83 = scmp.eq.s32.totalorder %s21, 1
    %p84 = por %p82, %p83
    %p86 = scmp.ne.s32.totalorder %s69, %s85
    %p87 = scmp.eq.s32.totalorder %s21, 0
    %p88 = por %p86, %p87
    %s90 = sadd.s32 %s89, 1
    %p93 = scmp.eq.s32.totalorder %s15, 1
    %p94 = scmp.ne.s32.totalorder %s89, %s91
    %p95 = scmp.eq.s32.totalorder %s15, 0
    %p96 = por %p94, %p95
    %p97 = scmp.ne.s32.totalorder %s89, %s91
    %p98 = scmp.eq.s32.totalorder %s20, 1
    %p99 = por %p97, %p98
    %p100 = scmp.ne.s32.totalorder %s91, %s92
    %p101 = scmp.eq.s32.totalorder %s20, 0
    %p102 = por %p100, %p101
    %p103 = scmp.ne.s32.totalorder %s91, %s92
    %p104 = scmp.eq.s32.totalorder %s21, 1
    %p105 = por %p103, %p104
    %p107 = scmp.ne.s32.totalorder %s92, %s106
    %p108 = scmp.eq.s32.totalorder %s21, 0
    %p109 = por %p107, %p108
    %s111 = sadd.s32 %s110, 1
    %p114 = scmp.eq.s32.totalorder %s15, 1
    %p115 = scmp.ne.s32.totalorder %s110, %s112
    %p116 = scmp.eq.s32.totalorder %s15, 0
    %p117 = por %p115, %p116
    %p118 = scmp.ne.s32.totalorder %s110, %s112
    %p119 = scmp.eq.s32.totalorder %s20, 1
    %p120 = por %p118, %p119
    %p121 = scmp.ne.s32.totalorder %s112, %s113
    %p122 = scmp.eq.s32.totalorder %s20, 0
    %p123 = por %p121, %p122
    %p124 = scmp.ne.s32.totalorder %s112, %s113
    %p125 = scmp.eq.s32.totalorder %s21, 1
    %p126 = por %p124, %p125
    %p128 = scmp.ne.s32.totalorder %s113, %s127
    %p129 = scmp.eq.s32.totalorder %s21, 0
    %p130 = por %p128, %p129
    %s132 = sadd.s32 %s131, 1
    %p135 = scmp.eq.s32.totalorder %s15, 1
    %p136 = scmp.ne.s32.totalorder %s131, %s133
    %p137 = scmp.eq.s32.totalorder %s15, 0
    %p138 = por %p136, %p137
    %p139 = scmp.ne.s32.totalorder %s131, %s133
    %p140 = scmp.eq.s32.totalorder %s20, 1
    %p141 = por %p139, %p140
    %p142 = scmp.ne.s32.totalorder %s133, %s134
    %p143 = scmp.eq.s32.totalorder %s20, 0
    %p144 = por %p142, %p143
    %p145 = scmp.ne.s32.totalorder %s133, %s134
    %p146 = scmp.eq.s32.totalorder %s21, 1
    %p147 = por %p145, %p146
    %p149 = scmp.ne.s32.totalorder %s134, %s148
    %p150 = scmp.eq.s32.totalorder %s21, 0
    %p151 = por %p149, %p150
    %s153 = sadd.s32 %s152, 1
    %p156 = scmp.eq.s32.totalorder %s15, 1
    %p157 = scmp.ne.s32.totalorder %s152, %s154
    %p158 = scmp.eq.s32.totalorder %s15, 0
    %p159 = por %p157, %p158
    %p160 = scmp.ne.s32.totalorder %s152, %s154
    %p161 = scmp.eq.s32.totalorder %s20, 1
    %p162 = por %p160, %p161
    %p163 = scmp.ne.s32.totalorder %s154, %s155
    %p164 = scmp.eq.s32.totalorder %s20, 0
    %p165 = por %p163, %p164
    %p166 = scmp.ne.s32.totalorder %s154, %s155
    %p167 = scmp.eq.s32.totalorder %s21, 1
    %p168 = por %p166, %p167
    %p170 = scmp.ne.s32.totalorder %s155, %s169
    %p171 = scmp.eq.s32.totalorder %s21, 0
    %p172 = por %p170, %p171
    %s174 = sadd.s32 %s173, 1
    %p177 = scmp.eq.s32.totalorder %s15, 1
    %p178 = scmp.ne.s32.totalorder %s173, %s175
    %p179 = scmp.eq.s32.totalorder %s15, 0
    %p180 = por %p178, %p179
    %p181 = scmp.ne.s32.totalorder %s173, %s175
    %p182 = scmp.eq.s32.totalorder %s20, 1
    %p183 = por %p181, %p182
    %p184 = scmp.ne.s32.totalorder %s175, %s176
    %p185 = scmp.eq.s32.totalorder %s20, 0
    %p186 = por %p184, %p185
    %p187 = scmp.ne.s32.totalorder %s175, %s176
    %p188 = scmp.eq.s32.totalorder %s21, 1
    %p189 = por %p187, %p188
    %p191 = scmp.ne.s32.totalorder %s176, %s190
    %p192 = scmp.eq.s32.totalorder %s21, 0
    %p193 = por %p191, %p192
    %s195 = sadd.s32 %s194, 1
    %p198 = scmp.eq.s32.totalorder %s15, 1
    %p199 = scmp.ne.s32.totalorder %s194, %s196
    %p200 = scmp.eq.s32.totalorder %s15, 0
    %p201 = por %p199, %p200
    %p202 = scmp.ne.s32.totalorder %s194, %s196
    %p203 = scmp.eq.s32.totalorder %s20, 1
    %p204 = por %p202, %p203
    %p205 = scmp.ne.s32.totalorder %s196, %s197
    %p206 = scmp.eq.s32.totalorder %s20, 0
    %p207 = por %p205, %p206
    %p208 = scmp.ne.s32.totalorder %s196, %s197
    %p209 = scmp.eq.s32.totalorder %s21, 1
    %p210 = por %p208, %p209
    %p212 = scmp.ne.s32.totalorder %s197, %s211
    %p213 = scmp.eq.s32.totalorder %s21, 0
    %p214 = por %p212, %p213
    %s215 = ssub.s32 %s22, %s34
    %s216 = ssub.s32 %s23, %s30
    %s217 = sor.u32 %s215, %s216
    %p218 = scmp.eq.s32.totalorder %s217, 0
    %s220 = sadd.s32 %s219, 1
    %s221 = scalar_select %p218, %s219, %s220
    %p224 = pneg %p218
    %p225 = scmp.eq.s32.totalorder %s15, 1
    %p226 = por %p224, %p225
    %p227 = scmp.ne.s32.totalorder %s219, %s222
    %p228 = scmp.eq.s32.totalorder %s15, 0
    %p229 = por %p227, %p228
    %p230 = scmp.ne.s32.totalorder %s219, %s222
    %p231 = scmp.eq.s32.totalorder %s20, 1
    %p232 = por %p230, %p231
    %p233 = scmp.ne.s32.totalorder %s222, %s223
    %p234 = scmp.eq.s32.totalorder %s20, 0
    %p235 = por %p233, %p234
    %p236 = scmp.ne.s32.totalorder %s222, %s223
    %p237 = scmp.eq.s32.totalorder %s21, 1
    %p238 = por %p236, %p237
    %p240 = scmp.ne.s32.totalorder %s223, %s239
    %p241 = scmp.eq.s32.totalorder %s21, 0
    %p242 = por %p240, %p241
    %s243 = ssub.s32 %s22, %s34
    %s244 = ssub.s32 %s23, %s30
    %s245 = sor.u32 %s243, %s244
    %p246 = scmp.eq.s32.totalorder %s245, 0
    %s248 = sadd.s32 %s247, 1
    %s249 = scalar_select %p246, %s247, %s248
    %p252 = pneg %p246
    %p253 = scmp.eq.s32.totalorder %s15, 1
    %p254 = por %p252, %p253
    %p255 = scmp.ne.s32.totalorder %s247, %s250
    %p256 = scmp.eq.s32.totalorder %s15, 0
    %p257 = por %p255, %p256
    %p258 = scmp.ne.s32.totalorder %s247, %s250
    %p259 = scmp.eq.s32.totalorder %s20, 1
    %p260 = por %p258, %p259
    %p261 = scmp.ne.s32.totalorder %s250, %s251
    %p262 = scmp.eq.s32.totalorder %s20, 0
    %p263 = por %p261, %p262
    %p264 = scmp.ne.s32.totalorder %s250, %s251
    %p265 = scmp.eq.s32.totalorder %s21, 1
    %p266 = por %p264, %p265
    %p268 = scmp.ne.s32.totalorder %s251, %s267
    %p269 = scmp.eq.s32.totalorder %s21, 0
    %p270 = por %p268, %p269
    %p271 = scmp.le.s32.totalorder 1, %s15
    %p272 = scmp.lt.s32.totalorder %s15, 3
    %p273 = pnand %p271, %p272
    %p274 = pneg %p273
    // Predicated region
    $region9: #{mbconv_forward.3} parent=5 // pred_check
      _
    $region10: #{mbconv_forward.3} parent=5 // pred_check_branch
      %276 = sbr.rel (%p273) target = $region12
    $region11: #{mbconv_forward.3} parent=5 // pred_region
      %s277 = ssub.s32 %s15, 1
      // Predicated region
      $region13: #{mbconv_forward.3} parent=11 // pred_check
        %p278 = pneg %p102
      $region14: #{mbconv_forward.3} parent=11 // pred_check_branch
        %280 = sbr.rel (%p278) target = $region16
      $region15: #{mbconv_forward.3} parent=11 // pred_region
        _
      $region16: #{mbconv_forward.3} parent=11 // pred_fallthru
        _
      // Predicated region
      $region17: #{mbconv_forward.3} parent=11 // pred_check
        %p281 = pneg %p123
      $region18: #{mbconv_forward.3} parent=11 // pred_check_branch
        %283 = sbr.rel (%p281) target = $region20
      $region19: #{mbconv_forward.3} parent=11 // pred_region
        _
      $region20: #{mbconv_forward.3} parent=11 // pred_fallthru
        _
      // Predicated region
      $region21: #{mbconv_forward.3} parent=11 // pred_check
        %p284 = pneg %p144
      $region22: #{mbconv_forward.3} parent=11 // pred_check_branch
        %286 = sbr.rel (%p284) target = $region24
      $region23: #{mbconv_forward.3} parent=11 // pred_region
        _
      $region24: #{mbconv_forward.3} parent=11 // pred_fallthru
        _
      // Predicated region
      $region25: #{mbconv_forward.3} parent=11 // pred_check
        %p287 = pneg %p165
      $region26: #{mbconv_forward.3} parent=11 // pred_check_branch
        %289 = sbr.rel (%p287) target = $region28
      $region27: #{mbconv_forward.3} parent=11 // pred_region
        _
      $region28: #{mbconv_forward.3} parent=11 // pred_fallthru
        _
      // Predicated region
      $region29: #{mbconv_forward.3} parent=11 // pred_check
        %p290 = pneg %p186
      $region30: #{mbconv_forward.3} parent=11 // pred_check_branch
        %292 = sbr.rel (%p290) target = $region32
      $region31: #{mbconv_forward.3} parent=11 // pred_region
        _
      $region32: #{mbconv_forward.3} parent=11 // pred_fallthru
        _
      // Predicated region
      $region33: #{mbconv_forward.3} parent=11 // pred_check
        %p293 = pneg %p207
      $region34: #{mbconv_forward.3} parent=11 // pred_check_branch
        %295 = sbr.rel (%p293) target = $region36
      $region35: #{mbconv_forward.3} parent=11 // pred_region
        _
      $region36: #{mbconv_forward.3} parent=11 // pred_fallthru
        _
    $region12: #{mbconv_forward.3} parent=5 // pred_fallthru
      _
    %p296 = scmp.lt.s32.totalorder %s15, 2
    // Predicated region
    $region37: #{mbconv_forward.3} parent=5 // pred_check
      %p297 = pneg %p296
    $region38: #{mbconv_forward.3} parent=5 // pred_check_branch
      %299 = sbr.rel (%p297) target = $region40
    $region39: #{mbconv_forward.3} parent=5 // pred_region
      // Predicated region
      $region41: #{mbconv_forward.3} parent=39 // pred_check
        %p300 = pneg %p49
      $region42: #{mbconv_forward.3} parent=39 // pred_check_branch
        %302 = sbr.rel (%p300) target = $region44
      $region43: #{mbconv_forward.3} parent=39 // pred_region
        %s303 = smul.u32 128, %s23
        %p304 = scmp.lt.s32.totalorder %s22, 1
        %s305 = scalar_select %p304, %s22, 1
        %p306 = scmp.lt.s32.totalorder %s303, 127
        %s307 = scalar_select %p306, %s303, 127
        %s308 = smul.addr %s305, 128
        %s309 = sadd.s32 %s307, %s308
        %s310 = smul.addr %s309, 4
        %s311 = scalar_lea.vmem %s0, %s310
        %s312 = smul.u32 128, %s23
      $region44: #{mbconv_forward.3} parent=39 // pred_fallthru
        _
      // Predicated region
      $region45: #{mbconv_forward.3} parent=39 // pred_check
        %p313 = pneg %p75
      $region46: #{mbconv_forward.3} parent=39 // pred_check_branch
        %315 = sbr.rel (%p313) target = $region48
      $region47: #{mbconv_forward.3} parent=39 // pred_region
        %p316 = scmp.lt.s32.totalorder %s22, 1
        %s317 = scalar_select %p316, %s22, 1
        %s318 = scalar_lea.vmem %s1, %s317
      $region48: #{mbconv_forward.3} parent=39 // pred_fallthru
        _
      // Predicated region
      $region49: #{mbconv_forward.3} parent=39 // pred_check
        %p319 = pneg %p229
      $region50: #{mbconv_forward.3} parent=39 // pred_check_branch
        %321 = sbr.rel (%p319) target = $region52
      $region51: #{mbconv_forward.3} parent=39 // pred_region
        %s322 = smul.u32 8, %s23
        %p323 = scmp.lt.s32.totalorder %s22, 1
        %s324 = scalar_select %p323, %s22, 1
        %p325 = scmp.lt.s32.totalorder %s322, 7
        %s326 = scalar_select %p325, %s322, 7
        %s327 = smul.addr %s324, 8
        %s328 = sadd.s32 %s326, %s327
        %s329 = smul.addr %s328, 8
        %s330 = scalar_lea.vmem %s8, %s329
        %s331 = smul.u32 8, %s23
      $region52: #{mbconv_forward.3} parent=39 // pred_fallthru
        _
    $region40: #{mbconv_forward.3} parent=5 // pred_fallthru
      _
    %p332 = scmp.le.s32.totalorder 1, %s15
    %p333 = scmp.lt.s32.totalorder %s15, 3
    %p334 = pnand %p332, %p333
    %p335 = pneg %p334
    // Predicated region
    $region53: #{mbconv_forward.3} parent=5 // pred_check
      _
    $region54: #{mbconv_forward.3} parent=5 // pred_check_branch
      %337 = sbr.rel (%p334) target = $region56
    $region55: #{mbconv_forward.3} parent=5 // pred_region
      %s338 = ssub.s32 %s15, 1
      %s339 = smul.u32 128, %s25
      %p340 = scmp.lt.s32.totalorder %s24, 1
      %s341 = scalar_select %p340, %s24, 1
      %p342 = scmp.lt.s32.totalorder %s339, 127
      %s343 = scalar_select %p342, %s339, 127
      %s344 = smul.addr %s341, 128
      %s345 = sadd.s32 %s343, %s344
      %s346 = smul.addr %s345, 4
      %s347 = scalar_lea.vmem %s0, %s346
      %p348 = pneg %p55
      %p349 = pneg %p52
      %p350 = scmp.lt.s32.totalorder %s24, 1
      %s351 = scalar_select %p350, %s24, 1
      %s352 = scalar_lea.vmem %s1, %s351
      %p353 = pneg %p81
      %p354 = pneg %p78
      %p355 = pneg %p102
      %p356 = pneg %p99
      %p357 = pneg %p123
      %p358 = pneg %p120
      %p359 = pneg %p144
      %p360 = pneg %p141
      %p361 = pneg %p165
      %p362 = pneg %p162
      %p363 = pneg %p186
      %p364 = pneg %p183
      %p365 = pneg %p207
      %p366 = pneg %p204
      %s367 = smul.u32 8, %s25
      %p368 = scmp.lt.s32.totalorder %s24, 1
      %s369 = scalar_select %p368, %s24, 1
      %p370 = scmp.lt.s32.totalorder %s367, 7
      %s371 = scalar_select %p370, %s367, 7
      %s372 = smul.addr %s369, 8
      %s373 = sadd.s32 %s371, %s372
      %s374 = smul.addr %s373, 8
      %s375 = scalar_lea.vmem %s8, %s374
      %p376 = pneg %p235
      %p377 = pneg %p232
      %p378 = pneg %p263
      %p379 = pneg %p260
      %s380 = smul.u32 8, %s25
      %p381 = scmp.lt.s32.totalorder %s24, 1
      %s382 = scalar_select %p381, %s24, 1
      %p383 = scmp.lt.s32.totalorder %s380, 7
      %s384 = scalar_select %p383, %s380, 7
      %s385 = smul.addr %s382, 8
      %s386 = sadd.s32 %s384, %s385
      %s387 = smul.addr %s386, 8
      %s388 = scalar_lea.vmem %s9, %s387
      %s389 = smul.u32 128, %s25
      %p390 = scmp.lt.s32.totalorder %s24, 1
      %s391 = scalar_select %p390, %s24, 1
      %p392 = scmp.lt.s32.totalorder %s389, 127
      %s393 = scalar_select %p392, %s389, 127
      %s394 = smul.addr %s391, 128
      %s395 = sadd.s32 %s393, %s394
      %s396 = smul.addr %s395, 4
      %s397 = scalar_lea.vmem %s0, %s396
      %s398 = smul.u32 128, %s25
      %p399 = scmp.lt.s32.totalorder %s24, 1
      %s400 = scalar_select %p399, %s24, 1
      %s401 = scalar_lea.vmem %s1, %s400
      %s402 = smul.u32 8, %s25
      %p403 = scmp.lt.s32.totalorder %s24, 1
      %s404 = scalar_select %p403, %s24, 1
      %p405 = scmp.lt.s32.totalorder %s402, 7
      %s406 = scalar_select %p405, %s402, 7
      %s407 = smul.addr %s404, 8
      %s408 = sadd.s32 %s406, %s407
      %s409 = smul.addr %s408, 8
      %s410 = scalar_lea.vmem %s8, %s409
      %s411 = smul.u32 8, %s25
      %s412 = smul.u32 8, %s25
      %p413 = scmp.lt.s32.totalorder %s24, 1
      %s414 = scalar_select %p413, %s24, 1
      %p415 = scmp.lt.s32.totalorder %s412, 7
      %s416 = scalar_select %p415, %s412, 7
      %s417 = smul.addr %s414, 8
      %s418 = sadd.s32 %s416, %s417
      %s419 = smul.addr %s418, 8
      %s420 = scalar_lea.vmem %s9, %s419
      %s421 = smul.u32 8, %s25
      %v423 = vld [vmem:[%s401] sm:$0x1]
      %v424 = vld [vmem:[%s2] sm:$0xff]
      %v425 = vld [vmem:[%s2 + $0x8] sm:$0xff]
      %v426 = vld [vmem:[%s2 + $0x10] sm:$0xff]
      %v427 = vld [vmem:[%s2 + $0x18] sm:$0xff]
      %v428 = vld [vmem:[%s3] sm:$0x1]
      %vm429 = vcmask 261120
      %v431 = vsel %vm429, %v423, 0
      %433 = vmatprep.subr.mxu0 0.0
      %434 = vmatpush1.msra.mxu0 %v424
      %435 = vmatprep.subr.mxu0 0.0
      %436 = vmatpush1.msra.mxu0 %v425
      %437 = vmatprep.subr.mxu0 0.0
      %438 = vmatpush1.msra.mxu0 %v426
      %439 = vmatprep.subr.mxu0 0.0
      %440 = vmatpush1.msra.mxu0 %v427
      %441 = vmatprep.subr.mxu0 0.0
      %442 = vmatpush1.msra.mxu0 0.0
      %443 = vmatprep.subr.mxu0 0.0
      %444 = vmatpush1.msra.mxu0 0.0
      %445 = vmatprep.subr.mxu0 0.0
      %446 = vmatpush1.msra.mxu0 0.0
      %447 = vmatprep.subr.mxu0 0.0
      %448 = vmatpush1.msra.mxu0 0.0
      %449 = vmatprep.subr.mxu0 0.0
      %450 = vmatpush1.msra.mxu0 0.0
      %451 = vmatprep.subr.mxu0 0.0
      %452 = vmatpush1.msra.mxu0 0.0
      %453 = vmatprep.subr.mxu0 0.0
      %454 = vmatpush1.msra.mxu0 0.0
      %455 = vmatprep.subr.mxu0 0.0
      %456 = vmatpush1.msra.mxu0 0.0
      %457 = vmatprep.subr.mxu0 0.0
      %458 = vmatpush1.msra.mxu0 0.0
      %459 = vmatprep.subr.mxu0 0.0
      %460 = vmatpush1.msra.mxu0 0.0
      %461 = vmatprep.subr.mxu0 0.0
      %462 = vmatpush1.msra.mxu0 0.0
      %463 = vmatprep.subr.mxu0 0.0
      %464 = vmatpush1.msra.mxu0 0.0
      %465 = vmatprep.subr.mxu0 0.0
      %466 = vmatpush1.msra.mxu0 0.0
      %467 = vmatprep.subr.mxu0 0.0
      %468 = vmatpush1.msra.mxu0 0.0
      %469 = vmatprep.subr.mxu0 0.0
      %470 = vmatpush1.msra.mxu0 0.0
      %471 = vmatprep.subr.mxu0 0.0
      %472 = vmatpush1.msra.mxu0 0.0
      %473 = vmatprep.subr.mxu0 0.0
      %474 = vmatpush1.msra.mxu0 0.0
      %475 = vmatprep.subr.mxu0 0.0
      %476 = vmatpush1.msra.mxu0 0.0
      %477 = vmatprep.subr.mxu0 0.0
      %478 = vmatpush1.msra.mxu0 0.0
      %479 = vmatprep.subr.mxu0 0.0
      %480 = vmatpush1.msra.mxu0 0.0
      %481 = vmatprep.subr.mxu0 0.0
      %482 = vmatpush1.msra.mxu0 0.0
      %483 = vmatprep.subr.mxu0 0.0
      %484 = vmatpush1.msra.mxu0 0.0
      %485 = vmatprep.subr.mxu0 0.0
      %486 = vmatpush1.msra.mxu0 0.0
      %487 = vmatprep.subr.mxu0 0.0
      %488 = vmatpush1.msra.mxu0 0.0
      %489 = vmatprep.subr.mxu0 0.0
      %490 = vmatpush1.msra.mxu0 0.0
      %491 = vmatprep.subr.mxu0 0.0
      %492 = vmatpush1.msra.mxu0 0.0
      %493 = vmatprep.subr.mxu0 0.0
      %494 = vmatpush1.msra.mxu0 0.0
      %495 = vmatprep.subr.mxu0 0.0
      %496 = vmatpush1.msra.mxu0 0.0
      %497 = vmatprep.mubr.f32.mxu0 0.0
      %498 = vmatmul.mubr.f32.gmra.mrb[0].mxu0 %v431
      %v499 = vpop.f32.mrb[0].mxu0
      %v500 = vadd.f32 %v428, %v499
      %v501 = vpop.f32.mrb[0].mxu0
      %502 = vdwg.mxu0
      %v503 = vxor.u32 %v500, 2147483648
      %v504 = vmul.f32 %v503, 1.442695
      %v505 = vpow.pop %v504
      %v506 = vadd.f32 %v505, 1.0
      %v507 = vrcp.pop %v506
      %v508 = vmul.f32 1.0, %v507
      %v509 = vmul.f32 %v500, %v508
      %v510 = vld [vmem:[%s4] sm:$0x3]
      %v511 = vld [vmem:[%s5] sm:$0x1]
      %vm512 = vcmask 15360
      %v514 = vsel %vm512, %v509, 0
      %vm516 = vcmask 1041408
      %v518 = vsel %vm516, %v510, 0
      %520 = vmatprep.subr.mxu0 0.0
      %521 = vmatpush1.msra.mxu0 %v518
      %522 = vmatprep.subr.mxu0 0.0
      %523 = vmatpush1.msra.mxu0 0.0
      %524 = vmatprep.subr.mxu0 0.0
      %525 = vmatpush1.msra.mxu0 0.0
      %526 = vmatprep.subr.mxu0 0.0
      %527 = vmatpush1.msra.mxu0 0.0
      %528 = vmatprep.subr.mxu0 0.0
      %529 = vmatpush1.msra.mxu0 0.0
      %530 = vmatprep.subr.mxu0 0.0
      %531 = vmatpush1.msra.mxu0 0.0
      %532 = vmatprep.subr.mxu0 0.0
      %533 = vmatpush1.msra.mxu0 0.0
      %534 = vmatprep.subr.mxu0 0.0
      %535 = vmatpush1.msra.mxu0 0.0
      %536 = vmatprep.subr.mxu0 0.0
      %537 = vmatpush1.msra.mxu0 0.0
      %538 = vmatprep.subr.mxu0 0.0
      %539 = vmatpush1.msra.mxu0 0.0
      %540 = vmatprep.subr.mxu0 0.0
      %541 = vmatpush1.msra.mxu0 0.0
      %542 = vmatprep.subr.mxu0 0.0
      %543 = vmatpush1.msra.mxu0 0.0
      %544 = vmatprep.subr.mxu0 0.0
      %545 = vmatpush1.msra.mxu0 0.0
      %546 = vmatprep.subr.mxu0 0.0
      %547 = vmatpush1.msra.mxu0 0.0
      %548 = vmatprep.subr.mxu0 0.0
      %549 = vmatpush1.msra.mxu0 0.0
      %550 = vmatprep.subr.mxu0 0.0
      %551 = vmatpush1.msra.mxu0 0.0
      %552 = vmatprep.subr.mxu0 0.0
      %553 = vmatpush1.msra.mxu0 0.0
      %554 = vmatprep.subr.mxu0 0.0
      %555 = vmatpush1.msra.mxu0 0.0
      %556 = vmatprep.subr.mxu0 0.0
      %557 = vmatpush1.msra.mxu0 0.0
      %558 = vmatprep.subr.mxu0 0.0
      %559 = vmatpush1.msra.mxu0 0.0
      %560 = vmatprep.subr.mxu0 0.0
      %561 = vmatpush1.msra.mxu0 0.0
      %562 = vmatprep.subr.mxu0 0.0
      %563 = vmatpush1.msra.mxu0 0.0
      %564 = vmatprep.subr.mxu0 0.0
      %565 = vmatpush1.msra.mxu0 0.0
      %566 = vmatprep.subr.mxu0 0.0
      %567 = vmatpush1.msra.mxu0 0.0
      %568 = vmatprep.subr.mxu0 0.0
      %569 = vmatpush1.msra.mxu0 0.0
      %570 = vmatprep.subr.mxu0 0.0
      %571 = vmatpush1.msra.mxu0 0.0
      %572 = vmatprep.subr.mxu0 0.0
      %573 = vmatpush1.msra.mxu0 0.0
      %574 = vmatprep.subr.mxu0 0.0
      %575 = vmatpush1.msra.mxu0 0.0
      %576 = vmatprep.subr.mxu0 0.0
      %577 = vmatpush1.msra.mxu0 0.0
      %578 = vmatprep.subr.mxu0 0.0
      %579 = vmatpush1.msra.mxu0 0.0
      %580 = vmatprep.subr.mxu0 0.0
      %581 = vmatpush1.msra.mxu0 0.0
      %582 = vmatprep.subr.mxu0 0.0
      %583 = vmatpush1.msra.mxu0 0.0
      %584 = vmatprep.mubr.f32.mxu0 0.0
      %585 = vmatmul.mubr.f32.gmra.mrb[0].mxu0 %v514
      %v586 = vpop.f32.mrb[0].mxu0
      %v587 = vadd.f32 %v511, %v586
      %v588 = vpop.f32.mrb[0].mxu0
      %589 = vdwg.mxu0
      %v590 = vxor.u32 %v587, 2147483648
      %v591 = vmul.f32 %v590, 1.442695
      %v592 = vpow.pop %v591
      %v593 = vadd.f32 %v592, 1.0
      %v594 = vrcp.pop %v593
      %v595 = vmul.f32 1.0, %v594
      %v596 = vld [vmem:[%s6] sm:$0xff]
      %v597 = vlaneseq
      %v598 = vshrl.u32 %v597, 7
      %v599 = vsub.s32 0, %v598
      %v600 = vrot.slane %v595, %v599
      %v601 = vmul.f32 %v596, %v600
      %v602 = vpack.c.bf16 %v601, %v601
      %v603 = vld [vmem:[%s397] sm:$0xf]
      %v604 = vld [vmem:[%s397 + $0x4] sm:$0xf]
      %v605 = vld [vmem:[%s397 + $0x8] sm:$0xf]
      %v606 = vld [vmem:[%s397 + $0xc] sm:$0xf]
      %v607 = vld [vmem:[%s397 + $0x10] sm:$0xf]
      %v608 = vld [vmem:[%s397 + $0x14] sm:$0xf]
      %v609 = vld [vmem:[%s397 + $0x18] sm:$0xf]
      %v610 = vld [vmem:[%s397 + $0x1c] sm:$0xf]
      %v611 = vld [vmem:[%s397 + $0x20] sm:$0xf]
      %v612 = vld [vmem:[%s397 + $0x24] sm:$0xf]
      %v613 = vld [vmem:[%s397 + $0x28] sm:$0xf]
      %v614 = vld [vmem:[%s397 + $0x2c] sm:$0xf]
      %v615 = vld [vmem:[%s397 + $0x30] sm:$0xf]
      %v616 = vld [vmem:[%s397 + $0x34] sm:$0xf]
      %v617 = vld [vmem:[%s397 + $0x38] sm:$0xf]
      %v618 = vld [vmem:[%s397 + $0x3c] sm:$0xf]
      %v619 = vld [vmem:[%s397 + $0x40] sm:$0xf]
      %v620 = vld [vmem:[%s397 + $0x44] sm:$0xf]
      %v621 = vld [vmem:[%s397 + $0x48] sm:$0xf]
      %v622 = vld [vmem:[%s397 + $0x4c] sm:$0xf]
      %v623 = vld [vmem:[%s397 + $0x50] sm:$0xf]
      %v624 = vld [vmem:[%s397 + $0x54] sm:$0xf]
      %v625 = vld [vmem:[%s397 + $0x58] sm:$0xf]
      %v626 = vld [vmem:[%s397 + $0x5c] sm:$0xf]
      %v627 = vld [vmem:[%s397 + $0x60] sm:$0xf]
      %v628 = vld [vmem:[%s397 + $0x64] sm:$0xf]
      %v629 = vld [vmem:[%s397 + $0x68] sm:$0xf]
      %v630 = vld [vmem:[%s397 + $0x6c] sm:$0xf]
      %v631 = vld [vmem:[%s397 + $0x70] sm:$0xf]
      %v632 = vld [vmem:[%s397 + $0x74] sm:$0xf]
      %v633 = vld [vmem:[%s397 + $0x78] sm:$0xf]
      %v634 = vld [vmem:[%s397 + $0x7c] sm:$0xf]
      %v635 = vld [vmem:[%s397 + $0x80] sm:$0xf]
      %v636 = vld [vmem:[%s397 + $0x84] sm:$0xf]
      %v637 = vld [vmem:[%s397 + $0x88] sm:$0xf]
      %v638 = vld [vmem:[%s397 + $0x8c] sm:$0xf]
      %v639 = vld [vmem:[%s397 + $0x90] sm:$0xf]
      %v640 = vld [vmem:[%s397 + $0x94] sm:$0xf]
      %v641 = vld [vmem:[%s397 + $0x98] sm:$0xf]
      %v642 = vld [vmem:[%s397 + $0x9c] sm:$0xf]
      %v643 = vld [vmem:[%s397 + $0xa0] sm:$0xf]
      %v644 = vld [vmem:[%s397 + $0xa4] sm:$0xf]
      %v645 = vld [vmem:[%s397 + $0xa8] sm:$0xf]
      %v646 = vld [vmem:[%s397 + $0xac] sm:$0xf]
      %v647 = vld [vmem:[%s397 + $0xb0] sm:$0xf]
      %v648 = vld [vmem:[%s397 + $0xb4] sm:$0xf]
      %v649 = vld [vmem:[%s397 + $0xb8] sm:$0xf]
      %v650 = vld [vmem:[%s397 + $0xbc] sm:$0xf]
      %v651 = vld [vmem:[%s397 + $0xc0] sm:$0xf]
      %v652 = vld [vmem:[%s397 + $0xc4] sm:$0xf]
      %v653 = vld [vmem:[%s397 + $0xc8] sm:$0xf]
      %v654 = vld [vmem:[%s397 + $0xcc] sm:$0xf]
      %v655 = vld [vmem:[%s397 + $0xd0] sm:$0xf]
      %v656 = vld [vmem:[%s397 + $0xd4] sm:$0xf]
      %v657 = vld [vmem:[%s397 + $0xd8] sm:$0xf]
      %v658 = vld [vmem:[%s397 + $0xdc] sm:$0xf]
      %v659 = vld [vmem:[%s397 + $0xe0] sm:$0xf]
      %v660 = vld [vmem:[%s397 + $0xe4] sm:$0xf]
      %v661 = vld [vmem:[%s397 + $0xe8] sm:$0xf]
      %v662 = vld [vmem:[%s397 + $0xec] sm:$0xf]
      %v663 = vld [vmem:[%s397 + $0xf0] sm:$0xf]
      %v664 = vld [vmem:[%s397 + $0xf4] sm:$0xf]
      %v665 = vld [vmem:[%s397 + $0xf8] sm:$0xf]
      %v666 = vld [vmem:[%s397 + $0xfc] sm:$0xf]
      %v667 = vld [vmem:[%s397 + $0x100] sm:$0xf]
      %v668 = vld [vmem:[%s397 + $0x104] sm:$0xf]
      %v669 = vld [vmem:[%s397 + $0x108] sm:$0xf]
      %v670 = vld [vmem:[%s397 + $0x10c] sm:$0xf]
      %v671 = vld [vmem:[%s397 + $0x110] sm:$0xf]
      %v672 = vld [vmem:[%s397 + $0x114] sm:$0xf]
      %v673 = vld [vmem:[%s397 + $0x118] sm:$0xf]
      %v674 = vld [vmem:[%s397 + $0x11c] sm:$0xf]
      %v675 = vld [vmem:[%s397 + $0x120] sm:$0xf]
      %v676 = vld [vmem:[%s397 + $0x124] sm:$0xf]
      %v677 = vld [vmem:[%s397 + $0x128] sm:$0xf]
      %v678 = vld [vmem:[%s397 + $0x12c] sm:$0xf]
      %v679 = vld [vmem:[%s397 + $0x130] sm:$0xf]
      %v680 = vld [vmem:[%s397 + $0x134] sm:$0xf]
      %v681 = vld [vmem:[%s397 + $0x138] sm:$0xf]
      %v682 = vld [vmem:[%s397 + $0x13c] sm:$0xf]
      %v683 = vld [vmem:[%s397 + $0x140] sm:$0xf]
      %v684 = vld [vmem:[%s397 + $0x144] sm:$0xf]
      %v685 = vld [vmem:[%s397 + $0x148] sm:$0xf]
      %v686 = vld [vmem:[%s397 + $0x14c] sm:$0xf]
      %v687 = vld [vmem:[%s397 + $0x150] sm:$0xf]
      %v688 = vld [vmem:[%s397 + $0x154] sm:$0xf]
      %v689 = vld [vmem:[%s397 + $0x158] sm:$0xf]
      %v690 = vld [vmem:[%s397 + $0x15c] sm:$0xf]
      %v691 = vld [vmem:[%s397 + $0x160] sm:$0xf]
      %v692 = vld [vmem:[%s397 + $0x164] sm:$0xf]
      %v693 = vld [vmem:[%s397 + $0x168] sm:$0xf]
      %v694 = vld [vmem:[%s397 + $0x16c] sm:$0xf]
      %v695 = vld [vmem:[%s397 + $0x170] sm:$0xf]
      %v696 = vld [vmem:[%s397 + $0x174] sm:$0xf]
      %v697 = vld [vmem:[%s397 + $0x178] sm:$0xf]
      %v698 = vld [vmem:[%s397 + $0x17c] sm:$0xf]
      %v699 = vld [vmem:[%s397 + $0x180] sm:$0xf]
      %v700 = vld [vmem:[%s397 + $0x184] sm:$0xf]
      %v701 = vld [vmem:[%s397 + $0x188] sm:$0xf]
      %v702 = vld [vmem:[%s397 + $0x18c] sm:$0xf]
      %v703 = vld [vmem:[%s397 + $0x190] sm:$0xf]
      %v704 = vld [vmem:[%s397 + $0x194] sm:$0xf]
      %v705 = vld [vmem:[%s397 + $0x198] sm:$0xf]
      %v706 = vld [vmem:[%s397 + $0x19c] sm:$0xf]
      %v707 = vld [vmem:[%s397 + $0x1a0] sm:$0xf]
      %v708 = vld [vmem:[%s397 + $0x1a4] sm:$0xf]
      %v709 = vld [vmem:[%s397 + $0x1a8] sm:$0xf]
      %v710 = vld [vmem:[%s397 + $0x1ac] sm:$0xf]
      %v711 = vld [vmem:[%s397 + $0x1b0] sm:$0xf]
      %v712 = vld [vmem:[%s397 + $0x1b4] sm:$0xf]
      %v713 = vld [vmem:[%s397 + $0x1b8] sm:$0xf]
      %v714 = vld [vmem:[%s397 + $0x1bc] sm:$0xf]
      %v715 = vld [vmem:[%s397 + $0x1c0] sm:$0xf]
      %v716 = vld [vmem:[%s397 + $0x1c4] sm:$0xf]
      %v717 = vld [vmem:[%s397 + $0x1c8] sm:$0xf]
      %v718 = vld [vmem:[%s397 + $0x1cc] sm:$0xf]
      %v719 = vld [vmem:[%s397 + $0x1d0] sm:$0xf]
      %v720 = vld [vmem:[%s397 + $0x1d4] sm:$0xf]
      %v721 = vld [vmem:[%s397 + $0x1d8] sm:$0xf]
      %v722 = vld [vmem:[%s397 + $0x1dc] sm:$0xf]
      %v723 = vld [vmem:[%s397 + $0x1e0] sm:$0xf]
      %v724 = vld [vmem:[%s397 + $0x1e4] sm:$0xf]
      %v725 = vld [vmem:[%s397 + $0x1e8] sm:$0xf]
      %v726 = vld [vmem:[%s397 + $0x1ec] sm:$0xf]
      %v727 = vld [vmem:[%s397 + $0x1f0] sm:$0xf]
      %v728 = vld [vmem:[%s397 + $0x1f4] sm:$0xf]
      %v729 = vld [vmem:[%s397 + $0x1f8] sm:$0xf]
      %v730 = vld [vmem:[%s397 + $0x1fc] sm:$0xf]
      %v731 = vld [vmem:[%s7] sm:$0xff]
      %733 = vset.pattern.permute.xlu0 0
      %734 = vperm.xlu0 %733, %v731
      %v735 = vpop.permute.xlu0 %734
      %v865 = vunpack.c.l.b16 %v603
      %v866 = vunpack.c.l.b16 %v604
      %v867 = vunpack.c.l.b16 %v605
      %v868 = vunpack.c.l.b16 %v606
      %v869 = vunpack.c.l.b16 %v607
      %v870 = vunpack.c.l.b16 %v608
      %v871 = vunpack.c.l.b16 %v609
      %v872 = vunpack.c.l.b16 %v610
      %v873 = vunpack.c.l.b16 %v611
      %v874 = vunpack.c.l.b16 %v612
      %v875 = vunpack.c.l.b16 %v613
      %v876 = vunpack.c.l.b16 %v614
      %v877 = vunpack.c.l.b16 %v615
      %v878 = vunpack.c.l.b16 %v616
      %v879 = vunpack.c.l.b16 %v617
      %v880 = vunpack.c.l.b16 %v618
      %v881 = vunpack.c.l.b16 %v619
      %v882 = vunpack.c.l.b16 %v620
      %v883 = vunpack.c.l.b16 %v621
      %v884 = vunpack.c.l.b16 %v622
      %v885 = vunpack.c.l.b16 %v623
      %v886 = vunpack.c.l.b16 %v624
      %v887 = vunpack.c.l.b16 %v625
      %v888 = vunpack.c.l.b16 %v626
      %v889 = vunpack.c.l.b16 %v627
      %v890 = vunpack.c.l.b16 %v628
      %v891 = vunpack.c.l.b16 %v629
      %v892 = vunpack.c.l.b16 %v630
      %v893 = vunpack.c.l.b16 %v631
      %v894 = vunpack.c.l.b16 %v632
      %v895 = vunpack.c.l.b16 %v633
      %v896 = vunpack.c.l.b16 %v634
      %v897 = vunpack.c.l.b16 %v635
      %v898 = vunpack.c.l.b16 %v636
      %v899 = vunpack.c.l.b16 %v637
      %v900 = vunpack.c.l.b16 %v638
      %v901 = vunpack.c.l.b16 %v639
      %v902 = vunpack.c.l.b16 %v640
      %v903 = vunpack.c.l.b16 %v641
      %v904 = vunpack.c.l.b16 %v642
      %v905 = vunpack.c.l.b16 %v643
      %v906 = vunpack.c.l.b16 %v644
      %v907 = vunpack.c.l.b16 %v645
      %v908 = vunpack.c.l.b16 %v646
      %v909 = vunpack.c.l.b16 %v647
      %v910 = vunpack.c.l.b16 %v648
      %v911 = vunpack.c.l.b16 %v649
      %v912 = vunpack.c.l.b16 %v650
      %v913 = vunpack.c.l.b16 %v651
      %v914 = vunpack.c.l.b16 %v652
      %v915 = vunpack.c.l.b16 %v653
      %v916 = vunpack.c.l.b16 %v654
      %v917 = vunpack.c.l.b16 %v655
      %v918 = vunpack.c.l.b16 %v656
      %v919 = vunpack.c.l.b16 %v657
      %v920 = vunpack.c.l.b16 %v658
      %v921 = vunpack.c.l.b16 %v659
      %v922 = vunpack.c.l.b16 %v660
      %v923 = vunpack.c.l.b16 %v661
      %v924 = vunpack.c.l.b16 %v662
      %v925 = vunpack.c.l.b16 %v663
      %v926 = vunpack.c.l.b16 %v664
      %v927 = vunpack.c.l.b16 %v665
      %v928 = vunpack.c.l.b16 %v666
      %v929 = vunpack.c.l.b16 %v667
      %v930 = vunpack.c.l.b16 %v668
      %v931 = vunpack.c.l.b16 %v669
      %v932 = vunpack.c.l.b16 %v670
      %v933 = vunpack.c.l.b16 %v671
      %v934 = vunpack.c.l.b16 %v672
      %v935 = vunpack.c.l.b16 %v673
      %v936 = vunpack.c.l.b16 %v674
      %v937 = vunpack.c.l.b16 %v675
      %v938 = vunpack.c.l.b16 %v676
      %v939 = vunpack.c.l.b16 %v677
      %v940 = vunpack.c.l.b16 %v678
      %v941 = vunpack.c.l.b16 %v679
      %v942 = vunpack.c.l.b16 %v680
      %v943 = vunpack.c.l.b16 %v681
      %v944 = vunpack.c.l.b16 %v682
      %v945 = vunpack.c.l.b16 %v683
      %v946 = vunpack.c.l.b16 %v684
      %v947 = vunpack.c.l.b16 %v685
      %v948 = vunpack.c.l.b16 %v686
      %v949 = vunpack.c.l.b16 %v687
      %v950 = vunpack.c.l.b16 %v688
      %v951 = vunpack.c.l.b16 %v689
      %v952 = vunpack.c.l.b16 %v690
      %v953 = vunpack.c.l.b16 %v691
      %v954 = vunpack.c.l.b16 %v692
      %v955 = vunpack.c.l.b16 %v693
      %v956 = vunpack.c.l.b16 %v694
      %v957 = vunpack.c.l.b16 %v695
      %v958 = vunpack.c.l.b16 %v696
      %v959 = vunpack.c.l.b16 %v697
      %v960 = vunpack.c.l.b16 %v698
      %v961 = vunpack.c.l.b16 %v699
      %v962 = vunpack.c.l.b16 %v700
      %v963 = vunpack.c.l.b16 %v701
      %v964 = vunpack.c.l.b16 %v702
      %v965 = vunpack.c.l.b16 %v703
      %v966 = vunpack.c.l.b16 %v704
      %v967 = vunpack.c.l.b16 %v705
      %v968 = vunpack.c.l.b16 %v706
      %v969 = vunpack.c.l.b16 %v707
      %v970 = vunpack.c.l.b16 %v708
      %v971 = vunpack.c.l.b16 %v709
      %v972 = vunpack.c.l.b16 %v710
      %v973 = vunpack.c.l.b16 %v711
      %v974 = vunpack.c.l.b16 %v712
      %v975 = vunpack.c.l.b16 %v713
      %v976 = vunpack.c.l.b16 %v714
      %v977 = vunpack.c.l.b16 %v715
      %v978 = vunpack.c.l.b16 %v716
      %v979 = vunpack.c.l.b16 %v717
      %v980 = vunpack.c.l.b16 %v718
      %v981 = vunpack.c.l.b16 %v719
      %v982 = vunpack.c.l.b16 %v720
      %v983 = vunpack.c.l.b16 %v721
      %v984 = vunpack.c.l.b16 %v722
      %v985 = vunpack.c.l.b16 %v723
      %v986 = vunpack.c.l.b16 %v724
      %v987 = vunpack.c.l.b16 %v725
      %v988 = vunpack.c.l.b16 %v726
      %v989 = vunpack.c.l.b16 %v727
      %v990 = vunpack.c.l.b16 %v728
      %v991 = vunpack.c.l.b16 %v729
      %v992 = vunpack.c.l.b16 %v730
      %v993 = vpack.c.b16 %v866, %v865
      %v994 = vpack.c.b16 %v868, %v867
      %v995 = vpack.c.b16 %v870, %v869
      %v996 = vpack.c.b16 %v872, %v871
      %v997 = vpack.c.b16 %v874, %v873
      %v998 = vpack.c.b16 %v876, %v875
      %v999 = vpack.c.b16 %v878, %v877
      %v1000 = vpack.c.b16 %v880, %v879
      %v1001 = vpack.c.b16 %v882, %v881
      %v1002 = vpack.c.b16 %v884, %v883
      %v1003 = vpack.c.b16 %v886, %v885
      %v1004 = vpack.c.b16 %v888, %v887
      %v1005 = vpack.c.b16 %v890, %v889
      %v1006 = vpack.c.b16 %v892, %v891
      %v1007 = vpack.c.b16 %v894, %v893
      %v1008 = vpack.c.b16 %v896, %v895
      %v1009 = vpack.c.b16 %v898, %v897
      %v1010 = vpack.c.b16 %v900, %v899
      %v1011 = vpack.c.b16 %v902, %v901
      %v1012 = vpack.c.b16 %v904, %v903
      %v1013 = vpack.c.b16 %v906, %v905
      %v1014 = vpack.c.b16 %v908, %v907
      %v1015 = vpack.c.b16 %v910, %v909
      %v1016 = vpack.c.b16 %v912, %v911
      %v1017 = vpack.c.b16 %v914, %v913
      %v1018 = vpack.c.b16 %v916, %v915
      %v1019 = vpack.c.b16 %v918, %v917
      %v1020 = vpack.c.b16 %v920, %v919
      %v1021 = vpack.c.b16 %v922, %v921
      %v1022 = vpack.c.b16 %v924, %v923
      %v1023 = vpack.c.b16 %v926, %v925
      %v1024 = vpack.c.b16 %v928, %v927
      %v1025 = vpack.c.b16 %v930, %v929
      %v1026 = vpack.c.b16 %v932, %v931
      %v1027 = vpack.c.b16 %v934, %v933
      %v1028 = vpack.c.b16 %v936, %v935
      %v1029 = vpack.c.b16 %v938, %v937
      %v1030 = vpack.c.b16 %v940, %v939
      %v1031 = vpack.c.b16 %v942, %v941
      %v1032 = vpack.c.b16 %v944, %v943
      %v1033 = vpack.c.b16 %v946, %v945
      %v1034 = vpack.c.b16 %v948, %v947
      %v1035 = vpack.c.b16 %v950, %v949
      %v1036 = vpack.c.b16 %v952, %v951
      %v1037 = vpack.c.b16 %v954, %v953
      %v1038 = vpack.c.b16 %v956, %v955
      %v1039 = vpack.c.b16 %v958, %v957
      %v1040 = vpack.c.b16 %v960, %v959
      %v1041 = vpack.c.b16 %v962, %v961
      %v1042 = vpack.c.b16 %v964, %v963
      %v1043 = vpack.c.b16 %v966, %v965
      %v1044 = vpack.c.b16 %v968, %v967
      %v1045 = vpack.c.b16 %v970, %v969
      %v1046 = vpack.c.b16 %v972, %v971
      %v1047 = vpack.c.b16 %v974, %v973
      %v1048 = vpack.c.b16 %v976, %v975
      %v1049 = vpack.c.b16 %v978, %v977
      %v1050 = vpack.c.b16 %v980, %v979
      %v1051 = vpack.c.b16 %v982, %v981
      %v1052 = vpack.c.b16 %v984, %v983
      %v1053 = vpack.c.b16 %v986, %v985
      %v1054 = vpack.c.b16 %v988, %v987
      %v1055 = vpack.c.b16 %v990, %v989
      %v1056 = vpack.c.b16 %v992, %v991
      %v1058 = vsel %vm429, %v602, 0
      %v1061 = vsel %vm429, %v993, 0
      %v1064 = vsel %vm429, %v994, 0
      %v1067 = vsel %vm429, %v995, 0
      %v1070 = vsel %vm429, %v996, 0
      %v1073 = vsel %vm429, %v997, 0
      %v1076 = vsel %vm429, %v998, 0
      %v1079 = vsel %vm429, %v999, 0
      %v1082 = vsel %vm429, %v1000, 0
      %v1085 = vsel %vm429, %v1001, 0
      %v1088 = vsel %vm429, %v1002, 0
      %v1091 = vsel %vm429, %v1003, 0
      %v1094 = vsel %vm429, %v1004, 0
      %v1097 = vsel %vm429, %v1005, 0
      %v1100 = vsel %vm429, %v1006, 0
      %v1103 = vsel %vm429, %v1007, 0
      %v1106 = vsel %vm429, %v1008, 0
      %v1109 = vsel %vm429, %v1009, 0
      %v1112 = vsel %vm429, %v1010, 0
      %v1115 = vsel %vm429, %v1011, 0
      %v1118 = vsel %vm429, %v1012, 0
      %v1121 = vsel %vm429, %v1013, 0
      %v1124 = vsel %vm429, %v1014, 0
      %v1127 = vsel %vm429, %v1015, 0
      %v1130 = vsel %vm429, %v1016, 0
      %v1133 = vsel %vm429, %v1017, 0
      %v1136 = vsel %vm429, %v1018, 0
      %v1139 = vsel %vm429, %v1019, 0
      %v1142 = vsel %vm429, %v1020, 0
      %v1145 = vsel %vm429, %v1021, 0
      %v1148 = vsel %vm429, %v1022, 0
      %v1151 = vsel %vm429, %v1023, 0
      %v1154 = vsel %vm429, %v1024, 0
      %v1157 = vsel %vm429, %v1025, 0
      %v1160 = vsel %vm429, %v1026, 0
      %v1163 = vsel %vm429, %v1027, 0
      %v1166 = vsel %vm429, %v1028, 0
      %v1169 = vsel %vm429, %v1029, 0
      %v1172 = vsel %vm429, %v1030, 0
      %v1175 = vsel %vm429, %v1031, 0
      %v1178 = vsel %vm429, %v1032, 0
      %v1181 = vsel %vm429, %v1033, 0
      %v1184 = vsel %vm429, %v1034, 0
      %v1187 = vsel %vm429, %v1035, 0
      %v1190 = vsel %vm429, %v1036, 0
      %v1193 = vsel %vm429, %v1037, 0
      %v1196 = vsel %vm429, %v1038, 0
      %v1199 = vsel %vm429, %v1039, 0
      %v1202 = vsel %vm429, %v1040, 0
      %v1205 = vsel %vm429, %v1041, 0
      %v1208 = vsel %vm429, %v1042, 0
      %v1211 = vsel %vm429, %v1043, 0
      %v1214 = vsel %vm429, %v1044, 0
      %v1217 = vsel %vm429, %v1045, 0
      %v1220 = vsel %vm429, %v1046, 0
      %v1223 = vsel %vm429, %v1047, 0
      %v1226 = vsel %vm429, %v1048, 0
      %v1229 = vsel %vm429, %v1049, 0
      %v1232 = vsel %vm429, %v1050, 0
      %v1235 = vsel %vm429, %v1051, 0
      %v1238 = vsel %vm429, %v1052, 0
      %v1241 = vsel %vm429, %v1053, 0
      %v1244 = vsel %vm429, %v1054, 0
      %v1247 = vsel %vm429, %v1055, 0
      %v1250 = vsel %vm429, %v1056, 0
      %1252 = vmatprep.subr.bf16.mxu0 0
      %1253 = vmatpush1.bf16.xpose.msra.mxu0 %v1061
      %1254 = vmatprep.subr.bf16.mxu0 0
      %1255 = vmatpush1.bf16.xpose.msra.mxu0 %v1064
      %1256 = vmatprep.subr.bf16.mxu0 0
      %1257 = vmatpush1.bf16.xpose.msra.mxu0 %v1067
      %1258 = vmatprep.subr.bf16.mxu0 0
      %1259 = vmatpush1.bf16.xpose.msra.mxu0 %v1070
      %1260 = vmatprep.subr.bf16.mxu0 0
      %1261 = vmatpush1.bf16.xpose.msra.mxu0 %v1073
      %1262 = vmatprep.subr.bf16.mxu0 0
      %1263 = vmatpush1.bf16.xpose.msra.mxu0 %v1076
      %1264 = vmatprep.subr.bf16.mxu0 0
      %1265 = vmatpush1.bf16.xpose.msra.mxu0 %v1079
      %1266 = vmatprep.subr.bf16.mxu0 0
      %1267 = vmatpush1.bf16.xpose.msra.mxu0 %v1082
      %1268 = vmatprep.subr.bf16.mxu0 0
      %1269 = vmatpush1.bf16.xpose.msra.mxu0 %v1085
      %1270 = vmatprep.subr.bf16.mxu0 0
      %1271 = vmatpush1.bf16.xpose.msra.mxu0 %v1088
      %1272 = vmatprep.subr.bf16.mxu0 0
      %1273 = vmatpush1.bf16.xpose.msra.mxu0 %v1091
      %1274 = vmatprep.subr.bf16.mxu0 0
      %1275 = vmatpush1.bf16.xpose.msra.mxu0 %v1094
      %1276 = vmatprep.subr.bf16.mxu0 0
      %1277 = vmatpush1.bf16.xpose.msra.mxu0 %v1097
      %1278 = vmatprep.subr.bf16.mxu0 0
      %1279 = vmatpush1.bf16.xpose.msra.mxu0 %v1100
      %1280 = vmatprep.subr.bf16.mxu0 0
      %1281 = vmatpush1.bf16.xpose.msra.mxu0 %v1103
      %1282 = vmatprep.subr.bf16.mxu0 0
      %1283 = vmatpush1.bf16.xpose.msra.mxu0 %v1106
      %1284 = vmatprep.mubr.bf16.mxu0 0
      %1285 = vmatmul.mubr.bf16.gmra.mrb[0].mxu0 %v1058
      %v1286 = vpop.f32.mrb[0].mxu0
      %v1287 = vadd.f32 %v735, %v1286
      %v1288 = vpop.f32.mrb[0].mxu0
      %v1289 = vadd.f32 %v735, %v1288
      %v1290 = vpop.f32.mrb[0].mxu0
      %v1291 = vpop.f32.mrb[0].mxu0
      %1292 = vdwg.mxu0
      %1293 = vmatprep.subr.bf16.mxu0 0
      %1294 = vmatpush1.bf16.xpose.msra.mxu0 %v1109
      %1295 = vmatprep.subr.bf16.mxu0 0
      %1296 = vmatpush1.bf16.xpose.msra.mxu0 %v1112
      %1297 = vmatprep.subr.bf16.mxu0 0
      %1298 = vmatpush1.bf16.xpose.msra.mxu0 %v1115
      %1299 = vmatprep.subr.bf16.mxu0 0
      %1300 = vmatpush1.bf16.xpose.msra.mxu0 %v1118
      %1301 = vmatprep.subr.bf16.mxu0 0
      %1302 = vmatpush1.bf16.xpose.msra.mxu0 %v1121
      %1303 = vmatprep.subr.bf16.mxu0 0
      %1304 = vmatpush1.bf16.xpose.msra.mxu0 %v1124
      %1305 = vmatprep.subr.bf16.mxu0 0
      %1306 = vmatpush1.bf16.xpose.msra.mxu0 %v1127
      %1307 = vmatprep.subr.bf16.mxu0 0
      %1308 = vmatpush1.bf16.xpose.msra.mxu0 %v1130
      %1309 = vmatprep.subr.bf16.mxu0 0
      %1310 = vmatpush1.bf16.xpose.msra.mxu0 %v1133
      %1311 = vmatprep.subr.bf16.mxu0 0
      %1312 = vmatpush1.bf16.xpose.msra.mxu0 %v1136
      %1313 = vmatprep.subr.bf16.mxu0 0
      %1314 = vmatpush1.bf16.xpose.msra.mxu0 %v1139
      %1315 = vmatprep.subr.bf16.mxu0 0
      %1316 = vmatpush1.bf16.xpose.msra.mxu0 %v1142
      %1317 = vmatprep.subr.bf16.mxu0 0
      %1318 = vmatpush1.bf16.xpose.msra.mxu0 %v1145
      %1319 = vmatprep.subr.bf16.mxu0 0
      %1320 = vmatpush1.bf16.xpose.msra.mxu0 %v1148
      %1321 = vmatprep.subr.bf16.mxu0 0
      %1322 = vmatpush1.bf16.xpose.msra.mxu0 %v1151
      %1323 = vmatprep.subr.bf16.mxu0 0
      %1324 = vmatpush1.bf16.xpose.msra.mxu0 %v1154
      %1325 = vmatprep.mubr.bf16.mxu0 0
      %1326 = vmatmul.mubr.bf16.gmra.mrb[0].mxu0 %v1058
      %v1327 = vpop.f32.mrb[0].mxu0
      %v1328 = vadd.f32 %v735, %v1327
      %v1329 = vpop.f32.mrb[0].mxu0
      %v1330 = vadd.f32 %v735, %v1329
      %v1331 = vpop.f32.mrb[0].mxu0
      %v1332 = vpop.f32.mrb[0].mxu0
      %1333 = vdwg.mxu0
      %1334 = vmatprep.subr.bf16.mxu0 0
      %1335 = vmatpush1.bf16.xpose.msra.mxu0 %v1157
      %1336 = vmatprep.subr.bf16.mxu0 0
      %1337 = vmatpush1.bf16.xpose.msra.mxu0 %v1160
      %1338 = vmatprep.subr.bf16.mxu0 0
      %1339 = vmatpush1.bf16.xpose.msra.mxu0 %v1163
      %1340 = vmatprep.subr.bf16.mxu0 0
      %1341 = vmatpush1.bf16.xpose.msra.mxu0 %v1166
      %1342 = vmatprep.subr.bf16.mxu0 0
      %1343 = vmatpush1.bf16.xpose.msra.mxu0 %v1169
      %1344 = vmatprep.subr.bf16.mxu0 0
      %1345 = vmatpush1.bf16.xpose.msra.mxu0 %v1172
      %1346 = vmatprep.subr.bf16.mxu0 0
      %1347 = vmatpush1.bf16.xpose.msra.mxu0 %v1175
      %1348 = vmatprep.subr.bf16.mxu0 0
      %1349 = vmatpush1.bf16.xpose.msra.mxu0 %v1178
      %1350 = vmatprep.subr.bf16.mxu0 0
      %1351 = vmatpush1.bf16.xpose.msra.mxu0 %v1181
      %1352 = vmatprep.subr.bf16.mxu0 0
      %1353 = vmatpush1.bf16.xpose.msra.mxu0 %v1184
      %1354 = vmatprep.subr.bf16.mxu0 0
      %1355 = vmatpush1.bf16.xpose.msra.mxu0 %v1187
      %1356 = vmatprep.subr.bf16.mxu0 0
      %1357 = vmatpush1.bf16.xpose.msra.mxu0 %v1190
      %1358 = vmatprep.subr.bf16.mxu0 0
      %1359 = vmatpush1.bf16.xpose.msra.mxu0 %v1193
      %1360 = vmatprep.subr.bf16.mxu0 0
      %1361 = vmatpush1.bf16.xpose.msra.mxu0 %v1196
      %1362 = vmatprep.subr.bf16.mxu0 0
      %1363 = vmatpush1.bf16.xpose.msra.mxu0 %v1199
      %1364 = vmatprep.subr.bf16.mxu0 0
      %1365 = vmatpush1.bf16.xpose.msra.mxu0 %v1202
      %1366 = vmatprep.mubr.bf16.mxu0 0
      %1367 = vmatmul.mubr.bf16.gmra.mrb[0].mxu0 %v1058
      %v1368 = vpop.f32.mrb[0].mxu0
      %v1369 = vadd.f32 %v735, %v1368
      %v1370 = vpop.f32.mrb[0].mxu0
      %v1371 = vadd.f32 %v735, %v1370
      %v1372 = vpop.f32.mrb[0].mxu0
      %v1373 = vpop.f32.mrb[0].mxu0
      %1374 = vdwg.mxu0
      %1375 = vmatprep.subr.bf16.mxu0 0
      %1376 = vmatpush1.bf16.xpose.msra.mxu0 %v1205
      %1377 = vmatprep.subr.bf16.mxu0 0
      %1378 = vmatpush1.bf16.xpose.msra.mxu0 %v1208
      %1379 = vmatprep.subr.bf16.mxu0 0
      %1380 = vmatpush1.bf16.xpose.msra.mxu0 %v1211
      %1381 = vmatprep.subr.bf16.mxu0 0
      %1382 = vmatpush1.bf16.xpose.msra.mxu0 %v1214
      %1383 = vmatprep.subr.bf16.mxu0 0
      %1384 = vmatpush1.bf16.xpose.msra.mxu0 %v1217
      %1385 = vmatprep.subr.bf16.mxu0 0
      %1386 = vmatpush1.bf16.xpose.msra.mxu0 %v1220
      %1387 = vmatprep.subr.bf16.mxu0 0
      %1388 = vmatpush1.bf16.xpose.msra.mxu0 %v1223
      %1389 = vmatprep.subr.bf16.mxu0 0
      %1390 = vmatpush1.bf16.xpose.msra.mxu0 %v1226
      %1391 = vmatprep.subr.bf16.mxu0 0
      %1392 = vmatpush1.bf16.xpose.msra.mxu0 %v1229
      %1393 = vmatprep.subr.bf16.mxu0 0
      %1394 = vmatpush1.bf16.xpose.msra.mxu0 %v1232
      %1395 = vmatprep.subr.bf16.mxu0 0
      %1396 = vmatpush1.bf16.xpose.msra.mxu0 %v1235
      %1397 = vmatprep.subr.bf16.mxu0 0
      %1398 = vmatpush1.bf16.xpose.msra.mxu0 %v1238
      %1399 = vmatprep.subr.bf16.mxu0 0
      %1400 = vmatpush1.bf16.xpose.msra.mxu0 %v1241
      %1401 = vmatprep.subr.bf16.mxu0 0
      %1402 = vmatpush1.bf16.xpose.msra.mxu0 %v1244
      %1403 = vmatprep.subr.bf16.mxu0 0
      %1404 = vmatpush1.bf16.xpose.msra.mxu0 %v1247
      %1405 = vmatprep.subr.bf16.mxu0 0
      %1406 = vmatpush1.bf16.xpose.msra.mxu0 %v1250
      %1407 = vmatprep.mubr.bf16.mxu0 0
      %1408 = vmatmul.mubr.bf16.gmra.mrb[0].mxu0 %v1058
      %v1409 = vpop.f32.mrb[0].mxu0
      %v1410 = vadd.f32 %v735, %v1409
      %v1411 = vpop.f32.mrb[0].mxu0
      %v1412 = vadd.f32 %v735, %v1411
      %v1413 = vpop.f32.mrb[0].mxu0
      %v1414 = vpop.f32.mrb[0].mxu0
      %1415 = vdwg.mxu0
      %v1416 = vld [vmem:[%s410] sm:$0xff]
      %v1417 = vld [vmem:[%s410 + $0x8] sm:$0xff]
      %v1418 = vld [vmem:[%s410 + $0x10] sm:$0xff]
      %v1419 = vld [vmem:[%s410 + $0x18] sm:$0xff]
      %v1420 = vld [vmem:[%s410 + $0x20] sm:$0xff]
      %v1421 = vld [vmem:[%s410 + $0x28] sm:$0xff]
      %v1422 = vld [vmem:[%s410 + $0x30] sm:$0xff]
      %v1423 = vld [vmem:[%s410 + $0x38] sm:$0xff]
      %v1424 = vadd.f32 %v1287, %v1416
      %v1425 = vadd.f32 %v1289, %v1417
      %v1426 = vadd.f32 %v1328, %v1418
      %v1427 = vadd.f32 %v1330, %v1419
      %v1428 = vadd.f32 %v1369, %v1420
      %v1429 = vadd.f32 %v1371, %v1421
      %v1430 = vadd.f32 %v1410, %v1422
      %v1431 = vadd.f32 %v1412, %v1423
      %1432 = vst [vmem:[%s420] sm:$0xff] %v1424
      %1433 = vst [vmem:[%s420 + $0x8] sm:$0xff] %v1425
      %1434 = vst [vmem:[%s420 + $0x10] sm:$0xff] %v1426
      %1435 = vst [vmem:[%s420 + $0x18] sm:$0xff] %v1427
      %1436 = vst [vmem:[%s420 + $0x20] sm:$0xff] %v1428
      %1437 = vst [vmem:[%s420 + $0x28] sm:$0xff] %v1429
      %1438 = vst [vmem:[%s420 + $0x30] sm:$0xff] %v1430
      %1439 = vst [vmem:[%s420 + $0x38] sm:$0xff] %v1431
      %s1440 = smul.u32 8, %s25
      %p1441 = scmp.lt.s32.totalorder %s24, 1
      %s1442 = scalar_select %p1441, %s24, 1
      %p1443 = scmp.lt.s32.totalorder %s1440, 7
      %s1444 = scalar_select %p1443, %s1440, 7
      %s1445 = smul.addr %s1442, 8
      %s1446 = sadd.s32 %s1444, %s1445
      %s1447 = smul.addr %s1446, 8
      %s1448 = scalar_lea.vmem %s9, %s1447
      // Predicated region
      $region57: #{mbconv_forward.3} parent=55 // pred_check
        %p1449 = pneg %p260
      $region58: #{mbconv_forward.3} parent=55 // pred_check_branch
        %1451 = sbr.rel (%p1449) target = $region60
      $region59: #{mbconv_forward.3} parent=55 // pred_region
        %s1452 = smul.u32 8, %s25
      $region60: #{mbconv_forward.3} parent=55 // pred_fallthru
        _
    $region56: #{mbconv_forward.3} parent=5 // pred_fallthru
      _
    %p1453 = scmp.le.s32.totalorder 2, %s15
    // Predicated region
    $region61: #{mbconv_forward.3} parent=5 // pred_check
      %p1454 = pneg %p1453
    $region62: #{mbconv_forward.3} parent=5 // pred_check_branch
      %1456 = sbr.rel (%p1454) target = $region64
    $region63: #{mbconv_forward.3} parent=5 // pred_region
      %s1457 = ssub.s32 %s15, 2
      // Predicated region
      $region65: #{mbconv_forward.3} parent=63 // pred_check
        %p1458 = pneg %p266
      $region66: #{mbconv_forward.3} parent=63 // pred_check_branch
        %1460 = sbr.rel (%p1458) target = $region68
      $region67: #{mbconv_forward.3} parent=63 // pred_region
        %s1461 = smul.u32 8, %s27
        %p1462 = scmp.lt.s32.totalorder %s26, 1
        %s1463 = scalar_select %p1462, %s26, 1
        %p1464 = scmp.lt.s32.totalorder %s1461, 7
        %s1465 = scalar_select %p1464, %s1461, 7
        %s1466 = smul.addr %s1463, 8
        %s1467 = sadd.s32 %s1465, %s1466
        %s1468 = smul.addr %s1467, 8
        %s1469 = scalar_lea.vmem %s9, %s1468
      $region68: #{mbconv_forward.3} parent=63 // pred_fallthru
        _
    $region64: #{mbconv_forward.3} parent=5 // pred_fallthru
      _
  $region6: #{mbconv_forward.3} parent=0 // loop_footer
    %s19 = sadd.s32 1, %s15
  $region7: #{mbconv_forward.3} parent=0 // loop_footer_branch
    %14 = sbr.rel target = $region3
  $region8: #{mbconv_forward.3} parent=0 // loop_exit
    _

// kernel: mbconv_forward.2
$region0: #{mbconv_forward.2}
  #allocation0 [shape = 'u32[]', space=smem, size = 0x4, offset = 0x4, fixed_abs, tag = 'smem constant byte address 0x4 - core index']
  #allocation1 [shape = 'u32[144,128]{1,0:T(1,128)}', space=vmem, size = 0x12000, scoped, tag = 'internal scratch']
  #allocation2 [shape = 'f32[34,48,32]{2,1,0:T(8,128)}', space=vmem, size = 0xcc000, scoped, tag = 'scratch operand']
  %s0 = inlined_call_operand.vmem [shape: bf16[2,32,32,8], index: 0, kind: input, shape index: {}]
  %s1 = inlined_call_operand.vmem [shape: bf16[8,32], index: 1, kind: input, shape index: {}]
  %s2 = inlined_call_operand.vmem [shape: f32[1,32], index: 2, kind: input, shape index: {}]
  %s3 = inlined_call_operand.vmem [shape: f32[9,32], index: 3, kind: input, shape index: {}]
  %s4 = inlined_call_operand.vmem [shape: f32[1,1,32], index: 4, kind: input, shape index: {}]
  %s5 = inlined_call_operand.vmem [shape: bf16[2,32,32,32], index: 5, kind: output, shape index: {0}]
  %s6 = inlined_call_operand.vmem [shape: f32[2,1,32], index: 6, kind: output, shape index: {1}]
  %7 = xla_tuple %s5, %s6
  %s8 = sld [smem:[#allocation0]]
  $region61: #{mbconv_forward.2} parent=0
    _
  %s10 = ssub.s32 1, %s8
  %s11 = scalar_select 0, %s10, %s8
  loop: start=0, step=1, limit=4
  $region2: #{mbconv_forward.2} parent=0 // loop_pre_header
    _
  $region3: #{mbconv_forward.2} parent=0 // loop_header
    %s13 = sphi 0, %s17
    %p14 = scmp.ge.s32.totalorder %s13, 4
    %s23 = sphi 0, %s25
    %s26 = sphi 0, %s23
    %s27 = sphi 0, %s26
    %s43 = sphi 0, %s27
    %s47 = sphi 0, %s47
    %s49 = sphi 0, %s47
    %s50 = sphi 0, %s49
    %s64 = sphi 0, %s50
    %s68 = sphi 0, %s68
    %s70 = sphi 0, %s68
    %s71 = sphi 0, %s70
    %s85 = sphi 0, %s71
    %s89 = sphi 0, %s89
    %s91 = sphi 0, %s89
    %s92 = sphi 0, %s91
    %s106 = sphi 0, %s92
    %s110 = sphi 0, %s110
    %s112 = sphi 0, %s110
    %s113 = sphi 0, %s112
    %s127 = sphi 0, %s113
    %s133 = sphi 0, %s135
    %s136 = sphi 0, %s133
    %s137 = sphi 0, %s136
    %s153 = sphi 0, %s137
    %s159 = sphi 0, %s161
    %s162 = sphi 0, %s159
    %s163 = sphi 0, %s162
    %s179 = sphi 0, %s163
  $region4: #{mbconv_forward.2} parent=0 // loop_header_branch
    %16 = sbr.rel (%p14) target = $region8
  $region5: #{mbconv_forward.2} parent=0 // loop_body
    %s18 = ssub.s32 %s13, 1
    %s19 = ssub.s32 %s13, 2
    %s20 = sadd.s32 %s13, 1
    %s21 = ssub.s32 %s13, %s20
    %p22 = scmp.eq.s32.totalorder %s21, 0
    %s24 = sadd.s32 %s23, 1
    %s25 = scalar_select %p22, %s23, %s24
    %p28 = pneg %p22
    %p29 = scmp.eq.s32.totalorder %s13, 1
    %p30 = por %p28, %p29
    %p31 = scmp.ne.s32.totalorder %s23, %s26
    %p32 = scmp.eq.s32.totalorder %s13, 0
    %p33 = por %p31, %p32
    %p34 = scmp.ne.s32.totalorder %s23, %s26
    %p35 = scmp.eq.s32.totalorder %s18, 1
    %p36 = por %p34, %p35
    %p37 = scmp.ne.s32.totalorder %s26, %s27
    %p38 = scmp.eq.s32.totalorder %s18, 0
    %p39 = por %p37, %p38
    %p40 = scmp.ne.s32.totalorder %s26, %s27
    %p41 = scmp.eq.s32.totalorder %s19, 1
    %p42 = por %p40, %p41
    %p44 = scmp.ne.s32.totalorder %s27, %s43
    %p45 = scmp.eq.s32.totalorder %s19, 0
    %p46 = por %p44, %p45
    %s48 = sadd.s32 %s47, 1
    %p51 = scmp.eq.s32.totalorder %s13, 1
    %p52 = scmp.ne.s32.totalorder %s47, %s49
    %p53 = scmp.eq.s32.totalorder %s13, 0
    %p54 = por %p52, %p53
    %p55 = scmp.ne.s32.totalorder %s47, %s49
    %p56 = scmp.eq.s32.totalorder %s18, 1
    %p57 = por %p55, %p56
    %p58 = scmp.ne.s32.totalorder %s49, %s50
    %p59 = scmp.eq.s32.totalorder %s18, 0
    %p60 = por %p58, %p59
    %p61 = scmp.ne.s32.totalorder %s49, %s50
    %p62 = scmp.eq.s32.totalorder %s19, 1
    %p63 = por %p61, %p62
    %p65 = scmp.ne.s32.totalorder %s50, %s64
    %p66 = scmp.eq.s32.totalorder %s19, 0
    %p67 = por %p65, %p66
    %s69 = sadd.s32 %s68, 1
    %p72 = scmp.eq.s32.totalorder %s13, 1
    %p73 = scmp.ne.s32.totalorder %s68, %s70
    %p74 = scmp.eq.s32.totalorder %s13, 0
    %p75 = por %p73, %p74
    %p76 = scmp.ne.s32.totalorder %s68, %s70
    %p77 = scmp.eq.s32.totalorder %s18, 1
    %p78 = por %p76, %p77
    %p79 = scmp.ne.s32.totalorder %s70, %s71
    %p80 = scmp.eq.s32.totalorder %s18, 0
    %p81 = por %p79, %p80
    %p82 = scmp.ne.s32.totalorder %s70, %s71
    %p83 = scmp.eq.s32.totalorder %s19, 1
    %p84 = por %p82, %p83
    %p86 = scmp.ne.s32.totalorder %s71, %s85
    %p87 = scmp.eq.s32.totalorder %s19, 0
    %p88 = por %p86, %p87
    %s90 = sadd.s32 %s89, 1
    %p93 = scmp.eq.s32.totalorder %s13, 1
    %p94 = scmp.ne.s32.totalorder %s89, %s91
    %p95 = scmp.eq.s32.totalorder %s13, 0
    %p96 = por %p94, %p95
    %p97 = scmp.ne.s32.totalorder %s89, %s91
    %p98 = scmp.eq.s32.totalorder %s18, 1
    %p99 = por %p97, %p98
    %p100 = scmp.ne.s32.totalorder %s91, %s92
    %p101 = scmp.eq.s32.totalorder %s18, 0
    %p102 = por %p100, %p101
    %p103 = scmp.ne.s32.totalorder %s91, %s92
    %p104 = scmp.eq.s32.totalorder %s19, 1
    %p105 = por %p103, %p104
    %p107 = scmp.ne.s32.totalorder %s92, %s106
    %p108 = scmp.eq.s32.totalorder %s19, 0
    %p109 = por %p107, %p108
    %s111 = sadd.s32 %s110, 1
    %p114 = scmp.eq.s32.totalorder %s13, 1
    %p115 = scmp.ne.s32.totalorder %s110, %s112
    %p116 = scmp.eq.s32.totalorder %s13, 0
    %p117 = por %p115, %p116
    %p118 = scmp.ne.s32.totalorder %s110, %s112
    %p119 = scmp.eq.s32.totalorder %s18, 1
    %p120 = por %p118, %p119
    %p121 = scmp.ne.s32.totalorder %s112, %s113
    %p122 = scmp.eq.s32.totalorder %s18, 0
    %p123 = por %p121, %p122
    %p124 = scmp.ne.s32.totalorder %s112, %s113
    %p125 = scmp.eq.s32.totalorder %s19, 1
    %p126 = por %p124, %p125
    %p128 = scmp.ne.s32.totalorder %s113, %s127
    %p129 = scmp.eq.s32.totalorder %s19, 0
    %p130 = por %p128, %p129
    %s131 = ssub.s32 %s13, %s20
    %p132 = scmp.eq.s32.totalorder %s131, 0
    %s134 = sadd.s32 %s133, 1
    %s135 = scalar_select %p132, %s133, %s134
    %p138 = pneg %p132
    %p139 = scmp.eq.s32.totalorder %s13, 1
    %p140 = por %p138, %p139
    %p141 = scmp.ne.s32.totalorder %s133, %s136
    %p142 = scmp.eq.s32.totalorder %s13, 0
    %p143 = por %p141, %p142
    %p144 = scmp.ne.s32.totalorder %s133, %s136
    %p145 = scmp.eq.s32.totalorder %s18, 1
    %p146 = por %p144, %p145
    %p147 = scmp.ne.s32.totalorder %s136, %s137
    %p148 = scmp.eq.s32.totalorder %s18, 0
    %p149 = por %p147, %p148
    %p150 = scmp.ne.s32.totalorder %s136, %s137
    %p151 = scmp.eq.s32.totalorder %s19, 1
    %p152 = por %p150, %p151
    %p154 = scmp.ne.s32.totalorder %s137, %s153
    %p155 = scmp.eq.s32.totalorder %s19, 0
    %p156 = por %p154, %p155
    %s157 = ssub.s32 %s13, %s20
    %p158 = scmp.eq.s32.totalorder %s157, 0
    %s160 = sadd.s32 %s159, 1
    %s161 = scalar_select %p158, %s159, %s160
    %p164 = pneg %p158
    %p165 = scmp.eq.s32.totalorder %s13, 1
    %p166 = por %p164, %p165
    %p167 = scmp.ne.s32.totalorder %s159, %s162
    %p168 = scmp.eq.s32.totalorder %s13, 0
    %p169 = por %p167, %p168
    %p170 = scmp.ne.s32.totalorder %s159, %s162
    %p171 = scmp.eq.s32.totalorder %s18, 1
    %p172 = por %p170, %p171
    %p173 = scmp.ne.s32.totalorder %s162, %s163
    %p174 = scmp.eq.s32.totalorder %s18, 0
    %p175 = por %p173, %p174
    %p176 = scmp.ne.s32.totalorder %s162, %s163
    %p177 = scmp.eq.s32.totalorder %s19, 1
    %p178 = por %p176, %p177
    %p180 = scmp.ne.s32.totalorder %s163, %s179
    %p181 = scmp.eq.s32.totalorder %s19, 0
    %p182 = por %p180, %p181
    %p183 = scmp.le.s32.totalorder 1, %s13
    %p184 = scmp.lt.s32.totalorder %s13, 3
    %p185 = pnand %p183, %p184
    %p186 = pneg %p185
    // Predicated region
    $region9: #{mbconv_forward.2} parent=5 // pred_check
      _
    $region10: #{mbconv_forward.2} parent=5 // pred_check_branch
      %188 = sbr.rel (%p185) target = $region12
    $region11: #{mbconv_forward.2} parent=5 // pred_region
      %s189 = ssub.s32 %s13, 1
      // Predicated region
      $region13: #{mbconv_forward.2} parent=11 // pred_check
        %p190 = pneg %p60
      $region14: #{mbconv_forward.2} parent=11 // pred_check_branch
        %192 = sbr.rel (%p190) target = $region16
      $region15: #{mbconv_forward.2} parent=11 // pred_region
        _
      $region16: #{mbconv_forward.2} parent=11 // pred_fallthru
        _
      // Predicated region
      $region17: #{mbconv_forward.2} parent=11 // pred_check
        %p193 = pneg %p81
      $region18: #{mbconv_forward.2} parent=11 // pred_check_branch
        %195 = sbr.rel (%p193) target = $region20
      $region19: #{mbconv_forward.2} parent=11 // pred_region
        _
      $region20: #{mbconv_forward.2} parent=11 // pred_fallthru
        _
      // Predicated region
      $region21: #{mbconv_forward.2} parent=11 // pred_check
        %p196 = pneg %p102
      $region22: #{mbconv_forward.2} parent=11 // pred_check_branch
        %198 = sbr.rel (%p196) target = $region24
      $region23: #{mbconv_forward.2} parent=11 // pred_region
        _
      $region24: #{mbconv_forward.2} parent=11 // pred_fallthru
        _
      // Predicated region
      $region25: #{mbconv_forward.2} parent=11 // pred_check
        %p199 = pneg %p123
      $region26: #{mbconv_forward.2} parent=11 // pred_check_branch
        %201 = sbr.rel (%p199) target = $region28
      $region27: #{mbconv_forward.2} parent=11 // pred_region
        _
      $region28: #{mbconv_forward.2} parent=11 // pred_fallthru
        _
    $region12: #{mbconv_forward.2} parent=5 // pred_fallthru
      _
    %p202 = scmp.lt.s32.totalorder %s13, 2
    // Predicated region
    $region29: #{mbconv_forward.2} parent=5 // pred_check
      %p203 = pneg %p202
    $region30: #{mbconv_forward.2} parent=5 // pred_check_branch
      %205 = sbr.rel (%p203) target = $region32
    $region31: #{mbconv_forward.2} parent=5 // pred_region
      // Predicated region
      $region33: #{mbconv_forward.2} parent=31 // pred_check
        %p206 = pneg %p33
      $region34: #{mbconv_forward.2} parent=31 // pred_check_branch
        %208 = sbr.rel (%p206) target = $region36
      $region35: #{mbconv_forward.2} parent=31 // pred_region
        %p209 = scmp.lt.s32.totalorder %s13, 1
        %s210 = scalar_select %p209, %s13, 1
        %s211 = smul.addr %s210, 128
        %s212 = smul.addr %s211, 4
        %s213 = scalar_lea.vmem %s0, %s212
      $region36: #{mbconv_forward.2} parent=31 // pred_fallthru
        _
    $region32: #{mbconv_forward.2} parent=5 // pred_fallthru
      _
    %p214 = scmp.le.s32.totalorder 1, %s13
    %p215 = scmp.lt.s32.totalorder %s13, 3
    %p216 = pnand %p214, %p215
    %p217 = pneg %p216
    // Predicated region
    $region37: #{mbconv_forward.2} parent=5 // pred_check
      _
    $region38: #{mbconv_forward.2} parent=5 // pred_check_branch
      %219 = sbr.rel (%p216) target = $region40
    $region39: #{mbconv_forward.2} parent=5 // pred_region
      %s220 = ssub.s32 %s13, 1
      %p221 = scmp.lt.s32.totalorder %s18, 1
      %s222 = scalar_select %p221, %s18, 1
      %s223 = smul.addr %s222, 128
      %s224 = smul.addr %s223, 4
      %s225 = scalar_lea.vmem %s0, %s224
      %p226 = pneg %p39
      %p227 = pneg %p36
      %p228 = pneg %p60
      %p229 = pneg %p57
      %p230 = pneg %p81
      %p231 = pneg %p78
      %p232 = pneg %p102
      %p233 = pneg %p99
      %p234 = pneg %p123
      %p235 = pneg %p120
      %p236 = pneg %p149
      %p237 = pneg %p146
      %p238 = scmp.lt.s32.totalorder %s18, 1
      %s239 = scalar_select %p238, %s18, 1
      %s240 = smul.addr %s239, 128
      %s241 = smul.addr %s240, 4
      %s242 = scalar_lea.vmem %s5, %s241
      %p243 = pneg %p175
      %p244 = pneg %p172
      %p245 = scmp.lt.s32.totalorder %s18, 1
      %s246 = scalar_select %p245, %s18, 1
      %s247 = scalar_lea.vmem %s6, %s246
      %p248 = scmp.lt.s32.totalorder %s18, 1
      %s249 = scalar_select %p248, %s18, 1
      %s250 = smul.addr %s249, 128
      %s251 = smul.addr %s250, 4
      %s252 = scalar_lea.vmem %s0, %s251
      %p253 = scmp.lt.s32.totalorder %s18, 1
      %s254 = scalar_select %p253, %s18, 1
      %s255 = smul.addr %s254, 128
      %s256 = smul.addr %s255, 4
      %s257 = scalar_lea.vmem %s5, %s256
      %p258 = scmp.lt.s32.totalorder %s18, 1
      %s259 = scalar_select %p258, %s18, 1
      %s260 = scalar_lea.vmem %s6, %s259
      %vm262 = vcmask 261120
      %263 = vst.msk [vmem:[#allocation2] sm:$0xff] %vm262, 0.0
      %264 = vst.msk [vmem:[#allocation2 + $0x8] sm:$0xff] %vm262, 0.0
      %265 = vst.msk [vmem:[#allocation2 + $0x10] sm:$0xff] %vm262, 0.0
      %266 = vst.msk [vmem:[#allocation2 + $0x18] sm:$0xff] %vm262, 0.0
      %267 = vst.msk [vmem:[#allocation2 + $0x20] sm:$0xff] %vm262, 0.0
      %268 = vst.msk [vmem:[#allocation2 + $0x28] sm:$0xff] %vm262, 0.0
      %s269 = scalar_lea.vmem [#allocation2], 1584
      %270 = vst.msk [vmem:[%s269] sm:$0xff] %vm262, 0.0
      %271 = vst.msk [vmem:[%s269 + $0x8] sm:$0xff] %vm262, 0.0
      %272 = vst.msk [vmem:[%s269 + $0x10] sm:$0xff] %vm262, 0.0
      %273 = vst.msk [vmem:[%s269 + $0x18] sm:$0xff] %vm262, 0.0
      %274 = vst.msk [vmem:[%s269 + $0x20] sm:$0xff] %vm262, 0.0
      %275 = vst.msk [vmem:[%s269 + $0x28] sm:$0xff] %vm262, 0.0
      %s276 = scalar_lea.vmem [#allocation2], 48
      %277 = vst.msk [vmem:[%s276] sm:$0xff] %vm262, 0.0
      %278 = vst.msk [vmem:[%s276 + $0x30] sm:$0xff] %vm262, 0.0
      %279 = vst.msk [vmem:[%s276 + $0x60] sm:$0xff] %vm262, 0.0
      %280 = vst.msk [vmem:[%s276 + $0x90] sm:$0xff] %vm262, 0.0
      %281 = vst.msk [vmem:[%s276 + $0xc0] sm:$0xff] %vm262, 0.0
      %282 = vst.msk [vmem:[%s276 + $0xf0] sm:$0xff] %vm262, 0.0
      %283 = vst.msk [vmem:[%s276 + $0x120] sm:$0xff] %vm262, 0.0
      %284 = vst.msk [vmem:[%s276 + $0x150] sm:$0xff] %vm262, 0.0
      %285 = vst.msk [vmem:[%s276 + $0x180] sm:$0xff] %vm262, 0.0
      %286 = vst.msk [vmem:[%s276 + $0x1b0] sm:$0xff] %vm262, 0.0
      %287 = vst.msk [vmem:[%s276 + $0x1e0] sm:$0xff] %vm262, 0.0
      %288 = vst.msk [vmem:[%s276 + $0x210] sm:$0xff] %vm262, 0.0
      %289 = vst.msk [vmem:[%s276 + $0x240] sm:$0xff] %vm262, 0.0
      %290 = vst.msk [vmem:[%s276 + $0x270] sm:$0xff] %vm262, 0.0
      %291 = vst.msk [vmem:[%s276 + $0x2a0] sm:$0xff] %vm262, 0.0
      %292 = vst.msk [vmem:[%s276 + $0x2d0] sm:$0xff] %vm262, 0.0
      %293 = vst.msk [vmem:[%s276 + $0x300] sm:$0xff] %vm262, 0.0
      %294 = vst.msk [vmem:[%s276 + $0x330] sm:$0xff] %vm262, 0.0
      %295 = vst.msk [vmem:[%s276 + $0x360] sm:$0xff] %vm262, 0.0
      %296 = vst.msk [vmem:[%s276 + $0x390] sm:$0xff] %vm262, 0.0
      %297 = vst.msk [vmem:[%s276 + $0x3c0] sm:$0xff] %vm262, 0.0
      %298 = vst.msk [vmem:[%s276 + $0x3f0] sm:$0xff] %vm262, 0.0
      %299 = vst.msk [vmem:[%s276 + $0x420] sm:$0xff] %vm262, 0.0
      %300 = vst.msk [vmem:[%s276 + $0x450] sm:$0xff] %vm262, 0.0
      %301 = vst.msk [vmem:[%s276 + $0x480] sm:$0xff] %vm262, 0.0
      %302 = vst.msk [vmem:[%s276 + $0x4b0] sm:$0xff] %vm262, 0.0
      %303 = vst.msk [vmem:[%s276 + $0x4e0] sm:$0xff] %vm262, 0.0
      %304 = vst.msk [vmem:[%s276 + $0x510] sm:$0xff] %vm262, 0.0
      %305 = vst.msk [vmem:[%s276 + $0x540] sm:$0xff] %vm262, 0.0
      %306 = vst.msk [vmem:[%s276 + $0x570] sm:$0xff] %vm262, 0.0
      %307 = vst.msk [vmem:[%s276 + $0x5a0] sm:$0xff] %vm262, 0.0
      %308 = vst.msk [vmem:[%s276 + $0x5d0] sm:$0xff] %vm262, 0.0
      %309 = vst.msk [vmem:[%s276 + $0x28] sm:$0xff] %vm262, 0.0
      %310 = vst.msk [vmem:[%s276 + $0x58] sm:$0xff] %vm262, 0.0
      %311 = vst.msk [vmem:[%s276 + $0x88] sm:$0xff] %vm262, 0.0
      %312 = vst.msk [vmem:[%s276 + $0xb8] sm:$0xff] %vm262, 0.0
      %313 = vst.msk [vmem:[%s276 + $0xe8] sm:$0xff] %vm262, 0.0
      %314 = vst.msk [vmem:[%s276 + $0x118] sm:$0xff] %vm262, 0.0
      %315 = vst.msk [vmem:[%s276 + $0x148] sm:$0xff] %vm262, 0.0
      %316 = vst.msk [vmem:[%s276 + $0x178] sm:$0xff] %vm262, 0.0
      %317 = vst.msk [vmem:[%s276 + $0x1a8] sm:$0xff] %vm262, 0.0
      %318 = vst.msk [vmem:[%s276 + $0x1d8] sm:$0xff] %vm262, 0.0
      %319 = vst.msk [vmem:[%s276 + $0x208] sm:$0xff] %vm262, 0.0
      %320 = vst.msk [vmem:[%s276 + $0x238] sm:$0xff] %vm262, 0.0
      %321 = vst.msk [vmem:[%s276 + $0x268] sm:$0xff] %vm262, 0.0
      %322 = vst.msk [vmem:[%s276 + $0x298] sm:$0xff] %vm262, 0.0
      %323 = vst.msk [vmem:[%s276 + $0x2c8] sm:$0xff] %vm262, 0.0
      %324 = vst.msk [vmem:[%s276 + $0x2f8] sm:$0xff] %vm262, 0.0
      %325 = vst.msk [vmem:[%s276 + $0x328] sm:$0xff] %vm262, 0.0
      %326 = vst.msk [vmem:[%s276 + $0x358] sm:$0xff] %vm262, 0.0
      %327 = vst.msk [vmem:[%s276 + $0x388] sm:$0xff] %vm262, 0.0
      %328 = vst.msk [vmem:[%s276 + $0x3b8] sm:$0xff] %vm262, 0.0
      %329 = vst.msk [vmem:[%s276 + $0x3e8] sm:$0xff] %vm262, 0.0
      %330 = vst.msk [vmem:[%s276 + $0x418] sm:$0xff] %vm262, 0.0
      %331 = vst.msk [vmem:[%s276 + $0x448] sm:$0xff] %vm262, 0.0
      %332 = vst.msk [vmem:[%s276 + $0x478] sm:$0xff] %vm262, 0.0
      %333 = vst.msk [vmem:[%s276 + $0x4a8] sm:$0xff] %vm262, 0.0
      %334 = vst.msk [vmem:[%s276 + $0x4d8] sm:$0xff] %vm262, 0.0
      %335 = vst.msk [vmem:[%s276 + $0x508] sm:$0xff] %vm262, 0.0
      %336 = vst.msk [vmem:[%s276 + $0x538] sm:$0xff] %vm262, 0.0
      %337 = vst.msk [vmem:[%s276 + $0x568] sm:$0xff] %vm262, 0.0
      %338 = vst.msk [vmem:[%s276 + $0x598] sm:$0xff] %vm262, 0.0
      %339 = vst.msk [vmem:[%s276 + $0x5c8] sm:$0xff] %vm262, 0.0
      %340 = vst.msk [vmem:[%s276 + $0x5f8] sm:$0xff] %vm262, 0.0
      %v341 = vld [vmem:[%s252] sm:$0xf]
      %v342 = vld [vmem:[%s252 + $0x4] sm:$0xf]
      %v343 = vld [vmem:[%s252 + $0x8] sm:$0xf]
      %v344 = vld [vmem:[%s252 + $0xc] sm:$0xf]
      %v345 = vld [vmem:[%s252 + $0x10] sm:$0xf]
      %v346 = vld [vmem:[%s252 + $0x14] sm:$0xf]
      %v347 = vld [vmem:[%s252 + $0x18] sm:$0xf]
      %v348 = vld [vmem:[%s252 + $0x1c] sm:$0xf]
      %v349 = vld [vmem:[%s252 + $0x20] sm:$0xf]
      %v350 = vld [vmem:[%s252 + $0x24] sm:$0xf]
      %v351 = vld [vmem:[%s252 + $0x28] sm:$0xf]
      %v352 = vld [vmem:[%s252 + $0x2c] sm:$0xf]
      %v353 = vld [vmem:[%s252 + $0x30] sm:$0xf]
      %v354 = vld [vmem:[%s252 + $0x34] sm:$0xf]
      %v355 = vld [vmem:[%s252 + $0x38] sm:$0xf]
      %v356 = vld [vmem:[%s252 + $0x3c] sm:$0xf]
      %v357 = vld [vmem:[%s252 + $0x40] sm:$0xf]
      %v358 = vld [vmem:[%s252 + $0x44] sm:$0xf]
      %v359 = vld [vmem:[%s252 + $0x48] sm:$0xf]
      %v360 = vld [vmem:[%s252 + $0x4c] sm:$0xf]
      %v361 = vld [vmem:[%s252 + $0x50] sm:$0xf]
      %v362 = vld [vmem:[%s252 + $0x54] sm:$0xf]
      %v363 = vld [vmem:[%s252 + $0x58] sm:$0xf]
      %v364 = vld [vmem:[%s252 + $0x5c] sm:$0xf]
      %v365 = vld [vmem:[%s252 + $0x60] sm:$0xf]
      %v366 = vld [vmem:[%s252 + $0x64] sm:$0xf]
      %v367 = vld [vmem:[%s252 + $0x68] sm:$0xf]
      %v368 = vld [vmem:[%s252 + $0x6c] sm:$0xf]
      %v369 = vld [vmem:[%s252 + $0x70] sm:$0xf]
      %v370 = vld [vmem:[%s252 + $0x74] sm:$0xf]
      %v371 = vld [vmem:[%s252 + $0x78] sm:$0xf]
      %v372 = vld [vmem:[%s252 + $0x7c] sm:$0xf]
      %v373 = vld [vmem:[%s252 + $0x80] sm:$0xf]
      %v374 = vld [vmem:[%s252 + $0x84] sm:$0xf]
      %v375 = vld [vmem:[%s252 + $0x88] sm:$0xf]
      %v376 = vld [vmem:[%s252 + $0x8c] sm:$0xf]
      %v377 = vld [vmem:[%s252 + $0x90] sm:$0xf]
      %v378 = vld [vmem:[%s252 + $0x94] sm:$0xf]
      %v379 = vld [vmem:[%s252 + $0x98] sm:$0xf]
      %v380 = vld [vmem:[%s252 + $0x9c] sm:$0xf]
      %v381 = vld [vmem:[%s252 + $0xa0] sm:$0xf]
      %v382 = vld [vmem:[%s252 + $0xa4] sm:$0xf]
      %v383 = vld [vmem:[%s252 + $0xa8] sm:$0xf]
      %v384 = vld [vmem:[%s252 + $0xac] sm:$0xf]
      %v385 = vld [vmem:[%s252 + $0xb0] sm:$0xf]
      %v386 = vld [vmem:[%s252 + $0xb4] sm:$0xf]
      %v387 = vld [vmem:[%s252 + $0xb8] sm:$0xf]
      %v388 = vld [vmem:[%s252 + $0xbc] sm:$0xf]
      %v389 = vld [vmem:[%s252 + $0xc0] sm:$0xf]
      %v390 = vld [vmem:[%s252 + $0xc4] sm:$0xf]
      %v391 = vld [vmem:[%s252 + $0xc8] sm:$0xf]
      %v392 = vld [vmem:[%s252 + $0xcc] sm:$0xf]
      %v393 = vld [vmem:[%s252 + $0xd0] sm:$0xf]
      %v394 = vld [vmem:[%s252 + $0xd4] sm:$0xf]
      %v395 = vld [vmem:[%s252 + $0xd8] sm:$0xf]
      %v396 = vld [vmem:[%s252 + $0xdc] sm:$0xf]
      %v397 = vld [vmem:[%s252 + $0xe0] sm:$0xf]
      %v398 = vld [vmem:[%s252 + $0xe4] sm:$0xf]
      %v399 = vld [vmem:[%s252 + $0xe8] sm:$0xf]
      %v400 = vld [vmem:[%s252 + $0xec] sm:$0xf]
      %v401 = vld [vmem:[%s252 + $0xf0] sm:$0xf]
      %v402 = vld [vmem:[%s252 + $0xf4] sm:$0xf]
      %v403 = vld [vmem:[%s252 + $0xf8] sm:$0xf]
      %v404 = vld [vmem:[%s252 + $0xfc] sm:$0xf]
      %v405 = vld [vmem:[%s252 + $0x100] sm:$0xf]
      %v406 = vld [vmem:[%s252 + $0x104] sm:$0xf]
      %v407 = vld [vmem:[%s252 + $0x108] sm:$0xf]
      %v408 = vld [vmem:[%s252 + $0x10c] sm:$0xf]
      %v409 = vld [vmem:[%s252 + $0x110] sm:$0xf]
      %v410 = vld [vmem:[%s252 + $0x114] sm:$0xf]
      %v411 = vld [vmem:[%s252 + $0x118] sm:$0xf]
      %v412 = vld [vmem:[%s252 + $0x11c] sm:$0xf]
      %v413 = vld [vmem:[%s252 + $0x120] sm:$0xf]
      %v414 = vld [vmem:[%s252 + $0x124] sm:$0xf]
      %v415 = vld [vmem:[%s252 + $0x128] sm:$0xf]
      %v416 = vld [vmem:[%s252 + $0x12c] sm:$0xf]
      %v417 = vld [vmem:[%s252 + $0x130] sm:$0xf]
      %v418 = vld [vmem:[%s252 + $0x134] sm:$0xf]
      %v419 = vld [vmem:[%s252 + $0x138] sm:$0xf]
      %v420 = vld [vmem:[%s252 + $0x13c] sm:$0xf]
      %v421 = vld [vmem:[%s252 + $0x140] sm:$0xf]
      %v422 = vld [vmem:[%s252 + $0x144] sm:$0xf]
      %v423 = vld [vmem:[%s252 + $0x148] sm:$0xf]
      %v424 = vld [vmem:[%s252 + $0x14c] sm:$0xf]
      %v425 = vld [vmem:[%s252 + $0x150] sm:$0xf]
      %v426 = vld [vmem:[%s252 + $0x154] sm:$0xf]
      %v427 = vld [vmem:[%s252 + $0x158] sm:$0xf]
      %v428 = vld [vmem:[%s252 + $0x15c] sm:$0xf]
      %v429 = vld [vmem:[%s252 + $0x160] sm:$0xf]
      %v430 = vld [vmem:[%s252 + $0x164] sm:$0xf]
      %v431 = vld [vmem:[%s252 + $0x168] sm:$0xf]
      %v432 = vld [vmem:[%s252 + $0x16c] sm:$0xf]
      %v433 = vld [vmem:[%s252 + $0x170] sm:$0xf]
      %v434 = vld [vmem:[%s252 + $0x174] sm:$0xf]
      %v435 = vld [vmem:[%s252 + $0x178] sm:$0xf]
      %v436 = vld [vmem:[%s252 + $0x17c] sm:$0xf]
      %v437 = vld [vmem:[%s252 + $0x180] sm:$0xf]
      %v438 = vld [vmem:[%s252 + $0x184] sm:$0xf]
      %v439 = vld [vmem:[%s252 + $0x188] sm:$0xf]
      %v440 = vld [vmem:[%s252 + $0x18c] sm:$0xf]
      %v441 = vld [vmem:[%s252 + $0x190] sm:$0xf]
      %v442 = vld [vmem:[%s252 + $0x194] sm:$0xf]
      %v443 = vld [vmem:[%s252 + $0x198] sm:$0xf]
      %v444 = vld [vmem:[%s252 + $0x19c] sm:$0xf]
      %v445 = vld [vmem:[%s252 + $0x1a0] sm:$0xf]
      %v446 = vld [vmem:[%s252 + $0x1a4] sm:$0xf]
      %v447 = vld [vmem:[%s252 + $0x1a8] sm:$0xf]
      %v448 = vld [vmem:[%s252 + $0x1ac] sm:$0xf]
      %v449 = vld [vmem:[%s252 + $0x1b0] sm:$0xf]
      %v450 = vld [vmem:[%s252 + $0x1b4] sm:$0xf]
      %v451 = vld [vmem:[%s252 + $0x1b8] sm:$0xf]
      %v452 = vld [vmem:[%s252 + $0x1bc] sm:$0xf]
      %v453 = vld [vmem:[%s252 + $0x1c0] sm:$0xf]
      %v454 = vld [vmem:[%s252 + $0x1c4] sm:$0xf]
      %v455 = vld [vmem:[%s252 + $0x1c8] sm:$0xf]
      %v456 = vld [vmem:[%s252 + $0x1cc] sm:$0xf]
      %v457 = vld [vmem:[%s252 + $0x1d0] sm:$0xf]
      %v458 = vld [vmem:[%s252 + $0x1d4] sm:$0xf]
      %v459 = vld [vmem:[%s252 + $0x1d8] sm:$0xf]
      %v460 = vld [vmem:[%s252 + $0x1dc] sm:$0xf]
      %v461 = vld [vmem:[%s252 + $0x1e0] sm:$0xf]
      %v462 = vld [vmem:[%s252 + $0x1e4] sm:$0xf]
      %v463 = vld [vmem:[%s252 + $0x1e8] sm:$0xf]
      %v464 = vld [vmem:[%s252 + $0x1ec] sm:$0xf]
      %v465 = vld [vmem:[%s252 + $0x1f0] sm:$0xf]
      %v466 = vld [vmem:[%s252 + $0x1f4] sm:$0xf]
      %v467 = vld [vmem:[%s252 + $0x1f8] sm:$0xf]
      %v468 = vld [vmem:[%s252 + $0x1fc] sm:$0xf]
      %v469 = vld [vmem:[%s1] sm:$0xf]
      %v470 = vld [vmem:[%s2] sm:$0x1]
      %v472 = vlaneseq
      %v473 = vshrl.u32 %v472, 7
      %v474 = vsub.s32 0, %v473
      %v475 = vrot.slane %v470, %v474
      %v605 = vunpack.c.l.b16 %v341
      %v606 = vunpack.c.l.b16 %v342
      %v607 = vunpack.c.l.b16 %v343
      %v608 = vunpack.c.l.b16 %v344
      %v609 = vunpack.c.l.b16 %v345
      %v610 = vunpack.c.l.b16 %v346
      %v611 = vunpack.c.l.b16 %v347
      %v612 = vunpack.c.l.b16 %v348
      %v613 = vunpack.c.l.b16 %v349
      %v614 = vunpack.c.l.b16 %v350
      %v615 = vunpack.c.l.b16 %v351
      %v616 = vunpack.c.l.b16 %v352
      %v617 = vunpack.c.l.b16 %v353
      %v618 = vunpack.c.l.b16 %v354
      %v619 = vunpack.c.l.b16 %v355
      %v620 = vunpack.c.l.b16 %v356
      %v621 = vunpack.c.l.b16 %v357
      %v622 = vunpack.c.l.b16 %v358
      %v623 = vunpack.c.l.b16 %v359
      %v624 = vunpack.c.l.b16 %v360
      %v625 = vunpack.c.l.b16 %v361
      %v626 = vunpack.c.l.b16 %v362
      %v627 = vunpack.c.l.b16 %v363
      %v628 = vunpack.c.l.b16 %v364
      %v629 = vunpack.c.l.b16 %v365
      %v630 = vunpack.c.l.b16 %v366
      %v631 = vunpack.c.l.b16 %v367
      %v632 = vunpack.c.l.b16 %v368
      %v633 = vunpack.c.l.b16 %v369
      %v634 = vunpack.c.l.b16 %v370
      %v635 = vunpack.c.l.b16 %v371
      %v636 = vunpack.c.l.b16 %v372
      %v637 = vunpack.c.l.b16 %v373
      %v638 = vunpack.c.l.b16 %v374
      %v639 = vunpack.c.l.b16 %v375
      %v640 = vunpack.c.l.b16 %v376
      %v641 = vunpack.c.l.b16 %v377
      %v642 = vunpack.c.l.b16 %v378
      %v643 = vunpack.c.l.b16 %v379
      %v644 = vunpack.c.l.b16 %v380
      %v645 = vunpack.c.l.b16 %v381
      %v646 = vunpack.c.l.b16 %v382
      %v647 = vunpack.c.l.b16 %v383
      %v648 = vunpack.c.l.b16 %v384
      %v649 = vunpack.c.l.b16 %v385
      %v650 = vunpack.c.l.b16 %v386
      %v651 = vunpack.c.l.b16 %v387
      %v652 = vunpack.c.l.b16 %v388
      %v653 = vunpack.c.l.b16 %v389
      %v654 = vunpack.c.l.b16 %v390
      %v655 = vunpack.c.l.b16 %v391
      %v656 = vunpack.c.l.b16 %v392
      %v657 = vunpack.c.l.b16 %v393
      %v658 = vunpack.c.l.b16 %v394
      %v659 = vunpack.c.l.b16 %v395
      %v660 = vunpack.c.l.b16 %v396
      %v661 = vunpack.c.l.b16 %v397
      %v662 = vunpack.c.l.b16 %v398
      %v663 = vunpack.c.l.b16 %v399
      %v664 = vunpack.c.l.b16 %v400
      %v665 = vunpack.c.l.b16 %v401
      %v666 = vunpack.c.l.b16 %v402
      %v667 = vunpack.c.l.b16 %v403
      %v668 = vunpack.c.l.b16 %v404
      %v669 = vunpack.c.l.b16 %v405
      %v670 = vunpack.c.l.b16 %v406
      %v671 = vunpack.c.l.b16 %v407
      %v672 = vunpack.c.l.b16 %v408
      %v673 = vunpack.c.l.b16 %v409
      %v674 = vunpack.c.l.b16 %v410
      %v675 = vunpack.c.l.b16 %v411
      %v676 = vunpack.c.l.b16 %v412
      %v677 = vunpack.c.l.b16 %v413
      %v678 = vunpack.c.l.b16 %v414
      %v679 = vunpack.c.l.b16 %v415
      %v680 = vunpack.c.l.b16 %v416
      %v681 = vunpack.c.l.b16 %v417
      %v682 = vunpack.c.l.b16 %v418
      %v683 = vunpack.c.l.b16 %v419
      %v684 = vunpack.c.l.b16 %v420
      %v685 = vunpack.c.l.b16 %v421
      %v686 = vunpack.c.l.b16 %v422
      %v687 = vunpack.c.l.b16 %v423
      %v688 = vunpack.c.l.b16 %v424
      %v689 = vunpack.c.l.b16 %v425
      %v690 = vunpack.c.l.b16 %v426
      %v691 = vunpack.c.l.b16 %v427
      %v692 = vunpack.c.l.b16 %v428
      %v693 = vunpack.c.l.b16 %v429
      %v694 = vunpack.c.l.b16 %v430
      %v695 = vunpack.c.l.b16 %v431
      %v696 = vunpack.c.l.b16 %v432
      %v697 = vunpack.c.l.b16 %v433
      %v698 = vunpack.c.l.b16 %v434
      %v699 = vunpack.c.l.b16 %v435
      %v700 = vunpack.c.l.b16 %v436
      %v701 = vunpack.c.l.b16 %v437
      %v702 = vunpack.c.l.b16 %v438
      %v703 = vunpack.c.l.b16 %v439
      %v704 = vunpack.c.l.b16 %v440
      %v705 = vunpack.c.l.b16 %v441
      %v706 = vunpack.c.l.b16 %v442
      %v707 = vunpack.c.l.b16 %v443
      %v708 = vunpack.c.l.b16 %v444
      %v709 = vunpack.c.l.b16 %v445
      %v710 = vunpack.c.l.b16 %v446
      %v711 = vunpack.c.l.b16 %v447
      %v712 = vunpack.c.l.b16 %v448
      %v713 = vunpack.c.l.b16 %v449
      %v714 = vunpack.c.l.b16 %v450
      %v715 = vunpack.c.l.b16 %v451
      %v716 = vunpack.c.l.b16 %v452
      %v717 = vunpack.c.l.b16 %v453
      %v718 = vunpack.c.l.b16 %v454
      %v719 = vunpack.c.l.b16 %v455
      %v720 = vunpack.c.l.b16 %v456
      %v721 = vunpack.c.l.b16 %v457
      %v722 = vunpack.c.l.b16 %v458
      %v723 = vunpack.c.l.b16 %v459
      %v724 = vunpack.c.l.b16 %v460
      %v725 = vunpack.c.l.b16 %v461
      %v726 = vunpack.c.l.b16 %v462
      %v727 = vunpack.c.l.b16 %v463
      %v728 = vunpack.c.l.b16 %v464
      %v729 = vunpack.c.l.b16 %v465
      %v730 = vunpack.c.l.b16 %v466
      %v731 = vunpack.c.l.b16 %v467
      %v732 = vunpack.c.l.b16 %v468
      %v733 = vpack.c.b16 %v606, %v605
      %v734 = vpack.c.b16 %v608, %v607
      %v735 = vpack.c.b16 %v610, %v609
      %v736 = vpack.c.b16 %v612, %v611
      %v737 = vpack.c.b16 %v614, %v613
      %v738 = vpack.c.b16 %v616, %v615
      %v739 = vpack.c.b16 %v618, %v617
      %v740 = vpack.c.b16 %v620, %v619
      %v741 = vpack.c.b16 %v622, %v621
      %v742 = vpack.c.b16 %v624, %v623
      %v743 = vpack.c.b16 %v626, %v625
      %v744 = vpack.c.b16 %v628, %v627
      %v745 = vpack.c.b16 %v630, %v629
      %v746 = vpack.c.b16 %v632, %v631
      %v747 = vpack.c.b16 %v634, %v633
      %v748 = vpack.c.b16 %v636, %v635
      %v749 = vpack.c.b16 %v638, %v637
      %v750 = vpack.c.b16 %v640, %v639
      %v751 = vpack.c.b16 %v642, %v641
      %v752 = vpack.c.b16 %v644, %v643
      %v753 = vpack.c.b16 %v646, %v645
      %v754 = vpack.c.b16 %v648, %v647
      %v755 = vpack.c.b16 %v650, %v649
      %v756 = vpack.c.b16 %v652, %v651
      %v757 = vpack.c.b16 %v654, %v653
      %v758 = vpack.c.b16 %v656, %v655
      %v759 = vpack.c.b16 %v658, %v657
      %v760 = vpack.c.b16 %v660, %v659
      %v761 = vpack.c.b16 %v662, %v661
      %v762 = vpack.c.b16 %v664, %v663
      %v763 = vpack.c.b16 %v666, %v665
      %v764 = vpack.c.b16 %v668, %v667
      %v765 = vpack.c.b16 %v670, %v669
      %v766 = vpack.c.b16 %v672, %v671
      %v767 = vpack.c.b16 %v674, %v673
      %v768 = vpack.c.b16 %v676, %v675
      %v769 = vpack.c.b16 %v678, %v677
      %v770 = vpack.c.b16 %v680, %v679
      %v771 = vpack.c.b16 %v682, %v681
      %v772 = vpack.c.b16 %v684, %v683
      %v773 = vpack.c.b16 %v686, %v685
      %v774 = vpack.c.b16 %v688, %v687
      %v775 = vpack.c.b16 %v690, %v689
      %v776 = vpack.c.b16 %v692, %v691
      %v777 = vpack.c.b16 %v694, %v693
      %v778 = vpack.c.b16 %v696, %v695
      %v779 = vpack.c.b16 %v698, %v697
      %v780 = vpack.c.b16 %v700, %v699
      %v781 = vpack.c.b16 %v702, %v701
      %v782 = vpack.c.b16 %v704, %v703
      %v783 = vpack.c.b16 %v706, %v705
      %v784 = vpack.c.b16 %v708, %v707
      %v785 = vpack.c.b16 %v710, %v709
      %v786 = vpack.c.b16 %v712, %v711
      %v787 = vpack.c.b16 %v714, %v713
      %v788 = vpack.c.b16 %v716, %v715
      %v789 = vpack.c.b16 %v718, %v717
      %v790 = vpack.c.b16 %v720, %v719
      %v791 = vpack.c.b16 %v722, %v721
      %v792 = vpack.c.b16 %v724, %v723
      %v793 = vpack.c.b16 %v726, %v725
      %v794 = vpack.c.b16 %v728, %v727
      %v795 = vpack.c.b16 %v730, %v729
      %v796 = vpack.c.b16 %v732, %v731
      %vm797 = vcmask 64512
      %v799 = vsel %vm797, %v733, 0
      %v802 = vsel %vm797, %v734, 0
      %v805 = vsel %vm797, %v735, 0
      %v808 = vsel %vm797, %v736, 0
      %v811 = vsel %vm797, %v737, 0
      %v814 = vsel %vm797, %v738, 0
      %v817 = vsel %vm797, %v739, 0
      %v820 = vsel %vm797, %v740, 0
      %v823 = vsel %vm797, %v741, 0
      %v826 = vsel %vm797, %v742, 0
      %v829 = vsel %vm797, %v743, 0
      %v832 = vsel %vm797, %v744, 0
      %v835 = vsel %vm797, %v745, 0
      %v838 = vsel %vm797, %v746, 0
      %v841 = vsel %vm797, %v747, 0
      %v844 = vsel %vm797, %v748, 0
      %v847 = vsel %vm797, %v749, 0
      %v850 = vsel %vm797, %v750, 0
      %v853 = vsel %vm797, %v751, 0
      %v856 = vsel %vm797, %v752, 0
      %v859 = vsel %vm797, %v753, 0
      %v862 = vsel %vm797, %v754, 0
      %v865 = vsel %vm797, %v755, 0
      %v868 = vsel %vm797, %v756, 0
      %v871 = vsel %vm797, %v757, 0
      %v874 = vsel %vm797, %v758, 0
      %v877 = vsel %vm797, %v759, 0
      %v880 = vsel %vm797, %v760, 0
      %v883 = vsel %vm797, %v761, 0
      %v886 = vsel %vm797, %v762, 0
      %v889 = vsel %vm797, %v763, 0
      %v892 = vsel %vm797, %v764, 0
      %v895 = vsel %vm797, %v765, 0
      %v898 = vsel %vm797, %v766, 0
      %v901 = vsel %vm797, %v767, 0
      %v904 = vsel %vm797, %v768, 0
      %v907 = vsel %vm797, %v769, 0
      %v910 = vsel %vm797, %v770, 0
      %v913 = vsel %vm797, %v771, 0
      %v916 = vsel %vm797, %v772, 0
      %v919 = vsel %vm797, %v773, 0
      %v922 = vsel %vm797, %v774, 0
      %v925 = vsel %vm797, %v775, 0
      %v928 = vsel %vm797, %v776, 0
      %v931 = vsel %vm797, %v777, 0
      %v934 = vsel %vm797, %v778, 0
      %v937 = vsel %vm797, %v779, 0
      %v940 = vsel %vm797, %v780, 0
      %v943 = vsel %vm797, %v781, 0
      %v946 = vsel %vm797, %v782, 0
      %v949 = vsel %vm797, %v783, 0
      %v952 = vsel %vm797, %v784, 0
      %v955 = vsel %vm797, %v785, 0
      %v958 = vsel %vm797, %v786, 0
      %v961 = vsel %vm797, %v787, 0
      %v964 = vsel %vm797, %v788, 0
      %v967 = vsel %vm797, %v789, 0
      %v970 = vsel %vm797, %v790, 0
      %v973 = vsel %vm797, %v791, 0
      %v976 = vsel %vm797, %v792, 0
      %v979 = vsel %vm797, %v793, 0
      %v982 = vsel %vm797, %v794, 0
      %v985 = vsel %vm797, %v795, 0
      %v988 = vsel %vm797, %v796, 0
      %vm990 = vcmask 1043456
      %v992 = vsel %vm990, %v469, 0
      %994 = vmatprep.subr.bf16.mxu0 0
      %995 = vmatpush1.bf16.msra.mxu0 %v992
      %996 = vmatprep.subr.bf16.mxu0 0
      %997 = vmatpush1.bf16.msra.mxu0 0
      %998 = vmatprep.subr.bf16.mxu0 0
      %999 = vmatpush1.bf16.msra.mxu0 0
      %1000 = vmatprep.subr.bf16.mxu0 0
      %1001 = vmatpush1.bf16.msra.mxu0 0
      %1002 = vmatprep.subr.bf16.mxu0 0
      %1003 = vmatpush1.bf16.msra.mxu0 0
      %1004 = vmatprep.subr.bf16.mxu0 0
      %1005 = vmatpush1.bf16.msra.mxu0 0
      %1006 = vmatprep.subr.bf16.mxu0 0
      %1007 = vmatpush1.bf16.msra.mxu0 0
      %1008 = vmatprep.subr.bf16.mxu0 0
      %1009 = vmatpush1.bf16.msra.mxu0 0
      %1010 = vmatprep.subr.bf16.mxu0 0
      %1011 = vmatpush1.bf16.msra.mxu0 0
      %1012 = vmatprep.subr.bf16.mxu0 0
      %1013 = vmatpush1.bf16.msra.mxu0 0
      %1014 = vmatprep.subr.bf16.mxu0 0
      %1015 = vmatpush1.bf16.msra.mxu0 0
      %1016 = vmatprep.subr.bf16.mxu0 0
      %1017 = vmatpush1.bf16.msra.mxu0 0
      %1018 = vmatprep.subr.bf16.mxu0 0
      %1019 = vmatpush1.bf16.msra.mxu0 0
      %1020 = vmatprep.subr.bf16.mxu0 0
      %1021 = vmatpush1.bf16.msra.mxu0 0
      %1022 = vmatprep.subr.bf16.mxu0 0
      %1023 = vmatpush1.bf16.msra.mxu0 0
      %1024 = vmatprep.subr.bf16.mxu0 0
      %1025 = vmatpush1.bf16.msra.mxu0 0
      %1026 = vmatprep.mubr.bf16.mxu0 0
      %1027 = vmatmul.mubr.bf16.gmra.mrb[0].mxu0 %v799
      %v1028 = vpop.f32.mrb[0].mxu0
      %v1029 = vadd.f32 %v475, %v1028
      %v1030 = vpop.f32.mrb[0].mxu0
      %v1031 = vpop.f32.mrb[0].mxu0
      %v1032 = vadd.f32 %v475, %v1031
      %v1033 = vpop.f32.mrb[0].mxu0
      %1034 = vmatprep.mubr.bf16.mxu0 0
      %1035 = vmatmul.mubr.bf16.gmra.mrb[0].mxu0 %v802
      %v1036 = vpop.f32.mrb[0].mxu0
      %v1037 = vadd.f32 %v475, %v1036
      %v1038 = vpop.f32.mrb[0].mxu0
      %v1039 = vpop.f32.mrb[0].mxu0
      %v1040 = vadd.f32 %v475, %v1039
      %v1041 = vpop.f32.mrb[0].mxu0
      %1042 = vmatprep.mubr.bf16.mxu0 0
      %1043 = vmatmul.mubr.bf16.gmra.mrb[0].mxu0 %v805
      %v1044 = vpop.f32.mrb[0].mxu0
      %v1045 = vadd.f32 %v475, %v1044
      %v1046 = vpop.f32.mrb[0].mxu0
      %v1047 = vpop.f32.mrb[0].mxu0
      %v1048 = vadd.f32 %v475, %v1047
      %v1049 = vpop.f32.mrb[0].mxu0
      %1050 = vmatprep.mubr.bf16.mxu0 0
      %1051 = vmatmul.mubr.bf16.gmra.mrb[0].mxu0 %v808
      %v1052 = vpop.f32.mrb[0].mxu0
      %v1053 = vadd.f32 %v475, %v1052
      %v1054 = vpop.f32.mrb[0].mxu0
      %v1055 = vpop.f32.mrb[0].mxu0
      %v1056 = vadd.f32 %v475, %v1055
      %v1057 = vpop.f32.mrb[0].mxu0
      %1058 = vmatprep.mubr.bf16.mxu0 0
      %1059 = vmatmul.mubr.bf16.gmra.mrb[0].mxu0 %v811
      %v1060 = vpop.f32.mrb[0].mxu0
      %v1061 = vadd.f32 %v475, %v1060
      %v1062 = vpop.f32.mrb[0].mxu0
      %v1063 = vpop.f32.mrb[0].mxu0
      %v1064 = vadd.f32 %v475, %v1063
      %v1065 = vpop.f32.mrb[0].mxu0
      %1066 = vmatprep.mubr.bf16.mxu0 0
      %1067 = vmatmul.mubr.bf16.gmra.mrb[0].mxu0 %v814
      %v1068 = vpop.f32.mrb[0].mxu0
      %v1069 = vadd.f32 %v475, %v1068
      %v1070 = vpop.f32.mrb[0].mxu0
      %v1071 = vpop.f32.mrb[0].mxu0
      %v1072 = vadd.f32 %v475, %v1071
      %v1073 = vpop.f32.mrb[0].mxu0
      %1074 = vmatprep.mubr.bf16.mxu0 0
      %1075 = vmatmul.mubr.bf16.gmra.mrb[0].mxu0 %v817
      %v1076 = vpop.f32.mrb[0].mxu0
      %v1077 = vadd.f32 %v475, %v1076
      %v1078 = vpop.f32.mrb[0].mxu0
      %v1079 = vpop.f32.mrb[0].mxu0
      %v1080 = vadd.f32 %v475, %v1079
      %v1081 = vpop.f32.mrb[0].mxu0
      %1082 = vmatprep.mubr.bf16.mxu0 0
      %1083 = vmatmul.mubr.bf16.gmra.mrb[0].mxu0 %v820
      %v1084 = vpop.f32.mrb[0].mxu0
      %v1085 = vadd.f32 %v475, %v1084
      %v1086 = vpop.f32.mrb[0].mxu0
      %v1087 = vpop.f32.mrb[0].mxu0
      %v1088 = vadd.f32 %v475, %v1087
      %v1089 = vpop.f32.mrb[0].mxu0
      %1090 = vmatprep.mubr.bf16.mxu0 0
      %1091 = vmatmul.mubr.bf16.gmra.mrb[0].mxu0 %v823
      %v1092 = vpop.f32.mrb[0].mxu0
      %v1093 = vadd.f32 %v475, %v1092
      %v1094 = vpop.f32.mrb[0].mxu0
      %v1095 = vpop.f32.mrb[0].mxu0
      %v1096 = vadd.f32 %v475, %v1095
      %v1097 = vpop.f32.mrb[0].mxu0
      %1098 = vmatprep.mubr.bf16.mxu0 0
      %1099 = vmatmul.mubr.bf16.gmra.mrb[0].mxu0 %v826
      %v1100 = vpop.f32.mrb[0].mxu0
      %v1101 = vadd.f32 %v475, %v1100
      %v1102 = vpop.f32.mrb[0].mxu0
      %v1103 = vpop.f32.mrb[0].mxu0
      %v1104 = vadd.f32 %v475, %v1103
      %v1105 = vpop.f32.mrb[0].mxu0
      %1106 = vmatprep.mubr.bf16.mxu0 0
      %1107 = vmatmul.mubr.bf16.gmra.mrb[0].mxu0 %v829
      %v1108 = vpop.f32.mrb[0].mxu0
      %v1109 = vadd.f32 %v475, %v1108
      %v1110 = vpop.f32.mrb[0].mxu0
      %v1111 = vpop.f32.mrb[0].mxu0
      %v1112 = vadd.f32 %v475, %v1111
      %v1113 = vpop.f32.mrb[0].mxu0
      %1114 = vmatprep.mubr.bf16.mxu0 0
      %1115 = vmatmul.mubr.bf16.gmra.mrb[0].mxu0 %v832
      %v1116 = vpop.f32.mrb[0].mxu0
      %v1117 = vadd.f32 %v475, %v1116
      %v1118 = vpop.f32.mrb[0].mxu0
      %v1119 = vpop.f32.mrb[0].mxu0
      %v1120 = vadd.f32 %v475, %v1119
      %v1121 = vpop.f32.mrb[0].mxu0
      %1122 = vmatprep.mubr.bf16.mxu0 0
      %1123 = vmatmul.mubr.bf16.gmra.mrb[0].mxu0 %v835
      %v1124 = vpop.f32.mrb[0].mxu0
      %v1125 = vadd.f32 %v475, %v1124
      %v1126 = vpop.f32.mrb[0].mxu0
      %v1127 = vpop.f32.mrb[0].mxu0
      %v1128 = vadd.f32 %v475, %v1127
      %v1129 = vpop.f32.mrb[0].mxu0
      %1130 = vmatprep.mubr.bf16.mxu0 0
      %1131 = vmatmul.mubr.bf16.gmra.mrb[0].mxu0 %v838
      %v1132 = vpop.f32.mrb[0].mxu0
      %v1133 = vadd.f32 %v475, %v1132
      %v1134 = vpop.f32.mrb[0].mxu0
      %v1135 = vpop.f32.mrb[0].mxu0
      %v1136 = vadd.f32 %v475, %v1135
      %v1137 = vpop.f32.mrb[0].mxu0
      %1138 = vmatprep.mubr.bf16.mxu0 0
      %1139 = vmatmul.mubr.bf16.gmra.mrb[0].mxu0 %v841
      %v1140 = vpop.f32.mrb[0].mxu0
      %v1141 = vadd.f32 %v475, %v1140
      %v1142 = vpop.f32.mrb[0].mxu0
      %v1143 = vpop.f32.mrb[0].mxu0
      %v1144 = vadd.f32 %v475, %v1143
      %v1145 = vpop.f32.mrb[0].mxu0
      %1146 = vmatprep.mubr.bf16.mxu0 0
      %1147 = vmatmul.mubr.bf16.gmra.mrb[0].mxu0 %v844
      %v1148 = vpop.f32.mrb[0].mxu0
      %v1149 = vadd.f32 %v475, %v1148
      %v1150 = vpop.f32.mrb[0].mxu0
      %v1151 = vpop.f32.mrb[0].mxu0
      %v1152 = vadd.f32 %v475, %v1151
      %v1153 = vpop.f32.mrb[0].mxu0
      %1154 = vmatprep.mubr.bf16.mxu0 0
      %1155 = vmatmul.mubr.bf16.gmra.mrb[0].mxu0 %v847
      %v1156 = vpop.f32.mrb[0].mxu0
      %v1157 = vadd.f32 %v475, %v1156
      %v1158 = vpop.f32.mrb[0].mxu0
      %v1159 = vpop.f32.mrb[0].mxu0
      %v1160 = vadd.f32 %v475, %v1159
      %v1161 = vpop.f32.mrb[0].mxu0
      %1162 = vmatprep.mubr.bf16.mxu0 0
      %1163 = vmatmul.mubr.bf16.gmra.mrb[0].mxu0 %v850
      %v1164 = vpop.f32.mrb[0].mxu0
      %v1165 = vadd.f32 %v475, %v1164
      %v1166 = vpop.f32.mrb[0].mxu0
      %v1167 = vpop.f32.mrb[0].mxu0
      %v1168 = vadd.f32 %v475, %v1167
      %v1169 = vpop.f32.mrb[0].mxu0
      %1170 = vmatprep.mubr.bf16.mxu0 0
      %1171 = vmatmul.mubr.bf16.gmra.mrb[0].mxu0 %v853
      %v1172 = vpop.f32.mrb[0].mxu0
      %v1173 = vadd.f32 %v475, %v1172
      %v1174 = vpop.f32.mrb[0].mxu0
      %v1175 = vpop.f32.mrb[0].mxu0
      %v1176 = vadd.f32 %v475, %v1175
      %v1177 = vpop.f32.mrb[0].mxu0
      %1178 = vmatprep.mubr.bf16.mxu0 0
      %1179 = vmatmul.mubr.bf16.gmra.mrb[0].mxu0 %v856
      %v1180 = vpop.f32.mrb[0].mxu0
      %v1181 = vadd.f32 %v475, %v1180
      %v1182 = vpop.f32.mrb[0].mxu0
      %v1183 = vpop.f32.mrb[0].mxu0
      %v1184 = vadd.f32 %v475, %v1183
      %v1185 = vpop.f32.mrb[0].mxu0
      %1186 = vmatprep.mubr.bf16.mxu0 0
      %1187 = vmatmul.mubr.bf16.gmra.mrb[0].mxu0 %v859
      %v1188 = vpop.f32.mrb[0].mxu0
      %v1189 = vadd.f32 %v475, %v1188
      %v1190 = vpop.f32.mrb[0].mxu0
      %v1191 = vpop.f32.mrb[0].mxu0
      %v1192 = vadd.f32 %v475, %v1191
      %v1193 = vpop.f32.mrb[0].mxu0
      %1194 = vmatprep.mubr.bf16.mxu0 0
      %1195 = vmatmul.mubr.bf16.gmra.mrb[0].mxu0 %v862
      %v1196 = vpop.f32.mrb[0].mxu0
      %v1197 = vadd.f32 %v475, %v1196
      %v1198 = vpop.f32.mrb[0].mxu0
      %v1199 = vpop.f32.mrb[0].mxu0
      %v1200 = vadd.f32 %v475, %v1199
      %v1201 = vpop.f32.mrb[0].mxu0
      %1202 = vmatprep.mubr.bf16.mxu0 0
      %1203 = vmatmul.mubr.bf16.gmra.mrb[0].mxu0 %v865
      %v1204 = vpop.f32.mrb[0].mxu0
      %v1205 = vadd.f32 %v475, %v1204
      %v1206 = vpop.f32.mrb[0].mxu0
      %v1207 = vpop.f32.mrb[0].mxu0
      %v1208 = vadd.f32 %v475, %v1207
      %v1209 = vpop.f32.mrb[0].mxu0
      %1210 = vmatprep.mubr.bf16.mxu0 0
      %1211 = vmatmul.mubr.bf16.gmra.mrb[0].mxu0 %v868
      %v1212 = vpop.f32.mrb[0].mxu0
      %v1213 = vadd.f32 %v475, %v1212
      %v1214 = vpop.f32.mrb[0].mxu0
      %v1215 = vpop.f32.mrb[0].mxu0
      %v1216 = vadd.f32 %v475, %v1215
      %v1217 = vpop.f32.mrb[0].mxu0
      %1218 = vmatprep.mubr.bf16.mxu0 0
      %1219 = vmatmul.mubr.bf16.gmra.mrb[0].mxu0 %v871
      %v1220 = vpop.f32.mrb[0].mxu0
      %v1221 = vadd.f32 %v475, %v1220
      %v1222 = vpop.f32.mrb[0].mxu0
      %v1223 = vpop.f32.mrb[0].mxu0
      %v1224 = vadd.f32 %v475, %v1223
      %v1225 = vpop.f32.mrb[0].mxu0
      %1226 = vmatprep.mubr.bf16.mxu0 0
      %1227 = vmatmul.mubr.bf16.gmra.mrb[0].mxu0 %v874
      %v1228 = vpop.f32.mrb[0].mxu0
      %v1229 = vadd.f32 %v475, %v1228
      %v1230 = vpop.f32.mrb[0].mxu0
      %v1231 = vpop.f32.mrb[0].mxu0
      %v1232 = vadd.f32 %v475, %v1231
      %v1233 = vpop.f32.mrb[0].mxu0
      %1234 = vmatprep.mubr.bf16.mxu0 0
      %1235 = vmatmul.mubr.bf16.gmra.mrb[0].mxu0 %v877
      %v1236 = vpop.f32.mrb[0].mxu0
      %v1237 = vadd.f32 %v475, %v1236
      %v1238 = vpop.f32.mrb[0].mxu0
      %v1239 = vpop.f32.mrb[0].mxu0
      %v1240 = vadd.f32 %v475, %v1239
      %v1241 = vpop.f32.mrb[0].mxu0
      %1242 = vmatprep.mubr.bf16.mxu0 0
      %1243 = vmatmul.mubr.bf16.gmra.mrb[0].mxu0 %v880
      %v1244 = vpop.f32.mrb[0].mxu0
      %v1245 = vadd.f32 %v475, %v1244
      %v1246 = vpop.f32.mrb[0].mxu0
      %v1247 = vpop.f32.mrb[0].mxu0
      %v1248 = vadd.f32 %v475, %v1247
      %v1249 = vpop.f32.mrb[0].mxu0
      %1250 = vmatprep.mubr.bf16.mxu0 0
      %1251 = vmatmul.mubr.bf16.gmra.mrb[0].mxu0 %v883
      %v1252 = vpop.f32.mrb[0].mxu0
      %v1253 = vadd.f32 %v475, %v1252
      %v1254 = vpop.f32.mrb[0].mxu0
      %v1255 = vpop.f32.mrb[0].mxu0
      %v1256 = vadd.f32 %v475, %v1255
      %v1257 = vpop.f32.mrb[0].mxu0
      %1258 = vmatprep.mubr.bf16.mxu0 0
      %1259 = vmatmul.mubr.bf16.gmra.mrb[0].mxu0 %v886
      %v1260 = vpop.f32.mrb[0].mxu0
      %v1261 = vadd.f32 %v475, %v1260
      %v1262 = vpop.f32.mrb[0].mxu0
      %v1263 = vpop.f32.mrb[0].mxu0
      %v1264 = vadd.f32 %v475, %v1263
      %v1265 = vpop.f32.mrb[0].mxu0
      %1266 = vmatprep.mubr.bf16.mxu0 0
      %1267 = vmatmul.mubr.bf16.gmra.mrb[0].mxu0 %v889
      %v1268 = vpop.f32.mrb[0].mxu0
      %v1269 = vadd.f32 %v475, %v1268
      %v1270 = vpop.f32.mrb[0].mxu0
      %v1271 = vpop.f32.mrb[0].mxu0
      %v1272 = vadd.f32 %v475, %v1271
      %v1273 = vpop.f32.mrb[0].mxu0
      %1274 = vmatprep.mubr.bf16.mxu0 0
      %1275 = vmatmul.mubr.bf16.gmra.mrb[0].mxu0 %v892
      %v1276 = vpop.f32.mrb[0].mxu0
      %v1277 = vadd.f32 %v475, %v1276
      %v1278 = vpop.f32.mrb[0].mxu0
      %v1279 = vpop.f32.mrb[0].mxu0
      %v1280 = vadd.f32 %v475, %v1279
      %v1281 = vpop.f32.mrb[0].mxu0
      %1282 = vmatprep.mubr.bf16.mxu0 0
      %1283 = vmatmul.mubr.bf16.gmra.mrb[0].mxu0 %v895
      %v1284 = vpop.f32.mrb[0].mxu0
      %v1285 = vadd.f32 %v475, %v1284
      %v1286 = vpop.f32.mrb[0].mxu0
      %v1287 = vpop.f32.mrb[0].mxu0
      %v1288 = vadd.f32 %v475, %v1287
      %v1289 = vpop.f32.mrb[0].mxu0
      %1290 = vmatprep.mubr.bf16.mxu0 0
      %1291 = vmatmul.mubr.bf16.gmra.mrb[0].mxu0 %v898
      %v1292 = vpop.f32.mrb[0].mxu0
      %v1293 = vadd.f32 %v475, %v1292
      %v1294 = vpop.f32.mrb[0].mxu0
      %v1295 = vpop.f32.mrb[0].mxu0
      %v1296 = vadd.f32 %v475, %v1295
      %v1297 = vpop.f32.mrb[0].mxu0
      %1298 = vmatprep.mubr.bf16.mxu0 0
      %1299 = vmatmul.mubr.bf16.gmra.mrb[0].mxu0 %v901
      %v1300 = vpop.f32.mrb[0].mxu0
      %v1301 = vadd.f32 %v475, %v1300
      %v1302 = vpop.f32.mrb[0].mxu0
      %v1303 = vpop.f32.mrb[0].mxu0
      %v1304 = vadd.f32 %v475, %v1303
      %v1305 = vpop.f32.mrb[0].mxu0
      %1306 = vmatprep.mubr.bf16.mxu0 0
      %1307 = vmatmul.mubr.bf16.gmra.mrb[0].mxu0 %v904
      %v1308 = vpop.f32.mrb[0].mxu0
      %v1309 = vadd.f32 %v475, %v1308
      %v1310 = vpop.f32.mrb[0].mxu0
      %v1311 = vpop.f32.mrb[0].mxu0
      %v1312 = vadd.f32 %v475, %v1311
      %v1313 = vpop.f32.mrb[0].mxu0
      %1314 = vmatprep.mubr.bf16.mxu0 0
      %1315 = vmatmul.mubr.bf16.gmra.mrb[0].mxu0 %v907
      %v1316 = vpop.f32.mrb[0].mxu0
      %v1317 = vadd.f32 %v475, %v1316
      %v1318 = vpop.f32.mrb[0].mxu0
      %v1319 = vpop.f32.mrb[0].mxu0
      %v1320 = vadd.f32 %v475, %v1319
      %v1321 = vpop.f32.mrb[0].mxu0
      %1322 = vmatprep.mubr.bf16.mxu0 0
      %1323 = vmatmul.mubr.bf16.gmra.mrb[0].mxu0 %v910
      %v1324 = vpop.f32.mrb[0].mxu0
      %v1325 = vadd.f32 %v475, %v1324
      %v1326 = vpop.f32.mrb[0].mxu0
      %v1327 = vpop.f32.mrb[0].mxu0
      %v1328 = vadd.f32 %v475, %v1327
      %v1329 = vpop.f32.mrb[0].mxu0
      %1330 = vmatprep.mubr.bf16.mxu0 0
      %1331 = vmatmul.mubr.bf16.gmra.mrb[0].mxu0 %v913
      %v1332 = vpop.f32.mrb[0].mxu0
      %v1333 = vadd.f32 %v475, %v1332
      %v1334 = vpop.f32.mrb[0].mxu0
      %v1335 = vpop.f32.mrb[0].mxu0
      %v1336 = vadd.f32 %v475, %v1335
      %v1337 = vpop.f32.mrb[0].mxu0
      %1338 = vmatprep.mubr.bf16.mxu0 0
      %1339 = vmatmul.mubr.bf16.gmra.mrb[0].mxu0 %v916
      %v1340 = vpop.f32.mrb[0].mxu0
      %v1341 = vadd.f32 %v475, %v1340
      %v1342 = vpop.f32.mrb[0].mxu0
      %v1343 = vpop.f32.mrb[0].mxu0
      %v1344 = vadd.f32 %v475, %v1343
      %v1345 = vpop.f32.mrb[0].mxu0
      %1346 = vmatprep.mubr.bf16.mxu0 0
      %1347 = vmatmul.mubr.bf16.gmra.mrb[0].mxu0 %v919
      %v1348 = vpop.f32.mrb[0].mxu0
      %v1349 = vadd.f32 %v475, %v1348
      %v1350 = vpop.f32.mrb[0].mxu0
      %v1351 = vpop.f32.mrb[0].mxu0
      %v1352 = vadd.f32 %v475, %v1351
      %v1353 = vpop.f32.mrb[0].mxu0
      %1354 = vmatprep.mubr.bf16.mxu0 0
      %1355 = vmatmul.mubr.bf16.gmra.mrb[0].mxu0 %v922
      %v1356 = vpop.f32.mrb[0].mxu0
      %v1357 = vadd.f32 %v475, %v1356
      %v1358 = vpop.f32.mrb[0].mxu0
      %v1359 = vpop.f32.mrb[0].mxu0
      %v1360 = vadd.f32 %v475, %v1359
      %v1361 = vpop.f32.mrb[0].mxu0
      %1362 = vmatprep.mubr.bf16.mxu0 0
      %1363 = vmatmul.mubr.bf16.gmra.mrb[0].mxu0 %v925
      %v1364 = vpop.f32.mrb[0].mxu0
      %v1365 = vadd.f32 %v475, %v1364
      %v1366 = vpop.f32.mrb[0].mxu0
      %v1367 = vpop.f32.mrb[0].mxu0
      %v1368 = vadd.f32 %v475, %v1367
      %v1369 = vpop.f32.mrb[0].mxu0
      %1370 = vmatprep.mubr.bf16.mxu0 0
      %1371 = vmatmul.mubr.bf16.gmra.mrb[0].mxu0 %v928
      %v1372 = vpop.f32.mrb[0].mxu0
      %v1373 = vadd.f32 %v475, %v1372
      %v1374 = vpop.f32.mrb[0].mxu0
      %v1375 = vpop.f32.mrb[0].mxu0
      %v1376 = vadd.f32 %v475, %v1375
      %v1377 = vpop.f32.mrb[0].mxu0
      %1378 = vmatprep.mubr.bf16.mxu0 0
      %1379 = vmatmul.mubr.bf16.gmra.mrb[0].mxu0 %v931
      %v1380 = vpop.f32.mrb[0].mxu0
      %v1381 = vadd.f32 %v475, %v1380
      %v1382 = vpop.f32.mrb[0].mxu0
      %v1383 = vpop.f32.mrb[0].mxu0
      %v1384 = vadd.f32 %v475, %v1383
      %v1385 = vpop.f32.mrb[0].mxu0
      %1386 = vmatprep.mubr.bf16.mxu0 0
      %1387 = vmatmul.mubr.bf16.gmra.mrb[0].mxu0 %v934
      %v1388 = vpop.f32.mrb[0].mxu0
      %v1389 = vadd.f32 %v475, %v1388
      %v1390 = vpop.f32.mrb[0].mxu0
      %v1391 = vpop.f32.mrb[0].mxu0
      %v1392 = vadd.f32 %v475, %v1391
      %v1393 = vpop.f32.mrb[0].mxu0
      %1394 = vmatprep.mubr.bf16.mxu0 0
      %1395 = vmatmul.mubr.bf16.gmra.mrb[0].mxu0 %v937
      %v1396 = vpop.f32.mrb[0].mxu0
      %v1397 = vadd.f32 %v475, %v1396
      %v1398 = vpop.f32.mrb[0].mxu0
      %v1399 = vpop.f32.mrb[0].mxu0
      %v1400 = vadd.f32 %v475, %v1399
      %v1401 = vpop.f32.mrb[0].mxu0
      %1402 = vmatprep.mubr.bf16.mxu0 0
      %1403 = vmatmul.mubr.bf16.gmra.mrb[0].mxu0 %v940
      %v1404 = vpop.f32.mrb[0].mxu0
      %v1405 = vadd.f32 %v475, %v1404
      %v1406 = vpop.f32.mrb[0].mxu0
      %v1407 = vpop.f32.mrb[0].mxu0
      %v1408 = vadd.f32 %v475, %v1407
      %v1409 = vpop.f32.mrb[0].mxu0
      %1410 = vmatprep.mubr.bf16.mxu0 0
      %1411 = vmatmul.mubr.bf16.gmra.mrb[0].mxu0 %v943
      %v1412 = vpop.f32.mrb[0].mxu0
      %v1413 = vadd.f32 %v475, %v1412
      %v1414 = vpop.f32.mrb[0].mxu0
      %v1415 = vpop.f32.mrb[0].mxu0
      %v1416 = vadd.f32 %v475, %v1415
      %v1417 = vpop.f32.mrb[0].mxu0
      %1418 = vmatprep.mubr.bf16.mxu0 0
      %1419 = vmatmul.mubr.bf16.gmra.mrb[0].mxu0 %v946
      %v1420 = vpop.f32.mrb[0].mxu0
      %v1421 = vadd.f32 %v475, %v1420
      %v1422 = vpop.f32.mrb[0].mxu0
      %v1423 = vpop.f32.mrb[0].mxu0
      %v1424 = vadd.f32 %v475, %v1423
      %v1425 = vpop.f32.mrb[0].mxu0
      %1426 = vmatprep.mubr.bf16.mxu0 0
      %1427 = vmatmul.mubr.bf16.gmra.mrb[0].mxu0 %v949
      %v1428 = vpop.f32.mrb[0].mxu0
      %v1429 = vadd.f32 %v475, %v1428
      %v1430 = vpop.f32.mrb[0].mxu0
      %v1431 = vpop.f32.mrb[0].mxu0
      %v1432 = vadd.f32 %v475, %v1431
      %v1433 = vpop.f32.mrb[0].mxu0
      %1434 = vmatprep.mubr.bf16.mxu0 0
      %1435 = vmatmul.mubr.bf16.gmra.mrb[0].mxu0 %v952
      %v1436 = vpop.f32.mrb[0].mxu0
      %v1437 = vadd.f32 %v475, %v1436
      %v1438 = vpop.f32.mrb[0].mxu0
      %v1439 = vpop.f32.mrb[0].mxu0
      %v1440 = vadd.f32 %v475, %v1439
      %v1441 = vpop.f32.mrb[0].mxu0
      %1442 = vmatprep.mubr.bf16.mxu0 0
      %1443 = vmatmul.mubr.bf16.gmra.mrb[0].mxu0 %v955
      %v1444 = vpop.f32.mrb[0].mxu0
      %v1445 = vadd.f32 %v475, %v1444
      %v1446 = vpop.f32.mrb[0].mxu0
      %v1447 = vpop.f32.mrb[0].mxu0
      %v1448 = vadd.f32 %v475, %v1447
      %v1449 = vpop.f32.mrb[0].mxu0
      %1450 = vmatprep.mubr.bf16.mxu0 0
      %1451 = vmatmul.mubr.bf16.gmra.mrb[0].mxu0 %v958
      %v1452 = vpop.f32.mrb[0].mxu0
      %v1453 = vadd.f32 %v475, %v1452
      %v1454 = vpop.f32.mrb[0].mxu0
      %v1455 = vpop.f32.mrb[0].mxu0
      %v1456 = vadd.f32 %v475, %v1455
      %v1457 = vpop.f32.mrb[0].mxu0
      %1458 = vmatprep.mubr.bf16.mxu0 0
      %1459 = vmatmul.mubr.bf16.gmra.mrb[0].mxu0 %v961
      %v1460 = vpop.f32.mrb[0].mxu0
      %v1461 = vadd.f32 %v475, %v1460
      %v1462 = vpop.f32.mrb[0].mxu0
      %v1463 = vpop.f32.mrb[0].mxu0
      %v1464 = vadd.f32 %v475, %v1463
      %v1465 = vpop.f32.mrb[0].mxu0
      %1466 = vmatprep.mubr.bf16.mxu0 0
      %1467 = vmatmul.mubr.bf16.gmra.mrb[0].mxu0 %v964
      %v1468 = vpop.f32.mrb[0].mxu0
      %v1469 = vadd.f32 %v475, %v1468
      %v1470 = vpop.f32.mrb[0].mxu0
      %v1471 = vpop.f32.mrb[0].mxu0
      %v1472 = vadd.f32 %v475, %v1471
      %v1473 = vpop.f32.mrb[0].mxu0
      %1474 = vmatprep.mubr.bf16.mxu0 0
      %1475 = vmatmul.mubr.bf16.gmra.mrb[0].mxu0 %v967
      %v1476 = vpop.f32.mrb[0].mxu0
      %v1477 = vadd.f32 %v475, %v1476
      %v1478 = vpop.f32.mrb[0].mxu0
      %v1479 = vpop.f32.mrb[0].mxu0
      %v1480 = vadd.f32 %v475, %v1479
      %v1481 = vpop.f32.mrb[0].mxu0
      %1482 = vmatprep.mubr.bf16.mxu0 0
      %1483 = vmatmul.mubr.bf16.gmra.mrb[0].mxu0 %v970
      %v1484 = vpop.f32.mrb[0].mxu0
      %v1485 = vadd.f32 %v475, %v1484
      %v1486 = vpop.f32.mrb[0].mxu0
      %v1487 = vpop.f32.mrb[0].mxu0
      %v1488 = vadd.f32 %v475, %v1487
      %v1489 = vpop.f32.mrb[0].mxu0
      %1490 = vmatprep.mubr.bf16.mxu0 0
      %1491 = vmatmul.mubr.bf16.gmra.mrb[0].mxu0 %v973
      %v1492 = vpop.f32.mrb[0].mxu0
      %v1493 = vadd.f32 %v475, %v1492
      %v1494 = vpop.f32.mrb[0].mxu0
      %v1495 = vpop.f32.mrb[0].mxu0
      %v1496 = vadd.f32 %v475, %v1495
      %v1497 = vpop.f32.mrb[0].mxu0
      %1498 = vmatprep.mubr.bf16.mxu0 0
      %1499 = vmatmul.mubr.bf16.gmra.mrb[0].mxu0 %v976
      %v1500 = vpop.f32.mrb[0].mxu0
      %v1501 = vadd.f32 %v475, %v1500
      %v1502 = vpop.f32.mrb[0].mxu0
      %v1503 = vpop.f32.mrb[0].mxu0
      %v1504 = vadd.f32 %v475, %v1503
      %v1505 = vpop.f32.mrb[0].mxu0
      %1506 = vmatprep.mubr.bf16.mxu0 0
      %1507 = vmatmul.mubr.bf16.gmra.mrb[0].mxu0 %v979
      %v1508 = vpop.f32.mrb[0].mxu0
      %v1509 = vadd.f32 %v475, %v1508
      %v1510 = vpop.f32.mrb[0].mxu0
      %v1511 = vpop.f32.mrb[0].mxu0
      %v1512 = vadd.f32 %v475, %v1511
      %v1513 = vpop.f32.mrb[0].mxu0
      %1514 = vmatprep.mubr.bf16.mxu0 0
      %1515 = vmatmul.mubr.bf16.gmra.mrb[0].mxu0 %v982
      %v1516 = vpop.f32.mrb[0].mxu0
      %v1517 = vadd.f32 %v475, %v1516
      %v1518 = vpop.f32.mrb[0].mxu0
      %v1519 = vpop.f32.mrb[0].mxu0
      %v1520 = vadd.f32 %v475, %v1519
      %v1521 = vpop.f32.mrb[0].mxu0
      %1522 = vmatprep.mubr.bf16.mxu0 0
      %1523 = vmatmul.mubr.bf16.gmra.mrb[0].mxu0 %v985
      %v1524 = vpop.f32.mrb[0].mxu0
      %v1525 = vadd.f32 %v475, %v1524
      %v1526 = vpop.f32.mrb[0].mxu0
      %v1527 = vpop.f32.mrb[0].mxu0
      %v1528 = vadd.f32 %v475, %v1527
      %v1529 = vpop.f32.mrb[0].mxu0
      %1530 = vmatprep.mubr.bf16.mxu0 0
      %1531 = vmatmul.mubr.bf16.gmra.mrb[0].mxu0 %v988
      %v1532 = vpop.f32.mrb[0].mxu0
      %v1533 = vadd.f32 %v475, %v1532
      %v1534 = vpop.f32.mrb[0].mxu0
      %v1535 = vpop.f32.mrb[0].mxu0
      %v1536 = vadd.f32 %v475, %v1535
      %v1537 = vpop.f32.mrb[0].mxu0
      %1538 = vdwg.mxu0
      %v1539 = vxor.u32 %v1029, 2147483648
      %v1540 = vxor.u32 %v1032, 2147483648
      %v1541 = vxor.u32 %v1037, 2147483648
      %v1542 = vxor.u32 %v1040, 2147483648
      %v1543 = vxor.u32 %v1045, 2147483648
      %v1544 = vxor.u32 %v1048, 2147483648
      %v1545 = vxor.u32 %v1053, 2147483648
      %v1546 = vxor.u32 %v1056, 2147483648
      %v1547 = vxor.u32 %v1061, 2147483648
      %v1548 = vxor.u32 %v1064, 2147483648
      %v1549 = vxor.u32 %v1069, 2147483648
      %v1550 = vxor.u32 %v1072, 2147483648
      %v1551 = vxor.u32 %v1077, 2147483648
      %v1552 = vxor.u32 %v1080, 2147483648
      %v1553 = vxor.u32 %v1085, 2147483648
      %v1554 = vxor.u32 %v1088, 2147483648
      %v1555 = vxor.u32 %v1093, 2147483648
      %v1556 = vxor.u32 %v1096, 2147483648
      %v1557 = vxor.u32 %v1101, 2147483648
      %v1558 = vxor.u32 %v1104, 2147483648
      %v1559 = vxor.u32 %v1109, 2147483648
      %v1560 = vxor.u32 %v1112, 2147483648
      %v1561 = vxor.u32 %v1117, 2147483648
      %v1562 = vxor.u32 %v1120, 2147483648
      %v1563 = vxor.u32 %v1125, 2147483648
      %v1564 = vxor.u32 %v1128, 2147483648
      %v1565 = vxor.u32 %v1133, 2147483648
      %v1566 = vxor.u32 %v1136, 2147483648
      %v1567 = vxor.u32 %v1141, 2147483648
      %v1568 = vxor.u32 %v1144, 2147483648
      %v1569 = vxor.u32 %v1149, 2147483648
      %v1570 = vxor.u32 %v1152, 2147483648
      %v1571 = vxor.u32 %v1157, 2147483648
      %v1572 = vxor.u32 %v1160, 2147483648
      %v1573 = vxor.u32 %v1165, 2147483648
      %v1574 = vxor.u32 %v1168, 2147483648
      %v1575 = vxor.u32 %v1173, 2147483648
      %v1576 = vxor.u32 %v1176, 2147483648
      %v1577 = vxor.u32 %v1181, 2147483648
      %v1578 = vxor.u32 %v1184, 2147483648
      %v1579 = vxor.u32 %v1189, 2147483648
      %v1580 = vxor.u32 %v1192, 2147483648
      %v1581 = vxor.u32 %v1197, 2147483648
      %v1582 = vxor.u32 %v1200, 2147483648
      %v1583 = vxor.u32 %v1205, 2147483648
      %v1584 = vxor.u32 %v1208, 2147483648
      %v1585 = vxor.u32 %v1213, 2147483648
      %v1586 = vxor.u32 %v1216, 2147483648
      %v1587 = vxor.u32 %v1221, 2147483648
      %v1588 = vxor.u32 %v1224, 2147483648
      %v1589 = vxor.u32 %v1229, 2147483648
      %v1590 = vxor.u32 %v1232, 2147483648
      %v1591 = vxor.u32 %v1237, 2147483648
      %v1592 = vxor.u32 %v1240, 2147483648
      %v1593 = vxor.u32 %v1245, 2147483648
      %v1594 = vxor.u32 %v1248, 2147483648
      %v1595 = vxor.u32 %v1253, 2147483648
      %v1596 = vxor.u32 %v1256, 2147483648
      %v1597 = vxor.u32 %v1261, 2147483648
      %v1598 = vxor.u32 %v1264, 2147483648
      %v1599 = vxor.u32 %v1269, 2147483648
      %v1600 = vxor.u32 %v1272, 2147483648
      %v1601 = vxor.u32 %v1277, 2147483648
      %v1602 = vxor.u32 %v1280, 2147483648
      %v1603 = vxor.u32 %v1285, 2147483648
      %v1604 = vxor.u32 %v1288, 2147483648
      %v1605 = vxor.u32 %v1293, 2147483648
      %v1606 = vxor.u32 %v1296, 2147483648
      %v1607 = vxor.u32 %v1301, 2147483648
      %v1608 = vxor.u32 %v1304, 2147483648
      %v1609 = vxor.u32 %v1309, 2147483648
      %v1610 = vxor.u32 %v1312, 2147483648
      %v1611 = vxor.u32 %v1317, 2147483648
      %v1612 = vxor.u32 %v1320, 2147483648
      %v1613 = vxor.u32 %v1325, 2147483648
      %v1614 = vxor.u32 %v1328, 2147483648
      %v1615 = vxor.u32 %v1333, 2147483648
      %v1616 = vxor.u32 %v1336, 2147483648
      %v1617 = vxor.u32 %v1341, 2147483648
      %v1618 = vxor.u32 %v1344, 2147483648
      %v1619 = vxor.u32 %v1349, 2147483648
      %v1620 = vxor.u32 %v1352, 2147483648
      %v1621 = vxor.u32 %v1357, 2147483648
      %v1622 = vxor.u32 %v1360, 2147483648
      %v1623 = vxor.u32 %v1365, 2147483648
      %v1624 = vxor.u32 %v1368, 2147483648
      %v1625 = vxor.u32 %v1373, 2147483648
      %v1626 = vxor.u32 %v1376, 2147483648
      %v1627 = vxor.u32 %v1381, 2147483648
      %v1628 = vxor.u32 %v1384, 2147483648
      %v1629 = vxor.u32 %v1389, 2147483648
      %v1630 = vxor.u32 %v1392, 2147483648
      %v1631 = vxor.u32 %v1397, 2147483648
      %v1632 = vxor.u32 %v1400, 2147483648
      %v1633 = vxor.u32 %v1405, 2147483648
      %v1634 = vxor.u32 %v1408, 2147483648
      %v1635 = vxor.u32 %v1413, 2147483648
      %v1636 = vxor.u32 %v1416, 2147483648
      %v1637 = vxor.u32 %v1421, 2147483648
      %v1638 = vxor.u32 %v1424, 2147483648
      %v1639 = vxor.u32 %v1429, 2147483648
      %v1640 = vxor.u32 %v1432, 2147483648
      %v1641 = vxor.u32 %v1437, 2147483648
      %v1642 = vxor.u32 %v1440, 2147483648
      %v1643 = vxor.u32 %v1445, 2147483648
      %v1644 = vxor.u32 %v1448, 2147483648
      %v1645 = vxor.u32 %v1453, 2147483648
      %v1646 = vxor.u32 %v1456, 2147483648
      %v1647 = vxor.u32 %v1461, 2147483648
      %v1648 = vxor.u32 %v1464, 2147483648
      %v1649 = vxor.u32 %v1469, 2147483648
      %v1650 = vxor.u32 %v1472, 2147483648
      %v1651 = vxor.u32 %v1477, 2147483648
      %v1652 = vxor.u32 %v1480, 2147483648
      %v1653 = vxor.u32 %v1485, 2147483648
      %v1654 = vxor.u32 %v1488, 2147483648
      %v1655 = vxor.u32 %v1493, 2147483648
      %v1656 = vxor.u32 %v1496, 2147483648
      %v1657 = vxor.u32 %v1501, 2147483648
      %v1658 = vxor.u32 %v1504, 2147483648
      %v1659 = vxor.u32 %v1509, 2147483648
      %v1660 = vxor.u32 %v1512, 2147483648
      %v1661 = vxor.u32 %v1517, 2147483648
      %v1662 = vxor.u32 %v1520, 2147483648
      %v1663 = vxor.u32 %v1525, 2147483648
      %v1664 = vxor.u32 %v1528, 2147483648
      %v1665 = vxor.u32 %v1533, 2147483648
      %v1666 = vxor.u32 %v1536, 2147483648
      %v1667 = vmul.f32 %v1539, 1.442695
      %v1668 = vpow.pop %v1667
      %v1669 = vmul.f32 %v1540, 1.442695
      %v1670 = vpow.pop %v1669
      %v1671 = vmul.f32 %v1541, 1.442695
      %v1672 = vpow.pop %v1671
      %v1673 = vmul.f32 %v1542, 1.442695
      %v1674 = vpow.pop %v1673
      %v1675 = vmul.f32 %v1543, 1.442695
      %v1676 = vpow.pop %v1675
      %v1677 = vmul.f32 %v1544, 1.442695
      %v1678 = vpow.pop %v1677
      %v1679 = vmul.f32 %v1545, 1.442695
      %v1680 = vpow.pop %v1679
      %v1681 = vmul.f32 %v1546, 1.442695
      %v1682 = vpow.pop %v1681
      %v1683 = vmul.f32 %v1547, 1.442695
      %v1684 = vpow.pop %v1683
      %v1685 = vmul.f32 %v1548, 1.442695
      %v1686 = vpow.pop %v1685
      %v1687 = vmul.f32 %v1549, 1.442695
      %v1688 = vpow.pop %v1687
      %v1689 = vmul.f32 %v1550, 1.442695
      %v1690 = vpow.pop %v1689
      %v1691 = vmul.f32 %v1551, 1.442695
      %v1692 = vpow.pop %v1691
      %v1693 = vmul.f32 %v1552, 1.442695
      %v1694 = vpow.pop %v1693
      %v1695 = vmul.f32 %v1553, 1.442695
      %v1696 = vpow.pop %v1695
      %v1697 = vmul.f32 %v1554, 1.442695
      %v1698 = vpow.pop %v1697
      %v1699 = vmul.f32 %v1555, 1.442695
      %v1700 = vpow.pop %v1699
      %v1701 = vmul.f32 %v1556, 1.442695
      %v1702 = vpow.pop %v1701
      %v1703 = vmul.f32 %v1557, 1.442695
      %v1704 = vpow.pop %v1703
      %v1705 = vmul.f32 %v1558, 1.442695
      %v1706 = vpow.pop %v1705
      %v1707 = vmul.f32 %v1559, 1.442695
      %v1708 = vpow.pop %v1707
      %v1709 = vmul.f32 %v1560, 1.442695
      %v1710 = vpow.pop %v1709
      %v1711 = vmul.f32 %v1561, 1.442695
      %v1712 = vpow.pop %v1711
      %v1713 = vmul.f32 %v1562, 1.442695
      %v1714 = vpow.pop %v1713
      %v1715 = vmul.f32 %v1563, 1.442695
      %v1716 = vpow.pop %v1715
      %v1717 = vmul.f32 %v1564, 1.442695
      %v1718 = vpow.pop %v1717
      %v1719 = vmul.f32 %v1565, 1.442695
      %v1720 = vpow.pop %v1719
      %v1721 = vmul.f32 %v1566, 1.442695
      %v1722 = vpow.pop %v1721
      %v1723 = vmul.f32 %v1567, 1.442695
      %v1724 = vpow.pop %v1723
      %v1725 = vmul.f32 %v1568, 1.442695
      %v1726 = vpow.pop %v1725
      %v1727 = vmul.f32 %v1569, 1.442695
      %v1728 = vpow.pop %v1727
      %v1729 = vmul.f32 %v1570, 1.442695
      %v1730 = vpow.pop %v1729
      %v1731 = vmul.f32 %v1571, 1.442695
      %v1732 = vpow.pop %v1731
      %v1733 = vmul.f32 %v1572, 1.442695
      %v1734 = vpow.pop %v1733
      %v1735 = vmul.f32 %v1573, 1.442695
      %v1736 = vpow.pop %v1735
      %v1737 = vmul.f32 %v1574, 1.442695
      %v1738 = vpow.pop %v1737
      %v1739 = vmul.f32 %v1575, 1.442695
      %v1740 = vpow.pop %v1739
      %v1741 = vmul.f32 %v1576, 1.442695
      %v1742 = vpow.pop %v1741
      %v1743 = vmul.f32 %v1577, 1.442695
      %v1744 = vpow.pop %v1743
      %v1745 = vmul.f32 %v1578, 1.442695
      %v1746 = vpow.pop %v1745
      %v1747 = vmul.f32 %v1579, 1.442695
      %v1748 = vpow.pop %v1747
      %v1749 = vmul.f32 %v1580, 1.442695
      %v1750 = vpow.pop %v1749
      %v1751 = vmul.f32 %v1581, 1.442695
      %v1752 = vpow.pop %v1751
      %v1753 = vmul.f32 %v1582, 1.442695
      %v1754 = vpow.pop %v1753
      %v1755 = vmul.f32 %v1583, 1.442695
      %v1756 = vpow.pop %v1755
      %v1757 = vmul.f32 %v1584, 1.442695
      %v1758 = vpow.pop %v1757
      %v1759 = vmul.f32 %v1585, 1.442695
      %v1760 = vpow.pop %v1759
      %v1761 = vmul.f32 %v1586, 1.442695
      %v1762 = vpow.pop %v1761
      %v1763 = vmul.f32 %v1587, 1.442695
      %v1764 = vpow.pop %v1763
      %v1765 = vmul.f32 %v1588, 1.442695
      %v1766 = vpow.pop %v1765
      %v1767 = vmul.f32 %v1589, 1.442695
      %v1768 = vpow.pop %v1767
      %v1769 = vmul.f32 %v1590, 1.442695
      %v1770 = vpow.pop %v1769
      %v1771 = vmul.f32 %v1591, 1.442695
      %v1772 = vpow.pop %v1771
      %v1773 = vmul.f32 %v1592, 1.442695
      %v1774 = vpow.pop %v1773
      %v1775 = vmul.f32 %v1593, 1.442695
      %v1776 = vpow.pop %v1775
      %v1777 = vmul.f32 %v1594, 1.442695
      %v1778 = vpow.pop %v1777
      %v1779 = vmul.f32 %v1595, 1.442695
      %v1780 = vpow.pop %v1779
      %v1781 = vmul.f32 %v1596, 1.442695
      %v1782 = vpow.pop %v1781
      %v1783 = vmul.f32 %v1597, 1.442695
      %v1784 = vpow.pop %v1783
      %v1785 = vmul.f32 %v1598, 1.442695
      %v1786 = vpow.pop %v1785
      %v1787 = vmul.f32 %v1599, 1.442695
      %v1788 = vpow.pop %v1787
      %v1789 = vmul.f32 %v1600, 1.442695
      %v1790 = vpow.pop %v1789
      %v1791 = vmul.f32 %v1601, 1.442695
      %v1792 = vpow.pop %v1791
      %v1793 = vmul.f32 %v1602, 1.442695
      %v1794 = vpow.pop %v1793
      %v1795 = vmul.f32 %v1603, 1.442695
      %v1796 = vpow.pop %v1795
      %v1797 = vmul.f32 %v1604, 1.442695
      %v1798 = vpow.pop %v1797
      %v1799 = vmul.f32 %v1605, 1.442695
      %v1800 = vpow.pop %v1799
      %v1801 = vmul.f32 %v1606, 1.442695
      %v1802 = vpow.pop %v1801
      %v1803 = vmul.f32 %v1607, 1.442695
      %v1804 = vpow.pop %v1803
      %v1805 = vmul.f32 %v1608, 1.442695
      %v1806 = vpow.pop %v1805
      %v1807 = vmul.f32 %v1609, 1.442695
      %v1808 = vpow.pop %v1807
      %v1809 = vmul.f32 %v1610, 1.442695
      %v1810 = vpow.pop %v1809
      %v1811 = vmul.f32 %v1611, 1.442695
      %v1812 = vpow.pop %v1811
      %v1813 = vmul.f32 %v1612, 1.442695
      %v1814 = vpow.pop %v1813
      %v1815 = vmul.f32 %v1613, 1.442695
      %v1816 = vpow.pop %v1815
      %v1817 = vmul.f32 %v1614, 1.442695
      %v1818 = vpow.pop %v1817
      %v1819 = vmul.f32 %v1615, 1.442695
      %v1820 = vpow.pop %v1819
      %v1821 = vmul.f32 %v1616, 1.442695
      %v1822 = vpow.pop %v1821
      %v1823 = vmul.f32 %v1617, 1.442695
      %v1824 = vpow.pop %v1823
      %v1825 = vmul.f32 %v1618, 1.442695
      %v1826 = vpow.pop %v1825
      %v1827 = vmul.f32 %v1619, 1.442695
      %v1828 = vpow.pop %v1827
      %v1829 = vmul.f32 %v1620, 1.442695
      %v1830 = vpow.pop %v1829
      %v1831 = vmul.f32 %v1621, 1.442695
      %v1832 = vpow.pop %v1831
      %v1833 = vmul.f32 %v1622, 1.442695
      %v1834 = vpow.pop %v1833
      %v1835 = vmul.f32 %v1623, 1.442695
      %v1836 = vpow.pop %v1835
      %v1837 = vmul.f32 %v1624, 1.442695
      %v1838 = vpow.pop %v1837
      %v1839 = vmul.f32 %v1625, 1.442695
      %v1840 = vpow.pop %v1839
      %v1841 = vmul.f32 %v1626, 1.442695
      %v1842 = vpow.pop %v1841
      %v1843 = vmul.f32 %v1627, 1.442695
      %v1844 = vpow.pop %v1843
      %v1845 = vmul.f32 %v1628, 1.442695
      %v1846 = vpow.pop %v1845
      %v1847 = vmul.f32 %v1629, 1.442695
      %v1848 = vpow.pop %v1847
      %v1849 = vmul.f32 %v1630, 1.442695
      %v1850 = vpow.pop %v1849
      %v1851 = vmul.f32 %v1631, 1.442695
      %v1852 = vpow.pop %v1851
      %v1853 = vmul.f32 %v1632, 1.442695
      %v1854 = vpow.pop %v1853
      %v1855 = vmul.f32 %v1633, 1.442695
      %v1856 = vpow.pop %v1855
      %v1857 = vmul.f32 %v1634, 1.442695
      %v1858 = vpow.pop %v1857
      %v1859 = vmul.f32 %v1635, 1.442695
      %v1860 = vpow.pop %v1859
      %v1861 = vmul.f32 %v1636, 1.442695
      %v1862 = vpow.pop %v1861
      %v1863 = vmul.f32 %v1637, 1.442695
      %v1864 = vpow.pop %v1863
      %v1865 = vmul.f32 %v1638, 1.442695
      %v1866 = vpow.pop %v1865
      %v1867 = vmul.f32 %v1639, 1.442695
      %v1868 = vpow.pop %v1867
      %v1869 = vmul.f32 %v1640, 1.442695
      %v1870 = vpow.pop %v1869
      %v1871 = vmul.f32 %v1641, 1.442695
      %v1872 = vpow.pop %v1871
      %v1873 = vmul.f32 %v1642, 1.442695
      %v1874 = vpow.pop %v1873
      %v1875 = vmul.f32 %v1643, 1.442695
      %v1876 = vpow.pop %v1875
      %v1877 = vmul.f32 %v1644, 1.442695
      %v1878 = vpow.pop %v1877
      %v1879 = vmul.f32 %v1645, 1.442695
      %v1880 = vpow.pop %v1879
      %v1881 = vmul.f32 %v1646, 1.442695
      %v1882 = vpow.pop %v1881
      %v1883 = vmul.f32 %v1647, 1.442695
      %v1884 = vpow.pop %v1883
      %v1885 = vmul.f32 %v1648, 1.442695
      %v1886 = vpow.pop %v1885
      %v1887 = vmul.f32 %v1649, 1.442695
      %v1888 = vpow.pop %v1887
      %v1889 = vmul.f32 %v1650, 1.442695
      %v1890 = vpow.pop %v1889
      %v1891 = vmul.f32 %v1651, 1.442695
      %v1892 = vpow.pop %v1891
      %v1893 = vmul.f32 %v1652, 1.442695
      %v1894 = vpow.pop %v1893
      %v1895 = vmul.f32 %v1653, 1.442695
      %v1896 = vpow.pop %v1895
      %v1897 = vmul.f32 %v1654, 1.442695
      %v1898 = vpow.pop %v1897
      %v1899 = vmul.f32 %v1655, 1.442695
      %v1900 = vpow.pop %v1899
      %v1901 = vmul.f32 %v1656, 1.442695
      %v1902 = vpow.pop %v1901
      %v1903 = vmul.f32 %v1657, 1.442695
      %v1904 = vpow.pop %v1903
      %v1905 = vmul.f32 %v1658, 1.442695
      %v1906 = vpow.pop %v1905
      %v1907 = vmul.f32 %v1659, 1.442695
      %v1908 = vpow.pop %v1907
      %v1909 = vmul.f32 %v1660, 1.442695
      %v1910 = vpow.pop %v1909
      %v1911 = vmul.f32 %v1661, 1.442695
      %v1912 = vpow.pop %v1911
      %v1913 = vmul.f32 %v1662, 1.442695
      %v1914 = vpow.pop %v1913
      %v1915 = vmul.f32 %v1663, 1.442695
      %v1916 = vpow.pop %v1915
      %v1917 = vmul.f32 %v1664, 1.442695
      %v1918 = vpow.pop %v1917
      %v1919 = vmul.f32 %v1665, 1.442695
      %v1920 = vpow.pop %v1919
      %v1921 = vmul.f32 %v1666, 1.442695
      %v1922 = vpow.pop %v1921
      %v1923 = vadd.f32 %v1668, 1.0
      %v1924 = vadd.f32 %v1670, 1.0
      %v1925 = vadd.f32 %v1672, 1.0
      %v1926 = vadd.f32 %v1674, 1.0
      %v1927 = vadd.f32 %v1676, 1.0
      %v1928 = vadd.f32 %v1678, 1.0
      %v1929 = vadd.f32 %v1680, 1.0
      %v1930 = vadd.f32 %v1682, 1.0
      %v1931 = vadd.f32 %v1684, 1.0
      %v1932 = vadd.f32 %v1686, 1.0
      %v1933 = vadd.f32 %v1688, 1.0
      %v1934 = vadd.f32 %v1690, 1.0
      %v1935 = vadd.f32 %v1692, 1.0
      %v1936 = vadd.f32 %v1694, 1.0
      %v1937 = vadd.f32 %v1696, 1.0
      %v1938 = vadd.f32 %v1698, 1.0
      %v1939 = vadd.f32 %v1700, 1.0
      %v1940 = vadd.f32 %v1702, 1.0
      %v1941 = vadd.f32 %v1704, 1.0
      %v1942 = vadd.f32 %v1706, 1.0
      %v1943 = vadd.f32 %v1708, 1.0
      %v1944 = vadd.f32 %v1710, 1.0
      %v1945 = vadd.f32 %v1712, 1.0
      %v1946 = vadd.f32 %v1714, 1.0
      %v1947 = vadd.f32 %v1716, 1.0
      %v1948 = vadd.f32 %v1718, 1.0
      %v1949 = vadd.f32 %v1720, 1.0
      %v1950 = vadd.f32 %v1722, 1.0
      %v1951 = vadd.f32 %v1724, 1.0
      %v1952 = vadd.f32 %v1726, 1.0
      %v1953 = vadd.f32 %v1728, 1.0
      %v1954 = vadd.f32 %v1730, 1.0
      %v1955 = vadd.f32 %v1732, 1.0
      %v1956 = vadd.f32 %v1734, 1.0
      %v1957 = vadd.f32 %v1736, 1.0
      %v1958 = vadd.f32 %v1738, 1.0
      %v1959 = vadd.f32 %v1740, 1.0
      %v1960 = vadd.f32 %v1742, 1.0
      %v1961 = vadd.f32 %v1744, 1.0
      %v1962 = vadd.f32 %v1746, 1.0
      %v1963 = vadd.f32 %v1748, 1.0
      %v1964 = vadd.f32 %v1750, 1.0
      %v1965 = vadd.f32 %v1752, 1.0
      %v1966 = vadd.f32 %v1754, 1.0
      %v1967 = vadd.f32 %v1756, 1.0
      %v1968 = vadd.f32 %v1758, 1.0
      %v1969 = vadd.f32 %v1760, 1.0
      %v1970 = vadd.f32 %v1762, 1.0
      %v1971 = vadd.f32 %v1764, 1.0
      %v1972 = vadd.f32 %v1766, 1.0
      %v1973 = vadd.f32 %v1768, 1.0
      %v1974 = vadd.f32 %v1770, 1.0
      %v1975 = vadd.f32 %v1772, 1.0
      %v1976 = vadd.f32 %v1774, 1.0
      %v1977 = vadd.f32 %v1776, 1.0
      %v1978 = vadd.f32 %v1778, 1.0
      %v1979 = vadd.f32 %v1780, 1.0
      %v1980 = vadd.f32 %v1782, 1.0
      %v1981 = vadd.f32 %v1784, 1.0
      %v1982 = vadd.f32 %v1786, 1.0
      %v1983 = vadd.f32 %v1788, 1.0
      %v1984 = vadd.f32 %v1790, 1.0
      %v1985 = vadd.f32 %v1792, 1.0
      %v1986 = vadd.f32 %v1794, 1.0
      %v1987 = vadd.f32 %v1796, 1.0
      %v1988 = vadd.f32 %v1798, 1.0
      %v1989 = vadd.f32 %v1800, 1.0
      %v1990 = vadd.f32 %v1802, 1.0
      %v1991 = vadd.f32 %v1804, 1.0
      %v1992 = vadd.f32 %v1806, 1.0
      %v1993 = vadd.f32 %v1808, 1.0
      %v1994 = vadd.f32 %v1810, 1.0
      %v1995 = vadd.f32 %v1812, 1.0
      %v1996 = vadd.f32 %v1814, 1.0
      %v1997 = vadd.f32 %v1816, 1.0
      %v1998 = vadd.f32 %v1818, 1.0
      %v1999 = vadd.f32 %v1820, 1.0
      %v2000 = vadd.f32 %v1822, 1.0
      %v2001 = vadd.f32 %v1824, 1.0
      %v2002 = vadd.f32 %v1826, 1.0
      %v2003 = vadd.f32 %v1828, 1.0
      %v2004 = vadd.f32 %v1830, 1.0
      %v2005 = vadd.f32 %v1832, 1.0
      %v2006 = vadd.f32 %v1834, 1.0
      %v2007 = vadd.f32 %v1836, 1.0
      %v2008 = vadd.f32 %v1838, 1.0
      %v2009 = vadd.f32 %v1840, 1.0
      %v2010 = vadd.f32 %v1842, 1.0
      %v2011 = vadd.f32 %v1844, 1.0
      %v2012 = vadd.f32 %v1846, 1.0
      %v2013 = vadd.f32 %v1848, 1.0
      %v2014 = vadd.f32 %v1850, 1.0
      %v2015 = vadd.f32 %v1852, 1.0
      %v2016 = vadd.f32 %v1854, 1.0
      %v2017 = vadd.f32 %v1856, 1.0
      %v2018 = vadd.f32 %v1858, 1.0
      %v2019 = vadd.f32 %v1860, 1.0
      %v2020 = vadd.f32 %v1862, 1.0
      %v2021 = vadd.f32 %v1864, 1.0
      %v2022 = vadd.f32 %v1866, 1.0
      %v2023 = vadd.f32 %v1868, 1.0
      %v2024 = vadd.f32 %v1870, 1.0
      %v2025 = vadd.f32 %v1872, 1.0
      %v2026 = vadd.f32 %v1874, 1.0
      %v2027 = vadd.f32 %v1876, 1.0
      %v2028 = vadd.f32 %v1878, 1.0
      %v2029 = vadd.f32 %v1880, 1.0
      %v2030 = vadd.f32 %v1882, 1.0
      %v2031 = vadd.f32 %v1884, 1.0
      %v2032 = vadd.f32 %v1886, 1.0
      %v2033 = vadd.f32 %v1888, 1.0
      %v2034 = vadd.f32 %v1890, 1.0
      %v2035 = vadd.f32 %v1892, 1.0
      %v2036 = vadd.f32 %v1894, 1.0
      %v2037 = vadd.f32 %v1896, 1.0
      %v2038 = vadd.f32 %v1898, 1.0
      %v2039 = vadd.f32 %v1900, 1.0
      %v2040 = vadd.f32 %v1902, 1.0
      %v2041 = vadd.f32 %v1904, 1.0
      %v2042 = vadd.f32 %v1906, 1.0
      %v2043 = vadd.f32 %v1908, 1.0
      %v2044 = vadd.f32 %v1910, 1.0
      %v2045 = vadd.f32 %v1912, 1.0
      %v2046 = vadd.f32 %v1914, 1.0
      %v2047 = vadd.f32 %v1916, 1.0
      %v2048 = vadd.f32 %v1918, 1.0
      %v2049 = vadd.f32 %v1920, 1.0
      %v2050 = vadd.f32 %v1922, 1.0
      %v2051 = vrcp.pop %v1923
      %v2052 = vmul.f32 1.0, %v2051
      %v2053 = vrcp.pop %v1924
      %v2054 = vmul.f32 1.0, %v2053
      %v2055 = vrcp.pop %v1925
      %v2056 = vmul.f32 1.0, %v2055
      %v2057 = vrcp.pop %v1926
      %v2058 = vmul.f32 1.0, %v2057
      %v2059 = vrcp.pop %v1927
      %v2060 = vmul.f32 1.0, %v2059
      %v2061 = vrcp.pop %v1928
      %v2062 = vmul.f32 1.0, %v2061
      %v2063 = vrcp.pop %v1929
      %v2064 = vmul.f32 1.0, %v2063
      %v2065 = vrcp.pop %v1930
      %v2066 = vmul.f32 1.0, %v2065
      %v2067 = vrcp.pop %v1931
      %v2068 = vmul.f32 1.0, %v2067
      %v2069 = vrcp.pop %v1932
      %v2070 = vmul.f32 1.0, %v2069
      %v2071 = vrcp.pop %v1933
      %v2072 = vmul.f32 1.0, %v2071
      %v2073 = vrcp.pop %v1934
      %v2074 = vmul.f32 1.0, %v2073
      %v2075 = vrcp.pop %v1935
      %v2076 = vmul.f32 1.0, %v2075
      %v2077 = vrcp.pop %v1936
      %v2078 = vmul.f32 1.0, %v2077
      %v2079 = vrcp.pop %v1937
      %v2080 = vmul.f32 1.0, %v2079
      %v2081 = vrcp.pop %v1938
      %v2082 = vmul.f32 1.0, %v2081
      %v2083 = vrcp.pop %v1939
      %v2084 = vmul.f32 1.0, %v2083
      %v2085 = vrcp.pop %v1940
      %v2086 = vmul.f32 1.0, %v2085
      %v2087 = vrcp.pop %v1941
      %v2088 = vmul.f32 1.0, %v2087
      %v2089 = vrcp.pop %v1942
      %v2090 = vmul.f32 1.0, %v2089
      %v2091 = vrcp.pop %v1943
      %v2092 = vmul.f32 1.0, %v2091
      %v2093 = vrcp.pop %v1944
      %v2094 = vmul.f32 1.0, %v2093
      %v2095 = vrcp.pop %v1945
      %v2096 = vmul.f32 1.0, %v2095
      %v2097 = vrcp.pop %v1946
      %v2098 = vmul.f32 1.0, %v2097
      %v2099 = vrcp.pop %v1947
      %v2100 = vmul.f32 1.0, %v2099
      %v2101 = vrcp.pop %v1948
      %v2102 = vmul.f32 1.0, %v2101
      %v2103 = vrcp.pop %v1949
      %v2104 = vmul.f32 1.0, %v2103
      %v2105 = vrcp.pop %v1950
      %v2106 = vmul.f32 1.0, %v2105
      %v2107 = vrcp.pop %v1951
      %v2108 = vmul.f32 1.0, %v2107
      %v2109 = vrcp.pop %v1952
      %v2110 = vmul.f32 1.0, %v2109
      %v2111 = vrcp.pop %v1953
      %v2112 = vmul.f32 1.0, %v2111
      %v2113 = vrcp.pop %v1954
      %v2114 = vmul.f32 1.0, %v2113
      %v2115 = vrcp.pop %v1955
      %v2116 = vmul.f32 1.0, %v2115
      %v2117 = vrcp.pop %v1956
      %v2118 = vmul.f32 1.0, %v2117
      %v2119 = vrcp.pop %v1957
      %v2120 = vmul.f32 1.0, %v2119
      %v2121 = vrcp.pop %v1958
      %v2122 = vmul.f32 1.0, %v2121
      %v2123 = vrcp.pop %v1959
      %v2124 = vmul.f32 1.0, %v2123
      %v2125 = vrcp.pop %v1960
      %v2126 = vmul.f32 1.0, %v2125
      %v2127 = vrcp.pop %v1961
      %v2128 = vmul.f32 1.0, %v2127
      %v2129 = vrcp.pop %v1962
      %v2130 = vmul.f32 1.0, %v2129
      %v2131 = vrcp.pop %v1963
      %v2132 = vmul.f32 1.0, %v2131
      %v2133 = vrcp.pop %v1964
      %v2134 = vmul.f32 1.0, %v2133
      %v2135 = vrcp.pop %v1965
      %v2136 = vmul.f32 1.0, %v2135
      %v2137 = vrcp.pop %v1966
      %v2138 = vmul.f32 1.0, %v2137
      %v2139 = vrcp.pop %v1967
      %v2140 = vmul.f32 1.0, %v2139
      %v2141 = vrcp.pop %v1968
      %v2142 = vmul.f32 1.0, %v2141
      %v2143 = vrcp.pop %v1969
      %v2144 = vmul.f32 1.0, %v2143
      %v2145 = vrcp.pop %v1970
      %v2146 = vmul.f32 1.0, %v2145
      %v2147 = vrcp.pop %v1971
      %v2148 = vmul.f32 1.0, %v2147
      %v2149 = vrcp.pop %v1972
      %v2150 = vmul.f32 1.0, %v2149
      %v2151 = vrcp.pop %v1973
      %v2152 = vmul.f32 1.0, %v2151
      %v2153 = vrcp.pop %v1974
      %v2154 = vmul.f32 1.0, %v2153
      %v2155 = vrcp.pop %v1975
      %v2156 = vmul.f32 1.0, %v2155
      %v2157 = vrcp.pop %v1976
      %v2158 = vmul.f32 1.0, %v2157
      %v2159 = vrcp.pop %v1977
      %v2160 = vmul.f32 1.0, %v2159
      %v2161 = vrcp.pop %v1978
      %v2162 = vmul.f32 1.0, %v2161
      %v2163 = vrcp.pop %v1979
      %v2164 = vmul.f32 1.0, %v2163
      %v2165 = vrcp.pop %v1980
      %v2166 = vmul.f32 1.0, %v2165
      %v2167 = vrcp.pop %v1981
      %v2168 = vmul.f32 1.0, %v2167
      %v2169 = vrcp.pop %v1982
      %v2170 = vmul.f32 1.0, %v2169
      %v2171 = vrcp.pop %v1983
      %v2172 = vmul.f32 1.0, %v2171
      %v2173 = vrcp.pop %v1984
      %v2174 = vmul.f32 1.0, %v2173
      %v2175 = vrcp.pop %v1985
      %v2176 = vmul.f32 1.0, %v2175
      %v2177 = vrcp.pop %v1986
      %v2178 = vmul.f32 1.0, %v2177
      %v2179 = vrcp.pop %v1987
      %v2180 = vmul.f32 1.0, %v2179
      %v2181 = vrcp.pop %v1988
      %v2182 = vmul.f32 1.0, %v2181
      %v2183 = vrcp.pop %v1989
      %v2184 = vmul.f32 1.0, %v2183
      %v2185 = vrcp.pop %v1990
      %v2186 = vmul.f32 1.0, %v2185
      %v2187 = vrcp.pop %v1991
      %v2188 = vmul.f32 1.0, %v2187
      %v2189 = vrcp.pop %v1992
      %v2190 = vmul.f32 1.0, %v2189
      %v2191 = vrcp.pop %v1993
      %v2192 = vmul.f32 1.0, %v2191
      %v2193 = vrcp.pop %v1994
      %v2194 = vmul.f32 1.0, %v2193
      %v2195 = vrcp.pop %v1995
      %v2196 = vmul.f32 1.0, %v2195
      %v2197 = vrcp.pop %v1996
      %v2198 = vmul.f32 1.0, %v2197
      %v2199 = vrcp.pop %v1997
      %v2200 = vmul.f32 1.0, %v2199
      %v2201 = vrcp.pop %v1998
      %v2202 = vmul.f32 1.0, %v2201
      %v2203 = vrcp.pop %v1999
      %v2204 = vmul.f32 1.0, %v2203
      %v2205 = vrcp.pop %v2000
      %v2206 = vmul.f32 1.0, %v2205
      %v2207 = vrcp.pop %v2001
      %v2208 = vmul.f32 1.0, %v2207
      %v2209 = vrcp.pop %v2002
      %v2210 = vmul.f32 1.0, %v2209
      %v2211 = vrcp.pop %v2003
      %v2212 = vmul.f32 1.0, %v2211
      %v2213 = vrcp.pop %v2004
      %v2214 = vmul.f32 1.0, %v2213
      %v2215 = vrcp.pop %v2005
      %v2216 = vmul.f32 1.0, %v2215
      %v2217 = vrcp.pop %v2006
      %v2218 = vmul.f32 1.0, %v2217
      %v2219 = vrcp.pop %v2007
      %v2220 = vmul.f32 1.0, %v2219
      %v2221 = vrcp.pop %v2008
      %v2222 = vmul.f32 1.0, %v2221
      %v2223 = vrcp.pop %v2009
      %v2224 = vmul.f32 1.0, %v2223
      %v2225 = vrcp.pop %v2010
      %v2226 = vmul.f32 1.0, %v2225
      %v2227 = vrcp.pop %v2011
      %v2228 = vmul.f32 1.0, %v2227
      %v2229 = vrcp.pop %v2012
      %v2230 = vmul.f32 1.0, %v2229
      %v2231 = vrcp.pop %v2013
      %v2232 = vmul.f32 1.0, %v2231
      %v2233 = vrcp.pop %v2014
      %v2234 = vmul.f32 1.0, %v2233
      %v2235 = vrcp.pop %v2015
      %v2236 = vmul.f32 1.0, %v2235
      %v2237 = vrcp.pop %v2016
      %v2238 = vmul.f32 1.0, %v2237
      %v2239 = vrcp.pop %v2017
      %v2240 = vmul.f32 1.0, %v2239
      %v2241 = vrcp.pop %v2018
      %v2242 = vmul.f32 1.0, %v2241
      %v2243 = vrcp.pop %v2019
      %v2244 = vmul.f32 1.0, %v2243
      %v2245 = vrcp.pop %v2020
      %v2246 = vmul.f32 1.0, %v2245
      %v2247 = vrcp.pop %v2021
      %v2248 = vmul.f32 1.0, %v2247
      %v2249 = vrcp.pop %v2022
      %v2250 = vmul.f32 1.0, %v2249
      %v2251 = vrcp.pop %v2023
      %v2252 = vmul.f32 1.0, %v2251
      %v2253 = vrcp.pop %v2024
      %v2254 = vmul.f32 1.0, %v2253
      %v2255 = vrcp.pop %v2025
      %v2256 = vmul.f32 1.0, %v2255
      %v2257 = vrcp.pop %v2026
      %v2258 = vmul.f32 1.0, %v2257
      %v2259 = vrcp.pop %v2027
      %v2260 = vmul.f32 1.0, %v2259
      %v2261 = vrcp.pop %v2028
      %v2262 = vmul.f32 1.0, %v2261
      %v2263 = vrcp.pop %v2029
      %v2264 = vmul.f32 1.0, %v2263
      %v2265 = vrcp.pop %v2030
      %v2266 = vmul.f32 1.0, %v2265
      %v2267 = vrcp.pop %v2031
      %v2268 = vmul.f32 1.0, %v2267
      %v2269 = vrcp.pop %v2032
      %v2270 = vmul.f32 1.0, %v2269
      %v2271 = vrcp.pop %v2033
      %v2272 = vmul.f32 1.0, %v2271
      %v2273 = vrcp.pop %v2034
      %v2274 = vmul.f32 1.0, %v2273
      %v2275 = vrcp.pop %v2035
      %v2276 = vmul.f32 1.0, %v2275
      %v2277 = vrcp.pop %v2036
      %v2278 = vmul.f32 1.0, %v2277
      %v2279 = vrcp.pop %v2037
      %v2280 = vmul.f32 1.0, %v2279
      %v2281 = vrcp.pop %v2038
      %v2282 = vmul.f32 1.0, %v2281
      %v2283 = vrcp.pop %v2039
      %v2284 = vmul.f32 1.0, %v2283
      %v2285 = vrcp.pop %v2040
      %v2286 = vmul.f32 1.0, %v2285
      %v2287 = vrcp.pop %v2041
      %v2288 = vmul.f32 1.0, %v2287
      %v2289 = vrcp.pop %v2042
      %v2290 = vmul.f32 1.0, %v2289
      %v2291 = vrcp.pop %v2043
      %v2292 = vmul.f32 1.0, %v2291
      %v2293 = vrcp.pop %v2044
      %v2294 = vmul.f32 1.0, %v2293
      %v2295 = vrcp.pop %v2045
      %v2296 = vmul.f32 1.0, %v2295
      %v2297 = vrcp.pop %v2046
      %v2298 = vmul.f32 1.0, %v2297
      %v2299 = vrcp.pop %v2047
      %v2300 = vmul.f32 1.0, %v2299
      %v2301 = vrcp.pop %v2048
      %v2302 = vmul.f32 1.0, %v2301
      %v2303 = vrcp.pop %v2049
      %v2304 = vmul.f32 1.0, %v2303
      %v2305 = vrcp.pop %v2050
      %v2306 = vmul.f32 1.0, %v2305
      %v2307 = vmul.f32 %v1029, %v2052
      %v2308 = vmul.f32 %v1032, %v2054
      %v2309 = vmul.f32 %v1037, %v2056
      %v2310 = vmul.f32 %v1040, %v2058
      %v2311 = vmul.f32 %v1045, %v2060
      %v2312 = vmul.f32 %v1048, %v2062
      %v2313 = vmul.f32 %v1053, %v2064
      %v2314 = vmul.f32 %v1056, %v2066
      %v2315 = vmul.f32 %v1061, %v2068
      %v2316 = vmul.f32 %v1064, %v2070
      %v2317 = vmul.f32 %v1069, %v2072
      %v2318 = vmul.f32 %v1072, %v2074
      %v2319 = vmul.f32 %v1077, %v2076
      %v2320 = vmul.f32 %v1080, %v2078
      %v2321 = vmul.f32 %v1085, %v2080
      %v2322 = vmul.f32 %v1088, %v2082
      %v2323 = vmul.f32 %v1093, %v2084
      %v2324 = vmul.f32 %v1096, %v2086
      %v2325 = vmul.f32 %v1101, %v2088
      %v2326 = vmul.f32 %v1104, %v2090
      %v2327 = vmul.f32 %v1109, %v2092
      %v2328 = vmul.f32 %v1112, %v2094
      %v2329 = vmul.f32 %v1117, %v2096
      %v2330 = vmul.f32 %v1120, %v2098
      %v2331 = vmul.f32 %v1125, %v2100
      %v2332 = vmul.f32 %v1128, %v2102
      %v2333 = vmul.f32 %v1133, %v2104
      %v2334 = vmul.f32 %v1136, %v2106
      %v2335 = vmul.f32 %v1141, %v2108
      %v2336 = vmul.f32 %v1144, %v2110
      %v2337 = vmul.f32 %v1149, %v2112
      %v2338 = vmul.f32 %v1152, %v2114
      %v2339 = vmul.f32 %v1157, %v2116
      %v2340 = vmul.f32 %v1160, %v2118
      %v2341 = vmul.f32 %v1165, %v2120
      %v2342 = vmul.f32 %v1168, %v2122
      %v2343 = vmul.f32 %v1173, %v2124
      %v2344 = vmul.f32 %v1176, %v2126
      %v2345 = vmul.f32 %v1181, %v2128
      %v2346 = vmul.f32 %v1184, %v2130
      %v2347 = vmul.f32 %v1189, %v2132
      %v2348 = vmul.f32 %v1192, %v2134
      %v2349 = vmul.f32 %v1197, %v2136
      %v2350 = vmul.f32 %v1200, %v2138
      %v2351 = vmul.f32 %v1205, %v2140
      %v2352 = vmul.f32 %v1208, %v2142
      %v2353 = vmul.f32 %v1213, %v2144
      %v2354 = vmul.f32 %v1216, %v2146
      %v2355 = vmul.f32 %v1221, %v2148
      %v2356 = vmul.f32 %v1224, %v2150
      %v2357 = vmul.f32 %v1229, %v2152
      %v2358 = vmul.f32 %v1232, %v2154
      %v2359 = vmul.f32 %v1237, %v2156
      %v2360 = vmul.f32 %v1240, %v2158
      %v2361 = vmul.f32 %v1245, %v2160
      %v2362 = vmul.f32 %v1248, %v2162
      %v2363 = vmul.f32 %v1253, %v2164
      %v2364 = vmul.f32 %v1256, %v2166
      %v2365 = vmul.f32 %v1261, %v2168
      %v2366 = vmul.f32 %v1264, %v2170
      %v2367 = vmul.f32 %v1269, %v2172
      %v2368 = vmul.f32 %v1272, %v2174
      %v2369 = vmul.f32 %v1277, %v2176
      %v2370 = vmul.f32 %v1280, %v2178
      %v2371 = vmul.f32 %v1285, %v2180
      %v2372 = vmul.f32 %v1288, %v2182
      %v2373 = vmul.f32 %v1293, %v2184
      %v2374 = vmul.f32 %v1296, %v2186
      %v2375 = vmul.f32 %v1301, %v2188
      %v2376 = vmul.f32 %v1304, %v2190
      %v2377 = vmul.f32 %v1309, %v2192
      %v2378 = vmul.f32 %v1312, %v2194
      %v2379 = vmul.f32 %v1317, %v2196
      %v2380 = vmul.f32 %v1320, %v2198
      %v2381 = vmul.f32 %v1325, %v2200
      %v2382 = vmul.f32 %v1328, %v2202
      %v2383 = vmul.f32 %v1333, %v2204
      %v2384 = vmul.f32 %v1336, %v2206
      %v2385 = vmul.f32 %v1341, %v2208
      %v2386 = vmul.f32 %v1344, %v2210
      %v2387 = vmul.f32 %v1349, %v2212
      %v2388 = vmul.f32 %v1352, %v2214
      %v2389 = vmul.f32 %v1357, %v2216
      %v2390 = vmul.f32 %v1360, %v2218
      %v2391 = vmul.f32 %v1365, %v2220
      %v2392 = vmul.f32 %v1368, %v2222
      %v2393 = vmul.f32 %v1373, %v2224
      %v2394 = vmul.f32 %v1376, %v2226
      %v2395 = vmul.f32 %v1381, %v2228
      %v2396 = vmul.f32 %v1384, %v2230
      %v2397 = vmul.f32 %v1389, %v2232
      %v2398 = vmul.f32 %v1392, %v2234
      %v2399 = vmul.f32 %v1397, %v2236
      %v2400 = vmul.f32 %v1400, %v2238
      %v2401 = vmul.f32 %v1405, %v2240
      %v2402 = vmul.f32 %v1408, %v2242
      %v2403 = vmul.f32 %v1413, %v2244
      %v2404 = vmul.f32 %v1416, %v2246
      %v2405 = vmul.f32 %v1421, %v2248
      %v2406 = vmul.f32 %v1424, %v2250
      %v2407 = vmul.f32 %v1429, %v2252
      %v2408 = vmul.f32 %v1432, %v2254
      %v2409 = vmul.f32 %v1437, %v2256
      %v2410 = vmul.f32 %v1440, %v2258
      %v2411 = vmul.f32 %v1445, %v2260
      %v2412 = vmul.f32 %v1448, %v2262
      %v2413 = vmul.f32 %v1453, %v2264
      %v2414 = vmul.f32 %v1456, %v2266
      %v2415 = vmul.f32 %v1461, %v2268
      %v2416 = vmul.f32 %v1464, %v2270
      %v2417 = vmul.f32 %v1469, %v2272
      %v2418 = vmul.f32 %v1472, %v2274
      %v2419 = vmul.f32 %v1477, %v2276
      %v2420 = vmul.f32 %v1480, %v2278
      %v2421 = vmul.f32 %v1485, %v2280
      %v2422 = vmul.f32 %v1488, %v2282
      %v2423 = vmul.f32 %v1493, %v2284
      %v2424 = vmul.f32 %v1496, %v2286
      %v2425 = vmul.f32 %v1501, %v2288
      %v2426 = vmul.f32 %v1504, %v2290
      %v2427 = vmul.f32 %v1509, %v2292
      %v2428 = vmul.f32 %v1512, %v2294
      %v2429 = vmul.f32 %v1517, %v2296
      %v2430 = vmul.f32 %v1520, %v2298
      %v2431 = vmul.f32 %v1525, %v2300
      %v2432 = vmul.f32 %v1528, %v2302
      %v2433 = vmul.f32 %v1533, %v2304
      %v2434 = vmul.f32 %v1536, %v2306
      %2435 = vst.msk [vmem:[%s276 + $0x8] sm:$0xff] %vm262, %v2307
      %2436 = vst.msk [vmem:[%s276 + $0x10] sm:$0xff] %vm262, %v2308
      %2437 = vst.msk [vmem:[%s276 + $0x18] sm:$0xff] %vm262, %v2309
      %2438 = vst.msk [vmem:[%s276 + $0x20] sm:$0xff] %vm262, %v2310
      %2439 = vst.msk [vmem:[%s276 + $0x38] sm:$0xff] %vm262, %v2311
      %2440 = vst.msk [vmem:[%s276 + $0x40] sm:$0xff] %vm262, %v2312
      %2441 = vst.msk [vmem:[%s276 + $0x48] sm:$0xff] %vm262, %v2313
      %2442 = vst.msk [vmem:[%s276 + $0x50] sm:$0xff] %vm262, %v2314
      %2443 = vst.msk [vmem:[%s276 + $0x68] sm:$0xff] %vm262, %v2315
      %2444 = vst.msk [vmem:[%s276 + $0x70] sm:$0xff] %vm262, %v2316
      %2445 = vst.msk [vmem:[%s276 + $0x78] sm:$0xff] %vm262, %v2317
      %2446 = vst.msk [vmem:[%s276 + $0x80] sm:$0xff] %vm262, %v2318
      %2447 = vst.msk [vmem:[%s276 + $0x98] sm:$0xff] %vm262, %v2319
      %2448 = vst.msk [vmem:[%s276 + $0xa0] sm:$0xff] %vm262, %v2320
      %2449 = vst.msk [vmem:[%s276 + $0xa8] sm:$0xff] %vm262, %v2321
      %2450 = vst.msk [vmem:[%s276 + $0xb0] sm:$0xff] %vm262, %v2322
      %2451 = vst.msk [vmem:[%s276 + $0xc8] sm:$0xff] %vm262, %v2323
      %2452 = vst.msk [vmem:[%s276 + $0xd0] sm:$0xff] %vm262, %v2324
      %2453 = vst.msk [vmem:[%s276 + $0xd8] sm:$0xff] %vm262, %v2325
      %2454 = vst.msk [vmem:[%s276 + $0xe0] sm:$0xff] %vm262, %v2326
      %2455 = vst.msk [vmem:[%s276 + $0xf8] sm:$0xff] %vm262, %v2327
      %2456 = vst.msk [vmem:[%s276 + $0x100] sm:$0xff] %vm262, %v2328
      %2457 = vst.msk [vmem:[%s276 + $0x108] sm:$0xff] %vm262, %v2329
      %2458 = vst.msk [vmem:[%s276 + $0x110] sm:$0xff] %vm262, %v2330
      %2459 = vst.msk [vmem:[%s276 + $0x128] sm:$0xff] %vm262, %v2331
      %2460 = vst.msk [vmem:[%s276 + $0x130] sm:$0xff] %vm262, %v2332
      %2461 = vst.msk [vmem:[%s276 + $0x138] sm:$0xff] %vm262, %v2333
      %2462 = vst.msk [vmem:[%s276 + $0x140] sm:$0xff] %vm262, %v2334
      %2463 = vst.msk [vmem:[%s276 + $0x158] sm:$0xff] %vm262, %v2335
      %2464 = vst.msk [vmem:[%s276 + $0x160] sm:$0xff] %vm262, %v2336
      %2465 = vst.msk [vmem:[%s276 + $0x168] sm:$0xff] %vm262, %v2337
      %2466 = vst.msk [vmem:[%s276 + $0x170] sm:$0xff] %vm262, %v2338
      %2467 = vst.msk [vmem:[%s276 + $0x188] sm:$0xff] %vm262, %v2339
      %2468 = vst.msk [vmem:[%s276 + $0x190] sm:$0xff] %vm262, %v2340
      %2469 = vst.msk [vmem:[%s276 + $0x198] sm:$0xff] %vm262, %v2341
      %2470 = vst.msk [vmem:[%s276 + $0x1a0] sm:$0xff] %vm262, %v2342
      %2471 = vst.msk [vmem:[%s276 + $0x1b8] sm:$0xff] %vm262, %v2343
      %2472 = vst.msk [vmem:[%s276 + $0x1c0] sm:$0xff] %vm262, %v2344
      %2473 = vst.msk [vmem:[%s276 + $0x1c8] sm:$0xff] %vm262, %v2345
      %2474 = vst.msk [vmem:[%s276 + $0x1d0] sm:$0xff] %vm262, %v2346
      %2475 = vst.msk [vmem:[%s276 + $0x1e8] sm:$0xff] %vm262, %v2347
      %2476 = vst.msk [vmem:[%s276 + $0x1f0] sm:$0xff] %vm262, %v2348
      %2477 = vst.msk [vmem:[%s276 + $0x1f8] sm:$0xff] %vm262, %v2349
      %2478 = vst.msk [vmem:[%s276 + $0x200] sm:$0xff] %vm262, %v2350
      %2479 = vst.msk [vmem:[%s276 + $0x218] sm:$0xff] %vm262, %v2351
      %2480 = vst.msk [vmem:[%s276 + $0x220] sm:$0xff] %vm262, %v2352
      %2481 = vst.msk [vmem:[%s276 + $0x228] sm:$0xff] %vm262, %v2353
      %2482 = vst.msk [vmem:[%s276 + $0x230] sm:$0xff] %vm262, %v2354
      %2483 = vst.msk [vmem:[%s276 + $0x248] sm:$0xff] %vm262, %v2355
      %2484 = vst.msk [vmem:[%s276 + $0x250] sm:$0xff] %vm262, %v2356
      %2485 = vst.msk [vmem:[%s276 + $0x258] sm:$0xff] %vm262, %v2357
      %2486 = vst.msk [vmem:[%s276 + $0x260] sm:$0xff] %vm262, %v2358
      %2487 = vst.msk [vmem:[%s276 + $0x278] sm:$0xff] %vm262, %v2359
      %2488 = vst.msk [vmem:[%s276 + $0x280] sm:$0xff] %vm262, %v2360
      %2489 = vst.msk [vmem:[%s276 + $0x288] sm:$0xff] %vm262, %v2361
      %2490 = vst.msk [vmem:[%s276 + $0x290] sm:$0xff] %vm262, %v2362
      %2491 = vst.msk [vmem:[%s276 + $0x2a8] sm:$0xff] %vm262, %v2363
      %2492 = vst.msk [vmem:[%s276 + $0x2b0] sm:$0xff] %vm262, %v2364
      %2493 = vst.msk [vmem:[%s276 + $0x2b8] sm:$0xff] %vm262, %v2365
      %2494 = vst.msk [vmem:[%s276 + $0x2c0] sm:$0xff] %vm262, %v2366
      %2495 = vst.msk [vmem:[%s276 + $0x2d8] sm:$0xff] %vm262, %v2367
      %2496 = vst.msk [vmem:[%s276 + $0x2e0] sm:$0xff] %vm262, %v2368
      %2497 = vst.msk [vmem:[%s276 + $0x2e8] sm:$0xff] %vm262, %v2369
      %2498 = vst.msk [vmem:[%s276 + $0x2f0] sm:$0xff] %vm262, %v2370
      %2499 = vst.msk [vmem:[%s276 + $0x308] sm:$0xff] %vm262, %v2371
      %2500 = vst.msk [vmem:[%s276 + $0x310] sm:$0xff] %vm262, %v2372
      %2501 = vst.msk [vmem:[%s276 + $0x318] sm:$0xff] %vm262, %v2373
      %2502 = vst.msk [vmem:[%s276 + $0x320] sm:$0xff] %vm262, %v2374
      %2503 = vst.msk [vmem:[%s276 + $0x338] sm:$0xff] %vm262, %v2375
      %2504 = vst.msk [vmem:[%s276 + $0x340] sm:$0xff] %vm262, %v2376
      %2505 = vst.msk [vmem:[%s276 + $0x348] sm:$0xff] %vm262, %v2377
      %2506 = vst.msk [vmem:[%s276 + $0x350] sm:$0xff] %vm262, %v2378
      %2507 = vst.msk [vmem:[%s276 + $0x368] sm:$0xff] %vm262, %v2379
      %2508 = vst.msk [vmem:[%s276 + $0x370] sm:$0xff] %vm262, %v2380
      %2509 = vst.msk [vmem:[%s276 + $0x378] sm:$0xff] %vm262, %v2381
      %2510 = vst.msk [vmem:[%s276 + $0x380] sm:$0xff] %vm262, %v2382
      %2511 = vst.msk [vmem:[%s276 + $0x398] sm:$0xff] %vm262, %v2383
      %2512 = vst.msk [vmem:[%s276 + $0x3a0] sm:$0xff] %vm262, %v2384
      %2513 = vst.msk [vmem:[%s276 + $0x3a8] sm:$0xff] %vm262, %v2385
      %2514 = vst.msk [vmem:[%s276 + $0x3b0] sm:$0xff] %vm262, %v2386
      %2515 = vst.msk [vmem:[%s276 + $0x3c8] sm:$0xff] %vm262, %v2387
      %2516 = vst.msk [vmem:[%s276 + $0x3d0] sm:$0xff] %vm262, %v2388
      %2517 = vst.msk [vmem:[%s276 + $0x3d8] sm:$0xff] %vm262, %v2389
      %2518 = vst.msk [vmem:[%s276 + $0x3e0] sm:$0xff] %vm262, %v2390
      %2519 = vst.msk [vmem:[%s276 + $0x3f8] sm:$0xff] %vm262, %v2391
      %2520 = vst.msk [vmem:[%s276 + $0x400] sm:$0xff] %vm262, %v2392
      %2521 = vst.msk [vmem:[%s276 + $0x408] sm:$0xff] %vm262, %v2393
      %2522 = vst.msk [vmem:[%s276 + $0x410] sm:$0xff] %vm262, %v2394
      %2523 = vst.msk [vmem:[%s276 + $0x428] sm:$0xff] %vm262, %v2395
      %2524 = vst.msk [vmem:[%s276 + $0x430] sm:$0xff] %vm262, %v2396
      %2525 = vst.msk [vmem:[%s276 + $0x438] sm:$0xff] %vm262, %v2397
      %2526 = vst.msk [vmem:[%s276 + $0x440] sm:$0xff] %vm262, %v2398
      %2527 = vst.msk [vmem:[%s276 + $0x458] sm:$0xff] %vm262, %v2399
      %2528 = vst.msk [vmem:[%s276 + $0x460] sm:$0xff] %vm262, %v2400
      %2529 = vst.msk [vmem:[%s276 + $0x468] sm:$0xff] %vm262, %v2401
      %2530 = vst.msk [vmem:[%s276 + $0x470] sm:$0xff] %vm262, %v2402
      %2531 = vst.msk [vmem:[%s276 + $0x488] sm:$0xff] %vm262, %v2403
      %2532 = vst.msk [vmem:[%s276 + $0x490] sm:$0xff] %vm262, %v2404
      %2533 = vst.msk [vmem:[%s276 + $0x498] sm:$0xff] %vm262, %v2405
      %2534 = vst.msk [vmem:[%s276 + $0x4a0] sm:$0xff] %vm262, %v2406
      %2535 = vst.msk [vmem:[%s276 + $0x4b8] sm:$0xff] %vm262, %v2407
      %2536 = vst.msk [vmem:[%s276 + $0x4c0] sm:$0xff] %vm262, %v2408
      %2537 = vst.msk [vmem:[%s276 + $0x4c8] sm:$0xff] %vm262, %v2409
      %2538 = vst.msk [vmem:[%s276 + $0x4d0] sm:$0xff] %vm262, %v2410
      %2539 = vst.msk [vmem:[%s276 + $0x4e8] sm:$0xff] %vm262, %v2411
      %2540 = vst.msk [vmem:[%s276 + $0x4f0] sm:$0xff] %vm262, %v2412
      %2541 = vst.msk [vmem:[%s276 + $0x4f8] sm:$0xff] %vm262, %v2413
      %2542 = vst.msk [vmem:[%s276 + $0x500] sm:$0xff] %vm262, %v2414
      %2543 = vst.msk [vmem:[%s276 + $0x518] sm:$0xff] %vm262, %v2415
      %2544 = vst.msk [vmem:[%s276 + $0x520] sm:$0xff] %vm262, %v2416
      %2545 = vst.msk [vmem:[%s276 + $0x528] sm:$0xff] %vm262, %v2417
      %2546 = vst.msk [vmem:[%s276 + $0x530] sm:$0xff] %vm262, %v2418
      %2547 = vst.msk [vmem:[%s276 + $0x548] sm:$0xff] %vm262, %v2419
      %2548 = vst.msk [vmem:[%s276 + $0x550] sm:$0xff] %vm262, %v2420
      %2549 = vst.msk [vmem:[%s276 + $0x558] sm:$0xff] %vm262, %v2421
      %2550 = vst.msk [vmem:[%s276 + $0x560] sm:$0xff] %vm262, %v2422
      %2551 = vst.msk [vmem:[%s276 + $0x578] sm:$0xff] %vm262, %v2423
      %2552 = vst.msk [vmem:[%s276 + $0x580] sm:$0xff] %vm262, %v2424
      %2553 = vst.msk [vmem:[%s276 + $0x588] sm:$0xff] %vm262, %v2425
      %2554 = vst.msk [vmem:[%s276 + $0x590] sm:$0xff] %vm262, %v2426
      %2555 = vst.msk [vmem:[%s276 + $0x5a8] sm:$0xff] %vm262, %v2427
      %2556 = vst.msk [vmem:[%s276 + $0x5b0] sm:$0xff] %vm262, %v2428
      %2557 = vst.msk [vmem:[%s276 + $0x5b8] sm:$0xff] %vm262, %v2429
      %2558 = vst.msk [vmem:[%s276 + $0x5c0] sm:$0xff] %vm262, %v2430
      %2559 = vst.msk [vmem:[%s276 + $0x5d8] sm:$0xff] %vm262, %v2431
      %2560 = vst.msk [vmem:[%s276 + $0x5e0] sm:$0xff] %vm262, %v2432
      %2561 = vst.msk [vmem:[%s276 + $0x5e8] sm:$0xff] %vm262, %v2433
      %2562 = vst.msk [vmem:[%s276 + $0x5f0] sm:$0xff] %vm262, %v2434
      %v2563 = vld [vmem:[%s3] sm:$0xff]
      %v2564 = vld [vmem:[%s3 + $0x8] sm:$0x1]
      %v2565 = vld [vmem:[#allocation2 + $0x7] sm:$0xff]
      %v2566 = vld [vmem:[#allocation2 + $0xf] sm:$0xff]
      %v2567 = vld [vmem:[#allocation2 + $0x17] sm:$0xff]
      %v2568 = vld [vmem:[#allocation2 + $0x1f] sm:$0xff]
      %v2569 = vld [vmem:[#allocation2 + $0x37] sm:$0xff]
      %v2570 = vld [vmem:[#allocation2 + $0x3f] sm:$0xff]
      %v2571 = vld [vmem:[#allocation2 + $0x47] sm:$0xff]
      %v2572 = vld [vmem:[#allocation2 + $0x4f] sm:$0xff]
      %v2573 = vld [vmem:[#allocation2 + $0x67] sm:$0xff]
      %v2574 = vld [vmem:[#allocation2 + $0x6f] sm:$0xff]
      %v2575 = vld [vmem:[#allocation2 + $0x77] sm:$0xff]
      %v2576 = vld [vmem:[#allocation2 + $0x7f] sm:$0xff]
      %v2577 = vld [vmem:[#allocation2 + $0x97] sm:$0xff]
      %v2578 = vld [vmem:[#allocation2 + $0x9f] sm:$0xff]
      %v2579 = vld [vmem:[#allocation2 + $0xa7] sm:$0xff]
      %v2580 = vld [vmem:[#allocation2 + $0xaf] sm:$0xff]
      %v2581 = vld [vmem:[#allocation2 + $0xc7] sm:$0xff]
      %v2582 = vld [vmem:[#allocation2 + $0xcf] sm:$0xff]
      %v2583 = vld [vmem:[#allocation2 + $0xd7] sm:$0xff]
      %v2584 = vld [vmem:[#allocation2 + $0xdf] sm:$0xff]
      %v2585 = vld [vmem:[#allocation2 + $0xf7] sm:$0xff]
      %v2586 = vld [vmem:[#allocation2 + $0xff] sm:$0xff]
      %v2587 = vld [vmem:[#allocation2 + $0x107] sm:$0xff]
      %v2588 = vld [vmem:[#allocation2 + $0x10f] sm:$0xff]
      %v2589 = vld [vmem:[#allocation2 + $0x127] sm:$0xff]
      %v2590 = vld [vmem:[#allocation2 + $0x12f] sm:$0xff]
      %v2591 = vld [vmem:[#allocation2 + $0x137] sm:$0xff]
      %v2592 = vld [vmem:[#allocation2 + $0x13f] sm:$0xff]
      %v2593 = vld [vmem:[#allocation2 + $0x157] sm:$0xff]
      %v2594 = vld [vmem:[#allocation2 + $0x15f] sm:$0xff]
      %v2595 = vld [vmem:[#allocation2 + $0x167] sm:$0xff]
      %v2596 = vld [vmem:[#allocation2 + $0x16f] sm:$0xff]
      %v2597 = vld [vmem:[#allocation2 + $0x187] sm:$0xff]
      %v2598 = vld [vmem:[#allocation2 + $0x18f] sm:$0xff]
      %v2599 = vld [vmem:[#allocation2 + $0x197] sm:$0xff]
      %v2600 = vld [vmem:[#allocation2 + $0x19f] sm:$0xff]
      %v2601 = vld [vmem:[#allocation2 + $0x1b7] sm:$0xff]
      %v2602 = vld [vmem:[#allocation2 + $0x1bf] sm:$0xff]
      %v2603 = vld [vmem:[#allocation2 + $0x1c7] sm:$0xff]
      %v2604 = vld [vmem:[#allocation2 + $0x1cf] sm:$0xff]
      %v2605 = vld [vmem:[#allocation2 + $0x1e7] sm:$0xff]
      %v2606 = vld [vmem:[#allocation2 + $0x1ef] sm:$0xff]
      %v2607 = vld [vmem:[#allocation2 + $0x1f7] sm:$0xff]
      %v2608 = vld [vmem:[#allocation2 + $0x1ff] sm:$0xff]
      %v2609 = vld [vmem:[#allocation2 + $0x217] sm:$0xff]
      %v2610 = vld [vmem:[#allocation2 + $0x21f] sm:$0xff]
      %v2611 = vld [vmem:[#allocation2 + $0x227] sm:$0xff]
      %v2612 = vld [vmem:[#allocation2 + $0x22f] sm:$0xff]
      %v2613 = vld [vmem:[#allocation2 + $0x247] sm:$0xff]
      %v2614 = vld [vmem:[#allocation2 + $0x24f] sm:$0xff]
      %v2615 = vld [vmem:[#allocation2 + $0x257] sm:$0xff]
      %v2616 = vld [vmem:[#allocation2 + $0x25f] sm:$0xff]
      %v2617 = vld [vmem:[#allocation2 + $0x277] sm:$0xff]
      %v2618 = vld [vmem:[#allocation2 + $0x27f] sm:$0xff]
      %v2619 = vld [vmem:[#allocation2 + $0x287] sm:$0xff]
      %v2620 = vld [vmem:[#allocation2 + $0x28f] sm:$0xff]
      %v2621 = vld [vmem:[#allocation2 + $0x2a7] sm:$0xff]
      %v2622 = vld [vmem:[#allocation2 + $0x2af] sm:$0xff]
      %v2623 = vld [vmem:[#allocation2 + $0x2b7] sm:$0xff]
      %v2624 = vld [vmem:[#allocation2 + $0x2bf] sm:$0xff]
      %v2625 = vld [vmem:[#allocation2 + $0x2d7] sm:$0xff]
      %v2626 = vld [vmem:[#allocation2 + $0x2df] sm:$0xff]
      %v2627 = vld [vmem:[#allocation2 + $0x2e7] sm:$0xff]
      %v2628 = vld [vmem:[#allocation2 + $0x2ef] sm:$0xff]
      %v2629 = vld [vmem:[#allocation2 + $0x307] sm:$0xff]
      %v2630 = vld [vmem:[#allocation2 + $0x30f] sm:$0xff]
      %v2631 = vld [vmem:[#allocation2 + $0x317] sm:$0xff]
      %v2632 = vld [vmem:[#allocation2 + $0x31f] sm:$0xff]
      %v2633 = vld [vmem:[#allocation2 + $0x337] sm:$0xff]
      %v2634 = vld [vmem:[#allocation2 + $0x33f] sm:$0xff]
      %v2635 = vld [vmem:[#allocation2 + $0x347] sm:$0xff]
      %v2636 = vld [vmem:[#allocation2 + $0x34f] sm:$0xff]
      %v2637 = vld [vmem:[#allocation2 + $0x367] sm:$0xff]
      %v2638 = vld [vmem:[#allocation2 + $0x36f] sm:$0xff]
      %v2639 = vld [vmem:[#allocation2 + $0x377] sm:$0xff]
      %v2640 = vld [vmem:[#allocation2 + $0x37f] sm:$0xff]
      %v2641 = vld [vmem:[#allocation2 + $0x397] sm:$0xff]
      %v2642 = vld [vmem:[#allocation2 + $0x39f] sm:$0xff]
      %v2643 = vld [vmem:[#allocation2 + $0x3a7] sm:$0xff]
      %v2644 = vld [vmem:[#allocation2 + $0x3af] sm:$0xff]
      %v2645 = vld [vmem:[#allocation2 + $0x3c7] sm:$0xff]
      %v2646 = vld [vmem:[#allocation2 + $0x3cf] sm:$0xff]
      %v2647 = vld [vmem:[#allocation2 + $0x3d7] sm:$0xff]
      %v2648 = vld [vmem:[#allocation2 + $0x3df] sm:$0xff]
      %v2649 = vld [vmem:[#allocation2 + $0x3f7] sm:$0xff]
      %v2650 = vld [vmem:[#allocation2 + $0x3ff] sm:$0xff]
      %v2651 = vld [vmem:[#allocation2 + $0x407] sm:$0xff]
      %v2652 = vld [vmem:[#allocation2 + $0x40f] sm:$0xff]
      %v2653 = vld [vmem:[#allocation2 + $0x427] sm:$0xff]
      %v2654 = vld [vmem:[#allocation2 + $0x42f] sm:$0xff]
      %v2655 = vld [vmem:[#allocation2 + $0x437] sm:$0xff]
      %v2656 = vld [vmem:[#allocation2 + $0x43f] sm:$0xff]
      %v2657 = vld [vmem:[#allocation2 + $0x457] sm:$0xff]
      %v2658 = vld [vmem:[#allocation2 + $0x45f] sm:$0xff]
      %v2659 = vld [vmem:[#allocation2 + $0x467] sm:$0xff]
      %v2660 = vld [vmem:[#allocation2 + $0x46f] sm:$0xff]
      %v2661 = vld [vmem:[#allocation2 + $0x487] sm:$0xff]
      %v2662 = vld [vmem:[#allocation2 + $0x48f] sm:$0xff]
      %v2663 = vld [vmem:[#allocation2 + $0x497] sm:$0xff]
      %v2664 = vld [vmem:[#allocation2 + $0x49f] sm:$0xff]
      %v2665 = vld [vmem:[#allocation2 + $0x4b7] sm:$0xff]
      %v2666 = vld [vmem:[#allocation2 + $0x4bf] sm:$0xff]
      %v2667 = vld [vmem:[#allocation2 + $0x4c7] sm:$0xff]
      %v2668 = vld [vmem:[#allocation2 + $0x4cf] sm:$0xff]
      %v2669 = vld [vmem:[#allocation2 + $0x4e7] sm:$0xff]
      %v2670 = vld [vmem:[#allocation2 + $0x4ef] sm:$0xff]
      %v2671 = vld [vmem:[#allocation2 + $0x4f7] sm:$0xff]
      %v2672 = vld [vmem:[#allocation2 + $0x4ff] sm:$0xff]
      %v2673 = vld [vmem:[#allocation2 + $0x517] sm:$0xff]
      %v2674 = vld [vmem:[#allocation2 + $0x51f] sm:$0xff]
      %v2675 = vld [vmem:[#allocation2 + $0x527] sm:$0xff]
      %v2676 = vld [vmem:[#allocation2 + $0x52f] sm:$0xff]
      %v2677 = vld [vmem:[#allocation2 + $0x547] sm:$0xff]
      %v2678 = vld [vmem:[#allocation2 + $0x54f] sm:$0xff]
      %v2679 = vld [vmem:[#allocation2 + $0x557] sm:$0xff]
      %v2680 = vld [vmem:[#allocation2 + $0x55f] sm:$0xff]
      %v2681 = vld [vmem:[#allocation2 + $0x577] sm:$0xff]
      %v2682 = vld [vmem:[#allocation2 + $0x57f] sm:$0xff]
      %v2683 = vld [vmem:[#allocation2 + $0x587] sm:$0xff]
      %v2684 = vld [vmem:[#allocation2 + $0x58f] sm:$0xff]
      %v2685 = vld [vmem:[#allocation2 + $0x5a7] sm:$0xff]
      %v2686 = vld [vmem:[#allocation2 + $0x5af] sm:$0xff]
      %v2687 = vld [vmem:[#allocation2 + $0x5b7] sm:$0xff]
      %v2688 = vld [vmem:[#allocation2 + $0x5bf] sm:$0xff]
      %v2689 = vld [vmem:[#allocation2 + $0x5d7] sm:$0xff]
      %v2690 = vld [vmem:[#allocation2 + $0x5df] sm:$0xff]
      %v2691 = vld [vmem:[#allocation2 + $0x5e7] sm:$0xff]
      %v2692 = vld [vmem:[#allocation2 + $0x5ef] sm:$0xff]
      %v2693 = vld [vmem:[#allocation2 + $0x607] sm:$0xff]
      %v2694 = vld [vmem:[#allocation2 + $0x60f] sm:$0xff]
      %v2695 = vld [vmem:[#allocation2 + $0x617] sm:$0xff]
      %v2696 = vld [vmem:[#allocation2 + $0x61f] sm:$0xff]
      %v2697 = vld [vmem:[#allocation2 + $0x637] sm:$0xff]
      %v2698 = vld [vmem:[#allocation2 + $0x63f] sm:$0xff]
      %v2699 = vld [vmem:[#allocation2 + $0x647] sm:$0xff]
      %v2700 = vld [vmem:[#allocation2 + $0x64f] sm:$0xff]
      %v2701 = vlaneseq
      %v2702 = vshrl.u32 %v2701, 7
      %v2703 = vsub.s32 0, %v2702
      %v2704 = vrot.slane %v2563, %v2703
      %v2705 = vmul.f32 %v2565, %v2704
      %v2706 = vmul.f32 %v2566, %v2704
      %v2707 = vmul.f32 %v2567, %v2704
      %v2708 = vmul.f32 %v2568, %v2704
      %v2709 = vmul.f32 %v2569, %v2704
      %v2710 = vmul.f32 %v2570, %v2704
      %v2711 = vmul.f32 %v2571, %v2704
      %v2712 = vmul.f32 %v2572, %v2704
      %v2713 = vmul.f32 %v2573, %v2704
      %v2714 = vmul.f32 %v2574, %v2704
      %v2715 = vmul.f32 %v2575, %v2704
      %v2716 = vmul.f32 %v2576, %v2704
      %v2717 = vmul.f32 %v2577, %v2704
      %v2718 = vmul.f32 %v2578, %v2704
      %v2719 = vmul.f32 %v2579, %v2704
      %v2720 = vmul.f32 %v2580, %v2704
      %v2721 = vmul.f32 %v2581, %v2704
      %v2722 = vmul.f32 %v2582, %v2704
      %v2723 = vmul.f32 %v2583, %v2704
      %v2724 = vmul.f32 %v2584, %v2704
      %v2725 = vmul.f32 %v2585, %v2704
      %v2726 = vmul.f32 %v2586, %v2704
      %v2727 = vmul.f32 %v2587, %v2704
      %v2728 = vmul.f32 %v2588, %v2704
      %v2729 = vmul.f32 %v2589, %v2704
      %v2730 = vmul.f32 %v2590, %v2704
      %v2731 = vmul.f32 %v2591, %v2704
      %v2732 = vmul.f32 %v2592, %v2704
      %v2733 = vmul.f32 %v2593, %v2704
      %v2734 = vmul.f32 %v2594, %v2704
      %v2735 = vmul.f32 %v2595, %v2704
      %v2736 = vmul.f32 %v2596, %v2704
      %v2737 = vmul.f32 %v2597, %v2704
      %v2738 = vmul.f32 %v2598, %v2704
      %v2739 = vmul.f32 %v2599, %v2704
      %v2740 = vmul.f32 %v2600, %v2704
      %v2741 = vmul.f32 %v2601, %v2704
      %v2742 = vmul.f32 %v2602, %v2704
      %v2743 = vmul.f32 %v2603, %v2704
      %v2744 = vmul.f32 %v2604, %v2704
      %v2745 = vmul.f32 %v2605, %v2704
      %v2746 = vmul.f32 %v2606, %v2704
      %v2747 = vmul.f32 %v2607, %v2704
      %v2748 = vmul.f32 %v2608, %v2704
      %v2749 = vmul.f32 %v2609, %v2704
      %v2750 = vmul.f32 %v2610, %v2704
      %v2751 = vmul.f32 %v2611, %v2704
      %v2752 = vmul.f32 %v2612, %v2704
      %v2753 = vmul.f32 %v2613, %v2704
      %v2754 = vmul.f32 %v2614, %v2704
      %v2755 = vmul.f32 %v2615, %v2704
      %v2756 = vmul.f32 %v2616, %v2704
      %v2757 = vmul.f32 %v2617, %v2704
      %v2758 = vmul.f32 %v2618, %v2704
      %v2759 = vmul.f32 %v2619, %v2704
      %v2760 = vmul.f32 %v2620, %v2704
      %v2761 = vmul.f32 %v2621, %v2704
      %v2762 = vmul.f32 %v2622, %v2704
      %v2763 = vmul.f32 %v2623, %v2704
      %v2764 = vmul.f32 %v2624, %v2704
      %v2765 = vmul.f32 %v2625, %v2704
      %v2766 = vmul.f32 %v2626, %v2704
      %v2767 = vmul.f32 %v2627, %v2704
      %v2768 = vmul.f32 %v2628, %v2704
      %v2769 = vmul.f32 %v2629, %v2704
      %v2770 = vmul.f32 %v2630, %v2704
      %v2771 = vmul.f32 %v2631, %v2704
      %v2772 = vmul.f32 %v2632, %v2704
      %v2773 = vmul.f32 %v2633, %v2704
      %v2774 = vmul.f32 %v2634, %v2704
      %v2775 = vmul.f32 %v2635, %v2704
      %v2776 = vmul.f32 %v2636, %v2704
      %v2777 = vmul.f32 %v2637, %v2704
      %v2778 = vmul.f32 %v2638, %v2704
      %v2779 = vmul.f32 %v2639, %v2704
      %v2780 = vmul.f32 %v2640, %v2704
      %v2781 = vmul.f32 %v2641, %v2704
      %v2782 = vmul.f32 %v2642, %v2704
      %v2783 = vmul.f32 %v2643, %v2704
      %v2784 = vmul.f32 %v2644, %v2704
      %v2785 = vmul.f32 %v2645, %v2704
      %v2786 = vmul.f32 %v2646, %v2704
      %v2787 = vmul.f32 %v2647, %v2704
      %v2788 = vmul.f32 %v2648, %v2704
      %v2789 = vmul.f32 %v2649, %v2704
      %v2790 = vmul.f32 %v2650, %v2704
      %v2791 = vmul.f32 %v2651, %v2704
      %v2792 = vmul.f32 %v2652, %v2704
      %v2793 = vmul.f32 %v2653, %v2704
      %v2794 = vmul.f32 %v2654, %v2704
      %v2795 = vmul.f32 %v2655, %v2704
      %v2796 = vmul.f32 %v2656, %v2704
      %v2797 = vmul.f32 %v2657, %v2704
      %v2798 = vmul.f32 %v2658, %v2704
      %v2799 = vmul.f32 %v2659, %v2704
      %v2800 = vmul.f32 %v2660, %v2704
      %v2801 = vmul.f32 %v2661, %v2704
      %v2802 = vmul.f32 %v2662, %v2704
      %v2803 = vmul.f32 %v2663, %v2704
      %v2804 = vmul.f32 %v2664, %v2704
      %v2805 = vmul.f32 %v2665, %v2704
      %v2806 = vmul.f32 %v2666, %v2704
      %v2807 = vmul.f32 %v2667, %v2704
      %v2808 = vmul.f32 %v2668, %v2704
      %v2809 = vmul.f32 %v2669, %v2704
      %v2810 = vmul.f32 %v2670, %v2704
      %v2811 = vmul.f32 %v2671, %v2704
      %v2812 = vmul.f32 %v2672, %v2704
      %v2813 = vmul.f32 %v2673, %v2704
      %v2814 = vmul.f32 %v2674, %v2704
      %v2815 = vmul.f32 %v2675, %v2704
      %v2816 = vmul.f32 %v2676, %v2704
      %v2817 = vmul.f32 %v2677, %v2704
      %v2818 = vmul.f32 %v2678, %v2704
      %v2819 = vmul.f32 %v2679, %v2704
      %v2820 = vmul.f32 %v2680, %v2704
      %v2821 = vmul.f32 %v2681, %v2704
      %v2822 = vmul.f32 %v2682, %v2704
      %v2823 = vmul.f32 %v2683, %v2704
      %v2824 = vmul.f32 %v2684, %v2704
      %v2825 = vmul.f32 %v2685, %v2704
      %v2826 = vmul.f32 %v2686, %v2704
      %v2827 = vmul.f32 %v2687, %v2704
      %v2828 = vmul.f32 %v2688, %v2704
      %v2829 = vmul.f32 %v2689, %v2704
      %v2830 = vmul.f32 %v2690, %v2704
      %v2831 = vmul.f32 %v2691, %v2704
      %v2832 = vmul.f32 %v2692, %v2704
      %v2833 = vlaneseq
      %v2834 = vshrl.u32 %v2833, 7
      %v2835 = vsub.s32 3, %v2834
      %v2836 = vrot.slane %v2563, %v2835
      %v2837 = vmul.f32 %v2569, %v2836
      %v2838 = vmul.f32 %v2570, %v2836
      %v2839 = vmul.f32 %v2571, %v2836
      %v2840 = vmul.f32 %v2572, %v2836
      %v2841 = vmul.f32 %v2573, %v2836
      %v2842 = vmul.f32 %v2574, %v2836
      %v2843 = vmul.f32 %v2575, %v2836
      %v2844 = vmul.f32 %v2576, %v2836
      %v2845 = vmul.f32 %v2577, %v2836
      %v2846 = vmul.f32 %v2578, %v2836
      %v2847 = vmul.f32 %v2579, %v2836
      %v2848 = vmul.f32 %v2580, %v2836
      %v2849 = vmul.f32 %v2581, %v2836
      %v2850 = vmul.f32 %v2582, %v2836
      %v2851 = vmul.f32 %v2583, %v2836
      %v2852 = vmul.f32 %v2584, %v2836
      %v2853 = vmul.f32 %v2585, %v2836
      %v2854 = vmul.f32 %v2586, %v2836
      %v2855 = vmul.f32 %v2587, %v2836
      %v2856 = vmul.f32 %v2588, %v2836
      %v2857 = vmul.f32 %v2589, %v2836
      %v2858 = vmul.f32 %v2590, %v2836
      %v2859 = vmul.f32 %v2591, %v2836
      %v2860 = vmul.f32 %v2592, %v2836
      %v2861 = vmul.f32 %v2593, %v2836
      %v2862 = vmul.f32 %v2594, %v2836
      %v2863 = vmul.f32 %v2595, %v2836
      %v2864 = vmul.f32 %v2596, %v2836
      %v2865 = vmul.f32 %v2597, %v2836
      %v2866 = vmul.f32 %v2598, %v2836
      %v2867 = vmul.f32 %v2599, %v2836
      %v2868 = vmul.f32 %v2600, %v2836
      %v2869 = vmul.f32 %v2601, %v2836
      %v2870 = vmul.f32 %v2602, %v2836
      %v2871 = vmul.f32 %v2603, %v2836
      %v2872 = vmul.f32 %v2604, %v2836
      %v2873 = vmul.f32 %v2605, %v2836
      %v2874 = vmul.f32 %v2606, %v2836
      %v2875 = vmul.f32 %v2607, %v2836
      %v2876 = vmul.f32 %v2608, %v2836
      %v2877 = vmul.f32 %v2609, %v2836
      %v2878 = vmul.f32 %v2610, %v2836
      %v2879 = vmul.f32 %v2611, %v2836
      %v2880 = vmul.f32 %v2612, %v2836
      %v2881 = vmul.f32 %v2613, %v2836
      %v2882 = vmul.f32 %v2614, %v2836
      %v2883 = vmul.f32 %v2615, %v2836
      %v2884 = vmul.f32 %v2616, %v2836
      %v2885 = vmul.f32 %v2617, %v2836
      %v2886 = vmul.f32 %v2618, %v2836
      %v2887 = vmul.f32 %v2619, %v2836
      %v2888 = vmul.f32 %v2620, %v2836
      %v2889 = vmul.f32 %v2621, %v2836
      %v2890 = vmul.f32 %v2622, %v2836
      %v2891 = vmul.f32 %v2623, %v2836
      %v2892 = vmul.f32 %v2624, %v2836
      %v2893 = vmul.f32 %v2625, %v2836
      %v2894 = vmul.f32 %v2626, %v2836
      %v2895 = vmul.f32 %v2627, %v2836
      %v2896 = vmul.f32 %v2628, %v2836
      %v2897 = vmul.f32 %v2629, %v2836
      %v2898 = vmul.f32 %v2630, %v2836
      %v2899 = vmul.f32 %v2631, %v2836
      %v2900 = vmul.f32 %v2632, %v2836
      %v2901 = vmul.f32 %v2633, %v2836
      %v2902 = vmul.f32 %v2634, %v2836
      %v2903 = vmul.f32 %v2635, %v2836
      %v2904 = vmul.f32 %v2636, %v2836
      %v2905 = vmul.f32 %v2637, %v2836
      %v2906 = vmul.f32 %v2638, %v2836
      %v2907 = vmul.f32 %v2639, %v2836
      %v2908 = vmul.f32 %v2640, %v2836
      %v2909 = vmul.f32 %v2641, %v2836
      %v2910 = vmul.f32 %v2642, %v2836
      %v2911 = vmul.f32 %v2643, %v2836
      %v2912 = vmul.f32 %v2644, %v2836
      %v2913 = vmul.f32 %v2645, %v2836
      %v2914 = vmul.f32 %v2646, %v2836
      %v2915 = vmul.f32 %v2647, %v2836
      %v2916 = vmul.f32 %v2648, %v2836
      %v2917 = vmul.f32 %v2649, %v2836
      %v2918 = vmul.f32 %v2650, %v2836
      %v2919 = vmul.f32 %v2651, %v2836
      %v2920 = vmul.f32 %v2652, %v2836
      %v2921 = vmul.f32 %v2653, %v2836
      %v2922 = vmul.f32 %v2654, %v2836
      %v2923 = vmul.f32 %v2655, %v2836
      %v2924 = vmul.f32 %v2656, %v2836
      %v2925 = vmul.f32 %v2657, %v2836
      %v2926 = vmul.f32 %v2658, %v2836
      %v2927 = vmul.f32 %v2659, %v2836
      %v2928 = vmul.f32 %v2660, %v2836
      %v2929 = vmul.f32 %v2661, %v2836
      %v2930 = vmul.f32 %v2662, %v2836
      %v2931 = vmul.f32 %v2663, %v2836
      %v2932 = vmul.f32 %v2664, %v2836
      %v2933 = vmul.f32 %v2665, %v2836
      %v2934 = vmul.f32 %v2666, %v2836
      %v2935 = vmul.f32 %v2667, %v2836
      %v2936 = vmul.f32 %v2668, %v2836
      %v2937 = vmul.f32 %v2669, %v2836
      %v2938 = vmul.f32 %v2670, %v2836
      %v2939 = vmul.f32 %v2671, %v2836
      %v2940 = vmul.f32 %v2672, %v2836
      %v2941 = vmul.f32 %v2673, %v2836
      %v2942 = vmul.f32 %v2674, %v2836
      %v2943 = vmul.f32 %v2675, %v2836
      %v2944 = vmul.f32 %v2676, %v2836
      %v2945 = vmul.f32 %v2677, %v2836
      %v2946 = vmul.f32 %v2678, %v2836
      %v2947 = vmul.f32 %v2679, %v2836
      %v2948 = vmul.f32 %v2680, %v2836
      %v2949 = vmul.f32 %v2681, %v2836
      %v2950 = vmul.f32 %v2682, %v2836
      %v2951 = vmul.f32 %v2683, %v2836
      %v2952 = vmul.f32 %v2684, %v2836
      %v2953 = vmul.f32 %v2685, %v2836
      %v2954 = vmul.f32 %v2686, %v2836
      %v2955 = vmul.f32 %v2687, %v2836
      %v2956 = vmul.f32 %v2688, %v2836
      %v2957 = vmul.f32 %v2689, %v2836
      %v2958 = vmul.f32 %v2690, %v2836
      %v2959 = vmul.f32 %v2691, %v2836
      %v2960 = vmul.f32 %v2692, %v2836
      %v2961 = vmul.f32 %v2693, %v2836
      %v2962 = vmul.f32 %v2694, %v2836
      %v2963 = vmul.f32 %v2695, %v2836
      %v2964 = vmul.f32 %v2696, %v2836
      %v2965 = vadd.f32 %v2705, %v2837
      %v2966 = vadd.f32 %v2706, %v2838
      %v2967 = vadd.f32 %v2707, %v2839
      %v2968 = vadd.f32 %v2708, %v2840
      %v2969 = vadd.f32 %v2709, %v2841
      %v2970 = vadd.f32 %v2710, %v2842
      %v2971 = vadd.f32 %v2711, %v2843
      %v2972 = vadd.f32 %v2712, %v2844
      %v2973 = vadd.f32 %v2713, %v2845
      %v2974 = vadd.f32 %v2714, %v2846
      %v2975 = vadd.f32 %v2715, %v2847
      %v2976 = vadd.f32 %v2716, %v2848
      %v2977 = vadd.f32 %v2717, %v2849
      %v2978 = vadd.f32 %v2718, %v2850
      %v2979 = vadd.f32 %v2719, %v2851
      %v2980 = vadd.f32 %v2720, %v2852
      %v2981 = vadd.f32 %v2721, %v2853
      %v2982 = vadd.f32 %v2722, %v2854
      %v2983 = vadd.f32 %v2723, %v2855
      %v2984 = vadd.f32 %v2724, %v2856
      %v2985 = vadd.f32 %v2725, %v2857
      %v2986 = vadd.f32 %v2726, %v2858
      %v2987 = vadd.f32 %v2727, %v2859
      %v2988 = vadd.f32 %v2728, %v2860
      %v2989 = vadd.f32 %v2729, %v2861
      %v2990 = vadd.f32 %v2730, %v2862
      %v2991 = vadd.f32 %v2731, %v2863
      %v2992 = vadd.f32 %v2732, %v2864
      %v2993 = vadd.f32 %v2733, %v2865
      %v2994 = vadd.f32 %v2734, %v2866
      %v2995 = vadd.f32 %v2735, %v2867
      %v2996 = vadd.f32 %v2736, %v2868
      %v2997 = vadd.f32 %v2737, %v2869
      %v2998 = vadd.f32 %v2738, %v2870
      %v2999 = vadd.f32 %v2739, %v2871
      %v3000 = vadd.f32 %v2740, %v2872
      %v3001 = vadd.f32 %v2741, %v2873
      %v3002 = vadd.f32 %v2742, %v2874
      %v3003 = vadd.f32 %v2743, %v2875
      %v3004 = vadd.f32 %v2744, %v2876
      %v3005 = vadd.f32 %v2745, %v2877
      %v3006 = vadd.f32 %v2746, %v2878
      %v3007 = vadd.f32 %v2747, %v2879
      %v3008 = vadd.f32 %v2748, %v2880
      %v3009 = vadd.f32 %v2749, %v2881
      %v3010 = vadd.f32 %v2750, %v2882
      %v3011 = vadd.f32 %v2751, %v2883
      %v3012 = vadd.f32 %v2752, %v2884
      %v3013 = vadd.f32 %v2753, %v2885
      %v3014 = vadd.f32 %v2754, %v2886
      %v3015 = vadd.f32 %v2755, %v2887
      %v3016 = vadd.f32 %v2756, %v2888
      %v3017 = vadd.f32 %v2757, %v2889
      %v3018 = vadd.f32 %v2758, %v2890
      %v3019 = vadd.f32 %v2759, %v2891
      %v3020 = vadd.f32 %v2760, %v2892
      %v3021 = vadd.f32 %v2761, %v2893
      %v3022 = vadd.f32 %v2762, %v2894
      %v3023 = vadd.f32 %v2763, %v2895
      %v3024 = vadd.f32 %v2764, %v2896
      %v3025 = vadd.f32 %v2765, %v2897
      %v3026 = vadd.f32 %v2766, %v2898
      %v3027 = vadd.f32 %v2767, %v2899
      %v3028 = vadd.f32 %v2768, %v2900
      %v3029 = vadd.f32 %v2769, %v2901
      %v3030 = vadd.f32 %v2770, %v2902
      %v3031 = vadd.f32 %v2771, %v2903
      %v3032 = vadd.f32 %v2772, %v2904
      %v3033 = vadd.f32 %v2773, %v2905
      %v3034 = vadd.f32 %v2774, %v2906
      %v3035 = vadd.f32 %v2775, %v2907
      %v3036 = vadd.f32 %v2776, %v2908
      %v3037 = vadd.f32 %v2777, %v2909
      %v3038 = vadd.f32 %v2778, %v2910
      %v3039 = vadd.f32 %v2779, %v2911
      %v3040 = vadd.f32 %v2780, %v2912
      %v3041 = vadd.f32 %v2781, %v2913
      %v3042 = vadd.f32 %v2782, %v2914
      %v3043 = vadd.f32 %v2783, %v2915
      %v3044 = vadd.f32 %v2784, %v2916
      %v3045 = vadd.f32 %v2785, %v2917
      %v3046 = vadd.f32 %v2786, %v2918
      %v3047 = vadd.f32 %v2787, %v2919
      %v3048 = vadd.f32 %v2788, %v2920
      %v3049 = vadd.f32 %v2789, %v2921
      %v3050 = vadd.f32 %v2790, %v2922
      %v3051 = vadd.f32 %v2791, %v2923
      %v3052 = vadd.f32 %v2792, %v2924
      %v3053 = vadd.f32 %v2793, %v2925
      %v3054 = vadd.f32 %v2794, %v2926
      %v3055 = vadd.f32 %v2795, %v2927
      %v3056 = vadd.f32 %v2796, %v2928
      %v3057 = vadd.f32 %v2797, %v2929
      %v3058 = vadd.f32 %v2798, %v2930
      %v3059 = vadd.f32 %v2799, %v2931
      %v3060 = vadd.f32 %v2800, %v2932
      %v3061 = vadd.f32 %v2801, %v2933
      %v3062 = vadd.f32 %v2802, %v2934
      %v3063 = vadd.f32 %v2803, %v2935
      %v3064 = vadd.f32 %v2804, %v2936
      %v3065 = vadd.f32 %v2805, %v2937
      %v3066 = vadd.f32 %v2806, %v2938
      %v3067 = vadd.f32 %v2807, %v2939
      %v3068 = vadd.f32 %v2808, %v2940
      %v3069 = vadd.f32 %v2809, %v2941
      %v3070 = vadd.f32 %v2810, %v2942
      %v3071 = vadd.f32 %v2811, %v2943
      %v3072 = vadd.f32 %v2812, %v2944
      %v3073 = vadd.f32 %v2813, %v2945
      %v3074 = vadd.f32 %v2814, %v2946
      %v3075 = vadd.f32 %v2815, %v2947
      %v3076 = vadd.f32 %v2816, %v2948
      %v3077 = vadd.f32 %v2817, %v2949
      %v3078 = vadd.f32 %v2818, %v2950
      %v3079 = vadd.f32 %v2819, %v2951
      %v3080 = vadd.f32 %v2820, %v2952
      %v3081 = vadd.f32 %v2821, %v2953
      %v3082 = vadd.f32 %v2822, %v2954
      %v3083 = vadd.f32 %v2823, %v2955
      %v3084 = vadd.f32 %v2824, %v2956
      %v3085 = vadd.f32 %v2825, %v2957
      %v3086 = vadd.f32 %v2826, %v2958
      %v3087 = vadd.f32 %v2827, %v2959
      %v3088 = vadd.f32 %v2828, %v2960
      %v3089 = vadd.f32 %v2829, %v2961
      %v3090 = vadd.f32 %v2830, %v2962
      %v3091 = vadd.f32 %v2831, %v2963
      %v3092 = vadd.f32 %v2832, %v2964
      %v3093 = vlaneseq
      %v3094 = vshrl.u32 %v3093, 7
      %v3095 = vsub.s32 6, %v3094
      %v3096 = vrot.slane %v2563, %v3095
      %v3097 = vmul.f32 %v2573, %v3096
      %v3098 = vmul.f32 %v2574, %v3096
      %v3099 = vmul.f32 %v2575, %v3096
      %v3100 = vmul.f32 %v2576, %v3096
      %v3101 = vmul.f32 %v2577, %v3096
      %v3102 = vmul.f32 %v2578, %v3096
      %v3103 = vmul.f32 %v2579, %v3096
      %v3104 = vmul.f32 %v2580, %v3096
      %v3105 = vmul.f32 %v2581, %v3096
      %v3106 = vmul.f32 %v2582, %v3096
      %v3107 = vmul.f32 %v2583, %v3096
      %v3108 = vmul.f32 %v2584, %v3096
      %v3109 = vmul.f32 %v2585, %v3096
      %v3110 = vmul.f32 %v2586, %v3096
      %v3111 = vmul.f32 %v2587, %v3096
      %v3112 = vmul.f32 %v2588, %v3096
      %v3113 = vmul.f32 %v2589, %v3096
      %v3114 = vmul.f32 %v2590, %v3096
      %v3115 = vmul.f32 %v2591, %v3096
      %v3116 = vmul.f32 %v2592, %v3096
      %v3117 = vmul.f32 %v2593, %v3096
      %v3118 = vmul.f32 %v2594, %v3096
      %v3119 = vmul.f32 %v2595, %v3096
      %v3120 = vmul.f32 %v2596, %v3096
      %v3121 = vmul.f32 %v2597, %v3096
      %v3122 = vmul.f32 %v2598, %v3096
      %v3123 = vmul.f32 %v2599, %v3096
      %v3124 = vmul.f32 %v2600, %v3096
      %v3125 = vmul.f32 %v2601, %v3096
      %v3126 = vmul.f32 %v2602, %v3096
      %v3127 = vmul.f32 %v2603, %v3096
      %v3128 = vmul.f32 %v2604, %v3096
      %v3129 = vmul.f32 %v2605, %v3096
      %v3130 = vmul.f32 %v2606, %v3096
      %v3131 = vmul.f32 %v2607, %v3096
      %v3132 = vmul.f32 %v2608, %v3096
      %v3133 = vmul.f32 %v2609, %v3096
      %v3134 = vmul.f32 %v2610, %v3096
      %v3135 = vmul.f32 %v2611, %v3096
      %v3136 = vmul.f32 %v2612, %v3096
      %v3137 = vmul.f32 %v2613, %v3096
      %v3138 = vmul.f32 %v2614, %v3096
      %v3139 = vmul.f32 %v2615, %v3096
      %v3140 = vmul.f32 %v2616, %v3096
      %v3141 = vmul.f32 %v2617, %v3096
      %v3142 = vmul.f32 %v2618, %v3096
      %v3143 = vmul.f32 %v2619, %v3096
      %v3144 = vmul.f32 %v2620, %v3096
      %v3145 = vmul.f32 %v2621, %v3096
      %v3146 = vmul.f32 %v2622, %v3096
      %v3147 = vmul.f32 %v2623, %v3096
      %v3148 = vmul.f32 %v2624, %v3096
      %v3149 = vmul.f32 %v2625, %v3096
      %v3150 = vmul.f32 %v2626, %v3096
      %v3151 = vmul.f32 %v2627, %v3096
      %v3152 = vmul.f32 %v2628, %v3096
      %v3153 = vmul.f32 %v2629, %v3096
      %v3154 = vmul.f32 %v2630, %v3096
      %v3155 = vmul.f32 %v2631, %v3096
      %v3156 = vmul.f32 %v2632, %v3096
      %v3157 = vmul.f32 %v2633, %v3096
      %v3158 = vmul.f32 %v2634, %v3096
      %v3159 = vmul.f32 %v2635, %v3096
      %v3160 = vmul.f32 %v2636, %v3096
      %v3161 = vmul.f32 %v2637, %v3096
      %v3162 = vmul.f32 %v2638, %v3096
      %v3163 = vmul.f32 %v2639, %v3096
      %v3164 = vmul.f32 %v2640, %v3096
      %v3165 = vmul.f32 %v2641, %v3096
      %v3166 = vmul.f32 %v2642, %v3096
      %v3167 = vmul.f32 %v2643, %v3096
      %v3168 = vmul.f32 %v2644, %v3096
      %v3169 = vmul.f32 %v2645, %v3096
      %v3170 = vmul.f32 %v2646, %v3096
      %v3171 = vmul.f32 %v2647, %v3096
      %v3172 = vmul.f32 %v2648, %v3096
      %v3173 = vmul.f32 %v2649, %v3096
      %v3174 = vmul.f32 %v2650, %v3096
      %v3175 = vmul.f32 %v2651, %v3096
      %v3176 = vmul.f32 %v2652, %v3096
      %v3177 = vmul.f32 %v2653, %v3096
      %v3178 = vmul.f32 %v2654, %v3096
      %v3179 = vmul.f32 %v2655, %v3096
      %v3180 = vmul.f32 %v2656, %v3096
      %v3181 = vmul.f32 %v2657, %v3096
      %v3182 = vmul.f32 %v2658, %v3096
      %v3183 = vmul.f32 %v2659, %v3096
      %v3184 = vmul.f32 %v2660, %v3096
      %v3185 = vmul.f32 %v2661, %v3096
      %v3186 = vmul.f32 %v2662, %v3096
      %v3187 = vmul.f32 %v2663, %v3096
      %v3188 = vmul.f32 %v2664, %v3096
      %v3189 = vmul.f32 %v2665, %v3096
      %v3190 = vmul.f32 %v2666, %v3096
      %v3191 = vmul.f32 %v2667, %v3096
      %v3192 = vmul.f32 %v2668, %v3096
      %v3193 = vmul.f32 %v2669, %v3096
      %v3194 = vmul.f32 %v2670, %v3096
      %v3195 = vmul.f32 %v2671, %v3096
      %v3196 = vmul.f32 %v2672, %v3096
      %v3197 = vmul.f32 %v2673, %v3096
      %v3198 = vmul.f32 %v2674, %v3096
      %v3199 = vmul.f32 %v2675, %v3096
      %v3200 = vmul.f32 %v2676, %v3096
      %v3201 = vmul.f32 %v2677, %v3096
      %v3202 = vmul.f32 %v2678, %v3096
      %v3203 = vmul.f32 %v2679, %v3096
      %v3204 = vmul.f32 %v2680, %v3096
      %v3205 = vmul.f32 %v2681, %v3096
      %v3206 = vmul.f32 %v2682, %v3096
      %v3207 = vmul.f32 %v2683, %v3096
      %v3208 = vmul.f32 %v2684, %v3096
      %v3209 = vmul.f32 %v2685, %v3096
      %v3210 = vmul.f32 %v2686, %v3096
      %v3211 = vmul.f32 %v2687, %v3096
      %v3212 = vmul.f32 %v2688, %v3096
      %v3213 = vmul.f32 %v2689, %v3096
      %v3214 = vmul.f32 %v2690, %v3096
      %v3215 = vmul.f32 %v2691, %v3096
      %v3216 = vmul.f32 %v2692, %v3096
      %v3217 = vmul.f32 %v2693, %v3096
      %v3218 = vmul.f32 %v2694, %v3096
      %v3219 = vmul.f32 %v2695, %v3096
      %v3220 = vmul.f32 %v2696, %v3096
      %v3221 = vmul.f32 %v2697, %v3096
      %v3222 = vmul.f32 %v2698, %v3096
      %v3223 = vmul.f32 %v2699, %v3096
      %v3224 = vmul.f32 %v2700, %v3096
      %v3225 = vadd.f32 %v2965, %v3097
      %v3226 = vadd.f32 %v2966, %v3098
      %v3227 = vadd.f32 %v2967, %v3099
      %v3228 = vadd.f32 %v2968, %v3100
      %v3229 = vadd.f32 %v2969, %v3101
      %v3230 = vadd.f32 %v2970, %v3102
      %v3231 = vadd.f32 %v2971, %v3103
      %v3232 = vadd.f32 %v2972, %v3104
      %v3233 = vadd.f32 %v2973, %v3105
      %v3234 = vadd.f32 %v2974, %v3106
      %v3235 = vadd.f32 %v2975, %v3107
      %v3236 = vadd.f32 %v2976, %v3108
      %v3237 = vadd.f32 %v2977, %v3109
      %v3238 = vadd.f32 %v2978, %v3110
      %v3239 = vadd.f32 %v2979, %v3111
      %v3240 = vadd.f32 %v2980, %v3112
      %v3241 = vadd.f32 %v2981, %v3113
      %v3242 = vadd.f32 %v2982, %v3114
      %v3243 = vadd.f32 %v2983, %v3115
      %v3244 = vadd.f32 %v2984, %v3116
      %v3245 = vadd.f32 %v2985, %v3117
      %v3246 = vadd.f32 %v2986, %v3118
      %v3247 = vadd.f32 %v2987, %v3119
      %v3248 = vadd.f32 %v2988, %v3120
      %v3249 = vadd.f32 %v2989, %v3121
      %v3250 = vadd.f32 %v2990, %v3122
      %v3251 = vadd.f32 %v2991, %v3123
      %v3252 = vadd.f32 %v2992, %v3124
      %v3253 = vadd.f32 %v2993, %v3125
      %v3254 = vadd.f32 %v2994, %v3126
      %v3255 = vadd.f32 %v2995, %v3127
      %v3256 = vadd.f32 %v2996, %v3128
      %v3257 = vadd.f32 %v2997, %v3129
      %v3258 = vadd.f32 %v2998, %v3130
      %v3259 = vadd.f32 %v2999, %v3131
      %v3260 = vadd.f32 %v3000, %v3132
      %v3261 = vadd.f32 %v3001, %v3133
      %v3262 = vadd.f32 %v3002, %v3134
      %v3263 = vadd.f32 %v3003, %v3135
      %v3264 = vadd.f32 %v3004, %v3136
      %v3265 = vadd.f32 %v3005, %v3137
      %v3266 = vadd.f32 %v3006, %v3138
      %v3267 = vadd.f32 %v3007, %v3139
      %v3268 = vadd.f32 %v3008, %v3140
      %v3269 = vadd.f32 %v3009, %v3141
      %v3270 = vadd.f32 %v3010, %v3142
      %v3271 = vadd.f32 %v3011, %v3143
      %v3272 = vadd.f32 %v3012, %v3144
      %v3273 = vadd.f32 %v3013, %v3145
      %v3274 = vadd.f32 %v3014, %v3146
      %v3275 = vadd.f32 %v3015, %v3147
      %v3276 = vadd.f32 %v3016, %v3148
      %v3277 = vadd.f32 %v3017, %v3149
      %v3278 = vadd.f32 %v3018, %v3150
      %v3279 = vadd.f32 %v3019, %v3151
      %v3280 = vadd.f32 %v3020, %v3152
      %v3281 = vadd.f32 %v3021, %v3153
      %v3282 = vadd.f32 %v3022, %v3154
      %v3283 = vadd.f32 %v3023, %v3155
      %v3284 = vadd.f32 %v3024, %v3156
      %v3285 = vadd.f32 %v3025, %v3157
      %v3286 = vadd.f32 %v3026, %v3158
      %v3287 = vadd.f32 %v3027, %v3159
      %v3288 = vadd.f32 %v3028, %v3160
      %v3289 = vadd.f32 %v3029, %v3161
      %v3290 = vadd.f32 %v3030, %v3162
      %v3291 = vadd.f32 %v3031, %v3163
      %v3292 = vadd.f32 %v3032, %v3164
      %v3293 = vadd.f32 %v3033, %v3165
      %v3294 = vadd.f32 %v3034, %v3166
      %v3295 = vadd.f32 %v3035, %v3167
      %v3296 = vadd.f32 %v3036, %v3168
      %v3297 = vadd.f32 %v3037, %v3169
      %v3298 = vadd.f32 %v3038, %v3170
      %v3299 = vadd.f32 %v3039, %v3171
      %v3300 = vadd.f32 %v3040, %v3172
      %v3301 = vadd.f32 %v3041, %v3173
      %v3302 = vadd.f32 %v3042, %v3174
      %v3303 = vadd.f32 %v3043, %v3175
      %v3304 = vadd.f32 %v3044, %v3176
      %v3305 = vadd.f32 %v3045, %v3177
      %v3306 = vadd.f32 %v3046, %v3178
      %v3307 = vadd.f32 %v3047, %v3179
      %v3308 = vadd.f32 %v3048, %v3180
      %v3309 = vadd.f32 %v3049, %v3181
      %v3310 = vadd.f32 %v3050, %v3182
      %v3311 = vadd.f32 %v3051, %v3183
      %v3312 = vadd.f32 %v3052, %v3184
      %v3313 = vadd.f32 %v3053, %v3185
      %v3314 = vadd.f32 %v3054, %v3186
      %v3315 = vadd.f32 %v3055, %v3187
      %v3316 = vadd.f32 %v3056, %v3188
      %v3317 = vadd.f32 %v3057, %v3189
      %v3318 = vadd.f32 %v3058, %v3190
      %v3319 = vadd.f32 %v3059, %v3191
      %v3320 = vadd.f32 %v3060, %v3192
      %v3321 = vadd.f32 %v3061, %v3193
      %v3322 = vadd.f32 %v3062, %v3194
      %v3323 = vadd.f32 %v3063, %v3195
      %v3324 = vadd.f32 %v3064, %v3196
      %v3325 = vadd.f32 %v3065, %v3197
      %v3326 = vadd.f32 %v3066, %v3198
      %v3327 = vadd.f32 %v3067, %v3199
      %v3328 = vadd.f32 %v3068, %v3200
      %v3329 = vadd.f32 %v3069, %v3201
      %v3330 = vadd.f32 %v3070, %v3202
      %v3331 = vadd.f32 %v3071, %v3203
      %v3332 = vadd.f32 %v3072, %v3204
      %v3333 = vadd.f32 %v3073, %v3205
      %v3334 = vadd.f32 %v3074, %v3206
      %v3335 = vadd.f32 %v3075, %v3207
      %v3336 = vadd.f32 %v3076, %v3208
      %v3337 = vadd.f32 %v3077, %v3209
      %v3338 = vadd.f32 %v3078, %v3210
      %v3339 = vadd.f32 %v3079, %v3211
      %v3340 = vadd.f32 %v3080, %v3212
      %v3341 = vadd.f32 %v3081, %v3213
      %v3342 = vadd.f32 %v3082, %v3214
      %v3343 = vadd.f32 %v3083, %v3215
      %v3344 = vadd.f32 %v3084, %v3216
      %v3345 = vadd.f32 %v3085, %v3217
      %v3346 = vadd.f32 %v3086, %v3218
      %v3347 = vadd.f32 %v3087, %v3219
      %v3348 = vadd.f32 %v3088, %v3220
      %v3349 = vadd.f32 %v3089, %v3221
      %v3350 = vadd.f32 %v3090, %v3222
      %v3351 = vadd.f32 %v3091, %v3223
      %v3352 = vadd.f32 %v3092, %v3224
      %v3353 = vld [vmem:[#allocation2 + $0x8] sm:$0xff]
      %v3354 = vld [vmem:[#allocation2 + $0x10] sm:$0xff]
      %v3355 = vld [vmem:[#allocation2 + $0x18] sm:$0xff]
      %v3356 = vld [vmem:[#allocation2 + $0x20] sm:$0xff]
      %v3357 = vld [vmem:[#allocation2 + $0x38] sm:$0xff]
      %v3358 = vld [vmem:[#allocation2 + $0x40] sm:$0xff]
      %v3359 = vld [vmem:[#allocation2 + $0x48] sm:$0xff]
      %v3360 = vld [vmem:[#allocation2 + $0x50] sm:$0xff]
      %v3361 = vld [vmem:[#allocation2 + $0x68] sm:$0xff]
      %v3362 = vld [vmem:[#allocation2 + $0x70] sm:$0xff]
      %v3363 = vld [vmem:[#allocation2 + $0x78] sm:$0xff]
      %v3364 = vld [vmem:[#allocation2 + $0x80] sm:$0xff]
      %v3365 = vld [vmem:[#allocation2 + $0x98] sm:$0xff]
      %v3366 = vld [vmem:[#allocation2 + $0xa0] sm:$0xff]
      %v3367 = vld [vmem:[#allocation2 + $0xa8] sm:$0xff]
      %v3368 = vld [vmem:[#allocation2 + $0xb0] sm:$0xff]
      %v3369 = vld [vmem:[#allocation2 + $0xc8] sm:$0xff]
      %v3370 = vld [vmem:[#allocation2 + $0xd0] sm:$0xff]
      %v3371 = vld [vmem:[#allocation2 + $0xd8] sm:$0xff]
      %v3372 = vld [vmem:[#allocation2 + $0xe0] sm:$0xff]
      %v3373 = vld [vmem:[#allocation2 + $0xf8] sm:$0xff]
      %v3374 = vld [vmem:[#allocation2 + $0x100] sm:$0xff]
      %v3375 = vld [vmem:[#allocation2 + $0x108] sm:$0xff]
      %v3376 = vld [vmem:[#allocation2 + $0x110] sm:$0xff]
      %v3377 = vld [vmem:[#allocation2 + $0x128] sm:$0xff]
      %v3378 = vld [vmem:[#allocation2 + $0x130] sm:$0xff]
      %v3379 = vld [vmem:[#allocation2 + $0x138] sm:$0xff]
      %v3380 = vld [vmem:[#allocation2 + $0x140] sm:$0xff]
      %v3381 = vld [vmem:[#allocation2 + $0x158] sm:$0xff]
      %v3382 = vld [vmem:[#allocation2 + $0x160] sm:$0xff]
      %v3383 = vld [vmem:[#allocation2 + $0x168] sm:$0xff]
      %v3384 = vld [vmem:[#allocation2 + $0x170] sm:$0xff]
      %v3385 = vld [vmem:[#allocation2 + $0x188] sm:$0xff]
      %v3386 = vld [vmem:[#allocation2 + $0x190] sm:$0xff]
      %v3387 = vld [vmem:[#allocation2 + $0x198] sm:$0xff]
      %v3388 = vld [vmem:[#allocation2 + $0x1a0] sm:$0xff]
      %v3389 = vld [vmem:[#allocation2 + $0x1b8] sm:$0xff]
      %v3390 = vld [vmem:[#allocation2 + $0x1c0] sm:$0xff]
      %v3391 = vld [vmem:[#allocation2 + $0x1c8] sm:$0xff]
      %v3392 = vld [vmem:[#allocation2 + $0x1d0] sm:$0xff]
      %v3393 = vld [vmem:[#allocation2 + $0x1e8] sm:$0xff]
      %v3394 = vld [vmem:[#allocation2 + $0x1f0] sm:$0xff]
      %v3395 = vld [vmem:[#allocation2 + $0x1f8] sm:$0xff]
      %v3396 = vld [vmem:[#allocation2 + $0x200] sm:$0xff]
      %v3397 = vld [vmem:[#allocation2 + $0x218] sm:$0xff]
      %v3398 = vld [vmem:[#allocation2 + $0x220] sm:$0xff]
      %v3399 = vld [vmem:[#allocation2 + $0x228] sm:$0xff]
      %v3400 = vld [vmem:[#allocation2 + $0x230] sm:$0xff]
      %v3401 = vld [vmem:[#allocation2 + $0x248] sm:$0xff]
      %v3402 = vld [vmem:[#allocation2 + $0x250] sm:$0xff]
      %v3403 = vld [vmem:[#allocation2 + $0x258] sm:$0xff]
      %v3404 = vld [vmem:[#allocation2 + $0x260] sm:$0xff]
      %v3405 = vld [vmem:[#allocation2 + $0x278] sm:$0xff]
      %v3406 = vld [vmem:[#allocation2 + $0x280] sm:$0xff]
      %v3407 = vld [vmem:[#allocation2 + $0x288] sm:$0xff]
      %v3408 = vld [vmem:[#allocation2 + $0x290] sm:$0xff]
      %v3409 = vld [vmem:[#allocation2 + $0x2a8] sm:$0xff]
      %v3410 = vld [vmem:[#allocation2 + $0x2b0] sm:$0xff]
      %v3411 = vld [vmem:[#allocation2 + $0x2b8] sm:$0xff]
      %v3412 = vld [vmem:[#allocation2 + $0x2c0] sm:$0xff]
      %v3413 = vld [vmem:[#allocation2 + $0x2d8] sm:$0xff]
      %v3414 = vld [vmem:[#allocation2 + $0x2e0] sm:$0xff]
      %v3415 = vld [vmem:[#allocation2 + $0x2e8] sm:$0xff]
      %v3416 = vld [vmem:[#allocation2 + $0x2f0] sm:$0xff]
      %v3417 = vld [vmem:[#allocation2 + $0x308] sm:$0xff]
      %v3418 = vld [vmem:[#allocation2 + $0x310] sm:$0xff]
      %v3419 = vld [vmem:[#allocation2 + $0x318] sm:$0xff]
      %v3420 = vld [vmem:[#allocation2 + $0x320] sm:$0xff]
      %v3421 = vld [vmem:[#allocation2 + $0x338] sm:$0xff]
      %v3422 = vld [vmem:[#allocation2 + $0x340] sm:$0xff]
      %v3423 = vld [vmem:[#allocation2 + $0x348] sm:$0xff]
      %v3424 = vld [vmem:[#allocation2 + $0x350] sm:$0xff]
      %v3425 = vld [vmem:[#allocation2 + $0x368] sm:$0xff]
      %v3426 = vld [vmem:[#allocation2 + $0x370] sm:$0xff]
      %v3427 = vld [vmem:[#allocation2 + $0x378] sm:$0xff]
      %v3428 = vld [vmem:[#allocation2 + $0x380] sm:$0xff]
      %v3429 = vld [vmem:[#allocation2 + $0x398] sm:$0xff]
      %v3430 = vld [vmem:[#allocation2 + $0x3a0] sm:$0xff]
      %v3431 = vld [vmem:[#allocation2 + $0x3a8] sm:$0xff]
      %v3432 = vld [vmem:[#allocation2 + $0x3b0] sm:$0xff]
      %v3433 = vld [vmem:[#allocation2 + $0x3c8] sm:$0xff]
      %v3434 = vld [vmem:[#allocation2 + $0x3d0] sm:$0xff]
      %v3435 = vld [vmem:[#allocation2 + $0x3d8] sm:$0xff]
      %v3436 = vld [vmem:[#allocation2 + $0x3e0] sm:$0xff]
      %v3437 = vld [vmem:[#allocation2 + $0x3f8] sm:$0xff]
      %v3438 = vld [vmem:[#allocation2 + $0x400] sm:$0xff]
      %v3439 = vld [vmem:[#allocation2 + $0x408] sm:$0xff]
      %v3440 = vld [vmem:[#allocation2 + $0x410] sm:$0xff]
      %v3441 = vld [vmem:[#allocation2 + $0x428] sm:$0xff]
      %v3442 = vld [vmem:[#allocation2 + $0x430] sm:$0xff]
      %v3443 = vld [vmem:[#allocation2 + $0x438] sm:$0xff]
      %v3444 = vld [vmem:[#allocation2 + $0x440] sm:$0xff]
      %v3445 = vld [vmem:[#allocation2 + $0x458] sm:$0xff]
      %v3446 = vld [vmem:[#allocation2 + $0x460] sm:$0xff]
      %v3447 = vld [vmem:[#allocation2 + $0x468] sm:$0xff]
      %v3448 = vld [vmem:[#allocation2 + $0x470] sm:$0xff]
      %v3449 = vld [vmem:[#allocation2 + $0x488] sm:$0xff]
      %v3450 = vld [vmem:[#allocation2 + $0x490] sm:$0xff]
      %v3451 = vld [vmem:[#allocation2 + $0x498] sm:$0xff]
      %v3452 = vld [vmem:[#allocation2 + $0x4a0] sm:$0xff]
      %v3453 = vld [vmem:[#allocation2 + $0x4b8] sm:$0xff]
      %v3454 = vld [vmem:[#allocation2 + $0x4c0] sm:$0xff]
      %v3455 = vld [vmem:[#allocation2 + $0x4c8] sm:$0xff]
      %v3456 = vld [vmem:[#allocation2 + $0x4d0] sm:$0xff]
      %v3457 = vld [vmem:[#allocation2 + $0x4e8] sm:$0xff]
      %v3458 = vld [vmem:[#allocation2 + $0x4f0] sm:$0xff]
      %v3459 = vld [vmem:[#allocation2 + $0x4f8] sm:$0xff]
      %v3460 = vld [vmem:[#allocation2 + $0x500] sm:$0xff]
      %v3461 = vld [vmem:[#allocation2 + $0x518] sm:$0xff]
      %v3462 = vld [vmem:[#allocation2 + $0x520] sm:$0xff]
      %v3463 = vld [vmem:[#allocation2 + $0x528] sm:$0xff]
      %v3464 = vld [vmem:[#allocation2 + $0x530] sm:$0xff]
      %v3465 = vld [vmem:[#allocation2 + $0x548] sm:$0xff]
      %v3466 = vld [vmem:[#allocation2 + $0x550] sm:$0xff]
      %v3467 = vld [vmem:[#allocation2 + $0x558] sm:$0xff]
      %v3468 = vld [vmem:[#allocation2 + $0x560] sm:$0xff]
      %v3469 = vld [vmem:[#allocation2 + $0x578] sm:$0xff]
      %v3470 = vld [vmem:[#allocation2 + $0x580] sm:$0xff]
      %v3471 = vld [vmem:[#allocation2 + $0x588] sm:$0xff]
      %v3472 = vld [vmem:[#allocation2 + $0x590] sm:$0xff]
      %v3473 = vld [vmem:[#allocation2 + $0x5a8] sm:$0xff]
      %v3474 = vld [vmem:[#allocation2 + $0x5b0] sm:$0xff]
      %v3475 = vld [vmem:[#allocation2 + $0x5b8] sm:$0xff]
      %v3476 = vld [vmem:[#allocation2 + $0x5c0] sm:$0xff]
      %v3477 = vld [vmem:[#allocation2 + $0x5d8] sm:$0xff]
      %v3478 = vld [vmem:[#allocation2 + $0x5e0] sm:$0xff]
      %v3479 = vld [vmem:[#allocation2 + $0x5e8] sm:$0xff]
      %v3480 = vld [vmem:[#allocation2 + $0x5f0] sm:$0xff]
      %v3481 = vld [vmem:[#allocation2 + $0x608] sm:$0xff]
      %v3482 = vld [vmem:[#allocation2 + $0x610] sm:$0xff]
      %v3483 = vld [vmem:[#allocation2 + $0x618] sm:$0xff]
      %v3484 = vld [vmem:[#allocation2 + $0x620] sm:$0xff]
      %v3485 = vld [vmem:[#allocation2 + $0x638] sm:$0xff]
      %v3486 = vld [vmem:[#allocation2 + $0x640] sm:$0xff]
      %v3487 = vld [vmem:[#allocation2 + $0x648] sm:$0xff]
      %v3488 = vld [vmem:[#allocation2 + $0x650] sm:$0xff]
      %v3489 = vlaneseq
      %v3490 = vshrl.u32 %v3489, 7
      %v3491 = vsub.s32 1, %v3490
      %v3492 = vrot.slane %v2563, %v3491
      %v3493 = vmul.f32 %v3353, %v3492
      %v3494 = vmul.f32 %v3354, %v3492
      %v3495 = vmul.f32 %v3355, %v3492
      %v3496 = vmul.f32 %v3356, %v3492
      %v3497 = vmul.f32 %v3357, %v3492
      %v3498 = vmul.f32 %v3358, %v3492
      %v3499 = vmul.f32 %v3359, %v3492
      %v3500 = vmul.f32 %v3360, %v3492
      %v3501 = vmul.f32 %v3361, %v3492
      %v3502 = vmul.f32 %v3362, %v3492
      %v3503 = vmul.f32 %v3363, %v3492
      %v3504 = vmul.f32 %v3364, %v3492
      %v3505 = vmul.f32 %v3365, %v3492
      %v3506 = vmul.f32 %v3366, %v3492
      %v3507 = vmul.f32 %v3367, %v3492
      %v3508 = vmul.f32 %v3368, %v3492
      %v3509 = vmul.f32 %v3369, %v3492
      %v3510 = vmul.f32 %v3370, %v3492
      %v3511 = vmul.f32 %v3371, %v3492
      %v3512 = vmul.f32 %v3372, %v3492
      %v3513 = vmul.f32 %v3373, %v3492
      %v3514 = vmul.f32 %v3374, %v3492
      %v3515 = vmul.f32 %v3375, %v3492
      %v3516 = vmul.f32 %v3376, %v3492
      %v3517 = vmul.f32 %v3377, %v3492
      %v3518 = vmul.f32 %v3378, %v3492
      %v3519 = vmul.f32 %v3379, %v3492
      %v3520 = vmul.f32 %v3380, %v3492
      %v3521 = vmul.f32 %v3381, %v3492
      %v3522 = vmul.f32 %v3382, %v3492
      %v3523 = vmul.f32 %v3383, %v3492
      %v3524 = vmul.f32 %v3384, %v3492
      %v3525 = vmul.f32 %v3385, %v3492
      %v3526 = vmul.f32 %v3386, %v3492
      %v3527 = vmul.f32 %v3387, %v3492
      %v3528 = vmul.f32 %v3388, %v3492
      %v3529 = vmul.f32 %v3389, %v3492
      %v3530 = vmul.f32 %v3390, %v3492
      %v3531 = vmul.f32 %v3391, %v3492
      %v3532 = vmul.f32 %v3392, %v3492
      %v3533 = vmul.f32 %v3393, %v3492
      %v3534 = vmul.f32 %v3394, %v3492
      %v3535 = vmul.f32 %v3395, %v3492
      %v3536 = vmul.f32 %v3396, %v3492
      %v3537 = vmul.f32 %v3397, %v3492
      %v3538 = vmul.f32 %v3398, %v3492
      %v3539 = vmul.f32 %v3399, %v3492
      %v3540 = vmul.f32 %v3400, %v3492
      %v3541 = vmul.f32 %v3401, %v3492
      %v3542 = vmul.f32 %v3402, %v3492
      %v3543 = vmul.f32 %v3403, %v3492
      %v3544 = vmul.f32 %v3404, %v3492
      %v3545 = vmul.f32 %v3405, %v3492
      %v3546 = vmul.f32 %v3406, %v3492
      %v3547 = vmul.f32 %v3407, %v3492
      %v3548 = vmul.f32 %v3408, %v3492
      %v3549 = vmul.f32 %v3409, %v3492
      %v3550 = vmul.f32 %v3410, %v3492
      %v3551 = vmul.f32 %v3411, %v3492
      %v3552 = vmul.f32 %v3412, %v3492
      %v3553 = vmul.f32 %v3413, %v3492
      %v3554 = vmul.f32 %v3414, %v3492
      %v3555 = vmul.f32 %v3415, %v3492
      %v3556 = vmul.f32 %v3416, %v3492
      %v3557 = vmul.f32 %v3417, %v3492
      %v3558 = vmul.f32 %v3418, %v3492
      %v3559 = vmul.f32 %v3419, %v3492
      %v3560 = vmul.f32 %v3420, %v3492
      %v3561 = vmul.f32 %v3421, %v3492
      %v3562 = vmul.f32 %v3422, %v3492
      %v3563 = vmul.f32 %v3423, %v3492
      %v3564 = vmul.f32 %v3424, %v3492
      %v3565 = vmul.f32 %v3425, %v3492
      %v3566 = vmul.f32 %v3426, %v3492
      %v3567 = vmul.f32 %v3427, %v3492
      %v3568 = vmul.f32 %v3428, %v3492
      %v3569 = vmul.f32 %v3429, %v3492
      %v3570 = vmul.f32 %v3430, %v3492
      %v3571 = vmul.f32 %v3431, %v3492
      %v3572 = vmul.f32 %v3432, %v3492
      %v3573 = vmul.f32 %v3433, %v3492
      %v3574 = vmul.f32 %v3434, %v3492
      %v3575 = vmul.f32 %v3435, %v3492
      %v3576 = vmul.f32 %v3436, %v3492
      %v3577 = vmul.f32 %v3437, %v3492
      %v3578 = vmul.f32 %v3438, %v3492
      %v3579 = vmul.f32 %v3439, %v3492
      %v3580 = vmul.f32 %v3440, %v3492
      %v3581 = vmul.f32 %v3441, %v3492
      %v3582 = vmul.f32 %v3442, %v3492
      %v3583 = vmul.f32 %v3443, %v3492
      %v3584 = vmul.f32 %v3444, %v3492
      %v3585 = vmul.f32 %v3445, %v3492
      %v3586 = vmul.f32 %v3446, %v3492
      %v3587 = vmul.f32 %v3447, %v3492
      %v3588 = vmul.f32 %v3448, %v3492
      %v3589 = vmul.f32 %v3449, %v3492
      %v3590 = vmul.f32 %v3450, %v3492
      %v3591 = vmul.f32 %v3451, %v3492
      %v3592 = vmul.f32 %v3452, %v3492
      %v3593 = vmul.f32 %v3453, %v3492
      %v3594 = vmul.f32 %v3454, %v3492
      %v3595 = vmul.f32 %v3455, %v3492
      %v3596 = vmul.f32 %v3456, %v3492
      %v3597 = vmul.f32 %v3457, %v3492
      %v3598 = vmul.f32 %v3458, %v3492
      %v3599 = vmul.f32 %v3459, %v3492
      %v3600 = vmul.f32 %v3460, %v3492
      %v3601 = vmul.f32 %v3461, %v3492
      %v3602 = vmul.f32 %v3462, %v3492
      %v3603 = vmul.f32 %v3463, %v3492
      %v3604 = vmul.f32 %v3464, %v3492
      %v3605 = vmul.f32 %v3465, %v3492
      %v3606 = vmul.f32 %v3466, %v3492
      %v3607 = vmul.f32 %v3467, %v3492
      %v3608 = vmul.f32 %v3468, %v3492
      %v3609 = vmul.f32 %v3469, %v3492
      %v3610 = vmul.f32 %v3470, %v3492
      %v3611 = vmul.f32 %v3471, %v3492
      %v3612 = vmul.f32 %v3472, %v3492
      %v3613 = vmul.f32 %v3473, %v3492
      %v3614 = vmul.f32 %v3474, %v3492
      %v3615 = vmul.f32 %v3475, %v3492
      %v3616 = vmul.f32 %v3476, %v3492
      %v3617 = vmul.f32 %v3477, %v3492
      %v3618 = vmul.f32 %v3478, %v3492
      %v3619 = vmul.f32 %v3479, %v3492
      %v3620 = vmul.f32 %v3480, %v3492
      %v3621 = vadd.f32 %v3225, %v3493
      %v3622 = vadd.f32 %v3226, %v3494
      %v3623 = vadd.f32 %v3227, %v3495
      %v3624 = vadd.f32 %v3228, %v3496
      %v3625 = vadd.f32 %v3229, %v3497
      %v3626 = vadd.f32 %v3230, %v3498
      %v3627 = vadd.f32 %v3231, %v3499
      %v3628 = vadd.f32 %v3232, %v3500
      %v3629 = vadd.f32 %v3233, %v3501
      %v3630 = vadd.f32 %v3234, %v3502
      %v3631 = vadd.f32 %v3235, %v3503
      %v3632 = vadd.f32 %v3236, %v3504
      %v3633 = vadd.f32 %v3237, %v3505
      %v3634 = vadd.f32 %v3238, %v3506
      %v3635 = vadd.f32 %v3239, %v3507
      %v3636 = vadd.f32 %v3240, %v3508
      %v3637 = vadd.f32 %v3241, %v3509
      %v3638 = vadd.f32 %v3242, %v3510
      %v3639 = vadd.f32 %v3243, %v3511
      %v3640 = vadd.f32 %v3244, %v3512
      %v3641 = vadd.f32 %v3245, %v3513
      %v3642 = vadd.f32 %v3246, %v3514
      %v3643 = vadd.f32 %v3247, %v3515
      %v3644 = vadd.f32 %v3248, %v3516
      %v3645 = vadd.f32 %v3249, %v3517
      %v3646 = vadd.f32 %v3250, %v3518
      %v3647 = vadd.f32 %v3251, %v3519
      %v3648 = vadd.f32 %v3252, %v3520
      %v3649 = vadd.f32 %v3253, %v3521
      %v3650 = vadd.f32 %v3254, %v3522
      %v3651 = vadd.f32 %v3255, %v3523
      %v3652 = vadd.f32 %v3256, %v3524
      %v3653 = vadd.f32 %v3257, %v3525
      %v3654 = vadd.f32 %v3258, %v3526
      %v3655 = vadd.f32 %v3259, %v3527
      %v3656 = vadd.f32 %v3260, %v3528
      %v3657 = vadd.f32 %v3261, %v3529
      %v3658 = vadd.f32 %v3262, %v3530
      %v3659 = vadd.f32 %v3263, %v3531
      %v3660 = vadd.f32 %v3264, %v3532
      %v3661 = vadd.f32 %v3265, %v3533
      %v3662 = vadd.f32 %v3266, %v3534
      %v3663 = vadd.f32 %v3267, %v3535
      %v3664 = vadd.f32 %v3268, %v3536
      %v3665 = vadd.f32 %v3269, %v3537
      %v3666 = vadd.f32 %v3270, %v3538
      %v3667 = vadd.f32 %v3271, %v3539
      %v3668 = vadd.f32 %v3272, %v3540
      %v3669 = vadd.f32 %v3273, %v3541
      %v3670 = vadd.f32 %v3274, %v3542
      %v3671 = vadd.f32 %v3275, %v3543
      %v3672 = vadd.f32 %v3276, %v3544
      %v3673 = vadd.f32 %v3277, %v3545
      %v3674 = vadd.f32 %v3278, %v3546
      %v3675 = vadd.f32 %v3279, %v3547
      %v3676 = vadd.f32 %v3280, %v3548
      %v3677 = vadd.f32 %v3281, %v3549
      %v3678 = vadd.f32 %v3282, %v3550
      %v3679 = vadd.f32 %v3283, %v3551
      %v3680 = vadd.f32 %v3284, %v3552
      %v3681 = vadd.f32 %v3285, %v3553
      %v3682 = vadd.f32 %v3286, %v3554
      %v3683 = vadd.f32 %v3287, %v3555
      %v3684 = vadd.f32 %v3288, %v3556
      %v3685 = vadd.f32 %v3289, %v3557
      %v3686 = vadd.f32 %v3290, %v3558
      %v3687 = vadd.f32 %v3291, %v3559
      %v3688 = vadd.f32 %v3292, %v3560
      %v3689 = vadd.f32 %v3293, %v3561
      %v3690 = vadd.f32 %v3294, %v3562
      %v3691 = vadd.f32 %v3295, %v3563
      %v3692 = vadd.f32 %v3296, %v3564
      %v3693 = vadd.f32 %v3297, %v3565
      %v3694 = vadd.f32 %v3298, %v3566
      %v3695 = vadd.f32 %v3299, %v3567
      %v3696 = vadd.f32 %v3300, %v3568
      %v3697 = vadd.f32 %v3301, %v3569
      %v3698 = vadd.f32 %v3302, %v3570
      %v3699 = vadd.f32 %v3303, %v3571
      %v3700 = vadd.f32 %v3304, %v3572
      %v3701 = vadd.f32 %v3305, %v3573
      %v3702 = vadd.f32 %v3306, %v3574
      %v3703 = vadd.f32 %v3307, %v3575
      %v3704 = vadd.f32 %v3308, %v3576
      %v3705 = vadd.f32 %v3309, %v3577
      %v3706 = vadd.f32 %v3310, %v3578
      %v3707 = vadd.f32 %v3311, %v3579
      %v3708 = vadd.f32 %v3312, %v3580
      %v3709 = vadd.f32 %v3313, %v3581
      %v3710 = vadd.f32 %v3314, %v3582
      %v3711 = vadd.f32 %v3315, %v3583
      %v3712 = vadd.f32 %v3316, %v3584
      %v3713 = vadd.f32 %v3317, %v3585
      %v3714 = vadd.f32 %v3318, %v3586
      %v3715 = vadd.f32 %v3319, %v3587
      %v3716 = vadd.f32 %v3320, %v3588
      %v3717 = vadd.f32 %v3321, %v3589
      %v3718 = vadd.f32 %v3322, %v3590
      %v3719 = vadd.f32 %v3323, %v3591
      %v3720 = vadd.f32 %v3324, %v3592
      %v3721 = vadd.f32 %v3325, %v3593
      %v3722 = vadd.f32 %v3326, %v3594
      %v3723 = vadd.f32 %v3327, %v3595
      %v3724 = vadd.f32 %v3328, %v3596
      %v3725 = vadd.f32 %v3329, %v3597
      %v3726 = vadd.f32 %v3330, %v3598
      %v3727 = vadd.f32 %v3331, %v3599
      %v3728 = vadd.f32 %v3332, %v3600
      %v3729 = vadd.f32 %v3333, %v3601
      %v3730 = vadd.f32 %v3334, %v3602
      %v3731 = vadd.f32 %v3335, %v3603
      %v3732 = vadd.f32 %v3336, %v3604
      %v3733 = vadd.f32 %v3337, %v3605
      %v3734 = vadd.f32 %v3338, %v3606
      %v3735 = vadd.f32 %v3339, %v3607
      %v3736 = vadd.f32 %v3340, %v3608
      %v3737 = vadd.f32 %v3341, %v3609
      %v3738 = vadd.f32 %v3342, %v3610
      %v3739 = vadd.f32 %v3343, %v3611
      %v3740 = vadd.f32 %v3344, %v3612
      %v3741 = vadd.f32 %v3345, %v3613
      %v3742 = vadd.f32 %v3346, %v3614
      %v3743 = vadd.f32 %v3347, %v3615
      %v3744 = vadd.f32 %v3348, %v3616
      %v3745 = vadd.f32 %v3349, %v3617
      %v3746 = vadd.f32 %v3350, %v3618
      %v3747 = vadd.f32 %v3351, %v3619
      %v3748 = vadd.f32 %v3352, %v3620
      %v3749 = vlaneseq
      %v3750 = vshrl.u32 %v3749, 7
      %v3751 = vsub.s32 4, %v3750
      %v3752 = vrot.slane %v2563, %v3751
      %v3753 = vmul.f32 %v3357, %v3752
      %v3754 = vmul.f32 %v3358, %v3752
      %v3755 = vmul.f32 %v3359, %v3752
      %v3756 = vmul.f32 %v3360, %v3752
      %v3757 = vmul.f32 %v3361, %v3752
      %v3758 = vmul.f32 %v3362, %v3752
      %v3759 = vmul.f32 %v3363, %v3752
      %v3760 = vmul.f32 %v3364, %v3752
      %v3761 = vmul.f32 %v3365, %v3752
      %v3762 = vmul.f32 %v3366, %v3752
      %v3763 = vmul.f32 %v3367, %v3752
      %v3764 = vmul.f32 %v3368, %v3752
      %v3765 = vmul.f32 %v3369, %v3752
      %v3766 = vmul.f32 %v3370, %v3752
      %v3767 = vmul.f32 %v3371, %v3752
      %v3768 = vmul.f32 %v3372, %v3752
      %v3769 = vmul.f32 %v3373, %v3752
      %v3770 = vmul.f32 %v3374, %v3752
      %v3771 = vmul.f32 %v3375, %v3752
      %v3772 = vmul.f32 %v3376, %v3752
      %v3773 = vmul.f32 %v3377, %v3752
      %v3774 = vmul.f32 %v3378, %v3752
      %v3775 = vmul.f32 %v3379, %v3752
      %v3776 = vmul.f32 %v3380, %v3752
      %v3777 = vmul.f32 %v3381, %v3752
      %v3778 = vmul.f32 %v3382, %v3752
      %v3779 = vmul.f32 %v3383, %v3752
      %v3780 = vmul.f32 %v3384, %v3752
      %v3781 = vmul.f32 %v3385, %v3752
      %v3782 = vmul.f32 %v3386, %v3752
      %v3783 = vmul.f32 %v3387, %v3752
      %v3784 = vmul.f32 %v3388, %v3752
      %v3785 = vmul.f32 %v3389, %v3752
      %v3786 = vmul.f32 %v3390, %v3752
      %v3787 = vmul.f32 %v3391, %v3752
      %v3788 = vmul.f32 %v3392, %v3752
      %v3789 = vmul.f32 %v3393, %v3752
      %v3790 = vmul.f32 %v3394, %v3752
      %v3791 = vmul.f32 %v3395, %v3752
      %v3792 = vmul.f32 %v3396, %v3752
      %v3793 = vmul.f32 %v3397, %v3752
      %v3794 = vmul.f32 %v3398, %v3752
      %v3795 = vmul.f32 %v3399, %v3752
      %v3796 = vmul.f32 %v3400, %v3752
      %v3797 = vmul.f32 %v3401, %v3752
      %v3798 = vmul.f32 %v3402, %v3752
      %v3799 = vmul.f32 %v3403, %v3752
      %v3800 = vmul.f32 %v3404, %v3752
      %v3801 = vmul.f32 %v3405, %v3752
      %v3802 = vmul.f32 %v3406, %v3752
      %v3803 = vmul.f32 %v3407, %v3752
      %v3804 = vmul.f32 %v3408, %v3752
      %v3805 = vmul.f32 %v3409, %v3752
      %v3806 = vmul.f32 %v3410, %v3752
      %v3807 = vmul.f32 %v3411, %v3752
      %v3808 = vmul.f32 %v3412, %v3752
      %v3809 = vmul.f32 %v3413, %v3752
      %v3810 = vmul.f32 %v3414, %v3752
      %v3811 = vmul.f32 %v3415, %v3752
      %v3812 = vmul.f32 %v3416, %v3752
      %v3813 = vmul.f32 %v3417, %v3752
      %v3814 = vmul.f32 %v3418, %v3752
      %v3815 = vmul.f32 %v3419, %v3752
      %v3816 = vmul.f32 %v3420, %v3752
      %v3817 = vmul.f32 %v3421, %v3752
      %v3818 = vmul.f32 %v3422, %v3752
      %v3819 = vmul.f32 %v3423, %v3752
      %v3820 = vmul.f32 %v3424, %v3752
      %v3821 = vmul.f32 %v3425, %v3752
      %v3822 = vmul.f32 %v3426, %v3752
      %v3823 = vmul.f32 %v3427, %v3752
      %v3824 = vmul.f32 %v3428, %v3752
      %v3825 = vmul.f32 %v3429, %v3752
      %v3826 = vmul.f32 %v3430, %v3752
      %v3827 = vmul.f32 %v3431, %v3752
      %v3828 = vmul.f32 %v3432, %v3752
      %v3829 = vmul.f32 %v3433, %v3752
      %v3830 = vmul.f32 %v3434, %v3752
      %v3831 = vmul.f32 %v3435, %v3752
      %v3832 = vmul.f32 %v3436, %v3752
      %v3833 = vmul.f32 %v3437, %v3752
      %v3834 = vmul.f32 %v3438, %v3752
      %v3835 = vmul.f32 %v3439, %v3752
      %v3836 = vmul.f32 %v3440, %v3752
      %v3837 = vmul.f32 %v3441, %v3752
      %v3838 = vmul.f32 %v3442, %v3752
      %v3839 = vmul.f32 %v3443, %v3752
      %v3840 = vmul.f32 %v3444, %v3752
      %v3841 = vmul.f32 %v3445, %v3752
      %v3842 = vmul.f32 %v3446, %v3752
      %v3843 = vmul.f32 %v3447, %v3752
      %v3844 = vmul.f32 %v3448, %v3752
      %v3845 = vmul.f32 %v3449, %v3752
      %v3846 = vmul.f32 %v3450, %v3752
      %v3847 = vmul.f32 %v3451, %v3752
      %v3848 = vmul.f32 %v3452, %v3752
      %v3849 = vmul.f32 %v3453, %v3752
      %v3850 = vmul.f32 %v3454, %v3752
      %v3851 = vmul.f32 %v3455, %v3752
      %v3852 = vmul.f32 %v3456, %v3752
      %v3853 = vmul.f32 %v3457, %v3752
      %v3854 = vmul.f32 %v3458, %v3752
      %v3855 = vmul.f32 %v3459, %v3752
      %v3856 = vmul.f32 %v3460, %v3752
      %v3857 = vmul.f32 %v3461, %v3752
      %v3858 = vmul.f32 %v3462, %v3752
      %v3859 = vmul.f32 %v3463, %v3752
      %v3860 = vmul.f32 %v3464, %v3752
      %v3861 = vmul.f32 %v3465, %v3752
      %v3862 = vmul.f32 %v3466, %v3752
      %v3863 = vmul.f32 %v3467, %v3752
      %v3864 = vmul.f32 %v3468, %v3752
      %v3865 = vmul.f32 %v3469, %v3752
      %v3866 = vmul.f32 %v3470, %v3752
      %v3867 = vmul.f32 %v3471, %v3752
      %v3868 = vmul.f32 %v3472, %v3752
      %v3869 = vmul.f32 %v3473, %v3752
      %v3870 = vmul.f32 %v3474, %v3752
      %v3871 = vmul.f32 %v3475, %v3752
      %v3872 = vmul.f32 %v3476, %v3752
      %v3873 = vmul.f32 %v3477, %v3752
      %v3874 = vmul.f32 %v3478, %v3752
      %v3875 = vmul.f32 %v3479, %v3752
      %v3876 = vmul.f32 %v3480, %v3752
      %v3877 = vmul.f32 %v3481, %v3752
      %v3878 = vmul.f32 %v3482, %v3752
      %v3879 = vmul.f32 %v3483, %v3752
      %v3880 = vmul.f32 %v3484, %v3752
      %v3881 = vadd.f32 %v3621, %v3753
      %v3882 = vadd.f32 %v3622, %v3754
      %v3883 = vadd.f32 %v3623, %v3755
      %v3884 = vadd.f32 %v3624, %v3756
      %v3885 = vadd.f32 %v3625, %v3757
      %v3886 = vadd.f32 %v3626, %v3758
      %v3887 = vadd.f32 %v3627, %v3759
      %v3888 = vadd.f32 %v3628, %v3760
      %v3889 = vadd.f32 %v3629, %v3761
      %v3890 = vadd.f32 %v3630, %v3762
      %v3891 = vadd.f32 %v3631, %v3763
      %v3892 = vadd.f32 %v3632, %v3764
      %v3893 = vadd.f32 %v3633, %v3765
      %v3894 = vadd.f32 %v3634, %v3766
      %v3895 = vadd.f32 %v3635, %v3767
      %v3896 = vadd.f32 %v3636, %v3768
      %v3897 = vadd.f32 %v3637, %v3769
      %v3898 = vadd.f32 %v3638, %v3770
      %v3899 = vadd.f32 %v3639, %v3771
      %v3900 = vadd.f32 %v3640, %v3772
      %v3901 = vadd.f32 %v3641, %v3773
      %v3902 = vadd.f32 %v3642, %v3774
      %v3903 = vadd.f32 %v3643, %v3775
      %v3904 = vadd.f32 %v3644, %v3776
      %v3905 = vadd.f32 %v3645, %v3777
      %v3906 = vadd.f32 %v3646, %v3778
      %v3907 = vadd.f32 %v3647, %v3779
      %v3908 = vadd.f32 %v3648, %v3780
      %v3909 = vadd.f32 %v3649, %v3781
      %v3910 = vadd.f32 %v3650, %v3782
      %v3911 = vadd.f32 %v3651, %v3783
      %v3912 = vadd.f32 %v3652, %v3784
      %v3913 = vadd.f32 %v3653, %v3785
      %v3914 = vadd.f32 %v3654, %v3786
      %v3915 = vadd.f32 %v3655, %v3787
      %v3916 = vadd.f32 %v3656, %v3788
      %v3917 = vadd.f32 %v3657, %v3789
      %v3918 = vadd.f32 %v3658, %v3790
      %v3919 = vadd.f32 %v3659, %v3791
      %v3920 = vadd.f32 %v3660, %v3792
      %v3921 = vadd.f32 %v3661, %v3793
      %v3922 = vadd.f32 %v3662, %v3794
      %v3923 = vadd.f32 %v3663, %v3795
      %v3924 = vadd.f32 %v3664, %v3796
      %v3925 = vadd.f32 %v3665, %v3797
      %v3926 = vadd.f32 %v3666, %v3798
      %v3927 = vadd.f32 %v3667, %v3799
      %v3928 = vadd.f32 %v3668, %v3800
      %v3929 = vadd.f32 %v3669, %v3801
      %v3930 = vadd.f32 %v3670, %v3802
      %v3931 = vadd.f32 %v3671, %v3803
      %v3932 = vadd.f32 %v3672, %v3804
      %v3933 = vadd.f32 %v3673, %v3805
      %v3934 = vadd.f32 %v3674, %v3806
      %v3935 = vadd.f32 %v3675, %v3807
      %v3936 = vadd.f32 %v3676, %v3808
      %v3937 = vadd.f32 %v3677, %v3809
      %v3938 = vadd.f32 %v3678, %v3810
      %v3939 = vadd.f32 %v3679, %v3811
      %v3940 = vadd.f32 %v3680, %v3812
      %v3941 = vadd.f32 %v3681, %v3813
      %v3942 = vadd.f32 %v3682, %v3814
      %v3943 = vadd.f32 %v3683, %v3815
      %v3944 = vadd.f32 %v3684, %v3816
      %v3945 = vadd.f32 %v3685, %v3817
      %v3946 = vadd.f32 %v3686, %v3818
      %v3947 = vadd.f32 %v3687, %v3819
      %v3948 = vadd.f32 %v3688, %v3820
      %v3949 = vadd.f32 %v3689, %v3821
      %v3950 = vadd.f32 %v3690, %v3822
      %v3951 = vadd.f32 %v3691, %v3823
      %v3952 = vadd.f32 %v3692, %v3824
      %v3953 = vadd.f32 %v3693, %v3825
      %v3954 = vadd.f32 %v3694, %v3826
      %v3955 = vadd.f32 %v3695, %v3827
      %v3956 = vadd.f32 %v3696, %v3828
      %v3957 = vadd.f32 %v3697, %v3829
      %v3958 = vadd.f32 %v3698, %v3830
      %v3959 = vadd.f32 %v3699, %v3831
      %v3960 = vadd.f32 %v3700, %v3832
      %v3961 = vadd.f32 %v3701, %v3833
      %v3962 = vadd.f32 %v3702, %v3834
      %v3963 = vadd.f32 %v3703, %v3835
      %v3964 = vadd.f32 %v3704, %v3836
      %v3965 = vadd.f32 %v3705, %v3837
      %v3966 = vadd.f32 %v3706, %v3838
      %v3967 = vadd.f32 %v3707, %v3839
      %v3968 = vadd.f32 %v3708, %v3840
      %v3969 = vadd.f32 %v3709, %v3841
      %v3970 = vadd.f32 %v3710, %v3842
      %v3971 = vadd.f32 %v3711, %v3843
      %v3972 = vadd.f32 %v3712, %v3844
      %v3973 = vadd.f32 %v3713, %v3845
      %v3974 = vadd.f32 %v3714, %v3846
      %v3975 = vadd.f32 %v3715, %v3847
      %v3976 = vadd.f32 %v3716, %v3848
      %v3977 = vadd.f32 %v3717, %v3849
      %v3978 = vadd.f32 %v3718, %v3850
      %v3979 = vadd.f32 %v3719, %v3851
      %v3980 = vadd.f32 %v3720, %v3852
      %v3981 = vadd.f32 %v3721, %v3853
      %v3982 = vadd.f32 %v3722, %v3854
      %v3983 = vadd.f32 %v3723, %v3855
      %v3984 = vadd.f32 %v3724, %v3856
      %v3985 = vadd.f32 %v3725, %v3857
      %v3986 = vadd.f32 %v3726, %v3858
      %v3987 = vadd.f32 %v3727, %v3859
      %v3988 = vadd.f32 %v3728, %v3860
      %v3989 = vadd.f32 %v3729, %v3861
      %v3990 = vadd.f32 %v3730, %v3862
      %v3991 = vadd.f32 %v3731, %v3863
      %v3992 = vadd.f32 %v3732, %v3864
      %v3993 = vadd.f32 %v3733, %v3865
      %v3994 = vadd.f32 %v3734, %v3866
      %v3995 = vadd.f32 %v3735, %v3867
      %v3996 = vadd.f32 %v3736, %v3868
      %v3997 = vadd.f32 %v3737, %v3869
      %v3998 = vadd.f32 %v3738, %v3870
      %v3999 = vadd.f32 %v3739, %v3871
      %v4000 = vadd.f32 %v3740, %v3872
      %v4001 = vadd.f32 %v3741, %v3873
      %v4002 = vadd.f32 %v3742, %v3874
      %v4003 = vadd.f32 %v3743, %v3875
      %v4004 = vadd.f32 %v3744, %v3876
      %v4005 = vadd.f32 %v3745, %v3877
      %v4006 = vadd.f32 %v3746, %v3878
      %v4007 = vadd.f32 %v3747, %v3879
      %v4008 = vadd.f32 %v3748, %v3880
      %v4009 = vlaneseq
      %v4010 = vshrl.u32 %v4009, 7
      %v4011 = vsub.s32 7, %v4010
      %v4012 = vrot.slane %v2563, %v4011
      %v4013 = vmul.f32 %v3361, %v4012
      %v4014 = vmul.f32 %v3362, %v4012
      %v4015 = vmul.f32 %v3363, %v4012
      %v4016 = vmul.f32 %v3364, %v4012
      %v4017 = vmul.f32 %v3365, %v4012
      %v4018 = vmul.f32 %v3366, %v4012
      %v4019 = vmul.f32 %v3367, %v4012
      %v4020 = vmul.f32 %v3368, %v4012
      %v4021 = vmul.f32 %v3369, %v4012
      %v4022 = vmul.f32 %v3370, %v4012
      %v4023 = vmul.f32 %v3371, %v4012
      %v4024 = vmul.f32 %v3372, %v4012
      %v4025 = vmul.f32 %v3373, %v4012
      %v4026 = vmul.f32 %v3374, %v4012
      %v4027 = vmul.f32 %v3375, %v4012
      %v4028 = vmul.f32 %v3376, %v4012
      %v4029 = vmul.f32 %v3377, %v4012
      %v4030 = vmul.f32 %v3378, %v4012
      %v4031 = vmul.f32 %v3379, %v4012
      %v4032 = vmul.f32 %v3380, %v4012
      %v4033 = vmul.f32 %v3381, %v4012
      %v4034 = vmul.f32 %v3382, %v4012
      %v4035 = vmul.f32 %v3383, %v4012
      %v4036 = vmul.f32 %v3384, %v4012
      %v4037 = vmul.f32 %v3385, %v4012
      %v4038 = vmul.f32 %v3386, %v4012
      %v4039 = vmul.f32 %v3387, %v4012
      %v4040 = vmul.f32 %v3388, %v4012
      %v4041 = vmul.f32 %v3389, %v4012
      %v4042 = vmul.f32 %v3390, %v4012
      %v4043 = vmul.f32 %v3391, %v4012
      %v4044 = vmul.f32 %v3392, %v4012
      %v4045 = vmul.f32 %v3393, %v4012
      %v4046 = vmul.f32 %v3394, %v4012
      %v4047 = vmul.f32 %v3395, %v4012
      %v4048 = vmul.f32 %v3396, %v4012
      %v4049 = vmul.f32 %v3397, %v4012
      %v4050 = vmul.f32 %v3398, %v4012
      %v4051 = vmul.f32 %v3399, %v4012
      %v4052 = vmul.f32 %v3400, %v4012
      %v4053 = vmul.f32 %v3401, %v4012
      %v4054 = vmul.f32 %v3402, %v4012
      %v4055 = vmul.f32 %v3403, %v4012
      %v4056 = vmul.f32 %v3404, %v4012
      %v4057 = vmul.f32 %v3405, %v4012
      %v4058 = vmul.f32 %v3406, %v4012
      %v4059 = vmul.f32 %v3407, %v4012
      %v4060 = vmul.f32 %v3408, %v4012
      %v4061 = vmul.f32 %v3409, %v4012
      %v4062 = vmul.f32 %v3410, %v4012
      %v4063 = vmul.f32 %v3411, %v4012
      %v4064 = vmul.f32 %v3412, %v4012
      %v4065 = vmul.f32 %v3413, %v4012
      %v4066 = vmul.f32 %v3414, %v4012
      %v4067 = vmul.f32 %v3415, %v4012
      %v4068 = vmul.f32 %v3416, %v4012
      %v4069 = vmul.f32 %v3417, %v4012
      %v4070 = vmul.f32 %v3418, %v4012
      %v4071 = vmul.f32 %v3419, %v4012
      %v4072 = vmul.f32 %v3420, %v4012
      %v4073 = vmul.f32 %v3421, %v4012
      %v4074 = vmul.f32 %v3422, %v4012
      %v4075 = vmul.f32 %v3423, %v4012
      %v4076 = vmul.f32 %v3424, %v4012
      %v4077 = vmul.f32 %v3425, %v4012
      %v4078 = vmul.f32 %v3426, %v4012
      %v4079 = vmul.f32 %v3427, %v4012
      %v4080 = vmul.f32 %v3428, %v4012
      %v4081 = vmul.f32 %v3429, %v4012
      %v4082 = vmul.f32 %v3430, %v4012
      %v4083 = vmul.f32 %v3431, %v4012
      %v4084 = vmul.f32 %v3432, %v4012
      %v4085 = vmul.f32 %v3433, %v4012
      %v4086 = vmul.f32 %v3434, %v4012
      %v4087 = vmul.f32 %v3435, %v4012
      %v4088 = vmul.f32 %v3436, %v4012
      %v4089 = vmul.f32 %v3437, %v4012
      %v4090 = vmul.f32 %v3438, %v4012
      %v4091 = vmul.f32 %v3439, %v4012
      %v4092 = vmul.f32 %v3440, %v4012
      %v4093 = vmul.f32 %v3441, %v4012
      %v4094 = vmul.f32 %v3442, %v4012
      %v4095 = vmul.f32 %v3443, %v4012
      %v4096 = vmul.f32 %v3444, %v4012
      %v4097 = vmul.f32 %v3445, %v4012
      %v4098 = vmul.f32 %v3446, %v4012
      %v4099 = vmul.f32 %v3447, %v4012
      %v4100 = vmul.f32 %v3448, %v4012
      %v4101 = vmul.f32 %v3449, %v4012
      %v4102 = vmul.f32 %v3450, %v4012
      %v4103 = vmul.f32 %v3451, %v4012
      %v4104 = vmul.f32 %v3452, %v4012
      %v4105 = vmul.f32 %v3453, %v4012
      %v4106 = vmul.f32 %v3454, %v4012
      %v4107 = vmul.f32 %v3455, %v4012
      %v4108 = vmul.f32 %v3456, %v4012
      %v4109 = vmul.f32 %v3457, %v4012
      %v4110 = vmul.f32 %v3458, %v4012
      %v4111 = vmul.f32 %v3459, %v4012
      %v4112 = vmul.f32 %v3460, %v4012
      %v4113 = vmul.f32 %v3461, %v4012
      %v4114 = vmul.f32 %v3462, %v4012
      %v4115 = vmul.f32 %v3463, %v4012
      %v4116 = vmul.f32 %v3464, %v4012
      %v4117 = vmul.f32 %v3465, %v4012
      %v4118 = vmul.f32 %v3466, %v4012
      %v4119 = vmul.f32 %v3467, %v4012
      %v4120 = vmul.f32 %v3468, %v4012
      %v4121 = vmul.f32 %v3469, %v4012
      %v4122 = vmul.f32 %v3470, %v4012
      %v4123 = vmul.f32 %v3471, %v4012
      %v4124 = vmul.f32 %v3472, %v4012
      %v4125 = vmul.f32 %v3473, %v4012
      %v4126 = vmul.f32 %v3474, %v4012
      %v4127 = vmul.f32 %v3475, %v4012
      %v4128 = vmul.f32 %v3476, %v4012
      %v4129 = vmul.f32 %v3477, %v4012
      %v4130 = vmul.f32 %v3478, %v4012
      %v4131 = vmul.f32 %v3479, %v4012
      %v4132 = vmul.f32 %v3480, %v4012
      %v4133 = vmul.f32 %v3481, %v4012
      %v4134 = vmul.f32 %v3482, %v4012
      %v4135 = vmul.f32 %v3483, %v4012
      %v4136 = vmul.f32 %v3484, %v4012
      %v4137 = vmul.f32 %v3485, %v4012
      %v4138 = vmul.f32 %v3486, %v4012
      %v4139 = vmul.f32 %v3487, %v4012
      %v4140 = vmul.f32 %v3488, %v4012
      %v4141 = vadd.f32 %v3881, %v4013
      %v4142 = vadd.f32 %v3882, %v4014
      %v4143 = vadd.f32 %v3883, %v4015
      %v4144 = vadd.f32 %v3884, %v4016
      %v4145 = vadd.f32 %v3885, %v4017
      %v4146 = vadd.f32 %v3886, %v4018
      %v4147 = vadd.f32 %v3887, %v4019
      %v4148 = vadd.f32 %v3888, %v4020
      %v4149 = vadd.f32 %v3889, %v4021
      %v4150 = vadd.f32 %v3890, %v4022
      %v4151 = vadd.f32 %v3891, %v4023
      %v4152 = vadd.f32 %v3892, %v4024
      %v4153 = vadd.f32 %v3893, %v4025
      %v4154 = vadd.f32 %v3894, %v4026
      %v4155 = vadd.f32 %v3895, %v4027
      %v4156 = vadd.f32 %v3896, %v4028
      %v4157 = vadd.f32 %v3897, %v4029
      %v4158 = vadd.f32 %v3898, %v4030
      %v4159 = vadd.f32 %v3899, %v4031
      %v4160 = vadd.f32 %v3900, %v4032
      %v4161 = vadd.f32 %v3901, %v4033
      %v4162 = vadd.f32 %v3902, %v4034
      %v4163 = vadd.f32 %v3903, %v4035
      %v4164 = vadd.f32 %v3904, %v4036
      %v4165 = vadd.f32 %v3905, %v4037
      %v4166 = vadd.f32 %v3906, %v4038
      %v4167 = vadd.f32 %v3907, %v4039
      %v4168 = vadd.f32 %v3908, %v4040
      %v4169 = vadd.f32 %v3909, %v4041
      %v4170 = vadd.f32 %v3910, %v4042
      %v4171 = vadd.f32 %v3911, %v4043
      %v4172 = vadd.f32 %v3912, %v4044
      %v4173 = vadd.f32 %v3913, %v4045
      %v4174 = vadd.f32 %v3914, %v4046
      %v4175 = vadd.f32 %v3915, %v4047
      %v4176 = vadd.f32 %v3916, %v4048
      %v4177 = vadd.f32 %v3917, %v4049
      %v4178 = vadd.f32 %v3918, %v4050
      %v4179 = vadd.f32 %v3919, %v4051
      %v4180 = vadd.f32 %v3920, %v4052
      %v4181 = vadd.f32 %v3921, %v4053
      %v4182 = vadd.f32 %v3922, %v4054
      %v4183 = vadd.f32 %v3923, %v4055
      %v4184 = vadd.f32 %v3924, %v4056
      %v4185 = vadd.f32 %v3925, %v4057
      %v4186 = vadd.f32 %v3926, %v4058
      %v4187 = vadd.f32 %v3927, %v4059
      %v4188 = vadd.f32 %v3928, %v4060
      %v4189 = vadd.f32 %v3929, %v4061
      %v4190 = vadd.f32 %v3930, %v4062
      %v4191 = vadd.f32 %v3931, %v4063
      %v4192 = vadd.f32 %v3932, %v4064
      %v4193 = vadd.f32 %v3933, %v4065
      %v4194 = vadd.f32 %v3934, %v4066
      %v4195 = vadd.f32 %v3935, %v4067
      %v4196 = vadd.f32 %v3936, %v4068
      %v4197 = vadd.f32 %v3937, %v4069
      %v4198 = vadd.f32 %v3938, %v4070
      %v4199 = vadd.f32 %v3939, %v4071
      %v4200 = vadd.f32 %v3940, %v4072
      %v4201 = vadd.f32 %v3941, %v4073
      %v4202 = vadd.f32 %v3942, %v4074
      %v4203 = vadd.f32 %v3943, %v4075
      %v4204 = vadd.f32 %v3944, %v4076
      %v4205 = vadd.f32 %v3945, %v4077
      %v4206 = vadd.f32 %v3946, %v4078
      %v4207 = vadd.f32 %v3947, %v4079
      %v4208 = vadd.f32 %v3948, %v4080
      %v4209 = vadd.f32 %v3949, %v4081
      %v4210 = vadd.f32 %v3950, %v4082
      %v4211 = vadd.f32 %v3951, %v4083
      %v4212 = vadd.f32 %v3952, %v4084
      %v4213 = vadd.f32 %v3953, %v4085
      %v4214 = vadd.f32 %v3954, %v4086
      %v4215 = vadd.f32 %v3955, %v4087
      %v4216 = vadd.f32 %v3956, %v4088
      %v4217 = vadd.f32 %v3957, %v4089
      %v4218 = vadd.f32 %v3958, %v4090
      %v4219 = vadd.f32 %v3959, %v4091
      %v4220 = vadd.f32 %v3960, %v4092
      %v4221 = vadd.f32 %v3961, %v4093
      %v4222 = vadd.f32 %v3962, %v4094
      %v4223 = vadd.f32 %v3963, %v4095
      %v4224 = vadd.f32 %v3964, %v4096
      %v4225 = vadd.f32 %v3965, %v4097
      %v4226 = vadd.f32 %v3966, %v4098
      %v4227 = vadd.f32 %v3967, %v4099
      %v4228 = vadd.f32 %v3968, %v4100
      %v4229 = vadd.f32 %v3969, %v4101
      %v4230 = vadd.f32 %v3970, %v4102
      %v4231 = vadd.f32 %v3971, %v4103
      %v4232 = vadd.f32 %v3972, %v4104
      %v4233 = vadd.f32 %v3973, %v4105
      %v4234 = vadd.f32 %v3974, %v4106
      %v4235 = vadd.f32 %v3975, %v4107
      %v4236 = vadd.f32 %v3976, %v4108
      %v4237 = vadd.f32 %v3977, %v4109
      %v4238 = vadd.f32 %v3978, %v4110
      %v4239 = vadd.f32 %v3979, %v4111
      %v4240 = vadd.f32 %v3980, %v4112
      %v4241 = vadd.f32 %v3981, %v4113
      %v4242 = vadd.f32 %v3982, %v4114
      %v4243 = vadd.f32 %v3983, %v4115
      %v4244 = vadd.f32 %v3984, %v4116
      %v4245 = vadd.f32 %v3985, %v4117
      %v4246 = vadd.f32 %v3986, %v4118
      %v4247 = vadd.f32 %v3987, %v4119
      %v4248 = vadd.f32 %v3988, %v4120
      %v4249 = vadd.f32 %v3989, %v4121
      %v4250 = vadd.f32 %v3990, %v4122
      %v4251 = vadd.f32 %v3991, %v4123
      %v4252 = vadd.f32 %v3992, %v4124
      %v4253 = vadd.f32 %v3993, %v4125
      %v4254 = vadd.f32 %v3994, %v4126
      %v4255 = vadd.f32 %v3995, %v4127
      %v4256 = vadd.f32 %v3996, %v4128
      %v4257 = vadd.f32 %v3997, %v4129
      %v4258 = vadd.f32 %v3998, %v4130
      %v4259 = vadd.f32 %v3999, %v4131
      %v4260 = vadd.f32 %v4000, %v4132
      %v4261 = vadd.f32 %v4001, %v4133
      %v4262 = vadd.f32 %v4002, %v4134
      %v4263 = vadd.f32 %v4003, %v4135
      %v4264 = vadd.f32 %v4004, %v4136
      %v4265 = vadd.f32 %v4005, %v4137
      %v4266 = vadd.f32 %v4006, %v4138
      %v4267 = vadd.f32 %v4007, %v4139
      %v4268 = vadd.f32 %v4008, %v4140
      %v4269 = vld [vmem:[#allocation2 + $0x9] sm:$0xff]
      %v4270 = vld [vmem:[#allocation2 + $0x11] sm:$0xff]
      %v4271 = vld [vmem:[#allocation2 + $0x19] sm:$0xff]
      %v4272 = vld [vmem:[#allocation2 + $0x21] sm:$0xff]
      %v4273 = vld [vmem:[#allocation2 + $0x39] sm:$0xff]
      %v4274 = vld [vmem:[#allocation2 + $0x41] sm:$0xff]
      %v4275 = vld [vmem:[#allocation2 + $0x49] sm:$0xff]
      %v4276 = vld [vmem:[#allocation2 + $0x51] sm:$0xff]
      %v4277 = vld [vmem:[#allocation2 + $0x69] sm:$0xff]
      %v4278 = vld [vmem:[#allocation2 + $0x71] sm:$0xff]
      %v4279 = vld [vmem:[#allocation2 + $0x79] sm:$0xff]
      %v4280 = vld [vmem:[#allocation2 + $0x81] sm:$0xff]
      %v4281 = vld [vmem:[#allocation2 + $0x99] sm:$0xff]
      %v4282 = vld [vmem:[#allocation2 + $0xa1] sm:$0xff]
      %v4283 = vld [vmem:[#allocation2 + $0xa9] sm:$0xff]
      %v4284 = vld [vmem:[#allocation2 + $0xb1] sm:$0xff]
      %v4285 = vld [vmem:[#allocation2 + $0xc9] sm:$0xff]
      %v4286 = vld [vmem:[#allocation2 + $0xd1] sm:$0xff]
      %v4287 = vld [vmem:[#allocation2 + $0xd9] sm:$0xff]
      %v4288 = vld [vmem:[#allocation2 + $0xe1] sm:$0xff]
      %v4289 = vld [vmem:[#allocation2 + $0xf9] sm:$0xff]
      %v4290 = vld [vmem:[#allocation2 + $0x101] sm:$0xff]
      %v4291 = vld [vmem:[#allocation2 + $0x109] sm:$0xff]
      %v4292 = vld [vmem:[#allocation2 + $0x111] sm:$0xff]
      %v4293 = vld [vmem:[#allocation2 + $0x129] sm:$0xff]
      %v4294 = vld [vmem:[#allocation2 + $0x131] sm:$0xff]
      %v4295 = vld [vmem:[#allocation2 + $0x139] sm:$0xff]
      %v4296 = vld [vmem:[#allocation2 + $0x141] sm:$0xff]
      %v4297 = vld [vmem:[#allocation2 + $0x159] sm:$0xff]
      %v4298 = vld [vmem:[#allocation2 + $0x161] sm:$0xff]
      %v4299 = vld [vmem:[#allocation2 + $0x169] sm:$0xff]
      %v4300 = vld [vmem:[#allocation2 + $0x171] sm:$0xff]
      %v4301 = vld [vmem:[#allocation2 + $0x189] sm:$0xff]
      %v4302 = vld [vmem:[#allocation2 + $0x191] sm:$0xff]
      %v4303 = vld [vmem:[#allocation2 + $0x199] sm:$0xff]
      %v4304 = vld [vmem:[#allocation2 + $0x1a1] sm:$0xff]
      %v4305 = vld [vmem:[#allocation2 + $0x1b9] sm:$0xff]
      %v4306 = vld [vmem:[#allocation2 + $0x1c1] sm:$0xff]
      %v4307 = vld [vmem:[#allocation2 + $0x1c9] sm:$0xff]
      %v4308 = vld [vmem:[#allocation2 + $0x1d1] sm:$0xff]
      %v4309 = vld [vmem:[#allocation2 + $0x1e9] sm:$0xff]
      %v4310 = vld [vmem:[#allocation2 + $0x1f1] sm:$0xff]
      %v4311 = vld [vmem:[#allocation2 + $0x1f9] sm:$0xff]
      %v4312 = vld [vmem:[#allocation2 + $0x201] sm:$0xff]
      %v4313 = vld [vmem:[#allocation2 + $0x219] sm:$0xff]
      %v4314 = vld [vmem:[#allocation2 + $0x221] sm:$0xff]
      %v4315 = vld [vmem:[#allocation2 + $0x229] sm:$0xff]
      %v4316 = vld [vmem:[#allocation2 + $0x231] sm:$0xff]
      %v4317 = vld [vmem:[#allocation2 + $0x249] sm:$0xff]
      %v4318 = vld [vmem:[#allocation2 + $0x251] sm:$0xff]
      %v4319 = vld [vmem:[#allocation2 + $0x259] sm:$0xff]
      %v4320 = vld [vmem:[#allocation2 + $0x261] sm:$0xff]
      %v4321 = vld [vmem:[#allocation2 + $0x279] sm:$0xff]
      %v4322 = vld [vmem:[#allocation2 + $0x281] sm:$0xff]
      %v4323 = vld [vmem:[#allocation2 + $0x289] sm:$0xff]
      %v4324 = vld [vmem:[#allocation2 + $0x291] sm:$0xff]
      %v4325 = vld [vmem:[#allocation2 + $0x2a9] sm:$0xff]
      %v4326 = vld [vmem:[#allocation2 + $0x2b1] sm:$0xff]
      %v4327 = vld [vmem:[#allocation2 + $0x2b9] sm:$0xff]
      %v4328 = vld [vmem:[#allocation2 + $0x2c1] sm:$0xff]
      %v4329 = vld [vmem:[#allocation2 + $0x2d9] sm:$0xff]
      %v4330 = vld [vmem:[#allocation2 + $0x2e1] sm:$0xff]
      %v4331 = vld [vmem:[#allocation2 + $0x2e9] sm:$0xff]
      %v4332 = vld [vmem:[#allocation2 + $0x2f1] sm:$0xff]
      %v4333 = vld [vmem:[#allocation2 + $0x309] sm:$0xff]
      %v4334 = vld [vmem:[#allocation2 + $0x311] sm:$0xff]
      %v4335 = vld [vmem:[#allocation2 + $0x319] sm:$0xff]
      %v4336 = vld [vmem:[#allocation2 + $0x321] sm:$0xff]
      %v4337 = vld [vmem:[#allocation2 + $0x339] sm:$0xff]
      %v4338 = vld [vmem:[#allocation2 + $0x341] sm:$0xff]
      %v4339 = vld [vmem:[#allocation2 + $0x349] sm:$0xff]
      %v4340 = vld [vmem:[#allocation2 + $0x351] sm:$0xff]
      %v4341 = vld [vmem:[#allocation2 + $0x369] sm:$0xff]
      %v4342 = vld [vmem:[#allocation2 + $0x371] sm:$0xff]
      %v4343 = vld [vmem:[#allocation2 + $0x379] sm:$0xff]
      %v4344 = vld [vmem:[#allocation2 + $0x381] sm:$0xff]
      %v4345 = vld [vmem:[#allocation2 + $0x399] sm:$0xff]
      %v4346 = vld [vmem:[#allocation2 + $0x3a1] sm:$0xff]
      %v4347 = vld [vmem:[#allocation2 + $0x3a9] sm:$0xff]
      %v4348 = vld [vmem:[#allocation2 + $0x3b1] sm:$0xff]
      %v4349 = vld [vmem:[#allocation2 + $0x3c9] sm:$0xff]
      %v4350 = vld [vmem:[#allocation2 + $0x3d1] sm:$0xff]
      %v4351 = vld [vmem:[#allocation2 + $0x3d9] sm:$0xff]
      %v4352 = vld [vmem:[#allocation2 + $0x3e1] sm:$0xff]
      %v4353 = vld [vmem:[#allocation2 + $0x3f9] sm:$0xff]
      %v4354 = vld [vmem:[#allocation2 + $0x401] sm:$0xff]
      %v4355 = vld [vmem:[#allocation2 + $0x409] sm:$0xff]
      %v4356 = vld [vmem:[#allocation2 + $0x411] sm:$0xff]
      %v4357 = vld [vmem:[#allocation2 + $0x429] sm:$0xff]
      %v4358 = vld [vmem:[#allocation2 + $0x431] sm:$0xff]
      %v4359 = vld [vmem:[#allocation2 + $0x439] sm:$0xff]
      %v4360 = vld [vmem:[#allocation2 + $0x441] sm:$0xff]
      %v4361 = vld [vmem:[#allocation2 + $0x459] sm:$0xff]
      %v4362 = vld [vmem:[#allocation2 + $0x461] sm:$0xff]
      %v4363 = vld [vmem:[#allocation2 + $0x469] sm:$0xff]
      %v4364 = vld [vmem:[#allocation2 + $0x471] sm:$0xff]
      %v4365 = vld [vmem:[#allocation2 + $0x489] sm:$0xff]
      %v4366 = vld [vmem:[#allocation2 + $0x491] sm:$0xff]
      %v4367 = vld [vmem:[#allocation2 + $0x499] sm:$0xff]
      %v4368 = vld [vmem:[#allocation2 + $0x4a1] sm:$0xff]
      %v4369 = vld [vmem:[#allocation2 + $0x4b9] sm:$0xff]
      %v4370 = vld [vmem:[#allocation2 + $0x4c1] sm:$0xff]
      %v4371 = vld [vmem:[#allocation2 + $0x4c9] sm:$0xff]
      %v4372 = vld [vmem:[#allocation2 + $0x4d1] sm:$0xff]
      %v4373 = vld [vmem:[#allocation2 + $0x4e9] sm:$0xff]
      %v4374 = vld [vmem:[#allocation2 + $0x4f1] sm:$0xff]
      %v4375 = vld [vmem:[#allocation2 + $0x4f9] sm:$0xff]
      %v4376 = vld [vmem:[#allocation2 + $0x501] sm:$0xff]
      %v4377 = vld [vmem:[#allocation2 + $0x519] sm:$0xff]
      %v4378 = vld [vmem:[#allocation2 + $0x521] sm:$0xff]
      %v4379 = vld [vmem:[#allocation2 + $0x529] sm:$0xff]
      %v4380 = vld [vmem:[#allocation2 + $0x531] sm:$0xff]
      %v4381 = vld [vmem:[#allocation2 + $0x549] sm:$0xff]
      %v4382 = vld [vmem:[#allocation2 + $0x551] sm:$0xff]
      %v4383 = vld [vmem:[#allocation2 + $0x559] sm:$0xff]
      %v4384 = vld [vmem:[#allocation2 + $0x561] sm:$0xff]
      %v4385 = vld [vmem:[#allocation2 + $0x579] sm:$0xff]
      %v4386 = vld [vmem:[#allocation2 + $0x581] sm:$0xff]
      %v4387 = vld [vmem:[#allocation2 + $0x589] sm:$0xff]
      %v4388 = vld [vmem:[#allocation2 + $0x591] sm:$0xff]
      %v4389 = vld [vmem:[#allocation2 + $0x5a9] sm:$0xff]
      %v4390 = vld [vmem:[#allocation2 + $0x5b1] sm:$0xff]
      %v4391 = vld [vmem:[#allocation2 + $0x5b9] sm:$0xff]
      %v4392 = vld [vmem:[#allocation2 + $0x5c1] sm:$0xff]
      %v4393 = vld [vmem:[#allocation2 + $0x5d9] sm:$0xff]
      %v4394 = vld [vmem:[#allocation2 + $0x5e1] sm:$0xff]
      %v4395 = vld [vmem:[#allocation2 + $0x5e9] sm:$0xff]
      %v4396 = vld [vmem:[#allocation2 + $0x5f1] sm:$0xff]
      %v4397 = vld [vmem:[#allocation2 + $0x609] sm:$0xff]
      %v4398 = vld [vmem:[#allocation2 + $0x611] sm:$0xff]
      %v4399 = vld [vmem:[#allocation2 + $0x619] sm:$0xff]
      %v4400 = vld [vmem:[#allocation2 + $0x621] sm:$0xff]
      %v4401 = vld [vmem:[#allocation2 + $0x639] sm:$0xff]
      %v4402 = vld [vmem:[#allocation2 + $0x641] sm:$0xff]
      %v4403 = vld [vmem:[#allocation2 + $0x649] sm:$0xff]
      %v4404 = vld [vmem:[#allocation2 + $0x651] sm:$0xff]
      %v4405 = vlaneseq
      %v4406 = vshrl.u32 %v4405, 7
      %v4407 = vsub.s32 2, %v4406
      %v4408 = vrot.slane %v2563, %v4407
      %v4409 = vmul.f32 %v4269, %v4408
      %v4410 = vmul.f32 %v4270, %v4408
      %v4411 = vmul.f32 %v4271, %v4408
      %v4412 = vmul.f32 %v4272, %v4408
      %v4413 = vmul.f32 %v4273, %v4408
      %v4414 = vmul.f32 %v4274, %v4408
      %v4415 = vmul.f32 %v4275, %v4408
      %v4416 = vmul.f32 %v4276, %v4408
      %v4417 = vmul.f32 %v4277, %v4408
      %v4418 = vmul.f32 %v4278, %v4408
      %v4419 = vmul.f32 %v4279, %v4408
      %v4420 = vmul.f32 %v4280, %v4408
      %v4421 = vmul.f32 %v4281, %v4408
      %v4422 = vmul.f32 %v4282, %v4408
      %v4423 = vmul.f32 %v4283, %v4408
      %v4424 = vmul.f32 %v4284, %v4408
      %v4425 = vmul.f32 %v4285, %v4408
      %v4426 = vmul.f32 %v4286, %v4408
      %v4427 = vmul.f32 %v4287, %v4408
      %v4428 = vmul.f32 %v4288, %v4408
      %v4429 = vmul.f32 %v4289, %v4408
      %v4430 = vmul.f32 %v4290, %v4408
      %v4431 = vmul.f32 %v4291, %v4408
      %v4432 = vmul.f32 %v4292, %v4408
      %v4433 = vmul.f32 %v4293, %v4408
      %v4434 = vmul.f32 %v4294, %v4408
      %v4435 = vmul.f32 %v4295, %v4408
      %v4436 = vmul.f32 %v4296, %v4408
      %v4437 = vmul.f32 %v4297, %v4408
      %v4438 = vmul.f32 %v4298, %v4408
      %v4439 = vmul.f32 %v4299, %v4408
      %v4440 = vmul.f32 %v4300, %v4408
      %v4441 = vmul.f32 %v4301, %v4408
      %v4442 = vmul.f32 %v4302, %v4408
      %v4443 = vmul.f32 %v4303, %v4408
      %v4444 = vmul.f32 %v4304, %v4408
      %v4445 = vmul.f32 %v4305, %v4408
      %v4446 = vmul.f32 %v4306, %v4408
      %v4447 = vmul.f32 %v4307, %v4408
      %v4448 = vmul.f32 %v4308, %v4408
      %v4449 = vmul.f32 %v4309, %v4408
      %v4450 = vmul.f32 %v4310, %v4408
      %v4451 = vmul.f32 %v4311, %v4408
      %v4452 = vmul.f32 %v4312, %v4408
      %v4453 = vmul.f32 %v4313, %v4408
      %v4454 = vmul.f32 %v4314, %v4408
      %v4455 = vmul.f32 %v4315, %v4408
      %v4456 = vmul.f32 %v4316, %v4408
      %v4457 = vmul.f32 %v4317, %v4408
      %v4458 = vmul.f32 %v4318, %v4408
      %v4459 = vmul.f32 %v4319, %v4408
      %v4460 = vmul.f32 %v4320, %v4408
      %v4461 = vmul.f32 %v4321, %v4408
      %v4462 = vmul.f32 %v4322, %v4408
      %v4463 = vmul.f32 %v4323, %v4408
      %v4464 = vmul.f32 %v4324, %v4408
      %v4465 = vmul.f32 %v4325, %v4408
      %v4466 = vmul.f32 %v4326, %v4408
      %v4467 = vmul.f32 %v4327, %v4408
      %v4468 = vmul.f32 %v4328, %v4408
      %v4469 = vmul.f32 %v4329, %v4408
      %v4470 = vmul.f32 %v4330, %v4408
      %v4471 = vmul.f32 %v4331, %v4408
      %v4472 = vmul.f32 %v4332, %v4408
      %v4473 = vmul.f32 %v4333, %v4408
      %v4474 = vmul.f32 %v4334, %v4408
      %v4475 = vmul.f32 %v4335, %v4408
      %v4476 = vmul.f32 %v4336, %v4408
      %v4477 = vmul.f32 %v4337, %v4408
      %v4478 = vmul.f32 %v4338, %v4408
      %v4479 = vmul.f32 %v4339, %v4408
      %v4480 = vmul.f32 %v4340, %v4408
      %v4481 = vmul.f32 %v4341, %v4408
      %v4482 = vmul.f32 %v4342, %v4408
      %v4483 = vmul.f32 %v4343, %v4408
      %v4484 = vmul.f32 %v4344, %v4408
      %v4485 = vmul.f32 %v4345, %v4408
      %v4486 = vmul.f32 %v4346, %v4408
      %v4487 = vmul.f32 %v4347, %v4408
      %v4488 = vmul.f32 %v4348, %v4408
      %v4489 = vmul.f32 %v4349, %v4408
      %v4490 = vmul.f32 %v4350, %v4408
      %v4491 = vmul.f32 %v4351, %v4408
      %v4492 = vmul.f32 %v4352, %v4408
      %v4493 = vmul.f32 %v4353, %v4408
      %v4494 = vmul.f32 %v4354, %v4408
      %v4495 = vmul.f32 %v4355, %v4408
      %v4496 = vmul.f32 %v4356, %v4408
      %v4497 = vmul.f32 %v4357, %v4408
      %v4498 = vmul.f32 %v4358, %v4408
      %v4499 = vmul.f32 %v4359, %v4408
      %v4500 = vmul.f32 %v4360, %v4408
      %v4501 = vmul.f32 %v4361, %v4408
      %v4502 = vmul.f32 %v4362, %v4408
      %v4503 = vmul.f32 %v4363, %v4408
      %v4504 = vmul.f32 %v4364, %v4408
      %v4505 = vmul.f32 %v4365, %v4408
      %v4506 = vmul.f32 %v4366, %v4408
      %v4507 = vmul.f32 %v4367, %v4408
      %v4508 = vmul.f32 %v4368, %v4408
      %v4509 = vmul.f32 %v4369, %v4408
      %v4510 = vmul.f32 %v4370, %v4408
      %v4511 = vmul.f32 %v4371, %v4408
      %v4512 = vmul.f32 %v4372, %v4408
      %v4513 = vmul.f32 %v4373, %v4408
      %v4514 = vmul.f32 %v4374, %v4408
      %v4515 = vmul.f32 %v4375, %v4408
      %v4516 = vmul.f32 %v4376, %v4408
      %v4517 = vmul.f32 %v4377, %v4408
      %v4518 = vmul.f32 %v4378, %v4408
      %v4519 = vmul.f32 %v4379, %v4408
      %v4520 = vmul.f32 %v4380, %v4408
      %v4521 = vmul.f32 %v4381, %v4408
      %v4522 = vmul.f32 %v4382, %v4408
      %v4523 = vmul.f32 %v4383, %v4408
      %v4524 = vmul.f32 %v4384, %v4408
      %v4525 = vmul.f32 %v4385, %v4408
      %v4526 = vmul.f32 %v4386, %v4408
      %v4527 = vmul.f32 %v4387, %v4408
      %v4528 = vmul.f32 %v4388, %v4408
      %v4529 = vmul.f32 %v4389, %v4408
      %v4530 = vmul.f32 %v4390, %v4408
      %v4531 = vmul.f32 %v4391, %v4408
      %v4532 = vmul.f32 %v4392, %v4408
      %v4533 = vmul.f32 %v4393, %v4408
      %v4534 = vmul.f32 %v4394, %v4408
      %v4535 = vmul.f32 %v4395, %v4408
      %v4536 = vmul.f32 %v4396, %v4408
      %v4537 = vadd.f32 %v4141, %v4409
      %v4538 = vadd.f32 %v4142, %v4410
      %v4539 = vadd.f32 %v4143, %v4411
      %v4540 = vadd.f32 %v4144, %v4412
      %v4541 = vadd.f32 %v4145, %v4413
      %v4542 = vadd.f32 %v4146, %v4414
      %v4543 = vadd.f32 %v4147, %v4415
      %v4544 = vadd.f32 %v4148, %v4416
      %v4545 = vadd.f32 %v4149, %v4417
      %v4546 = vadd.f32 %v4150, %v4418
      %v4547 = vadd.f32 %v4151, %v4419
      %v4548 = vadd.f32 %v4152, %v4420
      %v4549 = vadd.f32 %v4153, %v4421
      %v4550 = vadd.f32 %v4154, %v4422
      %v4551 = vadd.f32 %v4155, %v4423
      %v4552 = vadd.f32 %v4156, %v4424
      %v4553 = vadd.f32 %v4157, %v4425
      %v4554 = vadd.f32 %v4158, %v4426
      %v4555 = vadd.f32 %v4159, %v4427
      %v4556 = vadd.f32 %v4160, %v4428
      %v4557 = vadd.f32 %v4161, %v4429
      %v4558 = vadd.f32 %v4162, %v4430
      %v4559 = vadd.f32 %v4163, %v4431
      %v4560 = vadd.f32 %v4164, %v4432
      %v4561 = vadd.f32 %v4165, %v4433
      %v4562 = vadd.f32 %v4166, %v4434
      %v4563 = vadd.f32 %v4167, %v4435
      %v4564 = vadd.f32 %v4168, %v4436
      %v4565 = vadd.f32 %v4169, %v4437
      %v4566 = vadd.f32 %v4170, %v4438
      %v4567 = vadd.f32 %v4171, %v4439
      %v4568 = vadd.f32 %v4172, %v4440
      %v4569 = vadd.f32 %v4173, %v4441
      %v4570 = vadd.f32 %v4174, %v4442
      %v4571 = vadd.f32 %v4175, %v4443
      %v4572 = vadd.f32 %v4176, %v4444
      %v4573 = vadd.f32 %v4177, %v4445
      %v4574 = vadd.f32 %v4178, %v4446
      %v4575 = vadd.f32 %v4179, %v4447
      %v4576 = vadd.f32 %v4180, %v4448
      %v4577 = vadd.f32 %v4181, %v4449
      %v4578 = vadd.f32 %v4182, %v4450
      %v4579 = vadd.f32 %v4183, %v4451
      %v4580 = vadd.f32 %v4184, %v4452
      %v4581 = vadd.f32 %v4185, %v4453
      %v4582 = vadd.f32 %v4186, %v4454
      %v4583 = vadd.f32 %v4187, %v4455
      %v4584 = vadd.f32 %v4188, %v4456
      %v4585 = vadd.f32 %v4189, %v4457
      %v4586 = vadd.f32 %v4190, %v4458
      %v4587 = vadd.f32 %v4191, %v4459
      %v4588 = vadd.f32 %v4192, %v4460
      %v4589 = vadd.f32 %v4193, %v4461
      %v4590 = vadd.f32 %v4194, %v4462
      %v4591 = vadd.f32 %v4195, %v4463
      %v4592 = vadd.f32 %v4196, %v4464
      %v4593 = vadd.f32 %v4197, %v4465
      %v4594 = vadd.f32 %v4198, %v4466
      %v4595 = vadd.f32 %v4199, %v4467
      %v4596 = vadd.f32 %v4200, %v4468
      %v4597 = vadd.f32 %v4201, %v4469
      %v4598 = vadd.f32 %v4202, %v4470
      %v4599 = vadd.f32 %v4203, %v4471
      %v4600 = vadd.f32 %v4204, %v4472
      %v4601 = vadd.f32 %v4205, %v4473
      %v4602 = vadd.f32 %v4206, %v4474
      %v4603 = vadd.f32 %v4207, %v4475
      %v4604 = vadd.f32 %v4208, %v4476
      %v4605 = vadd.f32 %v4209, %v4477
      %v4606 = vadd.f32 %v4210, %v4478
      %v4607 = vadd.f32 %v4211, %v4479
      %v4608 = vadd.f32 %v4212, %v4480
      %v4609 = vadd.f32 %v4213, %v4481
      %v4610 = vadd.f32 %v4214, %v4482
      %v4611 = vadd.f32 %v4215, %v4483
      %v4612 = vadd.f32 %v4216, %v4484
      %v4613 = vadd.f32 %v4217, %v4485
      %v4614 = vadd.f32 %v4218, %v4486
      %v4615 = vadd.f32 %v4219, %v4487
      %v4616 = vadd.f32 %v4220, %v4488
      %v4617 = vadd.f32 %v4221, %v4489
      %v4618 = vadd.f32 %v4222, %v4490
      %v4619 = vadd.f32 %v4223, %v4491
      %v4620 = vadd.f32 %v4224, %v4492
      %v4621 = vadd.f32 %v4225, %v4493
      %v4622 = vadd.f32 %v4226, %v4494
      %v4623 = vadd.f32 %v4227, %v4495
      %v4624 = vadd.f32 %v4228, %v4496
      %v4625 = vadd.f32 %v4229, %v4497
      %v4626 = vadd.f32 %v4230, %v4498
      %v4627 = vadd.f32 %v4231, %v4499
      %v4628 = vadd.f32 %v4232, %v4500
      %v4629 = vadd.f32 %v4233, %v4501
      %v4630 = vadd.f32 %v4234, %v4502
      %v4631 = vadd.f32 %v4235, %v4503
      %v4632 = vadd.f32 %v4236, %v4504
      %v4633 = vadd.f32 %v4237, %v4505
      %v4634 = vadd.f32 %v4238, %v4506
      %v4635 = vadd.f32 %v4239, %v4507
      %v4636 = vadd.f32 %v4240, %v4508
      %v4637 = vadd.f32 %v4241, %v4509
      %v4638 = vadd.f32 %v4242, %v4510
      %v4639 = vadd.f32 %v4243, %v4511
      %v4640 = vadd.f32 %v4244, %v4512
      %v4641 = vadd.f32 %v4245, %v4513
      %v4642 = vadd.f32 %v4246, %v4514
      %v4643 = vadd.f32 %v4247, %v4515
      %v4644 = vadd.f32 %v4248, %v4516
      %v4645 = vadd.f32 %v4249, %v4517
      %v4646 = vadd.f32 %v4250, %v4518
      %v4647 = vadd.f32 %v4251, %v4519
      %v4648 = vadd.f32 %v4252, %v4520
      %v4649 = vadd.f32 %v4253, %v4521
      %v4650 = vadd.f32 %v4254, %v4522
      %v4651 = vadd.f32 %v4255, %v4523
      %v4652 = vadd.f32 %v4256, %v4524
      %v4653 = vadd.f32 %v4257, %v4525
      %v4654 = vadd.f32 %v4258, %v4526
      %v4655 = vadd.f32 %v4259, %v4527
      %v4656 = vadd.f32 %v4260, %v4528
      %v4657 = vadd.f32 %v4261, %v4529
      %v4658 = vadd.f32 %v4262, %v4530
      %v4659 = vadd.f32 %v4263, %v4531
      %v4660 = vadd.f32 %v4264, %v4532
      %v4661 = vadd.f32 %v4265, %v4533
      %v4662 = vadd.f32 %v4266, %v4534
      %v4663 = vadd.f32 %v4267, %v4535
      %v4664 = vadd.f32 %v4268, %v4536
      %v4665 = vlaneseq
      %v4666 = vshrl.u32 %v4665, 7
      %v4667 = vsub.s32 5, %v4666
      %v4668 = vrot.slane %v2563, %v4667
      %v4669 = vmul.f32 %v4273, %v4668
      %v4670 = vmul.f32 %v4274, %v4668
      %v4671 = vmul.f32 %v4275, %v4668
      %v4672 = vmul.f32 %v4276, %v4668
      %v4673 = vmul.f32 %v4277, %v4668
      %v4674 = vmul.f32 %v4278, %v4668
      %v4675 = vmul.f32 %v4279, %v4668
      %v4676 = vmul.f32 %v4280, %v4668
      %v4677 = vmul.f32 %v4281, %v4668
      %v4678 = vmul.f32 %v4282, %v4668
      %v4679 = vmul.f32 %v4283, %v4668
      %v4680 = vmul.f32 %v4284, %v4668
      %v4681 = vmul.f32 %v4285, %v4668
      %v4682 = vmul.f32 %v4286, %v4668
      %v4683 = vmul.f32 %v4287, %v4668
      %v4684 = vmul.f32 %v4288, %v4668
      %v4685 = vmul.f32 %v4289, %v4668
      %v4686 = vmul.f32 %v4290, %v4668
      %v4687 = vmul.f32 %v4291, %v4668
      %v4688 = vmul.f32 %v4292, %v4668
      %v4689 = vmul.f32 %v4293, %v4668
      %v4690 = vmul.f32 %v4294, %v4668
      %v4691 = vmul.f32 %v4295, %v4668
      %v4692 = vmul.f32 %v4296, %v4668
      %v4693 = vmul.f32 %v4297, %v4668
      %v4694 = vmul.f32 %v4298, %v4668
      %v4695 = vmul.f32 %v4299, %v4668
      %v4696 = vmul.f32 %v4300, %v4668
      %v4697 = vmul.f32 %v4301, %v4668
      %v4698 = vmul.f32 %v4302, %v4668
      %v4699 = vmul.f32 %v4303, %v4668
      %v4700 = vmul.f32 %v4304, %v4668
      %v4701 = vmul.f32 %v4305, %v4668
      %v4702 = vmul.f32 %v4306, %v4668
      %v4703 = vmul.f32 %v4307, %v4668
      %v4704 = vmul.f32 %v4308, %v4668
      %v4705 = vmul.f32 %v4309, %v4668
      %v4706 = vmul.f32 %v4310, %v4668
      %v4707 = vmul.f32 %v4311, %v4668
      %v4708 = vmul.f32 %v4312, %v4668
      %v4709 = vmul.f32 %v4313, %v4668
      %v4710 = vmul.f32 %v4314, %v4668
      %v4711 = vmul.f32 %v4315, %v4668
      %v4712 = vmul.f32 %v4316, %v4668
      %v4713 = vmul.f32 %v4317, %v4668
      %v4714 = vmul.f32 %v4318, %v4668
      %v4715 = vmul.f32 %v4319, %v4668
      %v4716 = vmul.f32 %v4320, %v4668
      %v4717 = vmul.f32 %v4321, %v4668
      %v4718 = vmul.f32 %v4322, %v4668
      %v4719 = vmul.f32 %v4323, %v4668
      %v4720 = vmul.f32 %v4324, %v4668
      %v4721 = vmul.f32 %v4325, %v4668
      %v4722 = vmul.f32 %v4326, %v4668
      %v4723 = vmul.f32 %v4327, %v4668
      %v4724 = vmul.f32 %v4328, %v4668
      %v4725 = vmul.f32 %v4329, %v4668
      %v4726 = vmul.f32 %v4330, %v4668
      %v4727 = vmul.f32 %v4331, %v4668
      %v4728 = vmul.f32 %v4332, %v4668
      %v4729 = vmul.f32 %v4333, %v4668
      %v4730 = vmul.f32 %v4334, %v4668
      %v4731 = vmul.f32 %v4335, %v4668
      %v4732 = vmul.f32 %v4336, %v4668
      %v4733 = vmul.f32 %v4337, %v4668
      %v4734 = vmul.f32 %v4338, %v4668
      %v4735 = vmul.f32 %v4339, %v4668
      %v4736 = vmul.f32 %v4340, %v4668
      %v4737 = vmul.f32 %v4341, %v4668
      %v4738 = vmul.f32 %v4342, %v4668
      %v4739 = vmul.f32 %v4343, %v4668
      %v4740 = vmul.f32 %v4344, %v4668
      %v4741 = vmul.f32 %v4345, %v4668
      %v4742 = vmul.f32 %v4346, %v4668
      %v4743 = vmul.f32 %v4347, %v4668
      %v4744 = vmul.f32 %v4348, %v4668
      %v4745 = vmul.f32 %v4349, %v4668
      %v4746 = vmul.f32 %v4350, %v4668
      %v4747 = vmul.f32 %v4351, %v4668
      %v4748 = vmul.f32 %v4352, %v4668
      %v4749 = vmul.f32 %v4353, %v4668
      %v4750 = vmul.f32 %v4354, %v4668
      %v4751 = vmul.f32 %v4355, %v4668
      %v4752 = vmul.f32 %v4356, %v4668
      %v4753 = vmul.f32 %v4357, %v4668
      %v4754 = vmul.f32 %v4358, %v4668
      %v4755 = vmul.f32 %v4359, %v4668
      %v4756 = vmul.f32 %v4360, %v4668
      %v4757 = vmul.f32 %v4361, %v4668
      %v4758 = vmul.f32 %v4362, %v4668
      %v4759 = vmul.f32 %v4363, %v4668
      %v4760 = vmul.f32 %v4364, %v4668
      %v4761 = vmul.f32 %v4365, %v4668
      %v4762 = vmul.f32 %v4366, %v4668
      %v4763 = vmul.f32 %v4367, %v4668
      %v4764 = vmul.f32 %v4368, %v4668
      %v4765 = vmul.f32 %v4369, %v4668
      %v4766 = vmul.f32 %v4370, %v4668
      %v4767 = vmul.f32 %v4371, %v4668
      %v4768 = vmul.f32 %v4372, %v4668
      %v4769 = vmul.f32 %v4373, %v4668
      %v4770 = vmul.f32 %v4374, %v4668
      %v4771 = vmul.f32 %v4375, %v4668
      %v4772 = vmul.f32 %v4376, %v4668
      %v4773 = vmul.f32 %v4377, %v4668
      %v4774 = vmul.f32 %v4378, %v4668
      %v4775 = vmul.f32 %v4379, %v4668
      %v4776 = vmul.f32 %v4380, %v4668
      %v4777 = vmul.f32 %v4381, %v4668
      %v4778 = vmul.f32 %v4382, %v4668
      %v4779 = vmul.f32 %v4383, %v4668
      %v4780 = vmul.f32 %v4384, %v4668
      %v4781 = vmul.f32 %v4385, %v4668
      %v4782 = vmul.f32 %v4386, %v4668
      %v4783 = vmul.f32 %v4387, %v4668
      %v4784 = vmul.f32 %v4388, %v4668
      %v4785 = vmul.f32 %v4389, %v4668
      %v4786 = vmul.f32 %v4390, %v4668
      %v4787 = vmul.f32 %v4391, %v4668
      %v4788 = vmul.f32 %v4392, %v4668
      %v4789 = vmul.f32 %v4393, %v4668
      %v4790 = vmul.f32 %v4394, %v4668
      %v4791 = vmul.f32 %v4395, %v4668
      %v4792 = vmul.f32 %v4396, %v4668
      %v4793 = vmul.f32 %v4397, %v4668
      %v4794 = vmul.f32 %v4398, %v4668
      %v4795 = vmul.f32 %v4399, %v4668
      %v4796 = vmul.f32 %v4400, %v4668
      %v4797 = vadd.f32 %v4537, %v4669
      %v4798 = vadd.f32 %v4538, %v4670
      %v4799 = vadd.f32 %v4539, %v4671
      %v4800 = vadd.f32 %v4540, %v4672
      %v4801 = vadd.f32 %v4541, %v4673
      %v4802 = vadd.f32 %v4542, %v4674
      %v4803 = vadd.f32 %v4543, %v4675
      %v4804 = vadd.f32 %v4544, %v4676
      %v4805 = vadd.f32 %v4545, %v4677
      %v4806 = vadd.f32 %v4546, %v4678
      %v4807 = vadd.f32 %v4547, %v4679
      %v4808 = vadd.f32 %v4548, %v4680
      %v4809 = vadd.f32 %v4549, %v4681
      %v4810 = vadd.f32 %v4550, %v4682
      %v4811 = vadd.f32 %v4551, %v4683
      %v4812 = vadd.f32 %v4552, %v4684
      %v4813 = vadd.f32 %v4553, %v4685
      %v4814 = vadd.f32 %v4554, %v4686
      %v4815 = vadd.f32 %v4555, %v4687
      %v4816 = vadd.f32 %v4556, %v4688
      %v4817 = vadd.f32 %v4557, %v4689
      %v4818 = vadd.f32 %v4558, %v4690
      %v4819 = vadd.f32 %v4559, %v4691
      %v4820 = vadd.f32 %v4560, %v4692
      %v4821 = vadd.f32 %v4561, %v4693
      %v4822 = vadd.f32 %v4562, %v4694
      %v4823 = vadd.f32 %v4563, %v4695
      %v4824 = vadd.f32 %v4564, %v4696
      %v4825 = vadd.f32 %v4565, %v4697
      %v4826 = vadd.f32 %v4566, %v4698
      %v4827 = vadd.f32 %v4567, %v4699
      %v4828 = vadd.f32 %v4568, %v4700
      %v4829 = vadd.f32 %v4569, %v4701
      %v4830 = vadd.f32 %v4570, %v4702
      %v4831 = vadd.f32 %v4571, %v4703
      %v4832 = vadd.f32 %v4572, %v4704
      %v4833 = vadd.f32 %v4573, %v4705
      %v4834 = vadd.f32 %v4574, %v4706
      %v4835 = vadd.f32 %v4575, %v4707
      %v4836 = vadd.f32 %v4576, %v4708
      %v4837 = vadd.f32 %v4577, %v4709
      %v4838 = vadd.f32 %v4578, %v4710
      %v4839 = vadd.f32 %v4579, %v4711
      %v4840 = vadd.f32 %v4580, %v4712
      %v4841 = vadd.f32 %v4581, %v4713
      %v4842 = vadd.f32 %v4582, %v4714
      %v4843 = vadd.f32 %v4583, %v4715
      %v4844 = vadd.f32 %v4584, %v4716
      %v4845 = vadd.f32 %v4585, %v4717
      %v4846 = vadd.f32 %v4586, %v4718
      %v4847 = vadd.f32 %v4587, %v4719
      %v4848 = vadd.f32 %v4588, %v4720
      %v4849 = vadd.f32 %v4589, %v4721
      %v4850 = vadd.f32 %v4590, %v4722
      %v4851 = vadd.f32 %v4591, %v4723
      %v4852 = vadd.f32 %v4592, %v4724
      %v4853 = vadd.f32 %v4593, %v4725
      %v4854 = vadd.f32 %v4594, %v4726
      %v4855 = vadd.f32 %v4595, %v4727
      %v4856 = vadd.f32 %v4596, %v4728
      %v4857 = vadd.f32 %v4597, %v4729
      %v4858 = vadd.f32 %v4598, %v4730
      %v4859 = vadd.f32 %v4599, %v4731
      %v4860 = vadd.f32 %v4600, %v4732
      %v4861 = vadd.f32 %v4601, %v4733
      %v4862 = vadd.f32 %v4602, %v4734
      %v4863 = vadd.f32 %v4603, %v4735
      %v4864 = vadd.f32 %v4604, %v4736
      %v4865 = vadd.f32 %v4605, %v4737
      %v4866 = vadd.f32 %v4606, %v4738
      %v4867 = vadd.f32 %v4607, %v4739
      %v4868 = vadd.f32 %v4608, %v4740
      %v4869 = vadd.f32 %v4609, %v4741
      %v4870 = vadd.f32 %v4610, %v4742
      %v4871 = vadd.f32 %v4611, %v4743
      %v4872 = vadd.f32 %v4612, %v4744
      %v4873 = vadd.f32 %v4613, %v4745
      %v4874 = vadd.f32 %v4614, %v4746
      %v4875 = vadd.f32 %v4615, %v4747
      %v4876 = vadd.f32 %v4616, %v4748
      %v4877 = vadd.f32 %v4617, %v4749
      %v4878 = vadd.f32 %v4618, %v4750
      %v4879 = vadd.f32 %v4619, %v4751
      %v4880 = vadd.f32 %v4620, %v4752
      %v4881 = vadd.f32 %v4621, %v4753
      %v4882 = vadd.f32 %v4622, %v4754
      %v4883 = vadd.f32 %v4623, %v4755
      %v4884 = vadd.f32 %v4624, %v4756
      %v4885 = vadd.f32 %v4625, %v4757
      %v4886 = vadd.f32 %v4626, %v4758
      %v4887 = vadd.f32 %v4627, %v4759
      %v4888 = vadd.f32 %v4628, %v4760
      %v4889 = vadd.f32 %v4629, %v4761
      %v4890 = vadd.f32 %v4630, %v4762
      %v4891 = vadd.f32 %v4631, %v4763
      %v4892 = vadd.f32 %v4632, %v4764
      %v4893 = vadd.f32 %v4633, %v4765
      %v4894 = vadd.f32 %v4634, %v4766
      %v4895 = vadd.f32 %v4635, %v4767
      %v4896 = vadd.f32 %v4636, %v4768
      %v4897 = vadd.f32 %v4637, %v4769
      %v4898 = vadd.f32 %v4638, %v4770
      %v4899 = vadd.f32 %v4639, %v4771
      %v4900 = vadd.f32 %v4640, %v4772
      %v4901 = vadd.f32 %v4641, %v4773
      %v4902 = vadd.f32 %v4642, %v4774
      %v4903 = vadd.f32 %v4643, %v4775
      %v4904 = vadd.f32 %v4644, %v4776
      %v4905 = vadd.f32 %v4645, %v4777
      %v4906 = vadd.f32 %v4646, %v4778
      %v4907 = vadd.f32 %v4647, %v4779
      %v4908 = vadd.f32 %v4648, %v4780
      %v4909 = vadd.f32 %v4649, %v4781
      %v4910 = vadd.f32 %v4650, %v4782
      %v4911 = vadd.f32 %v4651, %v4783
      %v4912 = vadd.f32 %v4652, %v4784
      %v4913 = vadd.f32 %v4653, %v4785
      %v4914 = vadd.f32 %v4654, %v4786
      %v4915 = vadd.f32 %v4655, %v4787
      %v4916 = vadd.f32 %v4656, %v4788
      %v4917 = vadd.f32 %v4657, %v4789
      %v4918 = vadd.f32 %v4658, %v4790
      %v4919 = vadd.f32 %v4659, %v4791
      %v4920 = vadd.f32 %v4660, %v4792
      %v4921 = vadd.f32 %v4661, %v4793
      %v4922 = vadd.f32 %v4662, %v4794
      %v4923 = vadd.f32 %v4663, %v4795
      %v4924 = vadd.f32 %v4664, %v4796
      %v4925 = vlaneseq
      %v4926 = vshrl.u32 %v4925, 7
      %v4927 = vsub.s32 0, %v4926
      %v4928 = vrot.slane %v2564, %v4927
      %v4929 = vmul.f32 %v4277, %v4928
      %v4930 = vmul.f32 %v4278, %v4928
      %v4931 = vmul.f32 %v4279, %v4928
      %v4932 = vmul.f32 %v4280, %v4928
      %v4933 = vmul.f32 %v4281, %v4928
      %v4934 = vmul.f32 %v4282, %v4928
      %v4935 = vmul.f32 %v4283, %v4928
      %v4936 = vmul.f32 %v4284, %v4928
      %v4937 = vmul.f32 %v4285, %v4928
      %v4938 = vmul.f32 %v4286, %v4928
      %v4939 = vmul.f32 %v4287, %v4928
      %v4940 = vmul.f32 %v4288, %v4928
      %v4941 = vmul.f32 %v4289, %v4928
      %v4942 = vmul.f32 %v4290, %v4928
      %v4943 = vmul.f32 %v4291, %v4928
      %v4944 = vmul.f32 %v4292, %v4928
      %v4945 = vmul.f32 %v4293, %v4928
      %v4946 = vmul.f32 %v4294, %v4928
      %v4947 = vmul.f32 %v4295, %v4928
      %v4948 = vmul.f32 %v4296, %v4928
      %v4949 = vmul.f32 %v4297, %v4928
      %v4950 = vmul.f32 %v4298, %v4928
      %v4951 = vmul.f32 %v4299, %v4928
      %v4952 = vmul.f32 %v4300, %v4928
      %v4953 = vmul.f32 %v4301, %v4928
      %v4954 = vmul.f32 %v4302, %v4928
      %v4955 = vmul.f32 %v4303, %v4928
      %v4956 = vmul.f32 %v4304, %v4928
      %v4957 = vmul.f32 %v4305, %v4928
      %v4958 = vmul.f32 %v4306, %v4928
      %v4959 = vmul.f32 %v4307, %v4928
      %v4960 = vmul.f32 %v4308, %v4928
      %v4961 = vmul.f32 %v4309, %v4928
      %v4962 = vmul.f32 %v4310, %v4928
      %v4963 = vmul.f32 %v4311, %v4928
      %v4964 = vmul.f32 %v4312, %v4928
      %v4965 = vmul.f32 %v4313, %v4928
      %v4966 = vmul.f32 %v4314, %v4928
      %v4967 = vmul.f32 %v4315, %v4928
      %v4968 = vmul.f32 %v4316, %v4928
      %v4969 = vmul.f32 %v4317, %v4928
      %v4970 = vmul.f32 %v4318, %v4928
      %v4971 = vmul.f32 %v4319, %v4928
      %v4972 = vmul.f32 %v4320, %v4928
      %v4973 = vmul.f32 %v4321, %v4928
      %v4974 = vmul.f32 %v4322, %v4928
      %v4975 = vmul.f32 %v4323, %v4928
      %v4976 = vmul.f32 %v4324, %v4928
      %v4977 = vmul.f32 %v4325, %v4928
      %v4978 = vmul.f32 %v4326, %v4928
      %v4979 = vmul.f32 %v4327, %v4928
      %v4980 = vmul.f32 %v4328, %v4928
      %v4981 = vmul.f32 %v4329, %v4928
      %v4982 = vmul.f32 %v4330, %v4928
      %v4983 = vmul.f32 %v4331, %v4928
      %v4984 = vmul.f32 %v4332, %v4928
      %v4985 = vmul.f32 %v4333, %v4928
      %v4986 = vmul.f32 %v4334, %v4928
      %v4987 = vmul.f32 %v4335, %v4928
      %v4988 = vmul.f32 %v4336, %v4928
      %v4989 = vmul.f32 %v4337, %v4928
      %v4990 = vmul.f32 %v4338, %v4928
      %v4991 = vmul.f32 %v4339, %v4928
      %v4992 = vmul.f32 %v4340, %v4928
      %v4993 = vmul.f32 %v4341, %v4928
      %v4994 = vmul.f32 %v4342, %v4928
      %v4995 = vmul.f32 %v4343, %v4928
      %v4996 = vmul.f32 %v4344, %v4928
      %v4997 = vmul.f32 %v4345, %v4928
      %v4998 = vmul.f32 %v4346, %v4928
      %v4999 = vmul.f32 %v4347, %v4928
      %v5000 = vmul.f32 %v4348, %v4928
      %v5001 = vmul.f32 %v4349, %v4928
      %v5002 = vmul.f32 %v4350, %v4928
      %v5003 = vmul.f32 %v4351, %v4928
      %v5004 = vmul.f32 %v4352, %v4928
      %v5005 = vmul.f32 %v4353, %v4928
      %v5006 = vmul.f32 %v4354, %v4928
      %v5007 = vmul.f32 %v4355, %v4928
      %v5008 = vmul.f32 %v4356, %v4928
      %v5009 = vmul.f32 %v4357, %v4928
      %v5010 = vmul.f32 %v4358, %v4928
      %v5011 = vmul.f32 %v4359, %v4928
      %v5012 = vmul.f32 %v4360, %v4928
      %v5013 = vmul.f32 %v4361, %v4928
      %v5014 = vmul.f32 %v4362, %v4928
      %v5015 = vmul.f32 %v4363, %v4928
      %v5016 = vmul.f32 %v4364, %v4928
      %v5017 = vmul.f32 %v4365, %v4928
      %v5018 = vmul.f32 %v4366, %v4928
      %v5019 = vmul.f32 %v4367, %v4928
      %v5020 = vmul.f32 %v4368, %v4928
      %v5021 = vmul.f32 %v4369, %v4928
      %v5022 = vmul.f32 %v4370, %v4928
      %v5023 = vmul.f32 %v4371, %v4928
      %v5024 = vmul.f32 %v4372, %v4928
      %v5025 = vmul.f32 %v4373, %v4928
      %v5026 = vmul.f32 %v4374, %v4928
      %v5027 = vmul.f32 %v4375, %v4928
      %v5028 = vmul.f32 %v4376, %v4928
      %v5029 = vmul.f32 %v4377, %v4928
      %v5030 = vmul.f32 %v4378, %v4928
      %v5031 = vmul.f32 %v4379, %v4928
      %v5032 = vmul.f32 %v4380, %v4928
      %v5033 = vmul.f32 %v4381, %v4928
      %v5034 = vmul.f32 %v4382, %v4928
      %v5035 = vmul.f32 %v4383, %v4928
      %v5036 = vmul.f32 %v4384, %v4928
      %v5037 = vmul.f32 %v4385, %v4928
      %v5038 = vmul.f32 %v4386, %v4928
      %v5039 = vmul.f32 %v4387, %v4928
      %v5040 = vmul.f32 %v4388, %v4928
      %v5041 = vmul.f32 %v4389, %v4928
      %v5042 = vmul.f32 %v4390, %v4928
      %v5043 = vmul.f32 %v4391, %v4928
      %v5044 = vmul.f32 %v4392, %v4928
      %v5045 = vmul.f32 %v4393, %v4928
      %v5046 = vmul.f32 %v4394, %v4928
      %v5047 = vmul.f32 %v4395, %v4928
      %v5048 = vmul.f32 %v4396, %v4928
      %v5049 = vmul.f32 %v4397, %v4928
      %v5050 = vmul.f32 %v4398, %v4928
      %v5051 = vmul.f32 %v4399, %v4928
      %v5052 = vmul.f32 %v4400, %v4928
      %v5053 = vmul.f32 %v4401, %v4928
      %v5054 = vmul.f32 %v4402, %v4928
      %v5055 = vmul.f32 %v4403, %v4928
      %v5056 = vmul.f32 %v4404, %v4928
      %v5057 = vadd.f32 %v4797, %v4929
      %v5058 = vadd.f32 %v4798, %v4930
      %v5059 = vadd.f32 %v4799, %v4931
      %v5060 = vadd.f32 %v4800, %v4932
      %v5061 = vadd.f32 %v4801, %v4933
      %v5062 = vadd.f32 %v4802, %v4934
      %v5063 = vadd.f32 %v4803, %v4935
      %v5064 = vadd.f32 %v4804, %v4936
      %v5065 = vadd.f32 %v4805, %v4937
      %v5066 = vadd.f32 %v4806, %v4938
      %v5067 = vadd.f32 %v4807, %v4939
      %v5068 = vadd.f32 %v4808, %v4940
      %v5069 = vadd.f32 %v4809, %v4941
      %v5070 = vadd.f32 %v4810, %v4942
      %v5071 = vadd.f32 %v4811, %v4943
      %v5072 = vadd.f32 %v4812, %v4944
      %v5073 = vadd.f32 %v4813, %v4945
      %v5074 = vadd.f32 %v4814, %v4946
      %v5075 = vadd.f32 %v4815, %v4947
      %v5076 = vadd.f32 %v4816, %v4948
      %v5077 = vadd.f32 %v4817, %v4949
      %v5078 = vadd.f32 %v4818, %v4950
      %v5079 = vadd.f32 %v4819, %v4951
      %v5080 = vadd.f32 %v4820, %v4952
      %v5081 = vadd.f32 %v4821, %v4953
      %v5082 = vadd.f32 %v4822, %v4954
      %v5083 = vadd.f32 %v4823, %v4955
      %v5084 = vadd.f32 %v4824, %v4956
      %v5085 = vadd.f32 %v4825, %v4957
      %v5086 = vadd.f32 %v4826, %v4958
      %v5087 = vadd.f32 %v4827, %v4959
      %v5088 = vadd.f32 %v4828, %v4960
      %v5089 = vadd.f32 %v4829, %v4961
      %v5090 = vadd.f32 %v4830, %v4962
      %v5091 = vadd.f32 %v4831, %v4963
      %v5092 = vadd.f32 %v4832, %v4964
      %v5093 = vadd.f32 %v4833, %v4965
      %v5094 = vadd.f32 %v4834, %v4966
      %v5095 = vadd.f32 %v4835, %v4967
      %v5096 = vadd.f32 %v4836, %v4968
      %v5097 = vadd.f32 %v4837, %v4969
      %v5098 = vadd.f32 %v4838, %v4970
      %v5099 = vadd.f32 %v4839, %v4971
      %v5100 = vadd.f32 %v4840, %v4972
      %v5101 = vadd.f32 %v4841, %v4973
      %v5102 = vadd.f32 %v4842, %v4974
      %v5103 = vadd.f32 %v4843, %v4975
      %v5104 = vadd.f32 %v4844, %v4976
      %v5105 = vadd.f32 %v4845, %v4977
      %v5106 = vadd.f32 %v4846, %v4978
      %v5107 = vadd.f32 %v4847, %v4979
      %v5108 = vadd.f32 %v4848, %v4980
      %v5109 = vadd.f32 %v4849, %v4981
      %v5110 = vadd.f32 %v4850, %v4982
      %v5111 = vadd.f32 %v4851, %v4983
      %v5112 = vadd.f32 %v4852, %v4984
      %v5113 = vadd.f32 %v4853, %v4985
      %v5114 = vadd.f32 %v4854, %v4986
      %v5115 = vadd.f32 %v4855, %v4987
      %v5116 = vadd.f32 %v4856, %v4988
      %v5117 = vadd.f32 %v4857, %v4989
      %v5118 = vadd.f32 %v4858, %v4990
      %v5119 = vadd.f32 %v4859, %v4991
      %v5120 = vadd.f32 %v4860, %v4992
      %v5121 = vadd.f32 %v4861, %v4993
      %v5122 = vadd.f32 %v4862, %v4994
      %v5123 = vadd.f32 %v4863, %v4995
      %v5124 = vadd.f32 %v4864, %v4996
      %v5125 = vadd.f32 %v4865, %v4997
      %v5126 = vadd.f32 %v4866, %v4998
      %v5127 = vadd.f32 %v4867, %v4999
      %v5128 = vadd.f32 %v4868, %v5000
      %v5129 = vadd.f32 %v4869, %v5001
      %v5130 = vadd.f32 %v4870, %v5002
      %v5131 = vadd.f32 %v4871, %v5003
      %v5132 = vadd.f32 %v4872, %v5004
      %v5133 = vadd.f32 %v4873, %v5005
      %v5134 = vadd.f32 %v4874, %v5006
      %v5135 = vadd.f32 %v4875, %v5007
      %v5136 = vadd.f32 %v4876, %v5008
      %v5137 = vadd.f32 %v4877, %v5009
      %v5138 = vadd.f32 %v4878, %v5010
      %v5139 = vadd.f32 %v4879, %v5011
      %v5140 = vadd.f32 %v4880, %v5012
      %v5141 = vadd.f32 %v4881, %v5013
      %v5142 = vadd.f32 %v4882, %v5014
      %v5143 = vadd.f32 %v4883, %v5015
      %v5144 = vadd.f32 %v4884, %v5016
      %v5145 = vadd.f32 %v4885, %v5017
      %v5146 = vadd.f32 %v4886, %v5018
      %v5147 = vadd.f32 %v4887, %v5019
      %v5148 = vadd.f32 %v4888, %v5020
      %v5149 = vadd.f32 %v4889, %v5021
      %v5150 = vadd.f32 %v4890, %v5022
      %v5151 = vadd.f32 %v4891, %v5023
      %v5152 = vadd.f32 %v4892, %v5024
      %v5153 = vadd.f32 %v4893, %v5025
      %v5154 = vadd.f32 %v4894, %v5026
      %v5155 = vadd.f32 %v4895, %v5027
      %v5156 = vadd.f32 %v4896, %v5028
      %v5157 = vadd.f32 %v4897, %v5029
      %v5158 = vadd.f32 %v4898, %v5030
      %v5159 = vadd.f32 %v4899, %v5031
      %v5160 = vadd.f32 %v4900, %v5032
      %v5161 = vadd.f32 %v4901, %v5033
      %v5162 = vadd.f32 %v4902, %v5034
      %v5163 = vadd.f32 %v4903, %v5035
      %v5164 = vadd.f32 %v4904, %v5036
      %v5165 = vadd.f32 %v4905, %v5037
      %v5166 = vadd.f32 %v4906, %v5038
      %v5167 = vadd.f32 %v4907, %v5039
      %v5168 = vadd.f32 %v4908, %v5040
      %v5169 = vadd.f32 %v4909, %v5041
      %v5170 = vadd.f32 %v4910, %v5042
      %v5171 = vadd.f32 %v4911, %v5043
      %v5172 = vadd.f32 %v4912, %v5044
      %v5173 = vadd.f32 %v4913, %v5045
      %v5174 = vadd.f32 %v4914, %v5046
      %v5175 = vadd.f32 %v4915, %v5047
      %v5176 = vadd.f32 %v4916, %v5048
      %v5177 = vadd.f32 %v4917, %v5049
      %v5178 = vadd.f32 %v4918, %v5050
      %v5179 = vadd.f32 %v4919, %v5051
      %v5180 = vadd.f32 %v4920, %v5052
      %v5181 = vadd.f32 %v4921, %v5053
      %v5182 = vadd.f32 %v4922, %v5054
      %v5183 = vadd.f32 %v4923, %v5055
      %v5184 = vadd.f32 %v4924, %v5056
      %v5185 = vld [vmem:[%s4] sm:$0x1]
      %v5187 = vlaneseq
      %v5188 = vshrl.u32 %v5187, 7
      %v5189 = vsub.s32 0, %v5188
      %v5190 = vrot.slane %v5185, %v5189
      %v5192 = vadd.f32 %v5057, %v5190
      %v5193 = vadd.f32 %v5058, %v5190
      %v5194 = vadd.f32 %v5059, %v5190
      %v5195 = vadd.f32 %v5060, %v5190
      %v5196 = vadd.f32 %v5061, %v5190
      %v5197 = vadd.f32 %v5062, %v5190
      %v5198 = vadd.f32 %v5063, %v5190
      %v5199 = vadd.f32 %v5064, %v5190
      %v5200 = vadd.f32 %v5065, %v5190
      %v5201 = vadd.f32 %v5066, %v5190
      %v5202 = vadd.f32 %v5067, %v5190
      %v5203 = vadd.f32 %v5068, %v5190
      %v5204 = vadd.f32 %v5069, %v5190
      %v5205 = vadd.f32 %v5070, %v5190
      %v5206 = vadd.f32 %v5071, %v5190
      %v5207 = vadd.f32 %v5072, %v5190
      %v5208 = vadd.f32 %v5073, %v5190
      %v5209 = vadd.f32 %v5074, %v5190
      %v5210 = vadd.f32 %v5075, %v5190
      %v5211 = vadd.f32 %v5076, %v5190
      %v5212 = vadd.f32 %v5077, %v5190
      %v5213 = vadd.f32 %v5078, %v5190
      %v5214 = vadd.f32 %v5079, %v5190
      %v5215 = vadd.f32 %v5080, %v5190
      %v5216 = vadd.f32 %v5081, %v5190
      %v5217 = vadd.f32 %v5082, %v5190
      %v5218 = vadd.f32 %v5083, %v5190
      %v5219 = vadd.f32 %v5084, %v5190
      %v5220 = vadd.f32 %v5085, %v5190
      %v5221 = vadd.f32 %v5086, %v5190
      %v5222 = vadd.f32 %v5087, %v5190
      %v5223 = vadd.f32 %v5088, %v5190
      %v5224 = vadd.f32 %v5089, %v5190
      %v5225 = vadd.f32 %v5090, %v5190
      %v5226 = vadd.f32 %v5091, %v5190
      %v5227 = vadd.f32 %v5092, %v5190
      %v5228 = vadd.f32 %v5093, %v5190
      %v5229 = vadd.f32 %v5094, %v5190
      %v5230 = vadd.f32 %v5095, %v5190
      %v5231 = vadd.f32 %v5096, %v5190
      %v5232 = vadd.f32 %v5097, %v5190
      %v5233 = vadd.f32 %v5098, %v5190
      %v5234 = vadd.f32 %v5099, %v5190
      %v5235 = vadd.f32 %v5100, %v5190
      %v5236 = vadd.f32 %v5101, %v5190
      %v5237 = vadd.f32 %v5102, %v5190
      %v5238 = vadd.f32 %v5103, %v5190
      %v5239 = vadd.f32 %v5104, %v5190
      %v5240 = vadd.f32 %v5105, %v5190
      %v5241 = vadd.f32 %v5106, %v5190
      %v5242 = vadd.f32 %v5107, %v5190
      %v5243 = vadd.f32 %v5108, %v5190
      %v5244 = vadd.f32 %v5109, %v5190
      %v5245 = vadd.f32 %v5110, %v5190
      %v5246 = vadd.f32 %v5111, %v5190
      %v5247 = vadd.f32 %v5112, %v5190
      %v5248 = vadd.f32 %v5113, %v5190
      %v5249 = vadd.f32 %v5114, %v5190
      %v5250 = vadd.f32 %v5115, %v5190
      %v5251 = vadd.f32 %v5116, %v5190
      %v5252 = vadd.f32 %v5117, %v5190
      %v5253 = vadd.f32 %v5118, %v5190
      %v5254 = vadd.f32 %v5119, %v5190
      %v5255 = vadd.f32 %v5120, %v5190
      %v5256 = vadd.f32 %v5121, %v5190
      %v5257 = vadd.f32 %v5122, %v5190
      %v5258 = vadd.f32 %v5123, %v5190
      %v5259 = vadd.f32 %v5124, %v5190
      %v5260 = vadd.f32 %v5125, %v5190
      %v5261 = vadd.f32 %v5126, %v5190
      %v5262 = vadd.f32 %v5127, %v5190
      %v5263 = vadd.f32 %v5128, %v5190
      %v5264 = vadd.f32 %v5129, %v5190
      %v5265 = vadd.f32 %v5130, %v5190
      %v5266 = vadd.f32 %v5131, %v5190
      %v5267 = vadd.f32 %v5132, %v5190
      %v5268 = vadd.f32 %v5133, %v5190
      %v5269 = vadd.f32 %v5134, %v5190
      %v5270 = vadd.f32 %v5135, %v5190
      %v5271 = vadd.f32 %v5136, %v5190
      %v5272 = vadd.f32 %v5137, %v5190
      %v5273 = vadd.f32 %v5138, %v5190
      %v5274 = vadd.f32 %v5139, %v5190
      %v5275 = vadd.f32 %v5140, %v5190
      %v5276 = vadd.f32 %v5141, %v5190
      %v5277 = vadd.f32 %v5142, %v5190
      %v5278 = vadd.f32 %v5143, %v5190
      %v5279 = vadd.f32 %v5144, %v5190
      %v5280 = vadd.f32 %v5145, %v5190
      %v5281 = vadd.f32 %v5146, %v5190
      %v5282 = vadd.f32 %v5147, %v5190
      %v5283 = vadd.f32 %v5148, %v5190
      %v5284 = vadd.f32 %v5149, %v5190
      %v5285 = vadd.f32 %v5150, %v5190
      %v5286 = vadd.f32 %v5151, %v5190
      %v5287 = vadd.f32 %v5152, %v5190
      %v5288 = vadd.f32 %v5153, %v5190
      %v5289 = vadd.f32 %v5154, %v5190
      %v5290 = vadd.f32 %v5155, %v5190
      %v5291 = vadd.f32 %v5156, %v5190
      %v5292 = vadd.f32 %v5157, %v5190
      %v5293 = vadd.f32 %v5158, %v5190
      %v5294 = vadd.f32 %v5159, %v5190
      %v5295 = vadd.f32 %v5160, %v5190
      %v5296 = vadd.f32 %v5161, %v5190
      %v5297 = vadd.f32 %v5162, %v5190
      %v5298 = vadd.f32 %v5163, %v5190
      %v5299 = vadd.f32 %v5164, %v5190
      %v5300 = vadd.f32 %v5165, %v5190
      %v5301 = vadd.f32 %v5166, %v5190
      %v5302 = vadd.f32 %v5167, %v5190
      %v5303 = vadd.f32 %v5168, %v5190
      %v5304 = vadd.f32 %v5169, %v5190
      %v5305 = vadd.f32 %v5170, %v5190
      %v5306 = vadd.f32 %v5171, %v5190
      %v5307 = vadd.f32 %v5172, %v5190
      %v5308 = vadd.f32 %v5173, %v5190
      %v5309 = vadd.f32 %v5174, %v5190
      %v5310 = vadd.f32 %v5175, %v5190
      %v5311 = vadd.f32 %v5176, %v5190
      %v5312 = vadd.f32 %v5177, %v5190
      %v5313 = vadd.f32 %v5178, %v5190
      %v5314 = vadd.f32 %v5179, %v5190
      %v5315 = vadd.f32 %v5180, %v5190
      %v5316 = vadd.f32 %v5181, %v5190
      %v5317 = vadd.f32 %v5182, %v5190
      %v5318 = vadd.f32 %v5183, %v5190
      %v5319 = vadd.f32 %v5184, %v5190
      %v5320 = vxor.u32 %v5192, 2147483648
      %v5321 = vxor.u32 %v5193, 2147483648
      %v5322 = vxor.u32 %v5194, 2147483648
      %v5323 = vxor.u32 %v5195, 2147483648
      %v5324 = vxor.u32 %v5196, 2147483648
      %v5325 = vxor.u32 %v5197, 2147483648
      %v5326 = vxor.u32 %v5198, 2147483648
      %v5327 = vxor.u32 %v5199, 2147483648
      %v5328 = vxor.u32 %v5200, 2147483648
      %v5329 = vxor.u32 %v5201, 2147483648
      %v5330 = vxor.u32 %v5202, 2147483648
      %v5331 = vxor.u32 %v5203, 2147483648
      %v5332 = vxor.u32 %v5204, 2147483648
      %v5333 = vxor.u32 %v5205, 2147483648
      %v5334 = vxor.u32 %v5206, 2147483648
      %v5335 = vxor.u32 %v5207, 2147483648
      %v5336 = vxor.u32 %v5208, 2147483648
      %v5337 = vxor.u32 %v5209, 2147483648
      %v5338 = vxor.u32 %v5210, 2147483648
      %v5339 = vxor.u32 %v5211, 2147483648
      %v5340 = vxor.u32 %v5212, 2147483648
      %v5341 = vxor.u32 %v5213, 2147483648
      %v5342 = vxor.u32 %v5214, 2147483648
      %v5343 = vxor.u32 %v5215, 2147483648
      %v5344 = vxor.u32 %v5216, 2147483648
      %v5345 = vxor.u32 %v5217, 2147483648
      %v5346 = vxor.u32 %v5218, 2147483648
      %v5347 = vxor.u32 %v5219, 2147483648
      %v5348 = vxor.u32 %v5220, 2147483648
      %v5349 = vxor.u32 %v5221, 2147483648
      %v5350 = vxor.u32 %v5222, 2147483648
      %v5351 = vxor.u32 %v5223, 2147483648
      %v5352 = vxor.u32 %v5224, 2147483648
      %v5353 = vxor.u32 %v5225, 2147483648
      %v5354 = vxor.u32 %v5226, 2147483648
      %v5355 = vxor.u32 %v5227, 2147483648
      %v5356 = vxor.u32 %v5228, 2147483648
      %v5357 = vxor.u32 %v5229, 2147483648
      %v5358 = vxor.u32 %v5230, 2147483648
      %v5359 = vxor.u32 %v5231, 2147483648
      %v5360 = vxor.u32 %v5232, 2147483648
      %v5361 = vxor.u32 %v5233, 2147483648
      %v5362 = vxor.u32 %v5234, 2147483648
      %v5363 = vxor.u32 %v5235, 2147483648
      %v5364 = vxor.u32 %v5236, 2147483648
      %v5365 = vxor.u32 %v5237, 2147483648
      %v5366 = vxor.u32 %v5238, 2147483648
      %v5367 = vxor.u32 %v5239, 2147483648
      %v5368 = vxor.u32 %v5240, 2147483648
      %v5369 = vxor.u32 %v5241, 2147483648
      %v5370 = vxor.u32 %v5242, 2147483648
      %v5371 = vxor.u32 %v5243, 2147483648
      %v5372 = vxor.u32 %v5244, 2147483648
      %v5373 = vxor.u32 %v5245, 2147483648
      %v5374 = vxor.u32 %v5246, 2147483648
      %v5375 = vxor.u32 %v5247, 2147483648
      %v5376 = vxor.u32 %v5248, 2147483648
      %v5377 = vxor.u32 %v5249, 2147483648
      %v5378 = vxor.u32 %v5250, 2147483648
      %v5379 = vxor.u32 %v5251, 2147483648
      %v5380 = vxor.u32 %v5252, 2147483648
      %v5381 = vxor.u32 %v5253, 2147483648
      %v5382 = vxor.u32 %v5254, 2147483648
      %v5383 = vxor.u32 %v5255, 2147483648
      %v5384 = vxor.u32 %v5256, 2147483648
      %v5385 = vxor.u32 %v5257, 2147483648
      %v5386 = vxor.u32 %v5258, 2147483648
      %v5387 = vxor.u32 %v5259, 2147483648
      %v5388 = vxor.u32 %v5260, 2147483648
      %v5389 = vxor.u32 %v5261, 2147483648
      %v5390 = vxor.u32 %v5262, 2147483648
      %v5391 = vxor.u32 %v5263, 2147483648
      %v5392 = vxor.u32 %v5264, 2147483648
      %v5393 = vxor.u32 %v5265, 2147483648
      %v5394 = vxor.u32 %v5266, 2147483648
      %v5395 = vxor.u32 %v5267, 2147483648
      %v5396 = vxor.u32 %v5268, 2147483648
      %v5397 = vxor.u32 %v5269, 2147483648
      %v5398 = vxor.u32 %v5270, 2147483648
      %v5399 = vxor.u32 %v5271, 2147483648
      %v5400 = vxor.u32 %v5272, 2147483648
      %v5401 = vxor.u32 %v5273, 2147483648
      %v5402 = vxor.u32 %v5274, 2147483648
      %v5403 = vxor.u32 %v5275, 2147483648
      %v5404 = vxor.u32 %v5276, 2147483648
      %v5405 = vxor.u32 %v5277, 2147483648
      %v5406 = vxor.u32 %v5278, 2147483648
      %v5407 = vxor.u32 %v5279, 2147483648
      %v5408 = vxor.u32 %v5280, 2147483648
      %v5409 = vxor.u32 %v5281, 2147483648
      %v5410 = vxor.u32 %v5282, 2147483648
      %v5411 = vxor.u32 %v5283, 2147483648
      %v5412 = vxor.u32 %v5284, 2147483648
      %v5413 = vxor.u32 %v5285, 2147483648
      %v5414 = vxor.u32 %v5286, 2147483648
      %v5415 = vxor.u32 %v5287, 2147483648
      %v5416 = vxor.u32 %v5288, 2147483648
      %v5417 = vxor.u32 %v5289, 2147483648
      %v5418 = vxor.u32 %v5290, 2147483648
      %v5419 = vxor.u32 %v5291, 2147483648
      %v5420 = vxor.u32 %v5292, 2147483648
      %v5421 = vxor.u32 %v5293, 2147483648
      %v5422 = vxor.u32 %v5294, 2147483648
      %v5423 = vxor.u32 %v5295, 2147483648
      %v5424 = vxor.u32 %v5296, 2147483648
      %v5425 = vxor.u32 %v5297, 2147483648
      %v5426 = vxor.u32 %v5298, 2147483648
      %v5427 = vxor.u32 %v5299, 2147483648
      %v5428 = vxor.u32 %v5300, 2147483648
      %v5429 = vxor.u32 %v5301, 2147483648
      %v5430 = vxor.u32 %v5302, 2147483648
      %v5431 = vxor.u32 %v5303, 2147483648
      %v5432 = vxor.u32 %v5304, 2147483648
      %v5433 = vxor.u32 %v5305, 2147483648
      %v5434 = vxor.u32 %v5306, 2147483648
      %v5435 = vxor.u32 %v5307, 2147483648
      %v5436 = vxor.u32 %v5308, 2147483648
      %v5437 = vxor.u32 %v5309, 2147483648
      %v5438 = vxor.u32 %v5310, 2147483648
      %v5439 = vxor.u32 %v5311, 2147483648
      %v5440 = vxor.u32 %v5312, 2147483648
      %v5441 = vxor.u32 %v5313, 2147483648
      %v5442 = vxor.u32 %v5314, 2147483648
      %v5443 = vxor.u32 %v5315, 2147483648
      %v5444 = vxor.u32 %v5316, 2147483648
      %v5445 = vxor.u32 %v5317, 2147483648
      %v5446 = vxor.u32 %v5318, 2147483648
      %v5447 = vxor.u32 %v5319, 2147483648
      %v5448 = vmul.f32 %v5320, 1.442695
      %v5449 = vpow.pop %v5448
      %v5450 = vmul.f32 %v5321, 1.442695
      %v5451 = vpow.pop %v5450
      %v5452 = vmul.f32 %v5322, 1.442695
      %v5453 = vpow.pop %v5452
      %v5454 = vmul.f32 %v5323, 1.442695
      %v5455 = vpow.pop %v5454
      %v5456 = vmul.f32 %v5324, 1.442695
      %v5457 = vpow.pop %v5456
      %v5458 = vmul.f32 %v5325, 1.442695
      %v5459 = vpow.pop %v5458
      %v5460 = vmul.f32 %v5326, 1.442695
      %v5461 = vpow.pop %v5460
      %v5462 = vmul.f32 %v5327, 1.442695
      %v5463 = vpow.pop %v5462
      %v5464 = vmul.f32 %v5328, 1.442695
      %v5465 = vpow.pop %v5464
      %v5466 = vmul.f32 %v5329, 1.442695
      %v5467 = vpow.pop %v5466
      %v5468 = vmul.f32 %v5330, 1.442695
      %v5469 = vpow.pop %v5468
      %v5470 = vmul.f32 %v5331, 1.442695
      %v5471 = vpow.pop %v5470
      %v5472 = vmul.f32 %v5332, 1.442695
      %v5473 = vpow.pop %v5472
      %v5474 = vmul.f32 %v5333, 1.442695
      %v5475 = vpow.pop %v5474
      %v5476 = vmul.f32 %v5334, 1.442695
      %v5477 = vpow.pop %v5476
      %v5478 = vmul.f32 %v5335, 1.442695
      %v5479 = vpow.pop %v5478
      %v5480 = vmul.f32 %v5336, 1.442695
      %v5481 = vpow.pop %v5480
      %v5482 = vmul.f32 %v5337, 1.442695
      %v5483 = vpow.pop %v5482
      %v5484 = vmul.f32 %v5338, 1.442695
      %v5485 = vpow.pop %v5484
      %v5486 = vmul.f32 %v5339, 1.442695
      %v5487 = vpow.pop %v5486
      %v5488 = vmul.f32 %v5340, 1.442695
      %v5489 = vpow.pop %v5488
      %v5490 = vmul.f32 %v5341, 1.442695
      %v5491 = vpow.pop %v5490
      %v5492 = vmul.f32 %v5342, 1.442695
      %v5493 = vpow.pop %v5492
      %v5494 = vmul.f32 %v5343, 1.442695
      %v5495 = vpow.pop %v5494
      %v5496 = vmul.f32 %v5344, 1.442695
      %v5497 = vpow.pop %v5496
      %v5498 = vmul.f32 %v5345, 1.442695
      %v5499 = vpow.pop %v5498
      %v5500 = vmul.f32 %v5346, 1.442695
      %v5501 = vpow.pop %v5500
      %v5502 = vmul.f32 %v5347, 1.442695
      %v5503 = vpow.pop %v5502
      %v5504 = vmul.f32 %v5348, 1.442695
      %v5505 = vpow.pop %v5504
      %v5506 = vmul.f32 %v5349, 1.442695
      %v5507 = vpow.pop %v5506
      %v5508 = vmul.f32 %v5350, 1.442695
      %v5509 = vpow.pop %v5508
      %v5510 = vmul.f32 %v5351, 1.442695
      %v5511 = vpow.pop %v5510
      %v5512 = vmul.f32 %v5352, 1.442695
      %v5513 = vpow.pop %v5512
      %v5514 = vmul.f32 %v5353, 1.442695
      %v5515 = vpow.pop %v5514
      %v5516 = vmul.f32 %v5354, 1.442695
      %v5517 = vpow.pop %v5516
      %v5518 = vmul.f32 %v5355, 1.442695
      %v5519 = vpow.pop %v5518
      %v5520 = vmul.f32 %v5356, 1.442695
      %v5521 = vpow.pop %v5520
      %v5522 = vmul.f32 %v5357, 1.442695
      %v5523 = vpow.pop %v5522
      %v5524 = vmul.f32 %v5358, 1.442695
      %v5525 = vpow.pop %v5524
      %v5526 = vmul.f32 %v5359, 1.442695
      %v5527 = vpow.pop %v5526
      %v5528 = vmul.f32 %v5360, 1.442695
      %v5529 = vpow.pop %v5528
      %v5530 = vmul.f32 %v5361, 1.442695
      %v5531 = vpow.pop %v5530
      %v5532 = vmul.f32 %v5362, 1.442695
      %v5533 = vpow.pop %v5532
      %v5534 = vmul.f32 %v5363, 1.442695
      %v5535 = vpow.pop %v5534
      %v5536 = vmul.f32 %v5364, 1.442695
      %v5537 = vpow.pop %v5536
      %v5538 = vmul.f32 %v5365, 1.442695
      %v5539 = vpow.pop %v5538
      %v5540 = vmul.f32 %v5366, 1.442695
      %v5541 = vpow.pop %v5540
      %v5542 = vmul.f32 %v5367, 1.442695
      %v5543 = vpow.pop %v5542
      %v5544 = vmul.f32 %v5368, 1.442695
      %v5545 = vpow.pop %v5544
      %v5546 = vmul.f32 %v5369, 1.442695
      %v5547 = vpow.pop %v5546
      %v5548 = vmul.f32 %v5370, 1.442695
      %v5549 = vpow.pop %v5548
      %v5550 = vmul.f32 %v5371, 1.442695
      %v5551 = vpow.pop %v5550
      %v5552 = vmul.f32 %v5372, 1.442695
      %v5553 = vpow.pop %v5552
      %v5554 = vmul.f32 %v5373, 1.442695
      %v5555 = vpow.pop %v5554
      %v5556 = vmul.f32 %v5374, 1.442695
      %v5557 = vpow.pop %v5556
      %v5558 = vmul.f32 %v5375, 1.442695
      %v5559 = vpow.pop %v5558
      %v5560 = vmul.f32 %v5376, 1.442695
      %v5561 = vpow.pop %v5560
      %v5562 = vmul.f32 %v5377, 1.442695
      %v5563 = vpow.pop %v5562
      %v5564 = vmul.f32 %v5378, 1.442695
      %v5565 = vpow.pop %v5564
      %v5566 = vmul.f32 %v5379, 1.442695
      %v5567 = vpow.pop %v5566
      %v5568 = vmul.f32 %v5380, 1.442695
      %v5569 = vpow.pop %v5568
      %v5570 = vmul.f32 %v5381, 1.442695
      %v5571 = vpow.pop %v5570
      %v5572 = vmul.f32 %v5382, 1.442695
      %v5573 = vpow.pop %v5572
      %v5574 = vmul.f32 %v5383, 1.442695
      %v5575 = vpow.pop %v5574
      %v5576 = vmul.f32 %v5384, 1.442695
      %v5577 = vpow.pop %v5576
      %v5578 = vmul.f32 %v5385, 1.442695
      %v5579 = vpow.pop %v5578
      %v5580 = vmul.f32 %v5386, 1.442695
      %v5581 = vpow.pop %v5580
      %v5582 = vmul.f32 %v5387, 1.442695
      %v5583 = vpow.pop %v5582
      %v5584 = vmul.f32 %v5388, 1.442695
      %v5585 = vpow.pop %v5584
      %v5586 = vmul.f32 %v5389, 1.442695
      %v5587 = vpow.pop %v5586
      %v5588 = vmul.f32 %v5390, 1.442695
      %v5589 = vpow.pop %v5588
      %v5590 = vmul.f32 %v5391, 1.442695
      %v5591 = vpow.pop %v5590
      %v5592 = vmul.f32 %v5392, 1.442695
      %v5593 = vpow.pop %v5592
      %v5594 = vmul.f32 %v5393, 1.442695
      %v5595 = vpow.pop %v5594
      %v5596 = vmul.f32 %v5394, 1.442695
      %v5597 = vpow.pop %v5596
      %v5598 = vmul.f32 %v5395, 1.442695
      %v5599 = vpow.pop %v5598
      %v5600 = vmul.f32 %v5396, 1.442695
      %v5601 = vpow.pop %v5600
      %v5602 = vmul.f32 %v5397, 1.442695
      %v5603 = vpow.pop %v5602
      %v5604 = vmul.f32 %v5398, 1.442695
      %v5605 = vpow.pop %v5604
      %v5606 = vmul.f32 %v5399, 1.442695
      %v5607 = vpow.pop %v5606
      %v5608 = vmul.f32 %v5400, 1.442695
      %v5609 = vpow.pop %v5608
      %v5610 = vmul.f32 %v5401, 1.442695
      %v5611 = vpow.pop %v5610
      %v5612 = vmul.f32 %v5402, 1.442695
      %v5613 = vpow.pop %v5612
      %v5614 = vmul.f32 %v5403, 1.442695
      %v5615 = vpow.pop %v5614
      %v5616 = vmul.f32 %v5404, 1.442695
      %v5617 = vpow.pop %v5616
      %v5618 = vmul.f32 %v5405, 1.442695
      %v5619 = vpow.pop %v5618
      %v5620 = vmul.f32 %v5406, 1.442695
      %v5621 = vpow.pop %v5620
      %v5622 = vmul.f32 %v5407, 1.442695
      %v5623 = vpow.pop %v5622
      %v5624 = vmul.f32 %v5408, 1.442695
      %v5625 = vpow.pop %v5624
      %v5626 = vmul.f32 %v5409, 1.442695
      %v5627 = vpow.pop %v5626
      %v5628 = vmul.f32 %v5410, 1.442695
      %v5629 = vpow.pop %v5628
      %v5630 = vmul.f32 %v5411, 1.442695
      %v5631 = vpow.pop %v5630
      %v5632 = vmul.f32 %v5412, 1.442695
      %v5633 = vpow.pop %v5632
      %v5634 = vmul.f32 %v5413, 1.442695
      %v5635 = vpow.pop %v5634
      %v5636 = vmul.f32 %v5414, 1.442695
      %v5637 = vpow.pop %v5636
      %v5638 = vmul.f32 %v5415, 1.442695
      %v5639 = vpow.pop %v5638
      %v5640 = vmul.f32 %v5416, 1.442695
      %v5641 = vpow.pop %v5640
      %v5642 = vmul.f32 %v5417, 1.442695
      %v5643 = vpow.pop %v5642
      %v5644 = vmul.f32 %v5418, 1.442695
      %v5645 = vpow.pop %v5644
      %v5646 = vmul.f32 %v5419, 1.442695
      %v5647 = vpow.pop %v5646
      %v5648 = vmul.f32 %v5420, 1.442695
      %v5649 = vpow.pop %v5648
      %v5650 = vmul.f32 %v5421, 1.442695
      %v5651 = vpow.pop %v5650
      %v5652 = vmul.f32 %v5422, 1.442695
      %v5653 = vpow.pop %v5652
      %v5654 = vmul.f32 %v5423, 1.442695
      %v5655 = vpow.pop %v5654
      %v5656 = vmul.f32 %v5424, 1.442695
      %v5657 = vpow.pop %v5656
      %v5658 = vmul.f32 %v5425, 1.442695
      %v5659 = vpow.pop %v5658
      %v5660 = vmul.f32 %v5426, 1.442695
      %v5661 = vpow.pop %v5660
      %v5662 = vmul.f32 %v5427, 1.442695
      %v5663 = vpow.pop %v5662
      %v5664 = vmul.f32 %v5428, 1.442695
      %v5665 = vpow.pop %v5664
      %v5666 = vmul.f32 %v5429, 1.442695
      %v5667 = vpow.pop %v5666
      %v5668 = vmul.f32 %v5430, 1.442695
      %v5669 = vpow.pop %v5668
      %v5670 = vmul.f32 %v5431, 1.442695
      %v5671 = vpow.pop %v5670
      %v5672 = vmul.f32 %v5432, 1.442695
      %v5673 = vpow.pop %v5672
      %v5674 = vmul.f32 %v5433, 1.442695
      %v5675 = vpow.pop %v5674
      %v5676 = vmul.f32 %v5434, 1.442695
      %v5677 = vpow.pop %v5676
      %v5678 = vmul.f32 %v5435, 1.442695
      %v5679 = vpow.pop %v5678
      %v5680 = vmul.f32 %v5436, 1.442695
      %v5681 = vpow.pop %v5680
      %v5682 = vmul.f32 %v5437, 1.442695
      %v5683 = vpow.pop %v5682
      %v5684 = vmul.f32 %v5438, 1.442695
      %v5685 = vpow.pop %v5684
      %v5686 = vmul.f32 %v5439, 1.442695
      %v5687 = vpow.pop %v5686
      %v5688 = vmul.f32 %v5440, 1.442695
      %v5689 = vpow.pop %v5688
      %v5690 = vmul.f32 %v5441, 1.442695
      %v5691 = vpow.pop %v5690
      %v5692 = vmul.f32 %v5442, 1.442695
      %v5693 = vpow.pop %v5692
      %v5694 = vmul.f32 %v5443, 1.442695
      %v5695 = vpow.pop %v5694
      %v5696 = vmul.f32 %v5444, 1.442695
      %v5697 = vpow.pop %v5696
      %v5698 = vmul.f32 %v5445, 1.442695
      %v5699 = vpow.pop %v5698
      %v5700 = vmul.f32 %v5446, 1.442695
      %v5701 = vpow.pop %v5700
      %v5702 = vmul.f32 %v5447, 1.442695
      %v5703 = vpow.pop %v5702
      %v5704 = vadd.f32 %v5449, 1.0
      %v5705 = vadd.f32 %v5451, 1.0
      %v5706 = vadd.f32 %v5453, 1.0
      %v5707 = vadd.f32 %v5455, 1.0
      %v5708 = vadd.f32 %v5457, 1.0
      %v5709 = vadd.f32 %v5459, 1.0
      %v5710 = vadd.f32 %v5461, 1.0
      %v5711 = vadd.f32 %v5463, 1.0
      %v5712 = vadd.f32 %v5465, 1.0
      %v5713 = vadd.f32 %v5467, 1.0
      %v5714 = vadd.f32 %v5469, 1.0
      %v5715 = vadd.f32 %v5471, 1.0
      %v5716 = vadd.f32 %v5473, 1.0
      %v5717 = vadd.f32 %v5475, 1.0
      %v5718 = vadd.f32 %v5477, 1.0
      %v5719 = vadd.f32 %v5479, 1.0
      %v5720 = vadd.f32 %v5481, 1.0
      %v5721 = vadd.f32 %v5483, 1.0
      %v5722 = vadd.f32 %v5485, 1.0
      %v5723 = vadd.f32 %v5487, 1.0
      %v5724 = vadd.f32 %v5489, 1.0
      %v5725 = vadd.f32 %v5491, 1.0
      %v5726 = vadd.f32 %v5493, 1.0
      %v5727 = vadd.f32 %v5495, 1.0
      %v5728 = vadd.f32 %v5497, 1.0
      %v5729 = vadd.f32 %v5499, 1.0
      %v5730 = vadd.f32 %v5501, 1.0
      %v5731 = vadd.f32 %v5503, 1.0
      %v5732 = vadd.f32 %v5505, 1.0
      %v5733 = vadd.f32 %v5507, 1.0
      %v5734 = vadd.f32 %v5509, 1.0
      %v5735 = vadd.f32 %v5511, 1.0
      %v5736 = vadd.f32 %v5513, 1.0
      %v5737 = vadd.f32 %v5515, 1.0
      %v5738 = vadd.f32 %v5517, 1.0
      %v5739 = vadd.f32 %v5519, 1.0
      %v5740 = vadd.f32 %v5521, 1.0
      %v5741 = vadd.f32 %v5523, 1.0
      %v5742 = vadd.f32 %v5525, 1.0
      %v5743 = vadd.f32 %v5527, 1.0
      %v5744 = vadd.f32 %v5529, 1.0
      %v5745 = vadd.f32 %v5531, 1.0
      %v5746 = vadd.f32 %v5533, 1.0
      %v5747 = vadd.f32 %v5535, 1.0
      %v5748 = vadd.f32 %v5537, 1.0
      %v5749 = vadd.f32 %v5539, 1.0
      %v5750 = vadd.f32 %v5541, 1.0
      %v5751 = vadd.f32 %v5543, 1.0
      %v5752 = vadd.f32 %v5545, 1.0
      %v5753 = vadd.f32 %v5547, 1.0
      %v5754 = vadd.f32 %v5549, 1.0
      %v5755 = vadd.f32 %v5551, 1.0
      %v5756 = vadd.f32 %v5553, 1.0
      %v5757 = vadd.f32 %v5555, 1.0
      %v5758 = vadd.f32 %v5557, 1.0
      %v5759 = vadd.f32 %v5559, 1.0
      %v5760 = vadd.f32 %v5561, 1.0
      %v5761 = vadd.f32 %v5563, 1.0
      %v5762 = vadd.f32 %v5565, 1.0
      %v5763 = vadd.f32 %v5567, 1.0
      %v5764 = vadd.f32 %v5569, 1.0
      %v5765 = vadd.f32 %v5571, 1.0
      %v5766 = vadd.f32 %v5573, 1.0
      %v5767 = vadd.f32 %v5575, 1.0
      %v5768 = vadd.f32 %v5577, 1.0
      %v5769 = vadd.f32 %v5579, 1.0
      %v5770 = vadd.f32 %v5581, 1.0
      %v5771 = vadd.f32 %v5583, 1.0
      %v5772 = vadd.f32 %v5585, 1.0
      %v5773 = vadd.f32 %v5587, 1.0
      %v5774 = vadd.f32 %v5589, 1.0
      %v5775 = vadd.f32 %v5591, 1.0
      %v5776 = vadd.f32 %v5593, 1.0
      %v5777 = vadd.f32 %v5595, 1.0
      %v5778 = vadd.f32 %v5597, 1.0
      %v5779 = vadd.f32 %v5599, 1.0
      %v5780 = vadd.f32 %v5601, 1.0
      %v5781 = vadd.f32 %v5603, 1.0
      %v5782 = vadd.f32 %v5605, 1.0
      %v5783 = vadd.f32 %v5607, 1.0
      %v5784 = vadd.f32 %v5609, 1.0
      %v5785 = vadd.f32 %v5611, 1.0
      %v5786 = vadd.f32 %v5613, 1.0
      %v5787 = vadd.f32 %v5615, 1.0
      %v5788 = vadd.f32 %v5617, 1.0
      %v5789 = vadd.f32 %v5619, 1.0
      %v5790 = vadd.f32 %v5621, 1.0
      %v5791 = vadd.f32 %v5623, 1.0
      %v5792 = vadd.f32 %v5625, 1.0
      %v5793 = vadd.f32 %v5627, 1.0
      %v5794 = vadd.f32 %v5629, 1.0
      %v5795 = vadd.f32 %v5631, 1.0
      %v5796 = vadd.f32 %v5633, 1.0
      %v5797 = vadd.f32 %v5635, 1.0
      %v5798 = vadd.f32 %v5637, 1.0
      %v5799 = vadd.f32 %v5639, 1.0
      %v5800 = vadd.f32 %v5641, 1.0
      %v5801 = vadd.f32 %v5643, 1.0
      %v5802 = vadd.f32 %v5645, 1.0
      %v5803 = vadd.f32 %v5647, 1.0
      %v5804 = vadd.f32 %v5649, 1.0
      %v5805 = vadd.f32 %v5651, 1.0
      %v5806 = vadd.f32 %v5653, 1.0
      %v5807 = vadd.f32 %v5655, 1.0
      %v5808 = vadd.f32 %v5657, 1.0
      %v5809 = vadd.f32 %v5659, 1.0
      %v5810 = vadd.f32 %v5661, 1.0
      %v5811 = vadd.f32 %v5663, 1.0
      %v5812 = vadd.f32 %v5665, 1.0
      %v5813 = vadd.f32 %v5667, 1.0
      %v5814 = vadd.f32 %v5669, 1.0
      %v5815 = vadd.f32 %v5671, 1.0
      %v5816 = vadd.f32 %v5673, 1.0
      %v5817 = vadd.f32 %v5675, 1.0
      %v5818 = vadd.f32 %v5677, 1.0
      %v5819 = vadd.f32 %v5679, 1.0
      %v5820 = vadd.f32 %v5681, 1.0
      %v5821 = vadd.f32 %v5683, 1.0
      %v5822 = vadd.f32 %v5685, 1.0
      %v5823 = vadd.f32 %v5687, 1.0
      %v5824 = vadd.f32 %v5689, 1.0
      %v5825 = vadd.f32 %v5691, 1.0
      %v5826 = vadd.f32 %v5693, 1.0
      %v5827 = vadd.f32 %v5695, 1.0
      %v5828 = vadd.f32 %v5697, 1.0
      %v5829 = vadd.f32 %v5699, 1.0
      %v5830 = vadd.f32 %v5701, 1.0
      %v5831 = vadd.f32 %v5703, 1.0
      %v5832 = vrcp.pop %v5704
      %v5833 = vmul.f32 1.0, %v5832
      %v5834 = vrcp.pop %v5705
      %v5835 = vmul.f32 1.0, %v5834
      %v5836 = vrcp.pop %v5706
      %v5837 = vmul.f32 1.0, %v5836
      %v5838 = vrcp.pop %v5707
      %v5839 = vmul.f32 1.0, %v5838
      %v5840 = vrcp.pop %v5708
      %v5841 = vmul.f32 1.0, %v5840
      %v5842 = vrcp.pop %v5709
      %v5843 = vmul.f32 1.0, %v5842
      %v5844 = vrcp.pop %v5710
      %v5845 = vmul.f32 1.0, %v5844
      %v5846 = vrcp.pop %v5711
      %v5847 = vmul.f32 1.0, %v5846
      %v5848 = vrcp.pop %v5712
      %v5849 = vmul.f32 1.0, %v5848
      %v5850 = vrcp.pop %v5713
      %v5851 = vmul.f32 1.0, %v5850
      %v5852 = vrcp.pop %v5714
      %v5853 = vmul.f32 1.0, %v5852
      %v5854 = vrcp.pop %v5715
      %v5855 = vmul.f32 1.0, %v5854
      %v5856 = vrcp.pop %v5716
      %v5857 = vmul.f32 1.0, %v5856
      %v5858 = vrcp.pop %v5717
      %v5859 = vmul.f32 1.0, %v5858
      %v5860 = vrcp.pop %v5718
      %v5861 = vmul.f32 1.0, %v5860
      %v5862 = vrcp.pop %v5719
      %v5863 = vmul.f32 1.0, %v5862
      %v5864 = vrcp.pop %v5720
      %v5865 = vmul.f32 1.0, %v5864
      %v5866 = vrcp.pop %v5721
      %v5867 = vmul.f32 1.0, %v5866
      %v5868 = vrcp.pop %v5722
      %v5869 = vmul.f32 1.0, %v5868
      %v5870 = vrcp.pop %v5723
      %v5871 = vmul.f32 1.0, %v5870
      %v5872 = vrcp.pop %v5724
      %v5873 = vmul.f32 1.0, %v5872
      %v5874 = vrcp.pop %v5725
      %v5875 = vmul.f32 1.0, %v5874
      %v5876 = vrcp.pop %v5726
      %v5877 = vmul.f32 1.0, %v5876
      %v5878 = vrcp.pop %v5727
      %v5879 = vmul.f32 1.0, %v5878
      %v5880 = vrcp.pop %v5728
      %v5881 = vmul.f32 1.0, %v5880
      %v5882 = vrcp.pop %v5729
      %v5883 = vmul.f32 1.0, %v5882
      %v5884 = vrcp.pop %v5730
      %v5885 = vmul.f32 1.0, %v5884
      %v5886 = vrcp.pop %v5731
      %v5887 = vmul.f32 1.0, %v5886
      %v5888 = vrcp.pop %v5732
      %v5889 = vmul.f32 1.0, %v5888
      %v5890 = vrcp.pop %v5733
      %v5891 = vmul.f32 1.0, %v5890
      %v5892 = vrcp.pop %v5734
      %v5893 = vmul.f32 1.0, %v5892
      %v5894 = vrcp.pop %v5735
      %v5895 = vmul.f32 1.0, %v5894
      %v5896 = vrcp.pop %v5736
      %v5897 = vmul.f32 1.0, %v5896
      %v5898 = vrcp.pop %v5737
      %v5899 = vmul.f32 1.0, %v5898
      %v5900 = vrcp.pop %v5738
      %v5901 = vmul.f32 1.0, %v5900
      %v5902 = vrcp.pop %v5739
      %v5903 = vmul.f32 1.0, %v5902
      %v5904 = vrcp.pop %v5740
      %v5905 = vmul.f32 1.0, %v5904
      %v5906 = vrcp.pop %v5741
      %v5907 = vmul.f32 1.0, %v5906
      %v5908 = vrcp.pop %v5742
      %v5909 = vmul.f32 1.0, %v5908
      %v5910 = vrcp.pop %v5743
      %v5911 = vmul.f32 1.0, %v5910
      %v5912 = vrcp.pop %v5744
      %v5913 = vmul.f32 1.0, %v5912
      %v5914 = vrcp.pop %v5745
      %v5915 = vmul.f32 1.0, %v5914
      %v5916 = vrcp.pop %v5746
      %v5917 = vmul.f32 1.0, %v5916
      %v5918 = vrcp.pop %v5747
      %v5919 = vmul.f32 1.0, %v5918
      %v5920 = vrcp.pop %v5748
      %v5921 = vmul.f32 1.0, %v5920
      %v5922 = vrcp.pop %v5749
      %v5923 = vmul.f32 1.0, %v5922
      %v5924 = vrcp.pop %v5750
      %v5925 = vmul.f32 1.0, %v5924
      %v5926 = vrcp.pop %v5751
      %v5927 = vmul.f32 1.0, %v5926
      %v5928 = vrcp.pop %v5752
      %v5929 = vmul.f32 1.0, %v5928
      %v5930 = vrcp.pop %v5753
      %v5931 = vmul.f32 1.0, %v5930
      %v5932 = vrcp.pop %v5754
      %v5933 = vmul.f32 1.0, %v5932
      %v5934 = vrcp.pop %v5755
      %v5935 = vmul.f32 1.0, %v5934
      %v5936 = vrcp.pop %v5756
      %v5937 = vmul.f32 1.0, %v5936
      %v5938 = vrcp.pop %v5757
      %v5939 = vmul.f32 1.0, %v5938
      %v5940 = vrcp.pop %v5758
      %v5941 = vmul.f32 1.0, %v5940
      %v5942 = vrcp.pop %v5759
      %v5943 = vmul.f32 1.0, %v5942
      %v5944 = vrcp.pop %v5760
      %v5945 = vmul.f32 1.0, %v5944
      %v5946 = vrcp.pop %v5761
      %v5947 = vmul.f32 1.0, %v5946
      %v5948 = vrcp.pop %v5762
      %v5949 = vmul.f32 1.0, %v5948
      %v5950 = vrcp.pop %v5763
      %v5951 = vmul.f32 1.0, %v5950
      %v5952 = vrcp.pop %v5764
      %v5953 = vmul.f32 1.0, %v5952
      %v5954 = vrcp.pop %v5765
      %v5955 = vmul.f32 1.0, %v5954
      %v5956 = vrcp.pop %v5766
      %v5957 = vmul.f32 1.0, %v5956
      %v5958 = vrcp.pop %v5767
      %v5959 = vmul.f32 1.0, %v5958
      %v5960 = vrcp.pop %v5768
      %v5961 = vmul.f32 1.0, %v5960
      %v5962 = vrcp.pop %v5769
      %v5963 = vmul.f32 1.0, %v5962
      %v5964 = vrcp.pop %v5770
      %v5965 = vmul.f32 1.0, %v5964
      %v5966 = vrcp.pop %v5771
      %v5967 = vmul.f32 1.0, %v5966
      %v5968 = vrcp.pop %v5772
      %v5969 = vmul.f32 1.0, %v5968
      %v5970 = vrcp.pop %v5773
      %v5971 = vmul.f32 1.0, %v5970
      %v5972 = vrcp.pop %v5774
      %v5973 = vmul.f32 1.0, %v5972
      %v5974 = vrcp.pop %v5775
      %v5975 = vmul.f32 1.0, %v5974
      %v5976 = vrcp.pop %v5776
      %v5977 = vmul.f32 1.0, %v5976
      %v5978 = vrcp.pop %v5777
      %v5979 = vmul.f32 1.0, %v5978
      %v5980 = vrcp.pop %v5778
      %v5981 = vmul.f32 1.0, %v5980
      %v5982 = vrcp.pop %v5779
      %v5983 = vmul.f32 1.0, %v5982
      %v5984 = vrcp.pop %v5780
      %v5985 = vmul.f32 1.0, %v5984
      %v5986 = vrcp.pop %v5781
      %v5987 = vmul.f32 1.0, %v5986
      %v5988 = vrcp.pop %v5782
      %v5989 = vmul.f32 1.0, %v5988
      %v5990 = vrcp.pop %v5783
      %v5991 = vmul.f32 1.0, %v5990
      %v5992 = vrcp.pop %v5784
      %v5993 = vmul.f32 1.0, %v5992
      %v5994 = vrcp.pop %v5785
      %v5995 = vmul.f32 1.0, %v5994
      %v5996 = vrcp.pop %v5786
      %v5997 = vmul.f32 1.0, %v5996
      %v5998 = vrcp.pop %v5787
      %v5999 = vmul.f32 1.0, %v5998
      %v6000 = vrcp.pop %v5788
      %v6001 = vmul.f32 1.0, %v6000
      %v6002 = vrcp.pop %v5789
      %v6003 = vmul.f32 1.0, %v6002
      %v6004 = vrcp.pop %v5790
      %v6005 = vmul.f32 1.0, %v6004
      %v6006 = vrcp.pop %v5791
      %v6007 = vmul.f32 1.0, %v6006
      %v6008 = vrcp.pop %v5792
      %v6009 = vmul.f32 1.0, %v6008
      %v6010 = vrcp.pop %v5793
      %v6011 = vmul.f32 1.0, %v6010
      %v6012 = vrcp.pop %v5794
      %v6013 = vmul.f32 1.0, %v6012
      %v6014 = vrcp.pop %v5795
      %v6015 = vmul.f32 1.0, %v6014
      %v6016 = vrcp.pop %v5796
      %v6017 = vmul.f32 1.0, %v6016
      %v6018 = vrcp.pop %v5797
      %v6019 = vmul.f32 1.0, %v6018
      %v6020 = vrcp.pop %v5798
      %v6021 = vmul.f32 1.0, %v6020
      %v6022 = vrcp.pop %v5799
      %v6023 = vmul.f32 1.0, %v6022
      %v6024 = vrcp.pop %v5800
      %v6025 = vmul.f32 1.0, %v6024
      %v6026 = vrcp.pop %v5801
      %v6027 = vmul.f32 1.0, %v6026
      %v6028 = vrcp.pop %v5802
      %v6029 = vmul.f32 1.0, %v6028
      %v6030 = vrcp.pop %v5803
      %v6031 = vmul.f32 1.0, %v6030
      %v6032 = vrcp.pop %v5804
      %v6033 = vmul.f32 1.0, %v6032
      %v6034 = vrcp.pop %v5805
      %v6035 = vmul.f32 1.0, %v6034
      %v6036 = vrcp.pop %v5806
      %v6037 = vmul.f32 1.0, %v6036
      %v6038 = vrcp.pop %v5807
      %v6039 = vmul.f32 1.0, %v6038
      %v6040 = vrcp.pop %v5808
      %v6041 = vmul.f32 1.0, %v6040
      %v6042 = vrcp.pop %v5809
      %v6043 = vmul.f32 1.0, %v6042
      %v6044 = vrcp.pop %v5810
      %v6045 = vmul.f32 1.0, %v6044
      %v6046 = vrcp.pop %v5811
      %v6047 = vmul.f32 1.0, %v6046
      %v6048 = vrcp.pop %v5812
      %v6049 = vmul.f32 1.0, %v6048
      %v6050 = vrcp.pop %v5813
      %v6051 = vmul.f32 1.0, %v6050
      %v6052 = vrcp.pop %v5814
      %v6053 = vmul.f32 1.0, %v6052
      %v6054 = vrcp.pop %v5815
      %v6055 = vmul.f32 1.0, %v6054
      %v6056 = vrcp.pop %v5816
      %v6057 = vmul.f32 1.0, %v6056
      %v6058 = vrcp.pop %v5817
      %v6059 = vmul.f32 1.0, %v6058
      %v6060 = vrcp.pop %v5818
      %v6061 = vmul.f32 1.0, %v6060
      %v6062 = vrcp.pop %v5819
      %v6063 = vmul.f32 1.0, %v6062
      %v6064 = vrcp.pop %v5820
      %v6065 = vmul.f32 1.0, %v6064
      %v6066 = vrcp.pop %v5821
      %v6067 = vmul.f32 1.0, %v6066
      %v6068 = vrcp.pop %v5822
      %v6069 = vmul.f32 1.0, %v6068
      %v6070 = vrcp.pop %v5823
      %v6071 = vmul.f32 1.0, %v6070
      %v6072 = vrcp.pop %v5824
      %v6073 = vmul.f32 1.0, %v6072
      %v6074 = vrcp.pop %v5825
      %v6075 = vmul.f32 1.0, %v6074
      %v6076 = vrcp.pop %v5826
      %v6077 = vmul.f32 1.0, %v6076
      %v6078 = vrcp.pop %v5827
      %v6079 = vmul.f32 1.0, %v6078
      %v6080 = vrcp.pop %v5828
      %v6081 = vmul.f32 1.0, %v6080
      %v6082 = vrcp.pop %v5829
      %v6083 = vmul.f32 1.0, %v6082
      %v6084 = vrcp.pop %v5830
      %v6085 = vmul.f32 1.0, %v6084
      %v6086 = vrcp.pop %v5831
      %v6087 = vmul.f32 1.0, %v6086
      %v6088 = vmul.f32 %v5192, %v5833
      %v6089 = vmul.f32 %v5193, %v5835
      %v6090 = vmul.f32 %v5194, %v5837
      %v6091 = vmul.f32 %v5195, %v5839
      %v6092 = vmul.f32 %v5196, %v5841
      %v6093 = vmul.f32 %v5197, %v5843
      %v6094 = vmul.f32 %v5198, %v5845
      %v6095 = vmul.f32 %v5199, %v5847
      %v6096 = vmul.f32 %v5200, %v5849
      %v6097 = vmul.f32 %v5201, %v5851
      %v6098 = vmul.f32 %v5202, %v5853
      %v6099 = vmul.f32 %v5203, %v5855
      %v6100 = vmul.f32 %v5204, %v5857
      %v6101 = vmul.f32 %v5205, %v5859
      %v6102 = vmul.f32 %v5206, %v5861
      %v6103 = vmul.f32 %v5207, %v5863
      %v6104 = vmul.f32 %v5208, %v5865
      %v6105 = vmul.f32 %v5209, %v5867
      %v6106 = vmul.f32 %v5210, %v5869
      %v6107 = vmul.f32 %v5211, %v5871
      %v6108 = vmul.f32 %v5212, %v5873
      %v6109 = vmul.f32 %v5213, %v5875
      %v6110 = vmul.f32 %v5214, %v5877
      %v6111 = vmul.f32 %v5215, %v5879
      %v6112 = vmul.f32 %v5216, %v5881
      %v6113 = vmul.f32 %v5217, %v5883
      %v6114 = vmul.f32 %v5218, %v5885
      %v6115 = vmul.f32 %v5219, %v5887
      %v6116 = vmul.f32 %v5220, %v5889
      %v6117 = vmul.f32 %v5221, %v5891
      %v6118 = vmul.f32 %v5222, %v5893
      %v6119 = vmul.f32 %v5223, %v5895
      %v6120 = vmul.f32 %v5224, %v5897
      %v6121 = vmul.f32 %v5225, %v5899
      %v6122 = vmul.f32 %v5226, %v5901
      %v6123 = vmul.f32 %v5227, %v5903
      %v6124 = vmul.f32 %v5228, %v5905
      %v6125 = vmul.f32 %v5229, %v5907
      %v6126 = vmul.f32 %v5230, %v5909
      %v6127 = vmul.f32 %v5231, %v5911
      %v6128 = vmul.f32 %v5232, %v5913
      %v6129 = vmul.f32 %v5233, %v5915
      %v6130 = vmul.f32 %v5234, %v5917
      %v6131 = vmul.f32 %v5235, %v5919
      %v6132 = vmul.f32 %v5236, %v5921
      %v6133 = vmul.f32 %v5237, %v5923
      %v6134 = vmul.f32 %v5238, %v5925
      %v6135 = vmul.f32 %v5239, %v5927
      %v6136 = vmul.f32 %v5240, %v5929
      %v6137 = vmul.f32 %v5241, %v5931
      %v6138 = vmul.f32 %v5242, %v5933
      %v6139 = vmul.f32 %v5243, %v5935
      %v6140 = vmul.f32 %v5244, %v5937
      %v6141 = vmul.f32 %v5245, %v5939
      %v6142 = vmul.f32 %v5246, %v5941
      %v6143 = vmul.f32 %v5247, %v5943
      %v6144 = vmul.f32 %v5248, %v5945
      %v6145 = vmul.f32 %v5249, %v5947
      %v6146 = vmul.f32 %v5250, %v5949
      %v6147 = vmul.f32 %v5251, %v5951
      %v6148 = vmul.f32 %v5252, %v5953
      %v6149 = vmul.f32 %v5253, %v5955
      %v6150 = vmul.f32 %v5254, %v5957
      %v6151 = vmul.f32 %v5255, %v5959
      %v6152 = vmul.f32 %v5256, %v5961
      %v6153 = vmul.f32 %v5257, %v5963
      %v6154 = vmul.f32 %v5258, %v5965
      %v6155 = vmul.f32 %v5259, %v5967
      %v6156 = vmul.f32 %v5260, %v5969
      %v6157 = vmul.f32 %v5261, %v5971
      %v6158 = vmul.f32 %v5262, %v5973
      %v6159 = vmul.f32 %v5263, %v5975
      %v6160 = vmul.f32 %v5264, %v5977
      %v6161 = vmul.f32 %v5265, %v5979
      %v6162 = vmul.f32 %v5266, %v5981
      %v6163 = vmul.f32 %v5267, %v5983
      %v6164 = vmul.f32 %v5268, %v5985
      %v6165 = vmul.f32 %v5269, %v5987
      %v6166 = vmul.f32 %v5270, %v5989
      %v6167 = vmul.f32 %v5271, %v5991
      %v6168 = vmul.f32 %v5272, %v5993
      %v6169 = vmul.f32 %v5273, %v5995
      %v6170 = vmul.f32 %v5274, %v5997
      %v6171 = vmul.f32 %v5275, %v5999
      %v6172 = vmul.f32 %v5276, %v6001
      %v6173 = vmul.f32 %v5277, %v6003
      %v6174 = vmul.f32 %v5278, %v6005
      %v6175 = vmul.f32 %v5279, %v6007
      %v6176 = vmul.f32 %v5280, %v6009
      %v6177 = vmul.f32 %v5281, %v6011
      %v6178 = vmul.f32 %v5282, %v6013
      %v6179 = vmul.f32 %v5283, %v6015
      %v6180 = vmul.f32 %v5284, %v6017
      %v6181 = vmul.f32 %v5285, %v6019
      %v6182 = vmul.f32 %v5286, %v6021
      %v6183 = vmul.f32 %v5287, %v6023
      %v6184 = vmul.f32 %v5288, %v6025
      %v6185 = vmul.f32 %v5289, %v6027
      %v6186 = vmul.f32 %v5290, %v6029
      %v6187 = vmul.f32 %v5291, %v6031
      %v6188 = vmul.f32 %v5292, %v6033
      %v6189 = vmul.f32 %v5293, %v6035
      %v6190 = vmul.f32 %v5294, %v6037
      %v6191 = vmul.f32 %v5295, %v6039
      %v6192 = vmul.f32 %v5296, %v6041
      %v6193 = vmul.f32 %v5297, %v6043
      %v6194 = vmul.f32 %v5298, %v6045
      %v6195 = vmul.f32 %v5299, %v6047
      %v6196 = vmul.f32 %v5300, %v6049
      %v6197 = vmul.f32 %v5301, %v6051
      %v6198 = vmul.f32 %v5302, %v6053
      %v6199 = vmul.f32 %v5303, %v6055
      %v6200 = vmul.f32 %v5304, %v6057
      %v6201 = vmul.f32 %v5305, %v6059
      %v6202 = vmul.f32 %v5306, %v6061
      %v6203 = vmul.f32 %v5307, %v6063
      %v6204 = vmul.f32 %v5308, %v6065
      %v6205 = vmul.f32 %v5309, %v6067
      %v6206 = vmul.f32 %v5310, %v6069
      %v6207 = vmul.f32 %v5311, %v6071
      %v6208 = vmul.f32 %v5312, %v6073
      %v6209 = vmul.f32 %v5313, %v6075
      %v6210 = vmul.f32 %v5314, %v6077
      %v6211 = vmul.f32 %v5315, %v6079
      %v6212 = vmul.f32 %v5316, %v6081
      %v6213 = vmul.f32 %v5317, %v6083
      %v6214 = vmul.f32 %v5318, %v6085
      %v6215 = vmul.f32 %v5319, %v6087
      %v6216 = vpack.c.bf16 %v6089, %v6088
      %v6217 = vpack.c.bf16 %v6091, %v6090
      %v6218 = vpack.c.bf16 %v6093, %v6092
      %v6219 = vpack.c.bf16 %v6095, %v6094
      %v6220 = vpack.c.bf16 %v6097, %v6096
      %v6221 = vpack.c.bf16 %v6099, %v6098
      %v6222 = vpack.c.bf16 %v6101, %v6100
      %v6223 = vpack.c.bf16 %v6103, %v6102
      %v6224 = vpack.c.bf16 %v6105, %v6104
      %v6225 = vpack.c.bf16 %v6107, %v6106
      %v6226 = vpack.c.bf16 %v6109, %v6108
      %v6227 = vpack.c.bf16 %v6111, %v6110
      %v6228 = vpack.c.bf16 %v6113, %v6112
      %v6229 = vpack.c.bf16 %v6115, %v6114
      %v6230 = vpack.c.bf16 %v6117, %v6116
      %v6231 = vpack.c.bf16 %v6119, %v6118
      %v6232 = vpack.c.bf16 %v6121, %v6120
      %v6233 = vpack.c.bf16 %v6123, %v6122
      %v6234 = vpack.c.bf16 %v6125, %v6124
      %v6235 = vpack.c.bf16 %v6127, %v6126
      %v6236 = vpack.c.bf16 %v6129, %v6128
      %v6237 = vpack.c.bf16 %v6131, %v6130
      %v6238 = vpack.c.bf16 %v6133, %v6132
      %v6239 = vpack.c.bf16 %v6135, %v6134
      %v6240 = vpack.c.bf16 %v6137, %v6136
      %v6241 = vpack.c.bf16 %v6139, %v6138
      %v6242 = vpack.c.bf16 %v6141, %v6140
      %v6243 = vpack.c.bf16 %v6143, %v6142
      %v6244 = vpack.c.bf16 %v6145, %v6144
      %v6245 = vpack.c.bf16 %v6147, %v6146
      %v6246 = vpack.c.bf16 %v6149, %v6148
      %v6247 = vpack.c.bf16 %v6151, %v6150
      %v6248 = vpack.c.bf16 %v6153, %v6152
      %v6249 = vpack.c.bf16 %v6155, %v6154
      %v6250 = vpack.c.bf16 %v6157, %v6156
      %v6251 = vpack.c.bf16 %v6159, %v6158
      %v6252 = vpack.c.bf16 %v6161, %v6160
      %v6253 = vpack.c.bf16 %v6163, %v6162
      %v6254 = vpack.c.bf16 %v6165, %v6164
      %v6255 = vpack.c.bf16 %v6167, %v6166
      %v6256 = vpack.c.bf16 %v6169, %v6168
      %v6257 = vpack.c.bf16 %v6171, %v6170
      %v6258 = vpack.c.bf16 %v6173, %v6172
      %v6259 = vpack.c.bf16 %v6175, %v6174
      %v6260 = vpack.c.bf16 %v6177, %v6176
      %v6261 = vpack.c.bf16 %v6179, %v6178
      %v6262 = vpack.c.bf16 %v6181, %v6180
      %v6263 = vpack.c.bf16 %v6183, %v6182
      %v6264 = vpack.c.bf16 %v6185, %v6184
      %v6265 = vpack.c.bf16 %v6187, %v6186
      %v6266 = vpack.c.bf16 %v6189, %v6188
      %v6267 = vpack.c.bf16 %v6191, %v6190
      %v6268 = vpack.c.bf16 %v6193, %v6192
      %v6269 = vpack.c.bf16 %v6195, %v6194
      %v6270 = vpack.c.bf16 %v6197, %v6196
      %v6271 = vpack.c.bf16 %v6199, %v6198
      %v6272 = vpack.c.bf16 %v6201, %v6200
      %v6273 = vpack.c.bf16 %v6203, %v6202
      %v6274 = vpack.c.bf16 %v6205, %v6204
      %v6275 = vpack.c.bf16 %v6207, %v6206
      %v6276 = vpack.c.bf16 %v6209, %v6208
      %v6277 = vpack.c.bf16 %v6211, %v6210
      %v6278 = vpack.c.bf16 %v6213, %v6212
      %v6279 = vpack.c.bf16 %v6215, %v6214
      %v6344 = vunpack.c.l.b16 %v6216
      %v6345 = vunpack.c.h.b16 %v6216
      %v6346 = vunpack.c.l.b16 %v6217
      %v6347 = vunpack.c.h.b16 %v6217
      %v6348 = vunpack.c.l.b16 %v6218
      %v6349 = vunpack.c.h.b16 %v6218
      %v6350 = vunpack.c.l.b16 %v6219
      %v6351 = vunpack.c.h.b16 %v6219
      %v6352 = vunpack.c.l.b16 %v6220
      %v6353 = vunpack.c.h.b16 %v6220
      %v6354 = vunpack.c.l.b16 %v6221
      %v6355 = vunpack.c.h.b16 %v6221
      %v6356 = vunpack.c.l.b16 %v6222
      %v6357 = vunpack.c.h.b16 %v6222
      %v6358 = vunpack.c.l.b16 %v6223
      %v6359 = vunpack.c.h.b16 %v6223
      %v6360 = vunpack.c.l.b16 %v6224
      %v6361 = vunpack.c.h.b16 %v6224
      %v6362 = vunpack.c.l.b16 %v6225
      %v6363 = vunpack.c.h.b16 %v6225
      %v6364 = vunpack.c.l.b16 %v6226
      %v6365 = vunpack.c.h.b16 %v6226
      %v6366 = vunpack.c.l.b16 %v6227
      %v6367 = vunpack.c.h.b16 %v6227
      %v6368 = vunpack.c.l.b16 %v6228
      %v6369 = vunpack.c.h.b16 %v6228
      %v6370 = vunpack.c.l.b16 %v6229
      %v6371 = vunpack.c.h.b16 %v6229
      %v6372 = vunpack.c.l.b16 %v6230
      %v6373 = vunpack.c.h.b16 %v6230
      %v6374 = vunpack.c.l.b16 %v6231
      %v6375 = vunpack.c.h.b16 %v6231
      %v6376 = vunpack.c.l.b16 %v6232
      %v6377 = vunpack.c.h.b16 %v6232
      %v6378 = vunpack.c.l.b16 %v6233
      %v6379 = vunpack.c.h.b16 %v6233
      %v6380 = vunpack.c.l.b16 %v6234
      %v6381 = vunpack.c.h.b16 %v6234
      %v6382 = vunpack.c.l.b16 %v6235
      %v6383 = vunpack.c.h.b16 %v6235
      %v6384 = vunpack.c.l.b16 %v6236
      %v6385 = vunpack.c.h.b16 %v6236
      %v6386 = vunpack.c.l.b16 %v6237
      %v6387 = vunpack.c.h.b16 %v6237
      %v6388 = vunpack.c.l.b16 %v6238
      %v6389 = vunpack.c.h.b16 %v6238
      %v6390 = vunpack.c.l.b16 %v6239
      %v6391 = vunpack.c.h.b16 %v6239
      %v6392 = vunpack.c.l.b16 %v6240
      %v6393 = vunpack.c.h.b16 %v6240
      %v6394 = vunpack.c.l.b16 %v6241
      %v6395 = vunpack.c.h.b16 %v6241
      %v6396 = vunpack.c.l.b16 %v6242
      %v6397 = vunpack.c.h.b16 %v6242
      %v6398 = vunpack.c.l.b16 %v6243
      %v6399 = vunpack.c.h.b16 %v6243
      %v6400 = vunpack.c.l.b16 %v6244
      %v6401 = vunpack.c.h.b16 %v6244
      %v6402 = vunpack.c.l.b16 %v6245
      %v6403 = vunpack.c.h.b16 %v6245
      %v6404 = vunpack.c.l.b16 %v6246
      %v6405 = vunpack.c.h.b16 %v6246
      %v6406 = vunpack.c.l.b16 %v6247
      %v6407 = vunpack.c.h.b16 %v6247
      %v6408 = vunpack.c.l.b16 %v6248
      %v6409 = vunpack.c.h.b16 %v6248
      %v6410 = vunpack.c.l.b16 %v6249
      %v6411 = vunpack.c.h.b16 %v6249
      %v6412 = vunpack.c.l.b16 %v6250
      %v6413 = vunpack.c.h.b16 %v6250
      %v6414 = vunpack.c.l.b16 %v6251
      %v6415 = vunpack.c.h.b16 %v6251
      %v6416 = vunpack.c.l.b16 %v6252
      %v6417 = vunpack.c.h.b16 %v6252
      %v6418 = vunpack.c.l.b16 %v6253
      %v6419 = vunpack.c.h.b16 %v6253
      %v6420 = vunpack.c.l.b16 %v6254
      %v6421 = vunpack.c.h.b16 %v6254
      %v6422 = vunpack.c.l.b16 %v6255
      %v6423 = vunpack.c.h.b16 %v6255
      %v6424 = vunpack.c.l.b16 %v6256
      %v6425 = vunpack.c.h.b16 %v6256
      %v6426 = vunpack.c.l.b16 %v6257
      %v6427 = vunpack.c.h.b16 %v6257
      %v6428 = vunpack.c.l.b16 %v6258
      %v6429 = vunpack.c.h.b16 %v6258
      %v6430 = vunpack.c.l.b16 %v6259
      %v6431 = vunpack.c.h.b16 %v6259
      %v6432 = vunpack.c.l.b16 %v6260
      %v6433 = vunpack.c.h.b16 %v6260
      %v6434 = vunpack.c.l.b16 %v6261
      %v6435 = vunpack.c.h.b16 %v6261
      %v6436 = vunpack.c.l.b16 %v6262
      %v6437 = vunpack.c.h.b16 %v6262
      %v6438 = vunpack.c.l.b16 %v6263
      %v6439 = vunpack.c.h.b16 %v6263
      %v6440 = vunpack.c.l.b16 %v6264
      %v6441 = vunpack.c.h.b16 %v6264
      %v6442 = vunpack.c.l.b16 %v6265
      %v6443 = vunpack.c.h.b16 %v6265
      %v6444 = vunpack.c.l.b16 %v6266
      %v6445 = vunpack.c.h.b16 %v6266
      %v6446 = vunpack.c.l.b16 %v6267
      %v6447 = vunpack.c.h.b16 %v6267
      %v6448 = vunpack.c.l.b16 %v6268
      %v6449 = vunpack.c.h.b16 %v6268
      %v6450 = vunpack.c.l.b16 %v6269
      %v6451 = vunpack.c.h.b16 %v6269
      %v6452 = vunpack.c.l.b16 %v6270
      %v6453 = vunpack.c.h.b16 %v6270
      %v6454 = vunpack.c.l.b16 %v6271
      %v6455 = vunpack.c.h.b16 %v6271
      %v6456 = vunpack.c.l.b16 %v6272
      %v6457 = vunpack.c.h.b16 %v6272
      %v6458 = vunpack.c.l.b16 %v6273
      %v6459 = vunpack.c.h.b16 %v6273
      %v6460 = vunpack.c.l.b16 %v6274
      %v6461 = vunpack.c.h.b16 %v6274
      %v6462 = vunpack.c.l.b16 %v6275
      %v6463 = vunpack.c.h.b16 %v6275
      %v6464 = vunpack.c.l.b16 %v6276
      %v6465 = vunpack.c.h.b16 %v6276
      %v6466 = vunpack.c.l.b16 %v6277
      %v6467 = vunpack.c.h.b16 %v6277
      %v6468 = vunpack.c.l.b16 %v6278
      %v6469 = vunpack.c.h.b16 %v6278
      %v6470 = vunpack.c.l.b16 %v6279
      %v6471 = vunpack.c.h.b16 %v6279
      %v6472 = vpack.c.b16 %v6344, %v6344
      %v6473 = vpack.c.b16 %v6345, %v6345
      %v6474 = vpack.c.b16 %v6346, %v6346
      %v6475 = vpack.c.b16 %v6347, %v6347
      %v6476 = vpack.c.b16 %v6348, %v6348
      %v6477 = vpack.c.b16 %v6349, %v6349
      %v6478 = vpack.c.b16 %v6350, %v6350
      %v6479 = vpack.c.b16 %v6351, %v6351
      %v6480 = vpack.c.b16 %v6352, %v6352
      %v6481 = vpack.c.b16 %v6353, %v6353
      %v6482 = vpack.c.b16 %v6354, %v6354
      %v6483 = vpack.c.b16 %v6355, %v6355
      %v6484 = vpack.c.b16 %v6356, %v6356
      %v6485 = vpack.c.b16 %v6357, %v6357
      %v6486 = vpack.c.b16 %v6358, %v6358
      %v6487 = vpack.c.b16 %v6359, %v6359
      %v6488 = vpack.c.b16 %v6360, %v6360
      %v6489 = vpack.c.b16 %v6361, %v6361
      %v6490 = vpack.c.b16 %v6362, %v6362
      %v6491 = vpack.c.b16 %v6363, %v6363
      %v6492 = vpack.c.b16 %v6364, %v6364
      %v6493 = vpack.c.b16 %v6365, %v6365
      %v6494 = vpack.c.b16 %v6366, %v6366
      %v6495 = vpack.c.b16 %v6367, %v6367
      %v6496 = vpack.c.b16 %v6368, %v6368
      %v6497 = vpack.c.b16 %v6369, %v6369
      %v6498 = vpack.c.b16 %v6370, %v6370
      %v6499 = vpack.c.b16 %v6371, %v6371
      %v6500 = vpack.c.b16 %v6372, %v6372
      %v6501 = vpack.c.b16 %v6373, %v6373
      %v6502 = vpack.c.b16 %v6374, %v6374
      %v6503 = vpack.c.b16 %v6375, %v6375
      %v6504 = vpack.c.b16 %v6376, %v6376
      %v6505 = vpack.c.b16 %v6377, %v6377
      %v6506 = vpack.c.b16 %v6378, %v6378
      %v6507 = vpack.c.b16 %v6379, %v6379
      %v6508 = vpack.c.b16 %v6380, %v6380
      %v6509 = vpack.c.b16 %v6381, %v6381
      %v6510 = vpack.c.b16 %v6382, %v6382
      %v6511 = vpack.c.b16 %v6383, %v6383
      %v6512 = vpack.c.b16 %v6384, %v6384
      %v6513 = vpack.c.b16 %v6385, %v6385
      %v6514 = vpack.c.b16 %v6386, %v6386
      %v6515 = vpack.c.b16 %v6387, %v6387
      %v6516 = vpack.c.b16 %v6388, %v6388
      %v6517 = vpack.c.b16 %v6389, %v6389
      %v6518 = vpack.c.b16 %v6390, %v6390
      %v6519 = vpack.c.b16 %v6391, %v6391
      %v6520 = vpack.c.b16 %v6392, %v6392
      %v6521 = vpack.c.b16 %v6393, %v6393
      %v6522 = vpack.c.b16 %v6394, %v6394
      %v6523 = vpack.c.b16 %v6395, %v6395
      %v6524 = vpack.c.b16 %v6396, %v6396
      %v6525 = vpack.c.b16 %v6397, %v6397
      %v6526 = vpack.c.b16 %v6398, %v6398
      %v6527 = vpack.c.b16 %v6399, %v6399
      %v6528 = vpack.c.b16 %v6400, %v6400
      %v6529 = vpack.c.b16 %v6401, %v6401
      %v6530 = vpack.c.b16 %v6402, %v6402
      %v6531 = vpack.c.b16 %v6403, %v6403
      %v6532 = vpack.c.b16 %v6404, %v6404
      %v6533 = vpack.c.b16 %v6405, %v6405
      %v6534 = vpack.c.b16 %v6406, %v6406
      %v6535 = vpack.c.b16 %v6407, %v6407
      %v6536 = vpack.c.b16 %v6408, %v6408
      %v6537 = vpack.c.b16 %v6409, %v6409
      %v6538 = vpack.c.b16 %v6410, %v6410
      %v6539 = vpack.c.b16 %v6411, %v6411
      %v6540 = vpack.c.b16 %v6412, %v6412
      %v6541 = vpack.c.b16 %v6413, %v6413
      %v6542 = vpack.c.b16 %v6414, %v6414
      %v6543 = vpack.c.b16 %v6415, %v6415
      %v6544 = vpack.c.b16 %v6416, %v6416
      %v6545 = vpack.c.b16 %v6417, %v6417
      %v6546 = vpack.c.b16 %v6418, %v6418
      %v6547 = vpack.c.b16 %v6419, %v6419
      %v6548 = vpack.c.b16 %v6420, %v6420
      %v6549 = vpack.c.b16 %v6421, %v6421
      %v6550 = vpack.c.b16 %v6422, %v6422
      %v6551 = vpack.c.b16 %v6423, %v6423
      %v6552 = vpack.c.b16 %v6424, %v6424
      %v6553 = vpack.c.b16 %v6425, %v6425
      %v6554 = vpack.c.b16 %v6426, %v6426
      %v6555 = vpack.c.b16 %v6427, %v6427
      %v6556 = vpack.c.b16 %v6428, %v6428
      %v6557 = vpack.c.b16 %v6429, %v6429
      %v6558 = vpack.c.b16 %v6430, %v6430
      %v6559 = vpack.c.b16 %v6431, %v6431
      %v6560 = vpack.c.b16 %v6432, %v6432
      %v6561 = vpack.c.b16 %v6433, %v6433
      %v6562 = vpack.c.b16 %v6434, %v6434
      %v6563 = vpack.c.b16 %v6435, %v6435
      %v6564 = vpack.c.b16 %v6436, %v6436
      %v6565 = vpack.c.b16 %v6437, %v6437
      %v6566 = vpack.c.b16 %v6438, %v6438
      %v6567 = vpack.c.b16 %v6439, %v6439
      %v6568 = vpack.c.b16 %v6440, %v6440
      %v6569 = vpack.c.b16 %v6441, %v6441
      %v6570 = vpack.c.b16 %v6442, %v6442
      %v6571 = vpack.c.b16 %v6443, %v6443
      %v6572 = vpack.c.b16 %v6444, %v6444
      %v6573 = vpack.c.b16 %v6445, %v6445
      %v6574 = vpack.c.b16 %v6446, %v6446
      %v6575 = vpack.c.b16 %v6447, %v6447
      %v6576 = vpack.c.b16 %v6448, %v6448
      %v6577 = vpack.c.b16 %v6449, %v6449
      %v6578 = vpack.c.b16 %v6450, %v6450
      %v6579 = vpack.c.b16 %v6451, %v6451
      %v6580 = vpack.c.b16 %v6452, %v6452
      %v6581 = vpack.c.b16 %v6453, %v6453
      %v6582 = vpack.c.b16 %v6454, %v6454
      %v6583 = vpack.c.b16 %v6455, %v6455
      %v6584 = vpack.c.b16 %v6456, %v6456
      %v6585 = vpack.c.b16 %v6457, %v6457
      %v6586 = vpack.c.b16 %v6458, %v6458
      %v6587 = vpack.c.b16 %v6459, %v6459
      %v6588 = vpack.c.b16 %v6460, %v6460
      %v6589 = vpack.c.b16 %v6461, %v6461
      %v6590 = vpack.c.b16 %v6462, %v6462
      %v6591 = vpack.c.b16 %v6463, %v6463
      %v6592 = vpack.c.b16 %v6464, %v6464
      %v6593 = vpack.c.b16 %v6465, %v6465
      %v6594 = vpack.c.b16 %v6466, %v6466
      %v6595 = vpack.c.b16 %v6467, %v6467
      %v6596 = vpack.c.b16 %v6468, %v6468
      %v6597 = vpack.c.b16 %v6469, %v6469
      %v6598 = vpack.c.b16 %v6470, %v6470
      %v6599 = vpack.c.b16 %v6471, %v6471
      %vm6728 = vcmask 257024
      %6729 = vst.msk [vmem:[%s257] sm:$0xf] %vm6728, %v6472
      %6730 = vst.msk [vmem:[%s257 + $0x4] sm:$0xf] %vm6728, %v6473
      %6731 = vst.msk [vmem:[%s257 + $0x8] sm:$0xf] %vm6728, %v6474
      %6732 = vst.msk [vmem:[%s257 + $0xc] sm:$0xf] %vm6728, %v6475
      %6733 = vst.msk [vmem:[%s257 + $0x10] sm:$0xf] %vm6728, %v6476
      %6734 = vst.msk [vmem:[%s257 + $0x14] sm:$0xf] %vm6728, %v6477
      %6735 = vst.msk [vmem:[%s257 + $0x18] sm:$0xf] %vm6728, %v6478
      %6736 = vst.msk [vmem:[%s257 + $0x1c] sm:$0xf] %vm6728, %v6479
      %6737 = vst.msk [vmem:[%s257 + $0x20] sm:$0xf] %vm6728, %v6480
      %6738 = vst.msk [vmem:[%s257 + $0x24] sm:$0xf] %vm6728, %v6481
      %6739 = vst.msk [vmem:[%s257 + $0x28] sm:$0xf] %vm6728, %v6482
      %6740 = vst.msk [vmem:[%s257 + $0x2c] sm:$0xf] %vm6728, %v6483
      %6741 = vst.msk [vmem:[%s257 + $0x30] sm:$0xf] %vm6728, %v6484
      %6742 = vst.msk [vmem:[%s257 + $0x34] sm:$0xf] %vm6728, %v6485
      %6743 = vst.msk [vmem:[%s257 + $0x38] sm:$0xf] %vm6728, %v6486
      %6744 = vst.msk [vmem:[%s257 + $0x3c] sm:$0xf] %vm6728, %v6487
      %6745 = vst.msk [vmem:[%s257 + $0x40] sm:$0xf] %vm6728, %v6488
      %6746 = vst.msk [vmem:[%s257 + $0x44] sm:$0xf] %vm6728, %v6489
      %6747 = vst.msk [vmem:[%s257 + $0x48] sm:$0xf] %vm6728, %v6490
      %6748 = vst.msk [vmem:[%s257 + $0x4c] sm:$0xf] %vm6728, %v6491
      %6749 = vst.msk [vmem:[%s257 + $0x50] sm:$0xf] %vm6728, %v6492
      %6750 = vst.msk [vmem:[%s257 + $0x54] sm:$0xf] %vm6728, %v6493
      %6751 = vst.msk [vmem:[%s257 + $0x58] sm:$0xf] %vm6728, %v6494
      %6752 = vst.msk [vmem:[%s257 + $0x5c] sm:$0xf] %vm6728, %v6495
      %6753 = vst.msk [vmem:[%s257 + $0x60] sm:$0xf] %vm6728, %v6496
      %6754 = vst.msk [vmem:[%s257 + $0x64] sm:$0xf] %vm6728, %v6497
      %6755 = vst.msk [vmem:[%s257 + $0x68] sm:$0xf] %vm6728, %v6498
      %6756 = vst.msk [vmem:[%s257 + $0x6c] sm:$0xf] %vm6728, %v6499
      %6757 = vst.msk [vmem:[%s257 + $0x70] sm:$0xf] %vm6728, %v6500
      %6758 = vst.msk [vmem:[%s257 + $0x74] sm:$0xf] %vm6728, %v6501
      %6759 = vst.msk [vmem:[%s257 + $0x78] sm:$0xf] %vm6728, %v6502
      %6760 = vst.msk [vmem:[%s257 + $0x7c] sm:$0xf] %vm6728, %v6503
      %6761 = vst.msk [vmem:[%s257 + $0x80] sm:$0xf] %vm6728, %v6504
      %6762 = vst.msk [vmem:[%s257 + $0x84] sm:$0xf] %vm6728, %v6505
      %6763 = vst.msk [vmem:[%s257 + $0x88] sm:$0xf] %vm6728, %v6506
      %6764 = vst.msk [vmem:[%s257 + $0x8c] sm:$0xf] %vm6728, %v6507
      %6765 = vst.msk [vmem:[%s257 + $0x90] sm:$0xf] %vm6728, %v6508
      %6766 = vst.msk [vmem:[%s257 + $0x94] sm:$0xf] %vm6728, %v6509
      %6767 = vst.msk [vmem:[%s257 + $0x98] sm:$0xf] %vm6728, %v6510
      %6768 = vst.msk [vmem:[%s257 + $0x9c] sm:$0xf] %vm6728, %v6511
      %6769 = vst.msk [vmem:[%s257 + $0xa0] sm:$0xf] %vm6728, %v6512
      %6770 = vst.msk [vmem:[%s257 + $0xa4] sm:$0xf] %vm6728, %v6513
      %6771 = vst.msk [vmem:[%s257 + $0xa8] sm:$0xf] %vm6728, %v6514
      %6772 = vst.msk [vmem:[%s257 + $0xac] sm:$0xf] %vm6728, %v6515
      %6773 = vst.msk [vmem:[%s257 + $0xb0] sm:$0xf] %vm6728, %v6516
      %6774 = vst.msk [vmem:[%s257 + $0xb4] sm:$0xf] %vm6728, %v6517
      %6775 = vst.msk [vmem:[%s257 + $0xb8] sm:$0xf] %vm6728, %v6518
      %6776 = vst.msk [vmem:[%s257 + $0xbc] sm:$0xf] %vm6728, %v6519
      %6777 = vst.msk [vmem:[%s257 + $0xc0] sm:$0xf] %vm6728, %v6520
      %6778 = vst.msk [vmem:[%s257 + $0xc4] sm:$0xf] %vm6728, %v6521
      %6779 = vst.msk [vmem:[%s257 + $0xc8] sm:$0xf] %vm6728, %v6522
      %6780 = vst.msk [vmem:[%s257 + $0xcc] sm:$0xf] %vm6728, %v6523
      %6781 = vst.msk [vmem:[%s257 + $0xd0] sm:$0xf] %vm6728, %v6524
      %6782 = vst.msk [vmem:[%s257 + $0xd4] sm:$0xf] %vm6728, %v6525
      %6783 = vst.msk [vmem:[%s257 + $0xd8] sm:$0xf] %vm6728, %v6526
      %6784 = vst.msk [vmem:[%s257 + $0xdc] sm:$0xf] %vm6728, %v6527
      %6785 = vst.msk [vmem:[%s257 + $0xe0] sm:$0xf] %vm6728, %v6528
      %6786 = vst.msk [vmem:[%s257 + $0xe4] sm:$0xf] %vm6728, %v6529
      %6787 = vst.msk [vmem:[%s257 + $0xe8] sm:$0xf] %vm6728, %v6530
      %6788 = vst.msk [vmem:[%s257 + $0xec] sm:$0xf] %vm6728, %v6531
      %6789 = vst.msk [vmem:[%s257 + $0xf0] sm:$0xf] %vm6728, %v6532
      %6790 = vst.msk [vmem:[%s257 + $0xf4] sm:$0xf] %vm6728, %v6533
      %6791 = vst.msk [vmem:[%s257 + $0xf8] sm:$0xf] %vm6728, %v6534
      %6792 = vst.msk [vmem:[%s257 + $0xfc] sm:$0xf] %vm6728, %v6535
      %6793 = vst.msk [vmem:[%s257 + $0x100] sm:$0xf] %vm6728, %v6536
      %6794 = vst.msk [vmem:[%s257 + $0x104] sm:$0xf] %vm6728, %v6537
      %6795 = vst.msk [vmem:[%s257 + $0x108] sm:$0xf] %vm6728, %v6538
      %6796 = vst.msk [vmem:[%s257 + $0x10c] sm:$0xf] %vm6728, %v6539
      %6797 = vst.msk [vmem:[%s257 + $0x110] sm:$0xf] %vm6728, %v6540
      %6798 = vst.msk [vmem:[%s257 + $0x114] sm:$0xf] %vm6728, %v6541
      %6799 = vst.msk [vmem:[%s257 + $0x118] sm:$0xf] %vm6728, %v6542
      %6800 = vst.msk [vmem:[%s257 + $0x11c] sm:$0xf] %vm6728, %v6543
      %6801 = vst.msk [vmem:[%s257 + $0x120] sm:$0xf] %vm6728, %v6544
      %6802 = vst.msk [vmem:[%s257 + $0x124] sm:$0xf] %vm6728, %v6545
      %6803 = vst.msk [vmem:[%s257 + $0x128] sm:$0xf] %vm6728, %v6546
      %6804 = vst.msk [vmem:[%s257 + $0x12c] sm:$0xf] %vm6728, %v6547
      %6805 = vst.msk [vmem:[%s257 + $0x130] sm:$0xf] %vm6728, %v6548
      %6806 = vst.msk [vmem:[%s257 + $0x134] sm:$0xf] %vm6728, %v6549
      %6807 = vst.msk [vmem:[%s257 + $0x138] sm:$0xf] %vm6728, %v6550
      %6808 = vst.msk [vmem:[%s257 + $0x13c] sm:$0xf] %vm6728, %v6551
      %6809 = vst.msk [vmem:[%s257 + $0x140] sm:$0xf] %vm6728, %v6552
      %6810 = vst.msk [vmem:[%s257 + $0x144] sm:$0xf] %vm6728, %v6553
      %6811 = vst.msk [vmem:[%s257 + $0x148] sm:$0xf] %vm6728, %v6554
      %6812 = vst.msk [vmem:[%s257 + $0x14c] sm:$0xf] %vm6728, %v6555
      %6813 = vst.msk [vmem:[%s257 + $0x150] sm:$0xf] %vm6728, %v6556
      %6814 = vst.msk [vmem:[%s257 + $0x154] sm:$0xf] %vm6728, %v6557
      %6815 = vst.msk [vmem:[%s257 + $0x158] sm:$0xf] %vm6728, %v6558
      %6816 = vst.msk [vmem:[%s257 + $0x15c] sm:$0xf] %vm6728, %v6559
      %6817 = vst.msk [vmem:[%s257 + $0x160] sm:$0xf] %vm6728, %v6560
      %6818 = vst.msk [vmem:[%s257 + $0x164] sm:$0xf] %vm6728, %v6561
      %6819 = vst.msk [vmem:[%s257 + $0x168] sm:$0xf] %vm6728, %v6562
      %6820 = vst.msk [vmem:[%s257 + $0x16c] sm:$0xf] %vm6728, %v6563
      %6821 = vst.msk [vmem:[%s257 + $0x170] sm:$0xf] %vm6728, %v6564
      %6822 = vst.msk [vmem:[%s257 + $0x174] sm:$0xf] %vm6728, %v6565
      %6823 = vst.msk [vmem:[%s257 + $0x178] sm:$0xf] %vm6728, %v6566
      %6824 = vst.msk [vmem:[%s257 + $0x17c] sm:$0xf] %vm6728, %v6567
      %6825 = vst.msk [vmem:[%s257 + $0x180] sm:$0xf] %vm6728, %v6568
      %6826 = vst.msk [vmem:[%s257 + $0x184] sm:$0xf] %vm6728, %v6569
      %6827 = vst.msk [vmem:[%s257 + $0x188] sm:$0xf] %vm6728, %v6570
      %6828 = vst.msk [vmem:[%s257 + $0x18c] sm:$0xf] %vm6728, %v6571
      %6829 = vst.msk [vmem:[%s257 + $0x190] sm:$0xf] %vm6728, %v6572
      %6830 = vst.msk [vmem:[%s257 + $0x194] sm:$0xf] %vm6728, %v6573
      %6831 = vst.msk [vmem:[%s257 + $0x198] sm:$0xf] %vm6728, %v6574
      %6832 = vst.msk [vmem:[%s257 + $0x19c] sm:$0xf] %vm6728, %v6575
      %6833 = vst.msk [vmem:[%s257 + $0x1a0] sm:$0xf] %vm6728, %v6576
      %6834 = vst.msk [vmem:[%s257 + $0x1a4] sm:$0xf] %vm6728, %v6577
      %6835 = vst.msk [vmem:[%s257 + $0x1a8] sm:$0xf] %vm6728, %v6578
      %6836 = vst.msk [vmem:[%s257 + $0x1ac] sm:$0xf] %vm6728, %v6579
      %6837 = vst.msk [vmem:[%s257 + $0x1b0] sm:$0xf] %vm6728, %v6580
      %6838 = vst.msk [vmem:[%s257 + $0x1b4] sm:$0xf] %vm6728, %v6581
      %6839 = vst.msk [vmem:[%s257 + $0x1b8] sm:$0xf] %vm6728, %v6582
      %6840 = vst.msk [vmem:[%s257 + $0x1bc] sm:$0xf] %vm6728, %v6583
      %6841 = vst.msk [vmem:[%s257 + $0x1c0] sm:$0xf] %vm6728, %v6584
      %6842 = vst.msk [vmem:[%s257 + $0x1c4] sm:$0xf] %vm6728, %v6585
      %6843 = vst.msk [vmem:[%s257 + $0x1c8] sm:$0xf] %vm6728, %v6586
      %6844 = vst.msk [vmem:[%s257 + $0x1cc] sm:$0xf] %vm6728, %v6587
      %6845 = vst.msk [vmem:[%s257 + $0x1d0] sm:$0xf] %vm6728, %v6588
      %6846 = vst.msk [vmem:[%s257 + $0x1d4] sm:$0xf] %vm6728, %v6589
      %6847 = vst.msk [vmem:[%s257 + $0x1d8] sm:$0xf] %vm6728, %v6590
      %6848 = vst.msk [vmem:[%s257 + $0x1dc] sm:$0xf] %vm6728, %v6591
      %6849 = vst.msk [vmem:[%s257 + $0x1e0] sm:$0xf] %vm6728, %v6592
      %6850 = vst.msk [vmem:[%s257 + $0x1e4] sm:$0xf] %vm6728, %v6593
      %6851 = vst.msk [vmem:[%s257 + $0x1e8] sm:$0xf] %vm6728, %v6594
      %6852 = vst.msk [vmem:[%s257 + $0x1ec] sm:$0xf] %vm6728, %v6595
      %6853 = vst.msk [vmem:[%s257 + $0x1f0] sm:$0xf] %vm6728, %v6596
      %6854 = vst.msk [vmem:[%s257 + $0x1f4] sm:$0xf] %vm6728, %v6597
      %6855 = vst.msk [vmem:[%s257 + $0x1f8] sm:$0xf] %vm6728, %v6598
      %6856 = vst.msk [vmem:[%s257 + $0x1fc] sm:$0xf] %vm6728, %v6599
      %v6857 = vsel %vm262, %v6088, 0.0
      %v6858 = vsel %vm262, %v6089, 0.0
      %v6859 = vadd.f32 %v6857, %v6858
      %v6860 = vsel %vm262, %v6090, 0.0
      %v6861 = vadd.f32 %v6859, %v6860
      %v6862 = vsel %vm262, %v6091, 0.0
      %v6863 = vadd.f32 %v6861, %v6862
      %v6864 = vsel %vm262, %v6092, 0.0
      %v6865 = vadd.f32 %v6863, %v6864
      %v6866 = vsel %vm262, %v6093, 0.0
      %v6867 = vadd.f32 %v6865, %v6866
      %v6868 = vsel %vm262, %v6094, 0.0
      %v6869 = vadd.f32 %v6867, %v6868
      %v6870 = vsel %vm262, %v6095, 0.0
      %v6871 = vadd.f32 %v6869, %v6870
      %v6872 = vsel %vm262, %v6096, 0.0
      %v6873 = vadd.f32 %v6871, %v6872
      %v6874 = vsel %vm262, %v6097, 0.0
      %v6875 = vadd.f32 %v6873, %v6874
      %v6876 = vsel %vm262, %v6098, 0.0
      %v6877 = vadd.f32 %v6875, %v6876
      %v6878 = vsel %vm262, %v6099, 0.0
      %v6879 = vadd.f32 %v6877, %v6878
      %v6880 = vsel %vm262, %v6100, 0.0
      %v6881 = vadd.f32 %v6879, %v6880
      %v6882 = vsel %vm262, %v6101, 0.0
      %v6883 = vadd.f32 %v6881, %v6882
      %v6884 = vsel %vm262, %v6102, 0.0
      %v6885 = vadd.f32 %v6883, %v6884
      %v6886 = vsel %vm262, %v6103, 0.0
      %v6887 = vadd.f32 %v6885, %v6886
      %v6888 = vsel %vm262, %v6104, 0.0
      %v6889 = vadd.f32 %v6887, %v6888
      %v6890 = vsel %vm262, %v6105, 0.0
      %v6891 = vadd.f32 %v6889, %v6890
      %v6892 = vsel %vm262, %v6106, 0.0
      %v6893 = vadd.f32 %v6891, %v6892
      %v6894 = vsel %vm262, %v6107, 0.0
      %v6895 = vadd.f32 %v6893, %v6894
      %v6896 = vsel %vm262, %v6108, 0.0
      %v6897 = vadd.f32 %v6895, %v6896
      %v6898 = vsel %vm262, %v6109, 0.0
      %v6899 = vadd.f32 %v6897, %v6898
      %v6900 = vsel %vm262, %v6110, 0.0
      %v6901 = vadd.f32 %v6899, %v6900
      %v6902 = vsel %vm262, %v6111, 0.0
      %v6903 = vadd.f32 %v6901, %v6902
      %v6904 = vsel %vm262, %v6112, 0.0
      %v6905 = vadd.f32 %v6903, %v6904
      %v6906 = vsel %vm262, %v6113, 0.0
      %v6907 = vadd.f32 %v6905, %v6906
      %v6908 = vsel %vm262, %v6114, 0.0
      %v6909 = vadd.f32 %v6907, %v6908
      %v6910 = vsel %vm262, %v6115, 0.0
      %v6911 = vadd.f32 %v6909, %v6910
      %v6912 = vsel %vm262, %v6116, 0.0
      %v6913 = vadd.f32 %v6911, %v6912
      %v6914 = vsel %vm262, %v6117, 0.0
      %v6915 = vadd.f32 %v6913, %v6914
      %v6916 = vsel %vm262, %v6118, 0.0
      %v6917 = vadd.f32 %v6915, %v6916
      %v6918 = vsel %vm262, %v6119, 0.0
      %v6919 = vadd.f32 %v6917, %v6918
      %v6920 = vsel %vm262, %v6120, 0.0
      %v6921 = vadd.f32 %v6919, %v6920
      %v6922 = vsel %vm262, %v6121, 0.0
      %v6923 = vadd.f32 %v6921, %v6922
      %v6924 = vsel %vm262, %v6122, 0.0
      %v6925 = vadd.f32 %v6923, %v6924
      %v6926 = vsel %vm262, %v6123, 0.0
      %v6927 = vadd.f32 %v6925, %v6926
      %v6928 = vsel %vm262, %v6124, 0.0
      %v6929 = vadd.f32 %v6927, %v6928
      %v6930 = vsel %vm262, %v6125, 0.0
      %v6931 = vadd.f32 %v6929, %v6930
      %v6932 = vsel %vm262, %v6126, 0.0
      %v6933 = vadd.f32 %v6931, %v6932
      %v6934 = vsel %vm262, %v6127, 0.0
      %v6935 = vadd.f32 %v6933, %v6934
      %v6936 = vsel %vm262, %v6128, 0.0
      %v6937 = vadd.f32 %v6935, %v6936
      %v6938 = vsel %vm262, %v6129, 0.0
      %v6939 = vadd.f32 %v6937, %v6938
      %v6940 = vsel %vm262, %v6130, 0.0
      %v6941 = vadd.f32 %v6939, %v6940
      %v6942 = vsel %vm262, %v6131, 0.0
      %v6943 = vadd.f32 %v6941, %v6942
      %v6944 = vsel %vm262, %v6132, 0.0
      %v6945 = vadd.f32 %v6943, %v6944
      %v6946 = vsel %vm262, %v6133, 0.0
      %v6947 = vadd.f32 %v6945, %v6946
      %v6948 = vsel %vm262, %v6134, 0.0
      %v6949 = vadd.f32 %v6947, %v6948
      %v6950 = vsel %vm262, %v6135, 0.0
      %v6951 = vadd.f32 %v6949, %v6950
      %v6952 = vsel %vm262, %v6136, 0.0
      %v6953 = vadd.f32 %v6951, %v6952
      %v6954 = vsel %vm262, %v6137, 0.0
      %v6955 = vadd.f32 %v6953, %v6954
      %v6956 = vsel %vm262, %v6138, 0.0
      %v6957 = vadd.f32 %v6955, %v6956
      %v6958 = vsel %vm262, %v6139, 0.0
      %v6959 = vadd.f32 %v6957, %v6958
      %v6960 = vsel %vm262, %v6140, 0.0
      %v6961 = vadd.f32 %v6959, %v6960
      %v6962 = vsel %vm262, %v6141, 0.0
      %v6963 = vadd.f32 %v6961, %v6962
      %v6964 = vsel %vm262, %v6142, 0.0
      %v6965 = vadd.f32 %v6963, %v6964
      %v6966 = vsel %vm262, %v6143, 0.0
      %v6967 = vadd.f32 %v6965, %v6966
      %v6968 = vsel %vm262, %v6144, 0.0
      %v6969 = vadd.f32 %v6967, %v6968
      %v6970 = vsel %vm262, %v6145, 0.0
      %v6971 = vadd.f32 %v6969, %v6970
      %v6972 = vsel %vm262, %v6146, 0.0
      %v6973 = vadd.f32 %v6971, %v6972
      %v6974 = vsel %vm262, %v6147, 0.0
      %v6975 = vadd.f32 %v6973, %v6974
      %v6976 = vsel %vm262, %v6148, 0.0
      %v6977 = vadd.f32 %v6975, %v6976
      %v6978 = vsel %vm262, %v6149, 0.0
      %v6979 = vadd.f32 %v6977, %v6978
      %v6980 = vsel %vm262, %v6150, 0.0
      %v6981 = vadd.f32 %v6979, %v6980
      %v6982 = vsel %vm262, %v6151, 0.0
      %v6983 = vadd.f32 %v6981, %v6982
      %v6984 = vsel %vm262, %v6152, 0.0
      %v6985 = vadd.f32 %v6983, %v6984
      %v6986 = vsel %vm262, %v6153, 0.0
      %v6987 = vadd.f32 %v6985, %v6986
      %v6988 = vsel %vm262, %v6154, 0.0
      %v6989 = vadd.f32 %v6987, %v6988
      %v6990 = vsel %vm262, %v6155, 0.0
      %v6991 = vadd.f32 %v6989, %v6990
      %v6992 = vsel %vm262, %v6156, 0.0
      %v6993 = vadd.f32 %v6991, %v6992
      %v6994 = vsel %vm262, %v6157, 0.0
      %v6995 = vadd.f32 %v6993, %v6994
      %v6996 = vsel %vm262, %v6158, 0.0
      %v6997 = vadd.f32 %v6995, %v6996
      %v6998 = vsel %vm262, %v6159, 0.0
      %v6999 = vadd.f32 %v6997, %v6998
      %v7000 = vsel %vm262, %v6160, 0.0
      %v7001 = vadd.f32 %v6999, %v7000
      %v7002 = vsel %vm262, %v6161, 0.0
      %v7003 = vadd.f32 %v7001, %v7002
      %v7004 = vsel %vm262, %v6162, 0.0
      %v7005 = vadd.f32 %v7003, %v7004
      %v7006 = vsel %vm262, %v6163, 0.0
      %v7007 = vadd.f32 %v7005, %v7006
      %v7008 = vsel %vm262, %v6164, 0.0
      %v7009 = vadd.f32 %v7007, %v7008
      %v7010 = vsel %vm262, %v6165, 0.0
      %v7011 = vadd.f32 %v7009, %v7010
      %v7012 = vsel %vm262, %v6166, 0.0
      %v7013 = vadd.f32 %v7011, %v7012
      %v7014 = vsel %vm262, %v6167, 0.0
      %v7015 = vadd.f32 %v7013, %v7014
      %v7016 = vsel %vm262, %v6168, 0.0
      %v7017 = vadd.f32 %v7015, %v7016
      %v7018 = vsel %vm262, %v6169, 0.0
      %v7019 = vadd.f32 %v7017, %v7018
      %v7020 = vsel %vm262, %v6170, 0.0
      %v7021 = vadd.f32 %v7019, %v7020
      %v7022 = vsel %vm262, %v6171, 0.0
      %v7023 = vadd.f32 %v7021, %v7022
      %v7024 = vsel %vm262, %v6172, 0.0
      %v7025 = vadd.f32 %v7023, %v7024
      %v7026 = vsel %vm262, %v6173, 0.0
      %v7027 = vadd.f32 %v7025, %v7026
      %v7028 = vsel %vm262, %v6174, 0.0
      %v7029 = vadd.f32 %v7027, %v7028
      %v7030 = vsel %vm262, %v6175, 0.0
      %v7031 = vadd.f32 %v7029, %v7030
      %v7032 = vsel %vm262, %v6176, 0.0
      %v7033 = vadd.f32 %v7031, %v7032
      %v7034 = vsel %vm262, %v6177, 0.0
      %v7035 = vadd.f32 %v7033, %v7034
      %v7036 = vsel %vm262, %v6178, 0.0
      %v7037 = vadd.f32 %v7035, %v7036
      %v7038 = vsel %vm262, %v6179, 0.0
      %v7039 = vadd.f32 %v7037, %v7038
      %v7040 = vsel %vm262, %v6180, 0.0
      %v7041 = vadd.f32 %v7039, %v7040
      %v7042 = vsel %vm262, %v6181, 0.0
      %v7043 = vadd.f32 %v7041, %v7042
      %v7044 = vsel %vm262, %v6182, 0.0
      %v7045 = vadd.f32 %v7043, %v7044
      %v7046 = vsel %vm262, %v6183, 0.0
      %v7047 = vadd.f32 %v7045, %v7046
      %v7048 = vsel %vm262, %v6184, 0.0
      %v7049 = vadd.f32 %v7047, %v7048
      %v7050 = vsel %vm262, %v6185, 0.0
      %v7051 = vadd.f32 %v7049, %v7050
      %v7052 = vsel %vm262, %v6186, 0.0
      %v7053 = vadd.f32 %v7051, %v7052
      %v7054 = vsel %vm262, %v6187, 0.0
      %v7055 = vadd.f32 %v7053, %v7054
      %v7056 = vsel %vm262, %v6188, 0.0
      %v7057 = vadd.f32 %v7055, %v7056
      %v7058 = vsel %vm262, %v6189, 0.0
      %v7059 = vadd.f32 %v7057, %v7058
      %v7060 = vsel %vm262, %v6190, 0.0
      %v7061 = vadd.f32 %v7059, %v7060
      %v7062 = vsel %vm262, %v6191, 0.0
      %v7063 = vadd.f32 %v7061, %v7062
      %v7064 = vsel %vm262, %v6192, 0.0
      %v7065 = vadd.f32 %v7063, %v7064
      %v7066 = vsel %vm262, %v6193, 0.0
      %v7067 = vadd.f32 %v7065, %v7066
      %v7068 = vsel %vm262, %v6194, 0.0
      %v7069 = vadd.f32 %v7067, %v7068
      %v7070 = vsel %vm262, %v6195, 0.0
      %v7071 = vadd.f32 %v7069, %v7070
      %v7072 = vsel %vm262, %v6196, 0.0
      %v7073 = vadd.f32 %v7071, %v7072
      %v7074 = vsel %vm262, %v6197, 0.0
      %v7075 = vadd.f32 %v7073, %v7074
      %v7076 = vsel %vm262, %v6198, 0.0
      %v7077 = vadd.f32 %v7075, %v7076
      %v7078 = vsel %vm262, %v6199, 0.0
      %v7079 = vadd.f32 %v7077, %v7078
      %v7080 = vsel %vm262, %v6200, 0.0
      %v7081 = vadd.f32 %v7079, %v7080
      %v7082 = vsel %vm262, %v6201, 0.0
      %v7083 = vadd.f32 %v7081, %v7082
      %v7084 = vsel %vm262, %v6202, 0.0
      %v7085 = vadd.f32 %v7083, %v7084
      %v7086 = vsel %vm262, %v6203, 0.0
      %v7087 = vadd.f32 %v7085, %v7086
      %v7088 = vsel %vm262, %v6204, 0.0
      %v7089 = vadd.f32 %v7087, %v7088
      %v7090 = vsel %vm262, %v6205, 0.0
      %v7091 = vadd.f32 %v7089, %v7090
      %v7092 = vsel %vm262, %v6206, 0.0
      %v7093 = vadd.f32 %v7091, %v7092
      %v7094 = vsel %vm262, %v6207, 0.0
      %v7095 = vadd.f32 %v7093, %v7094
      %v7096 = vsel %vm262, %v6208, 0.0
      %v7097 = vadd.f32 %v7095, %v7096
      %v7098 = vsel %vm262, %v6209, 0.0
      %v7099 = vadd.f32 %v7097, %v7098
      %v7100 = vsel %vm262, %v6210, 0.0
      %v7101 = vadd.f32 %v7099, %v7100
      %v7102 = vsel %vm262, %v6211, 0.0
      %v7103 = vadd.f32 %v7101, %v7102
      %v7104 = vsel %vm262, %v6212, 0.0
      %v7105 = vadd.f32 %v7103, %v7104
      %v7106 = vsel %vm262, %v6213, 0.0
      %v7107 = vadd.f32 %v7105, %v7106
      %v7108 = vsel %vm262, %v6214, 0.0
      %v7109 = vadd.f32 %v7107, %v7108
      %v7110 = vsel %vm262, %v6215, 0.0
      %v7111 = vadd.f32 %v7109, %v7110
      %v7112 = vrot.slane %v7111, 4
      %v7113 = vadd.f32 %v7111, %v7112
      %v7114 = vrot.slane %v7113, 2
      %v7115 = vadd.f32 %v7113, %v7114
      %v7116 = vrot.slane %v7115, 1
      %v7117 = vadd.f32 %v7115, %v7116
      %v7118 = vrcp.pop 1024.0
      %v7119 = vmul.f32 %v7117, %v7118
      %vm7120 = vcmask 253952
      %7121 = vst.msk [vmem:[%s260] sm:$0x1] %vm7120, %v7119
      %p7122 = scmp.lt.s32.totalorder %s18, 1
      %s7123 = scalar_select %p7122, %s18, 1
      %s7124 = smul.addr %s7123, 128
      %s7125 = smul.addr %s7124, 4
      %s7126 = scalar_lea.vmem %s5, %s7125
      %p7127 = scmp.lt.s32.totalorder %s18, 1
      %s7128 = scalar_select %p7127, %s18, 1
      %s7129 = scalar_lea.vmem %s6, %s7128
      // Predicated region
      $region41: #{mbconv_forward.2} parent=39 // pred_check
        %p7130 = pneg %p146
      $region42: #{mbconv_forward.2} parent=39 // pred_check_branch
        %7132 = sbr.rel (%p7130) target = $region44
      $region43: #{mbconv_forward.2} parent=39 // pred_region
        _
      $region44: #{mbconv_forward.2} parent=39 // pred_fallthru
        _
      // Predicated region
      $region45: #{mbconv_forward.2} parent=39 // pred_check
        %p7133 = pneg %p172
      $region46: #{mbconv_forward.2} parent=39 // pred_check_branch
        %7135 = sbr.rel (%p7133) target = $region48
      $region47: #{mbconv_forward.2} parent=39 // pred_region
        _
      $region48: #{mbconv_forward.2} parent=39 // pred_fallthru
        _
    $region40: #{mbconv_forward.2} parent=5 // pred_fallthru
      _
    %p7136 = scmp.le.s32.totalorder 2, %s13
    // Predicated region
    $region49: #{mbconv_forward.2} parent=5 // pred_check
      %p7137 = pneg %p7136
    $region50: #{mbconv_forward.2} parent=5 // pred_check_branch
      %7139 = sbr.rel (%p7137) target = $region52
    $region51: #{mbconv_forward.2} parent=5 // pred_region
      %s7140 = ssub.s32 %s13, 2
      // Predicated region
      $region53: #{mbconv_forward.2} parent=51 // pred_check
        %p7141 = pneg %p152
      $region54: #{mbconv_forward.2} parent=51 // pred_check_branch
        %7143 = sbr.rel (%p7141) target = $region56
      $region55: #{mbconv_forward.2} parent=51 // pred_region
        %p7144 = scmp.lt.s32.totalorder %s19, 1
        %s7145 = scalar_select %p7144, %s19, 1
        %s7146 = smul.addr %s7145, 128
        %s7147 = smul.addr %s7146, 4
        %s7148 = scalar_lea.vmem %s5, %s7147
      $region56: #{mbconv_forward.2} parent=51 // pred_fallthru
        _
      // Predicated region
      $region57: #{mbconv_forward.2} parent=51 // pred_check
        %p7149 = pneg %p178
      $region58: #{mbconv_forward.2} parent=51 // pred_check_branch
        %7151 = sbr.rel (%p7149) target = $region60
      $region59: #{mbconv_forward.2} parent=51 // pred_region
        %p7152 = scmp.lt.s32.totalorder %s19, 1
        %s7153 = scalar_select %p7152, %s19, 1
        %s7154 = scalar_lea.vmem %s6, %s7153
      $region60: #{mbconv_forward.2} parent=51 // pred_fallthru
        _
    $region52: #{mbconv_forward.2} parent=5 // pred_fallthru
      _
  $region6: #{mbconv_forward.2} parent=0 // loop_footer
    %s17 = sadd.s32 1, %s13
  $region7: #{mbconv_forward.2} parent=0 // loop_footer_branch
    %12 = sbr.rel target = $region3
  $region8: #{mbconv_forward.2} parent=0 // loop_exit
    _

</llo_original>
